<compile_context>
chip_gen: v7x
topology: tpu7x:2x2x1
jax: 0.10.0
libtpu: 0.0.40
codegen_flags: <defaults>
</compile_context>

<pallas_src>
import math
from functools import partial

import jax
import jax.numpy as jnp
from jax.experimental import pallas as pl
from jax.experimental.pallas import tpu as pltpu

INV_SQRT2 = 1.0 / math.sqrt(2.0)
LEAKY_SLOPE = 0.2


# ---------------------------------------------------------------------------
# Fused conv kernel: KHxKW stride-1 conv over a pre-padded NHWC window,
#   y = act( sum_{dy,dx} x[dy:dy+OH, dx:dx+OW, :] @ w[dy, dx] + b )
# optional fused epilogue stages (all on the VPU / a small MXU matmul):
#   * LeakyReLU(0.2)
#   * depthwise [1,2,1]x[1,2,1]/16 blur with reflect padding
#   * 1x1 residual conv + bias and the combine  y = (y + res) / sqrt(2)
# Grid: (batch, Cout tiles, Cin tiles); Cin is the reduction axis ("arbitrary").
# ---------------------------------------------------------------------------
def _conv_kernel(*refs, kh, kw, oh, ow, act_slope, fuse_blur, res_cin):
    n_in = 3 + (3 if res_cin is not None else 0)
    if res_cin is not None:
        x_ref, w_ref, b_ref, xres_ref, wres_ref, bres_ref = refs[:6]
    else:
        x_ref, w_ref, b_ref = refs[:3]
        xres_ref = wres_ref = bres_ref = None
    o_ref = refs[n_in]
    acc_ref = refs[n_in + 1]
    blur_ref = refs[n_in + 2] if fuse_blur else None

    k = pl.program_id(2)

    @pl.when(k == 0)
    def _():
        acc_ref[...] = jnp.zeros_like(acc_ref)

    x = x_ref[0]                        # (OH+KH-1, OW+KW-1, tk)
    w = w_ref[...]                      # (KH, KW, tk, tn)
    tk = x.shape[-1]

    acc = acc_ref[...]
    for dy in range(kh):
        for dx in range(kw):
            win = x[dy:dy + oh, dx:dx + ow, :]      # static shifted window
            wmat = w[dy, dx]                        # (tk, tn)
            if tk == 1:
                # K == 1: outer product on the VPU (MXU would be ~1% utilized),
                # and it stays exact f32.
                acc = acc + win.reshape(oh * ow, 1) * wmat
            else:
                acc = acc + jnp.dot(
                    win.reshape(oh * ow, tk).astype(jnp.bfloat16),
                    wmat.astype(jnp.bfloat16),
                    preferred_element_type=jnp.float32)
    acc_ref[...] = acc

    @pl.when(k == pl.num_programs(2) - 1)
    def _():
        tn = acc_ref.shape[-1]
        y = acc_ref[...] + b_ref[...]                       # (OH*OW, tn)
        if act_slope is not None:
            y = jnp.where(y > 0, y, act_slope * y)          # LeakyReLU(0.2)
        y = y.reshape(oh, ow, tn)

        if fuse_blur:
            # reflect-pad by 1 into a VMEM scratch (static ref stores), then
            # 9-term depthwise [1,2,1]x[1,2,1]/16 shifted-window sum (VPU).
            blur_ref[1:oh + 1, 1:ow + 1, :] = y
            blur_ref[0:1, 1:ow + 1, :] = y[1:2]
            blur_ref[oh + 1:oh + 2, 1:ow + 1, :] = y[oh - 2:oh - 1]
            blur_ref[:, 0:1, :] = blur_ref[:, 2:3, :]
            blur_ref[:, ow + 1:ow + 2, :] = blur_ref[:, ow - 1:ow, :]
            xp = blur_ref[...]
            f = (1.0, 2.0, 1.0)
            yb = jnp.zeros((oh, ow, tn), jnp.float32)
            for dy in range(3):
                for dx in range(3):
                    yb = yb + (f[dy] * f[dx] / 16.0) * xp[dy:dy + oh,
                                                          dx:dx + ow, :]
            y = yb

        if res_cin is not None:
            # fused 1x1 residual conv + bias, then (y + res) / sqrt(2)
            xr = xres_ref[0].reshape(oh * ow, res_cin)
            wr = wres_ref[0, 0]                             # (res_cin, tn)
            if res_cin == 1:
                r = xr * wr                                 # VPU outer product
            else:
                r = jnp.dot(xr.astype(jnp.bfloat16), wr.astype(jnp.bfloat16),
                            preferred_element_type=jnp.float32)
            r = r + bres_ref[...]
            y = (y.reshape(oh * ow, tn) + r) * INV_SQRT2
            y = y.reshape(oh, ow, tn)

        # TODO(synk): output last dim = Cout < 128 lanes at toy sizes -> masked
        # stores; a lane-dense (OW*Cout) output view would need an in-kernel
        # relayout, skipped for lowering safety.
        o_ref[...] = y.reshape(1, oh, ow, tn).astype(o_ref.dtype)


def conv_pallas(x_win, w, b, *, act_slope=None, fuse_blur=False, res=None):
    """KHxKW stride-1 conv + bias over a pre-padded NHWC window.

    x_win : (B, OH+KH-1, OW+KW-1, Cin) f32
    w     : (KH, KW, Cin, Cout) f32
    b     : (Cout,) f32
    fuse_blur : fuse the reflect-pad [1,2,1]^2/16 blur into the epilogue.
    res   : optional (xres, wres, bres) -> fused 1x1 residual conv and
            (y + res) / sqrt(2) combine in the epilogue.
            xres: (B, OH, OW, Cres), wres: (1,1,Cres,Cout), bres: (Cout,)
    """
    bsz, hin, wiw, cin = x_win.shape
    kh, kw, _, cout = w.shape
    oh, ow = hin - kh + 1, wiw - kw + 1

    # Channel tiling (single tile at toy sizes; MXU-native 256-multiples for
    # production channel counts).  Spatial tiling is a further TODO for very
    # large spectrograms / v7x's 64 MiB VMEM.
    tn = cout if cout <= 256 else 256
    tk = cin if cin <= 256 else 256
    assert cout % tn == 0 and cin % tk == 0
    grid = (bsz, cout // tn, cin // tk)

    in_specs = [
        pl.BlockSpec((1, hin, wiw, tk), lambda i, j, k: (i, 0, 0, k)),
        pl.BlockSpec((kh, kw, tk, tn), lambda i, j, k: (0, 0, k, j)),
        pl.BlockSpec((1, tn), lambda i, j, k: (0, j)),
    ]
    args = [x_win, w, b.reshape(1, cout)]

    res_cin = None
    if res is not None:
        xres, wres, bres = res
        res_cin = xres.shape[-1]
        assert xres.shape == (bsz, oh, ow, res_cin)
        assert wres.shape == (1, 1, res_cin, cout)
        # TODO(synk): residual Cin handled as a single tile in the epilogue;
        # would need its own reduction tiling for very large channel counts.
        in_specs += [
            pl.BlockSpec((1, oh, ow, res_cin), lambda i, j, k: (i, 0, 0, 0)),
            pl.BlockSpec((1, 1, res_cin, tn), lambda i, j, k: (0, 0, 0, j)),
            pl.BlockSpec((1, tn), lambda i, j, k: (0, j)),
        ]
        args += [xres, wres, bres.reshape(1, cout)]

    if fuse_blur:
        assert oh >= 2 and ow >= 2, "reflect pad needs spatial dims >= 2"

    scratch = [pltpu.VMEM((oh * ow, tn), jnp.float32)]
    if fuse_blur:
        scratch.append(pltpu.VMEM((oh + 2, ow + 2, tn), jnp.float32))

    flops = 2 * bsz * oh * ow * (kh * kw * cin * cout
                                 + (res_cin or 0) * cout
                                 + (9 * cout if fuse_blur else 0))
    extra_bytes = sum(a.size for a in args[3:]) if res is not None else 0
    bytes_accessed = 4 * (x_win.size * (cout // tn) + w.size + cout
                          + bsz * oh * ow * cout + extra_bytes)

    return pl.pallas_call(
        partial(_conv_kernel, kh=kh, kw=kw, oh=oh, ow=ow,
                act_slope=act_slope, fuse_blur=fuse_blur, res_cin=res_cin),
        out_shape=jax.ShapeDtypeStruct((bsz, oh, ow, cout), jnp.float32),
        grid=grid,
        in_specs=in_specs,
        out_specs=pl.BlockSpec((1, oh, ow, tn), lambda i, j, k: (i, 0, 0, j)),
        scratch_shapes=scratch,
        compiler_params=pltpu.CompilerParams(
            dimension_semantics=("parallel", "parallel", "arbitrary")),
        cost_estimate=pl.CostEstimate(flops=int(flops), transcendentals=0,
                                      bytes_accessed=int(bytes_accessed)),
    )(*args)


# ---------------------------------------------------------------------------
# stride-2 helpers: recast a 3x3 stride-2 pad-1 conv as a 2x2 stride-1 conv
# over a space-to-depth view (all kernel-side accesses stay unit stride and the
# input becomes lane-dense with 4*C channels).
# ---------------------------------------------------------------------------
def _space_to_depth_pad1(x):
    """zero-pad by 1 and fold 2x2 spatial parity into channels:
    out[b, i, j, (ry*2+rx)*C + c] == pad(x)[b, 2i+ry, 2j+rx, c]."""
    b, h, w, c = x.shape
    assert h % 2 == 0 and w % 2 == 0, "stride-2 path assumes even spatial dims"
    xp = jnp.pad(x, ((0, 0), (1, 1), (1, 1), (0, 0)))
    hs, ws = (h + 2) // 2, (w + 2) // 2
    return (xp.reshape(b, hs, 2, ws, 2, c)
              .transpose(0, 1, 3, 2, 4, 5)
              .reshape(b, hs, ws, 4 * c))


def _fold_stride2_weights(w):
    """(3,3,C,Cout) stride-2 weights -> (2,2,4C,Cout) stride-1 weights over the
    space-to-depth view produced by _space_to_depth_pad1."""
    _, _, c, cout = w.shape
    w2 = jnp.zeros((2, 2, 4 * c, cout), w.dtype)
    for dy in range(3):
        for dx in range(3):
            off = ((dy % 2) * 2 + (dx % 2)) * c
            w2 = w2.at[dy // 2, dx // 2, off:off + c, :].set(w[dy, dx])
    return w2


# ---------------------------------------------------------------------------
# DiscriminatorBlock forward
# ---------------------------------------------------------------------------
def discriminator_block(x, p, downsample):
    """x: NHWC f32.  Mirrors DiscriminatorBlock.forward."""
    # residual path input (the 1x1 conv itself is fused into the last conv);
    # stride-2 is a cheap wrapper-side subsample.
    xres = x[:, ::2, ::2, :] if downsample else x
    res_args = (xres, p["conv_res_w"], p["conv_res_b"])

    # main path: Conv3x3 + LeakyReLU
    h = conv_pallas(jnp.pad(x, ((0, 0), (1, 1), (1, 1), (0, 0))),
                    p["conv1_w"], p["conv1_b"], act_slope=LEAKY_SLOPE)
    hp = jnp.pad(h, ((0, 0), (1, 1), (1, 1), (0, 0)))
    if downsample:
        # Conv3x3 + LeakyReLU + Blur fused into one kernel.
        h = conv_pallas(hp, p["conv2_w"], p["conv2_b"],
                        act_slope=LEAKY_SLOPE, fuse_blur=True)
        # Conv3x3 stride 2 as a stride-1 2x2 conv over the space-to-depth view;
        # 1x1 residual conv + (x+res)/sqrt(2) fused into its epilogue.
        # TODO(synk): the space-to-depth relayout itself is a wrapper-side XLA
        # pass (one extra read+write of the blurred map).
        out = conv_pallas(_space_to_depth_pad1(h),
                          _fold_stride2_weights(p["down_w"]), p["down_b"],
                          res=res_args)
    else:
        # Conv3x3 + LeakyReLU + fused residual conv + (x+res)/sqrt(2).
        out = conv_pallas(hp, p["conv2_w"], p["conv2_b"],
                          act_slope=LEAKY_SLOPE, res=res_args)
    return out


def discriminator_block_nchw(x_nchw, p, downsample):
    x = jnp.transpose(x_nchw, (0, 2, 3, 1)).astype(jnp.float32)
    y = discriminator_block(x, p, downsample)
    return jnp.transpose(y, (0, 3, 1, 2))


# ---------------------------------------------------------------------------
# pure-JAX reference (lax.conv) for a correctness sanity check
# ---------------------------------------------------------------------------
def _conv_ref(x, w, b, stride=1, pad=0):
    y = jax.lax.conv_general_dilated(
        x, w, (stride, stride), [(pad, pad), (pad, pad)],
        dimension_numbers=("NHWC", "HWIO", "NHWC"))
    return y + b


def _blur_ref(x):
    c = x.shape[-1]
    f = jnp.array([1.0, 2.0, 1.0], jnp.float32)
    k = (f[:, None] * f[None, :]) / 16.0
    w = jnp.broadcast_to(k[:, :, None, None], (3, 3, 1, c))
    xp = jnp.pad(x, ((0, 0), (1, 1), (1, 1), (0, 0)), mode="reflect")
    return jax.lax.conv_general_dilated(
        xp, w, (1, 1), "VALID",
        dimension_numbers=("NHWC", "HWIO", "NHWC"), feature_group_count=c)


def _block_ref(x, p, downsample):
    res = _conv_ref(x, p["conv_res_w"], p["conv_res_b"],
                    stride=2 if downsample else 1, pad=0)
    h = _conv_ref(x, p["conv1_w"], p["conv1_b"], pad=1)
    h = jnp.where(h > 0, h, LEAKY_SLOPE * h)
    h = _conv_ref(h, p["conv2_w"], p["conv2_b"], pad=1)
    h = jnp.where(h > 0, h, LEAKY_SLOPE * h)
    if downsample:
        h = _blur_ref(h)
        h = _conv_ref(h, p["down_w"], p["down_b"], stride=2, pad=1)
    return (h + res) * INV_SQRT2


# ---------------------------------------------------------------------------
# Deterministic parameter init
# ---------------------------------------------------------------------------
def _kaiming(key, shape, fan_in):
    return math.sqrt(2.0 / fan_in) * jax.random.normal(key, shape, jnp.float32)


def _bias_init(key, shape, fan_in):
    bound = 1.0 / math.sqrt(fan_in)
    return jax.random.uniform(key, shape, jnp.float32, -bound, bound)


def init_block_params(key, cin, cout, downsample):
    ks = jax.random.split(key, 8)
    p = {
        "conv_res_w": _kaiming(ks[0], (1, 1, cin, cout), cin),
        "conv_res_b": _bias_init(ks[1], (cout,), cin),
        "conv1_w": _kaiming(ks[2], (3, 3, cin, cout), 9 * cin),
        "conv1_b": _bias_init(ks[3], (cout,), 9 * cin),
        "conv2_w": _kaiming(ks[4], (3, 3, cout, cout), 9 * cout),
        "conv2_b": _bias_init(ks[5], (cout,), 9 * cout),
    }
    if downsample:
        p["down_w"] = _kaiming(ks[6], (3, 3, cout, cout), 9 * cout)
        p["down_b"] = _bias_init(ks[7], (cout,), 9 * cout)
    return p


# ---------------------------------------------------------------------------
if __name__ == "__main__":
    B, CIN, H, W = 2, 1, 8, 16          # NCHW: (batch, channels, n_bands, time)
    FILTERS = 32

    key = jax.random.PRNGKey(0)
    kp1, kp2, kx = jax.random.split(key, 3)
    p1 = init_block_params(kp1, CIN, FILTERS, downsample=True)       # 1 -> 32, /2
    p2 = init_block_params(kp2, FILTERS, FILTERS, downsample=False)  # 32 -> 32
    x = jax.random.normal(kx, (B, CIN, H, W), jnp.float32)           # NCHW

    @jax.jit
    def forward(x_nchw):
        h = jnp.transpose(x_nchw, (0, 2, 3, 1)).astype(jnp.float32)
        h = discriminator_block(h, p1, downsample=True)
        h = discriminator_block(h, p2, downsample=False)
        return jnp.transpose(h, (0, 3, 1, 2))

    out = forward(x)
    jax.block_until_ready(out)
    assert out.shape == (B, FILTERS, H // 2, W // 2)
    assert out.dtype == jnp.float32

    def forward_ref(x_nchw):
        h = jnp.transpose(x_nchw, (0, 2, 3, 1)).astype(jnp.float32)
        h = _block_ref(h, p1, True)
        h = _block_ref(h, p2, False)
        return jnp.transpose(h, (0, 3, 1, 2))

    ref = forward_ref(x)
    err = float(jnp.max(jnp.abs(out - ref)))
    tol = 5e-2 * (1.0 + float(jnp.max(jnp.abs(ref))))   # bf16 MXU operands
    assert err <= tol, f"mismatch vs reference: max|diff|={err:.4f} tol={tol:.4f}"
    print("KERNEL_OK")
</pallas_src>

<mosaic_0001>
module attributes {stable_mosaic.version = 11 : i64} {
  func.func @_conv_kernel(%arg0: i32, %arg1: i32, %arg2: i32, %arg3: memref<1x10x18x1xf32, #tpu.memory_space<vmem>>, %arg4: memref<3x3x1x32xf32, #tpu.memory_space<vmem>>, %arg5: memref<1x32xf32, #tpu.memory_space<vmem>>, %arg6: memref<1x8x16x32xf32, #tpu.memory_space<vmem>>, %arg7: memref<128x32xf32, #tpu.memory_space<vmem>>) attributes {dimension_semantics = [#tpu.dimension_semantics<parallel>, #tpu.dimension_semantics<parallel>, #tpu.dimension_semantics<arbitrary>], iteration_bounds = array<i64: 2, 1, 1>, scalar_prefetch = 0 : i64, scratch_operands = 1 : i64, tpu.core_type = #tpu.core_type<tc>, window_params = [{transform_indices = @transform_0, window_bounds = array<i64: 1, 10, 18, 1>}, {transform_indices = @transform_1, window_bounds = array<i64: 3, 3, 1, 32>}, {transform_indices = @transform_2, window_bounds = array<i64: 1, 32>}, {transform_indices = @transform_3, window_bounds = array<i64: 1, 8, 16, 32>}]} {
    %c0_i32 = arith.constant 0 : i32
    %0 = arith.cmpi eq, %arg2, %c0_i32 : i32
    %1 = arith.extui %0 : i1 to i32
    %c0_i32_0 = arith.constant 0 : i32
    %2 = arith.cmpi ne, %1, %c0_i32_0 : i32
    scf.if %2 {
      %cst = arith.constant 0.000000e+00 : f32
      %83 = vector.broadcast %cst : f32 to vector<128x32xf32>
      %c0_14 = arith.constant 0 : index
      %c0_15 = arith.constant 0 : index
      %84 = vector.load %arg7[%c0_14, %c0_15] : memref<128x32xf32, #tpu.memory_space<vmem>>, vector<128x32xf32>
      tpu.vector_store %arg7[%c0_14, %c0_15], %83 {strides = array<i32>} : memref<128x32xf32, #tpu.memory_space<vmem>>, vector<128x32xf32>,
    } else {
    }
    %c0 = arith.constant 0 : index
    %c0_1 = arith.constant 0 : index
    %c0_2 = arith.constant 0 : index
    %c0_3 = arith.constant 0 : index
    %3 = vector.load %arg3[%c0, %c0_1, %c0_2, %c0_3] : memref<1x10x18x1xf32, #tpu.memory_space<vmem>>, vector<1x10x18x1xf32>
    %4 = vector.shape_cast %3 : vector<1x10x18x1xf32> to vector<10x18x1xf32>
    %c0_4 = arith.constant 0 : index
    %c0_5 = arith.constant 0 : index
    %c0_6 = arith.constant 0 : index
    %c0_7 = arith.constant 0 : index
    %5 = vector.load %arg4[%c0_4, %c0_5, %c0_6, %c0_7] : memref<3x3x1x32xf32, #tpu.memory_space<vmem>>, vector<3x3x1x32xf32>
    %c0_8 = arith.constant 0 : index
    %c0_9 = arith.constant 0 : index
    %6 = vector.load %arg7[%c0_8, %c0_9] : memref<128x32xf32, #tpu.memory_space<vmem>>, vector<128x32xf32>
    %7 = vector.extract_strided_slice %4 {offsets = [0, 0, 0], sizes = [8, 16, 1], strides = [1, 1, 1]} : vector<10x18x1xf32> to vector<8x16x1xf32>
    %8 = vector.extract_strided_slice %5 {offsets = [0, 0, 0, 0], sizes = [1, 1, 1, 32], strides = [1, 1, 1, 1]} : vector<3x3x1x32xf32> to vector<1x1x1x32xf32>
    %9 = vector.shape_cast %8 : vector<1x1x1x32xf32> to vector<1x32xf32>
    %10 = vector.shape_cast %7 : vector<8x16x1xf32> to vector<128x1xf32>
    %11 = vector.broadcast %10 : vector<128x1xf32> to vector<128x32xf32>
    %12 = vector.broadcast %9 : vector<1x32xf32> to vector<128x32xf32>
    %13 = arith.mulf %11, %12 : vector<128x32xf32>
    %14 = arith.addf %6, %13 : vector<128x32xf32>
    %15 = vector.extract_strided_slice %4 {offsets = [0, 1, 0], sizes = [8, 16, 1], strides = [1, 1, 1]} : vector<10x18x1xf32> to vector<8x16x1xf32>
    %16 = vector.extract_strided_slice %5 {offsets = [0, 1, 0, 0], sizes = [1, 1, 1, 32], strides = [1, 1, 1, 1]} : vector<3x3x1x32xf32> to vector<1x1x1x32xf32>
    %17 = vector.shape_cast %16 : vector<1x1x1x32xf32> to vector<1x32xf32>
    %18 = vector.shape_cast %15 : vector<8x16x1xf32> to vector<128x1xf32>
    %19 = vector.broadcast %18 : vector<128x1xf32> to vector<128x32xf32>
    %20 = vector.broadcast %17 : vector<1x32xf32> to vector<128x32xf32>
    %21 = arith.mulf %19, %20 : vector<128x32xf32>
    %22 = arith.addf %14, %21 : vector<128x32xf32>
    %23 = vector.extract_strided_slice %4 {offsets = [0, 2, 0], sizes = [8, 16, 1], strides = [1, 1, 1]} : vector<10x18x1xf32> to vector<8x16x1xf32>
    %24 = vector.extract_strided_slice %5 {offsets = [0, 2, 0, 0], sizes = [1, 1, 1, 32], strides = [1, 1, 1, 1]} : vector<3x3x1x32xf32> to vector<1x1x1x32xf32>
    %25 = vector.shape_cast %24 : vector<1x1x1x32xf32> to vector<1x32xf32>
    %26 = vector.shape_cast %23 : vector<8x16x1xf32> to vector<128x1xf32>
    %27 = vector.broadcast %26 : vector<128x1xf32> to vector<128x32xf32>
    %28 = vector.broadcast %25 : vector<1x32xf32> to vector<128x32xf32>
    %29 = arith.mulf %27, %28 : vector<128x32xf32>
    %30 = arith.addf %22, %29 : vector<128x32xf32>
    %31 = vector.extract_strided_slice %4 {offsets = [1, 0, 0], sizes = [8, 16, 1], strides = [1, 1, 1]} : vector<10x18x1xf32> to vector<8x16x1xf32>
    %32 = vector.extract_strided_slice %5 {offsets = [1, 0, 0, 0], sizes = [1, 1, 1, 32], strides = [1, 1, 1, 1]} : vector<3x3x1x32xf32> to vector<1x1x1x32xf32>
    %33 = vector.shape_cast %32 : vector<1x1x1x32xf32> to vector<1x32xf32>
    %34 = vector.shape_cast %31 : vector<8x16x1xf32> to vector<128x1xf32>
    %35 = vector.broadcast %34 : vector<128x1xf32> to vector<128x32xf32>
    %36 = vector.broadcast %33 : vector<1x32xf32> to vector<128x32xf32>
    %37 = arith.mulf %35, %36 : vector<128x32xf32>
    %38 = arith.addf %30, %37 : vector<128x32xf32>
    %39 = vector.extract_strided_slice %4 {offsets = [1, 1, 0], sizes = [8, 16, 1], strides = [1, 1, 1]} : vector<10x18x1xf32> to vector<8x16x1xf32>
    %40 = vector.extract_strided_slice %5 {offsets = [1, 1, 0, 0], sizes = [1, 1, 1, 32], strides = [1, 1, 1, 1]} : vector<3x3x1x32xf32> to vector<1x1x1x32xf32>
    %41 = vector.shape_cast %40 : vector<1x1x1x32xf32> to vector<1x32xf32>
    %42 = vector.shape_cast %39 : vector<8x16x1xf32> to vector<128x1xf32>
    %43 = vector.broadcast %42 : vector<128x1xf32> to vector<128x32xf32>
    %44 = vector.broadcast %41 : vector<1x32xf32> to vector<128x32xf32>
    %45 = arith.mulf %43, %44 : vector<128x32xf32>
    %46 = arith.addf %38, %45 : vector<128x32xf32>
    %47 = vector.extract_strided_slice %4 {offsets = [1, 2, 0], sizes = [8, 16, 1], strides = [1, 1, 1]} : vector<10x18x1xf32> to vector<8x16x1xf32>
    %48 = vector.extract_strided_slice %5 {offsets = [1, 2, 0, 0], sizes = [1, 1, 1, 32], strides = [1, 1, 1, 1]} : vector<3x3x1x32xf32> to vector<1x1x1x32xf32>
    %49 = vector.shape_cast %48 : vector<1x1x1x32xf32> to vector<1x32xf32>
    %50 = vector.shape_cast %47 : vector<8x16x1xf32> to vector<128x1xf32>
    %51 = vector.broadcast %50 : vector<128x1xf32> to vector<128x32xf32>
    %52 = vector.broadcast %49 : vector<1x32xf32> to vector<128x32xf32>
    %53 = arith.mulf %51, %52 : vector<128x32xf32>
    %54 = arith.addf %46, %53 : vector<128x32xf32>
    %55 = vector.extract_strided_slice %4 {offsets = [2, 0, 0], sizes = [8, 16, 1], strides = [1, 1, 1]} : vector<10x18x1xf32> to vector<8x16x1xf32>
    %56 = vector.extract_strided_slice %5 {offsets = [2, 0, 0, 0], sizes = [1, 1, 1, 32], strides = [1, 1, 1, 1]} : vector<3x3x1x32xf32> to vector<1x1x1x32xf32>
    %57 = vector.shape_cast %56 : vector<1x1x1x32xf32> to vector<1x32xf32>
    %58 = vector.shape_cast %55 : vector<8x16x1xf32> to vector<128x1xf32>
    %59 = vector.broadcast %58 : vector<128x1xf32> to vector<128x32xf32>
    %60 = vector.broadcast %57 : vector<1x32xf32> to vector<128x32xf32>
    %61 = arith.mulf %59, %60 : vector<128x32xf32>
    %62 = arith.addf %54, %61 : vector<128x32xf32>
    %63 = vector.extract_strided_slice %4 {offsets = [2, 1, 0], sizes = [8, 16, 1], strides = [1, 1, 1]} : vector<10x18x1xf32> to vector<8x16x1xf32>
    %64 = vector.extract_strided_slice %5 {offsets = [2, 1, 0, 0], sizes = [1, 1, 1, 32], strides = [1, 1, 1, 1]} : vector<3x3x1x32xf32> to vector<1x1x1x32xf32>
    %65 = vector.shape_cast %64 : vector<1x1x1x32xf32> to vector<1x32xf32>
    %66 = vector.shape_cast %63 : vector<8x16x1xf32> to vector<128x1xf32>
    %67 = vector.broadcast %66 : vector<128x1xf32> to vector<128x32xf32>
    %68 = vector.broadcast %65 : vector<1x32xf32> to vector<128x32xf32>
    %69 = arith.mulf %67, %68 : vector<128x32xf32>
    %70 = arith.addf %62, %69 : vector<128x32xf32>
    %71 = vector.extract_strided_slice %4 {offsets = [2, 2, 0], sizes = [8, 16, 1], strides = [1, 1, 1]} : vector<10x18x1xf32> to vector<8x16x1xf32>
    %72 = vector.extract_strided_slice %5 {offsets = [2, 2, 0, 0], sizes = [1, 1, 1, 32], strides = [1, 1, 1, 1]} : vector<3x3x1x32xf32> to vector<1x1x1x32xf32>
    %73 = vector.shape_cast %72 : vector<1x1x1x32xf32> to vector<1x32xf32>
    %74 = vector.shape_cast %71 : vector<8x16x1xf32> to vector<128x1xf32>
    %75 = vector.broadcast %74 : vector<128x1xf32> to vector<128x32xf32>
    %76 = vector.broadcast %73 : vector<1x32xf32> to vector<128x32xf32>
    %77 = arith.mulf %75, %76 : vector<128x32xf32>
    %78 = arith.addf %70, %77 : vector<128x32xf32>
    %c0_10 = arith.constant 0 : index
    %c0_11 = arith.constant 0 : index
    %79 = vector.load %arg7[%c0_10, %c0_11] : memref<128x32xf32, #tpu.memory_space<vmem>>, vector<128x32xf32>
    tpu.vector_store %arg7[%c0_10, %c0_11], %78 {strides = array<i32>} : memref<128x32xf32, #tpu.memory_space<vmem>>, vector<128x32xf32>,
    %c0_i32_12 = arith.constant 0 : i32
    %80 = arith.cmpi eq, %arg2, %c0_i32_12 : i32
    %81 = arith.extui %80 : i1 to i32
    %c0_i32_13 = arith.constant 0 : i32
    %82 = arith.cmpi ne, %81, %c0_i32_13 : i32
    scf.if %82 {
      %c0_14 = arith.constant 0 : index
      %c0_15 = arith.constant 0 : index
      %83 = vector.load %arg7[%c0_14, %c0_15] : memref<128x32xf32, #tpu.memory_space<vmem>>, vector<128x32xf32>
      %c0_16 = arith.constant 0 : index
      %c0_17 = arith.constant 0 : index
      %84 = vector.load %arg5[%c0_16, %c0_17] : memref<1x32xf32, #tpu.memory_space<vmem>>, vector<1x32xf32>
      %85 = vector.broadcast %84 : vector<1x32xf32> to vector<128x32xf32>
      %86 = arith.addf %83, %85 : vector<128x32xf32>
      %cst = arith.constant 0.000000e+00 : f32
      %87 = vector.broadcast %cst : f32 to vector<128x32xf32>
      %88 = arith.cmpf ogt, %86, %87 : vector<128x32xf32>
      %cst_18 = arith.constant 2.000000e-01 : f32
      %89 = vector.broadcast %cst_18 : f32 to vector<128x32xf32>
      %90 = arith.mulf %89, %86 : vector<128x32xf32>
      %91 = arith.select %88, %86, %90 : vector<128x32xi1>, vector<128x32xf32>
      %92 = vector.shape_cast %91 : vector<128x32xf32> to vector<8x16x32xf32>
      %93 = vector.shape_cast %92 : vector<8x16x32xf32> to vector<1x8x16x32xf32>
      %c0_19 = arith.constant 0 : index
      %c0_20 = arith.constant 0 : index
      %c0_21 = arith.constant 0 : index
      %c0_22 = arith.constant 0 : index
      %94 = vector.load %arg6[%c0_19, %c0_20, %c0_21, %c0_22] : memref<1x8x16x32xf32, #tpu.memory_space<vmem>>, vector<1x8x16x32xf32>
      tpu.vector_store %arg6[%c0_19, %c0_20, %c0_21, %c0_22], %93 {strides = array<i32>} : memref<1x8x16x32xf32, #tpu.memory_space<vmem>>, vector<1x8x16x32xf32>,
    } else {
    }
    return
  }
  func.func @transform_0(%arg0: i32, %arg1: i32, %arg2: i32) -> (i32, i32, i32, i32) {
    %c0_i32 = arith.constant 0 : i32
    %c0_i32_0 = arith.constant 0 : i32
    %c0_i32_1 = arith.constant 0 : i32
    return %arg0, %c0_i32, %c0_i32_0, %arg2 : i32, i32, i32, i32
  }
  func.func @transform_1(%arg0: i32, %arg1: i32, %arg2: i32) -> (i32, i32, i32, i32) {
    %c0_i32 = arith.constant 0 : i32
    %c0_i32_0 = arith.constant 0 : i32
    %c0_i32_1 = arith.constant 0 : i32
    return %c0_i32, %c0_i32_0, %arg2, %arg1 : i32, i32, i32, i32
  }
  func.func @transform_2(%arg0: i32, %arg1: i32, %arg2: i32) -> (i32, i32) {
    %c0_i32 = arith.constant 0 : i32
    %c0_i32_0 = arith.constant 0 : i32
    return %c0_i32, %arg1 : i32, i32
  }
  func.func @transform_3(%arg0: i32, %arg1: i32, %arg2: i32) -> (i32, i32, i32, i32) {
    %c0_i32 = arith.constant 0 : i32
    %c0_i32_0 = arith.constant 0 : i32
    %c0_i32_1 = arith.constant 0 : i32
    return %arg0, %c0_i32, %c0_i32_0, %arg1 : i32, i32, i32, i32
  }
}

module attributes {stable_mosaic.version = 11 : i64} {
  func.func @_conv_kernel(%arg0: i32, %arg1: i32, %arg2: i32, %arg3: memref<1x10x18x32xf32, #tpu.memory_space<vmem>>, %arg4: memref<3x3x32x32xf32, #tpu.memory_space<vmem>>, %arg5: memref<1x32xf32, #tpu.memory_space<vmem>>, %arg6: memref<1x8x16x32xf32, #tpu.memory_space<vmem>>, %arg7: memref<128x32xf32, #tpu.memory_space<vmem>>, %arg8: memref<10x18x32xf32, #tpu.memory_space<vmem>>) attributes {dimension_semantics = [#tpu.dimension_semantics<parallel>, #tpu.dimension_semantics<parallel>, #tpu.dimension_semantics<arbitrary>], iteration_bounds = array<i64: 2, 1, 1>, scalar_prefetch = 0 : i64, scratch_operands = 2 : i64, tpu.core_type = #tpu.core_type<tc>, window_params = [{transform_indices = @transform_0, window_bounds = array<i64: 1, 10, 18, 32>}, {transform_indices = @transform_1, window_bounds = array<i64: 3, 3, 32, 32>}, {transform_indices = @transform_2, window_bounds = array<i64: 1, 32>}, {transform_indices = @transform_3, window_bounds = array<i64: 1, 8, 16, 32>}]} {
    %c0_i32 = arith.constant 0 : i32
    %0 = arith.cmpi eq, %arg2, %c0_i32 : i32
    %1 = arith.extui %0 : i1 to i32
    %c0_i32_0 = arith.constant 0 : i32
    %2 = arith.cmpi ne, %1, %c0_i32_0 : i32
    scf.if %2 {
      %cst_22 = arith.constant 0.000000e+00 : f32
      %83 = vector.broadcast %cst_22 : f32 to vector<128x32xf32>
      %c0_23 = arith.constant 0 : index
      %c0_24 = arith.constant 0 : index
      %84 = vector.load %arg7[%c0_23, %c0_24] : memref<128x32xf32, #tpu.memory_space<vmem>>, vector<128x32xf32>
      tpu.vector_store %arg7[%c0_23, %c0_24], %83 {strides = array<i32>} : memref<128x32xf32, #tpu.memory_space<vmem>>, vector<128x32xf32>,
    } else {
    }
    %c0 = arith.constant 0 : index
    %c0_1 = arith.constant 0 : index
    %c0_2 = arith.constant 0 : index
    %c0_3 = arith.constant 0 : index
    %3 = vector.load %arg3[%c0, %c0_1, %c0_2, %c0_3] : memref<1x10x18x32xf32, #tpu.memory_space<vmem>>, vector<1x10x18x32xf32>
    %4 = vector.shape_cast %3 : vector<1x10x18x32xf32> to vector<10x18x32xf32>
    %c0_4 = arith.constant 0 : index
    %c0_5 = arith.constant 0 : index
    %c0_6 = arith.constant 0 : index
    %c0_7 = arith.constant 0 : index
    %5 = vector.load %arg4[%c0_4, %c0_5, %c0_6, %c0_7] : memref<3x3x32x32xf32, #tpu.memory_space<vmem>>, vector<3x3x32x32xf32>
    %c0_8 = arith.constant 0 : index
    %c0_9 = arith.constant 0 : index
    %6 = vector.load %arg7[%c0_8, %c0_9] : memref<128x32xf32, #tpu.memory_space<vmem>>, vector<128x32xf32>
    %7 = vector.extract_strided_slice %4 {offsets = [0, 0, 0], sizes = [8, 16, 32], strides = [1, 1, 1]} : vector<10x18x32xf32> to vector<8x16x32xf32>
    %8 = vector.extract_strided_slice %5 {offsets = [0, 0, 0, 0], sizes = [1, 1, 32, 32], strides = [1, 1, 1, 1]} : vector<3x3x32x32xf32> to vector<1x1x32x32xf32>
    %9 = vector.shape_cast %8 : vector<1x1x32x32xf32> to vector<32x32xf32>
    %10 = vector.shape_cast %7 : vector<8x16x32xf32> to vector<128x32xf32>
    %11 = arith.truncf %10 : vector<128x32xf32> to vector<128x32xbf16>
    %12 = arith.truncf %9 : vector<32x32xf32> to vector<32x32xbf16>
    %cst = arith.constant dense<0.000000e+00> : vector<128x32xf32>
    %13 = tpu.matmul %11, %12, %cst {dimension_numbers = #tpu.dot_dimension_numbers<[1], [0], [0], [1], [0, 0, 1, 1], [], []>} : vector<128x32xbf16>, vector<32x32xbf16>, vector<128x32xf32> -> vector<128x32xf32>
    %14 = arith.addf %6, %13 : vector<128x32xf32>
    %15 = vector.extract_strided_slice %4 {offsets = [0, 1, 0], sizes = [8, 16, 32], strides = [1, 1, 1]} : vector<10x18x32xf32> to vector<8x16x32xf32>
    %16 = vector.extract_strided_slice %5 {offsets = [0, 1, 0, 0], sizes = [1, 1, 32, 32], strides = [1, 1, 1, 1]} : vector<3x3x32x32xf32> to vector<1x1x32x32xf32>
    %17 = vector.shape_cast %16 : vector<1x1x32x32xf32> to vector<32x32xf32>
    %18 = vector.shape_cast %15 : vector<8x16x32xf32> to vector<128x32xf32>
    %19 = arith.truncf %18 : vector<128x32xf32> to vector<128x32xbf16>
    %20 = arith.truncf %17 : vector<32x32xf32> to vector<32x32xbf16>
    %cst_10 = arith.constant dense<0.000000e+00> : vector<128x32xf32>
    %21 = tpu.matmul %19, %20, %cst_10 {dimension_numbers = #tpu.dot_dimension_numbers<[1], [0], [0], [1], [0, 0, 1, 1], [], []>} : vector<128x32xbf16>, vector<32x32xbf16>, vector<128x32xf32> -> vector<128x32xf32>
    %22 = arith.addf %14, %21 : vector<128x32xf32>
    %23 = vector.extract_strided_slice %4 {offsets = [0, 2, 0], sizes = [8, 16, 32], strides = [1, 1, 1]} : vector<10x18x32xf32> to vector<8x16x32xf32>
    %24 = vector.extract_strided_slice %5 {offsets = [0, 2, 0, 0], sizes = [1, 1, 32, 32], strides = [1, 1, 1, 1]} : vector<3x3x32x32xf32> to vector<1x1x32x32xf32>
    %25 = vector.shape_cast %24 : vector<1x1x32x32xf32> to vector<32x32xf32>
    %26 = vector.shape_cast %23 : vector<8x16x32xf32> to vector<128x32xf32>
    %27 = arith.truncf %26 : vector<128x32xf32> to vector<128x32xbf16>
    %28 = arith.truncf %25 : vector<32x32xf32> to vector<32x32xbf16>
    %cst_11 = arith.constant dense<0.000000e+00> : vector<128x32xf32>
    %29 = tpu.matmul %27, %28, %cst_11 {dimension_numbers = #tpu.dot_dimension_numbers<[1], [0], [0], [1], [0, 0, 1, 1], [], []>} : vector<128x32xbf16>, vector<32x32xbf16>, vector<128x32xf32> -> vector<128x32xf32>
    %30 = arith.addf %22, %29 : vector<128x32xf32>
    %31 = vector.extract_strided_slice %4 {offsets = [1, 0, 0], sizes = [8, 16, 32], strides = [1, 1, 1]} : vector<10x18x32xf32> to vector<8x16x32xf32>
    %32 = vector.extract_strided_slice %5 {offsets = [1, 0, 0, 0], sizes = [1, 1, 32, 32], strides = [1, 1, 1, 1]} : vector<3x3x32x32xf32> to vector<1x1x32x32xf32>
    %33 = vector.shape_cast %32 : vector<1x1x32x32xf32> to vector<32x32xf32>
    %34 = vector.shape_cast %31 : vector<8x16x32xf32> to vector<128x32xf32>
    %35 = arith.truncf %34 : vector<128x32xf32> to vector<128x32xbf16>
    %36 = arith.truncf %33 : vector<32x32xf32> to vector<32x32xbf16>
    %cst_12 = arith.constant dense<0.000000e+00> : vector<128x32xf32>
    %37 = tpu.matmul %35, %36, %cst_12 {dimension_numbers = #tpu.dot_dimension_numbers<[1], [0], [0], [1], [0, 0, 1, 1], [], []>} : vector<128x32xbf16>, vector<32x32xbf16>, vector<128x32xf32> -> vector<128x32xf32>
    %38 = arith.addf %30, %37 : vector<128x32xf32>
    %39 = vector.extract_strided_slice %4 {offsets = [1, 1, 0], sizes = [8, 16, 32], strides = [1, 1, 1]} : vector<10x18x32xf32> to vector<8x16x32xf32>
    %40 = vector.extract_strided_slice %5 {offsets = [1, 1, 0, 0], sizes = [1, 1, 32, 32], strides = [1, 1, 1, 1]} : vector<3x3x32x32xf32> to vector<1x1x32x32xf32>
    %41 = vector.shape_cast %40 : vector<1x1x32x32xf32> to vector<32x32xf32>
    %42 = vector.shape_cast %39 : vector<8x16x32xf32> to vector<128x32xf32>
    %43 = arith.truncf %42 : vector<128x32xf32> to vector<128x32xbf16>
    %44 = arith.truncf %41 : vector<32x32xf32> to vector<32x32xbf16>
    %cst_13 = arith.constant dense<0.000000e+00> : vector<128x32xf32>
    %45 = tpu.matmul %43, %44, %cst_13 {dimension_numbers = #tpu.dot_dimension_numbers<[1], [0], [0], [1], [0, 0, 1, 1], [], []>} : vector<128x32xbf16>, vector<32x32xbf16>, vector<128x32xf32> -> vector<128x32xf32>
    %46 = arith.addf %38, %45 : vector<128x32xf32>
    %47 = vector.extract_strided_slice %4 {offsets = [1, 2, 0], sizes = [8, 16, 32], strides = [1, 1, 1]} : vector<10x18x32xf32> to vector<8x16x32xf32>
    %48 = vector.extract_strided_slice %5 {offsets = [1, 2, 0, 0], sizes = [1, 1, 32, 32], strides = [1, 1, 1, 1]} : vector<3x3x32x32xf32> to vector<1x1x32x32xf32>
    %49 = vector.shape_cast %48 : vector<1x1x32x32xf32> to vector<32x32xf32>
    %50 = vector.shape_cast %47 : vector<8x16x32xf32> to vector<128x32xf32>
    %51 = arith.truncf %50 : vector<128x32xf32> to vector<128x32xbf16>
    %52 = arith.truncf %49 : vector<32x32xf32> to vector<32x32xbf16>
    %cst_14 = arith.constant dense<0.000000e+00> : vector<128x32xf32>
    %53 = tpu.matmul %51, %52, %cst_14 {dimension_numbers = #tpu.dot_dimension_numbers<[1], [0], [0], [1], [0, 0, 1, 1], [], []>} : vector<128x32xbf16>, vector<32x32xbf16>, vector<128x32xf32> -> vector<128x32xf32>
    %54 = arith.addf %46, %53 : vector<128x32xf32>
    %55 = vector.extract_strided_slice %4 {offsets = [2, 0, 0], sizes = [8, 16, 32], strides = [1, 1, 1]} : vector<10x18x32xf32> to vector<8x16x32xf32>
    %56 = vector.extract_strided_slice %5 {offsets = [2, 0, 0, 0], sizes = [1, 1, 32, 32], strides = [1, 1, 1, 1]} : vector<3x3x32x32xf32> to vector<1x1x32x32xf32>
    %57 = vector.shape_cast %56 : vector<1x1x32x32xf32> to vector<32x32xf32>
    %58 = vector.shape_cast %55 : vector<8x16x32xf32> to vector<128x32xf32>
    %59 = arith.truncf %58 : vector<128x32xf32> to vector<128x32xbf16>
    %60 = arith.truncf %57 : vector<32x32xf32> to vector<32x32xbf16>
    %cst_15 = arith.constant dense<0.000000e+00> : vector<128x32xf32>
    %61 = tpu.matmul %59, %60, %cst_15 {dimension_numbers = #tpu.dot_dimension_numbers<[1], [0], [0], [1], [0, 0, 1, 1], [], []>} : vector<128x32xbf16>, vector<32x32xbf16>, vector<128x32xf32> -> vector<128x32xf32>
    %62 = arith.addf %54, %61 : vector<128x32xf32>
    %63 = vector.extract_strided_slice %4 {offsets = [2, 1, 0], sizes = [8, 16, 32], strides = [1, 1, 1]} : vector<10x18x32xf32> to vector<8x16x32xf32>
    %64 = vector.extract_strided_slice %5 {offsets = [2, 1, 0, 0], sizes = [1, 1, 32, 32], strides = [1, 1, 1, 1]} : vector<3x3x32x32xf32> to vector<1x1x32x32xf32>
    %65 = vector.shape_cast %64 : vector<1x1x32x32xf32> to vector<32x32xf32>
    %66 = vector.shape_cast %63 : vector<8x16x32xf32> to vector<128x32xf32>
    %67 = arith.truncf %66 : vector<128x32xf32> to vector<128x32xbf16>
    %68 = arith.truncf %65 : vector<32x32xf32> to vector<32x32xbf16>
    %cst_16 = arith.constant dense<0.000000e+00> : vector<128x32xf32>
    %69 = tpu.matmul %67, %68, %cst_16 {dimension_numbers = #tpu.dot_dimension_numbers<[1], [0], [0], [1], [0, 0, 1, 1], [], []>} : vector<128x32xbf16>, vector<32x32xbf16>, vector<128x32xf32> -> vector<128x32xf32>
    %70 = arith.addf %62, %69 : vector<128x32xf32>
    %71 = vector.extract_strided_slice %4 {offsets = [2, 2, 0], sizes = [8, 16, 32], strides = [1, 1, 1]} : vector<10x18x32xf32> to vector<8x16x32xf32>
    %72 = vector.extract_strided_slice %5 {offsets = [2, 2, 0, 0], sizes = [1, 1, 32, 32], strides = [1, 1, 1, 1]} : vector<3x3x32x32xf32> to vector<1x1x32x32xf32>
    %73 = vector.shape_cast %72 : vector<1x1x32x32xf32> to vector<32x32xf32>
    %74 = vector.shape_cast %71 : vector<8x16x32xf32> to vector<128x32xf32>
    %75 = arith.truncf %74 : vector<128x32xf32> to vector<128x32xbf16>
    %76 = arith.truncf %73 : vector<32x32xf32> to vector<32x32xbf16>
    %cst_17 = arith.constant dense<0.000000e+00> : vector<128x32xf32>
    %77 = tpu.matmul %75, %76, %cst_17 {dimension_numbers = #tpu.dot_dimension_numbers<[1], [0], [0], [1], [0, 0, 1, 1], [], []>} : vector<128x32xbf16>, vector<32x32xbf16>, vector<128x32xf32> -> vector<128x32xf32>
    %78 = arith.addf %70, %77 : vector<128x32xf32>
    %c0_18 = arith.constant 0 : index
    %c0_19 = arith.constant 0 : index
    %79 = vector.load %arg7[%c0_18, %c0_19] : memref<128x32xf32, #tpu.memory_space<vmem>>, vector<128x32xf32>
    tpu.vector_store %arg7[%c0_18, %c0_19], %78 {strides = array<i32>} : memref<128x32xf32, #tpu.memory_space<vmem>>, vector<128x32xf32>,
    %c0_i32_20 = arith.constant 0 : i32
    %80 = arith.cmpi eq, %arg2, %c0_i32_20 : i32
    %81 = arith.extui %80 : i1 to i32
    %c0_i32_21 = arith.constant 0 : i32
    %82 = arith.cmpi ne, %81, %c0_i32_21 : i32
    scf.if %82 {
      %c0_22 = arith.constant 0 : index
      %c0_23 = arith.constant 0 : index
      %83 = vector.load %arg7[%c0_22, %c0_23] : memref<128x32xf32, #tpu.memory_space<vmem>>, vector<128x32xf32>
      %c0_24 = arith.constant 0 : index
      %c0_25 = arith.constant 0 : index
      %84 = vector.load %arg5[%c0_24, %c0_25] : memref<1x32xf32, #tpu.memory_space<vmem>>, vector<1x32xf32>
      %85 = vector.broadcast %84 : vector<1x32xf32> to vector<128x32xf32>
      %86 = arith.addf %83, %85 : vector<128x32xf32>
      %cst_26 = arith.constant 0.000000e+00 : f32
      %87 = vector.broadcast %cst_26 : f32 to vector<128x32xf32>
      %88 = arith.cmpf ogt, %86, %87 : vector<128x32xf32>
      %cst_27 = arith.constant 2.000000e-01 : f32
      %89 = vector.broadcast %cst_27 : f32 to vector<128x32xf32>
      %90 = arith.mulf %89, %86 : vector<128x32xf32>
      %91 = arith.select %88, %86, %90 : vector<128x32xi1>, vector<128x32xf32>
      %92 = vector.shape_cast %91 : vector<128x32xf32> to vector<8x16x32xf32>
      %c1 = arith.constant 1 : index
      %c1_28 = arith.constant 1 : index
      %c0_29 = arith.constant 0 : index
      %93 = vector.load %arg8[%c1, %c1_28, %c0_29] : memref<10x18x32xf32, #tpu.memory_space<vmem>>, vector<8x16x32xf32>
      tpu.vector_store %arg8[%c1, %c1_28, %c0_29], %92 {strides = array<i32>} : memref<10x18x32xf32, #tpu.memory_space<vmem>>, vector<8x16x32xf32>,
      %94 = vector.extract_strided_slice %92 {offsets = [1, 0, 0], sizes = [1, 16, 32], strides = [1, 1, 1]} : vector<8x16x32xf32> to vector<1x16x32xf32>
      %c0_30 = arith.constant 0 : index
      %c1_31 = arith.constant 1 : index
      %c0_32 = arith.constant 0 : index
      %95 = vector.load %arg8[%c0_30, %c1_31, %c0_32] : memref<10x18x32xf32, #tpu.memory_space<vmem>>, vector<1x16x32xf32>
      tpu.vector_store %arg8[%c0_30, %c1_31, %c0_32], %94 {strides = array<i32>} : memref<10x18x32xf32, #tpu.memory_space<vmem>>, vector<1x16x32xf32>,
      %96 = vector.extract_strided_slice %92 {offsets = [6, 0, 0], sizes = [1, 16, 32], strides = [1, 1, 1]} : vector<8x16x32xf32> to vector<1x16x32xf32>
      %c9 = arith.constant 9 : index
      %c1_33 = arith.constant 1 : index
      %c0_34 = arith.constant 0 : index
      %97 = vector.load %arg8[%c9, %c1_33, %c0_34] : memref<10x18x32xf32, #tpu.memory_space<vmem>>, vector<1x16x32xf32>
      tpu.vector_store %arg8[%c9, %c1_33, %c0_34], %96 {strides = array<i32>} : memref<10x18x32xf32, #tpu.memory_space<vmem>>, vector<1x16x32xf32>,
      %c0_35 = arith.constant 0 : index
      %c2 = arith.constant 2 : index
      %c0_36 = arith.constant 0 : index
      %98 = vector.load %arg8[%c0_35, %c2, %c0_36] : memref<10x18x32xf32, #tpu.memory_space<vmem>>, vector<10x1x32xf32>
      %c0_37 = arith.constant 0 : index
      %c0_38 = arith.constant 0 : index
      %c0_39 = arith.constant 0 : index
      %99 = vector.load %arg8[%c0_37, %c0_38, %c0_39] : memref<10x18x32xf32, #tpu.memory_space<vmem>>, vector<10x1x32xf32>
      tpu.vector_store %arg8[%c0_37, %c0_38, %c0_39], %98 {strides = array<i32>} : memref<10x18x32xf32, #tpu.memory_space<vmem>>, vector<10x1x32xf32>,
      %c0_40 = arith.constant 0 : index
      %c15 = arith.constant 15 : index
      %c0_41 = arith.constant 0 : index
      %100 = vector.load %arg8[%c0_40, %c15, %c0_41] : memref<10x18x32xf32, #tpu.memory_space<vmem>>, vector<10x1x32xf32>
      %c0_42 = arith.constant 0 : index
      %c17 = arith.constant 17 : index
      %c0_43 = arith.constant 0 : index
      %101 = vector.load %arg8[%c0_42, %c17, %c0_43] : memref<10x18x32xf32, #tpu.memory_space<vmem>>, vector<10x1x32xf32>
      tpu.vector_store %arg8[%c0_42, %c17, %c0_43], %100 {strides = array<i32>} : memref<10x18x32xf32, #tpu.memory_space<vmem>>, vector<10x1x32xf32>,
      %c0_44 = arith.constant 0 : index
      %c0_45 = arith.constant 0 : index
      %c0_46 = arith.constant 0 : index
      %102 = vector.load %arg8[%c0_44, %c0_45, %c0_46] : memref<10x18x32xf32, #tpu.memory_space<vmem>>, vector<10x18x32xf32>
      %cst_47 = arith.constant 0.000000e+00 : f32
      %103 = vector.broadcast %cst_47 : f32 to vector<8x16x32xf32>
      %104 = vector.extract_strided_slice %102 {offsets = [0, 0, 0], sizes = [8, 16, 32], strides = [1, 1, 1]} : vector<10x18x32xf32> to vector<8x16x32xf32>
      %cst_48 = arith.constant 6.250000e-02 : f32
      %105 = vector.broadcast %cst_48 : f32 to vector<8x16x32xf32>
      %106 = arith.mulf %105, %104 : vector<8x16x32xf32>
      %107 = arith.addf %103, %106 : vector<8x16x32xf32>
      %108 = vector.extract_strided_slice %102 {offsets = [0, 1, 0], sizes = [8, 16, 32], strides = [1, 1, 1]} : vector<10x18x32xf32> to vector<8x16x32xf32>
      %cst_49 = arith.constant 1.250000e-01 : f32
      %109 = vector.broadcast %cst_49 : f32 to vector<8x16x32xf32>
      %110 = arith.mulf %109, %108 : vector<8x16x32xf32>
      %111 = arith.addf %107, %110 : vector<8x16x32xf32>
      %112 = vector.extract_strided_slice %102 {offsets = [0, 2, 0], sizes = [8, 16, 32], strides = [1, 1, 1]} : vector<10x18x32xf32> to vector<8x16x32xf32>
      %cst_50 = arith.constant 6.250000e-02 : f32
      %113 = vector.broadcast %cst_50 : f32 to vector<8x16x32xf32>
      %114 = arith.mulf %113, %112 : vector<8x16x32xf32>
      %115 = arith.addf %111, %114 : vector<8x16x32xf32>
      %116 = vector.extract_strided_slice %102 {offsets = [1, 0, 0], sizes = [8, 16, 32], strides = [1, 1, 1]} : vector<10x18x32xf32> to vector<8x16x32xf32>
      %cst_51 = arith.constant 1.250000e-01 : f32
      %117 = vector.broadcast %cst_51 : f32 to vector<8x16x32xf32>
      %118 = arith.mulf %117, %116 : vector<8x16x32xf32>
      %119 = arith.addf %115, %118 : vector<8x16x32xf32>
      %120 = vector.extract_strided_slice %102 {offsets = [1, 1, 0], sizes = [8, 16, 32], strides = [1, 1, 1]} : vector<10x18x32xf32> to vector<8x16x32xf32>
      %cst_52 = arith.constant 2.500000e-01 : f32
      %121 = vector.broadcast %cst_52 : f32 to vector<8x16x32xf32>
      %122 = arith.mulf %121, %120 : vector<8x16x32xf32>
      %123 = arith.addf %119, %122 : vector<8x16x32xf32>
      %124 = vector.extract_strided_slice %102 {offsets = [1, 2, 0], sizes = [8, 16, 32], strides = [1, 1, 1]} : vector<10x18x32xf32> to vector<8x16x32xf32>
      %cst_53 = arith.constant 1.250000e-01 : f32
      %125 = vector.broadcast %cst_53 : f32 to vector<8x16x32xf32>
      %126 = arith.mulf %125, %124 : vector<8x16x32xf32>
      %127 = arith.addf %123, %126 : vector<8x16x32xf32>
      %128 = vector.extract_strided_slice %102 {offsets = [2, 0, 0], sizes = [8, 16, 32], strides = [1, 1, 1]} : vector<10x18x32xf32> to vector<8x16x32xf32>
      %cst_54 = arith.constant 6.250000e-02 : f32
      %129 = vector.broadcast %cst_54 : f32 to vector<8x16x32xf32>
      %130 = arith.mulf %129, %128 : vector<8x16x32xf32>
      %131 = arith.addf %127, %130 : vector<8x16x32xf32>
      %132 = vector.extract_strided_slice %102 {offsets = [2, 1, 0], sizes = [8, 16, 32], strides = [1, 1, 1]} : vector<10x18x32xf32> to vector<8x16x32xf32>
      %cst_55 = arith.constant 1.250000e-01 : f32
      %133 = vector.broadcast %cst_55 : f32 to vector<8x16x32xf32>
      %134 = arith.mulf %133, %132 : vector<8x16x32xf32>
      %135 = arith.addf %131, %134 : vector<8x16x32xf32>
      %136 = vector.extract_strided_slice %102 {offsets = [2, 2, 0], sizes = [8, 16, 32], strides = [1, 1, 1]} : vector<10x18x32xf32> to vector<8x16x32xf32>
      %cst_56 = arith.constant 6.250000e-02 : f32
      %137 = vector.broadcast %cst_56 : f32 to vector<8x16x32xf32>
      %138 = arith.mulf %137, %136 : vector<8x16x32xf32>
      %139 = arith.addf %135, %138 : vector<8x16x32xf32>
      %140 = vector.shape_cast %139 : vector<8x16x32xf32> to vector<1x8x16x32xf32>
      %c0_57 = arith.constant 0 : index
      %c0_58 = arith.constant 0 : index
      %c0_59 = arith.constant 0 : index
      %c0_60 = arith.constant 0 : index
      %141 = vector.load %arg6[%c0_57, %c0_58, %c0_59, %c0_60] : memref<1x8x16x32xf32, #tpu.memory_space<vmem>>, vector<1x8x16x32xf32>
      tpu.vector_store %arg6[%c0_57, %c0_58, %c0_59, %c0_60], %140 {strides = array<i32>} : memref<1x8x16x32xf32, #tpu.memory_space<vmem>>, vector<1x8x16x32xf32>,
    } else {
    }
    return
  }
  func.func @transform_0(%arg0: i32, %arg1: i32, %arg2: i32) -> (i32, i32, i32, i32) {
    %c0_i32 = arith.constant 0 : i32
    %c0_i32_0 = arith.constant 0 : i32
    %c0_i32_1 = arith.constant 0 : i32
    return %arg0, %c0_i32, %c0_i32_0, %arg2 : i32, i32, i32, i32
  }
  func.func @transform_1(%arg0: i32, %arg1: i32, %arg2: i32) -> (i32, i32, i32, i32) {
    %c0_i32 = arith.constant 0 : i32
    %c0_i32_0 = arith.constant 0 : i32
    %c0_i32_1 = arith.constant 0 : i32
    return %c0_i32, %c0_i32_0, %arg2, %arg1 : i32, i32, i32, i32
  }
  func.func @transform_2(%arg0: i32, %arg1: i32, %arg2: i32) -> (i32, i32) {
    %c0_i32 = arith.constant 0 : i32
    %c0_i32_0 = arith.constant 0 : i32
    return %c0_i32, %arg1 : i32, i32
  }
  func.func @transform_3(%arg0: i32, %arg1: i32, %arg2: i32) -> (i32, i32, i32, i32) {
    %c0_i32 = arith.constant 0 : i32
    %c0_i32_0 = arith.constant 0 : i32
    %c0_i32_1 = arith.constant 0 : i32
    return %arg0, %c0_i32, %c0_i32_0, %arg1 : i32, i32, i32, i32
  }
}

module attributes {stable_mosaic.version = 11 : i64} {
  func.func @_conv_kernel(%arg0: i32, %arg1: i32, %arg2: i32, %arg3: memref<1x5x9x128xf32, #tpu.memory_space<vmem>>, %arg4: memref<2x2x128x32xf32, #tpu.memory_space<vmem>>, %arg5: memref<1x32xf32, #tpu.memory_space<vmem>>, %arg6: memref<1x4x8x1xf32, #tpu.memory_space<vmem>>, %arg7: memref<1x1x1x32xf32, #tpu.memory_space<vmem>>, %arg8: memref<1x32xf32, #tpu.memory_space<vmem>>, %arg9: memref<1x4x8x32xf32, #tpu.memory_space<vmem>>, %arg10: memref<32x32xf32, #tpu.memory_space<vmem>>) attributes {dimension_semantics = [#tpu.dimension_semantics<parallel>, #tpu.dimension_semantics<parallel>, #tpu.dimension_semantics<arbitrary>], iteration_bounds = array<i64: 2, 1, 1>, scalar_prefetch = 0 : i64, scratch_operands = 1 : i64, tpu.core_type = #tpu.core_type<tc>, window_params = [{transform_indices = @transform_0, window_bounds = array<i64: 1, 5, 9, 128>}, {transform_indices = @transform_1, window_bounds = array<i64: 2, 2, 128, 32>}, {transform_indices = @transform_2, window_bounds = array<i64: 1, 32>}, {transform_indices = @transform_3, window_bounds = array<i64: 1, 4, 8, 1>}, {transform_indices = @transform_4, window_bounds = array<i64: 1, 1, 1, 32>}, {transform_indices = @transform_5, window_bounds = array<i64: 1, 32>}, {transform_indices = @transform_6, window_bounds = array<i64: 1, 4, 8, 32>}]} {
    %c0_i32 = arith.constant 0 : i32
    %0 = arith.cmpi eq, %arg2, %c0_i32 : i32
    %1 = arith.extui %0 : i1 to i32
    %c0_i32_0 = arith.constant 0 : i32
    %2 = arith.cmpi ne, %1, %c0_i32_0 : i32
    scf.if %2 {
      %cst_17 = arith.constant 0.000000e+00 : f32
      %43 = vector.broadcast %cst_17 : f32 to vector<32x32xf32>
      %c0_18 = arith.constant 0 : index
      %c0_19 = arith.constant 0 : index
      %44 = vector.load %arg10[%c0_18, %c0_19] : memref<32x32xf32, #tpu.memory_space<vmem>>, vector<32x32xf32>
      tpu.vector_store %arg10[%c0_18, %c0_19], %43 {strides = array<i32>} : memref<32x32xf32, #tpu.memory_space<vmem>>, vector<32x32xf32>,
    } else {
    }
    %c0 = arith.constant 0 : index
    %c0_1 = arith.constant 0 : index
    %c0_2 = arith.constant 0 : index
    %c0_3 = arith.constant 0 : index
    %3 = vector.load %arg3[%c0, %c0_1, %c0_2, %c0_3] : memref<1x5x9x128xf32, #tpu.memory_space<vmem>>, vector<1x5x9x128xf32>
    %4 = vector.shape_cast %3 : vector<1x5x9x128xf32> to vector<5x9x128xf32>
    %c0_4 = arith.constant 0 : index
    %c0_5 = arith.constant 0 : index
    %c0_6 = arith.constant 0 : index
    %c0_7 = arith.constant 0 : index
    %5 = vector.load %arg4[%c0_4, %c0_5, %c0_6, %c0_7] : memref<2x2x128x32xf32, #tpu.memory_space<vmem>>, vector<2x2x128x32xf32>
    %c0_8 = arith.constant 0 : index
    %c0_9 = arith.constant 0 : index
    %6 = vector.load %arg10[%c0_8, %c0_9] : memref<32x32xf32, #tpu.memory_space<vmem>>, vector<32x32xf32>
    %7 = vector.extract_strided_slice %4 {offsets = [0, 0, 0], sizes = [4, 8, 128], strides = [1, 1, 1]} : vector<5x9x128xf32> to vector<4x8x128xf32>
    %8 = vector.extract_strided_slice %5 {offsets = [0, 0, 0, 0], sizes = [1, 1, 128, 32], strides = [1, 1, 1, 1]} : vector<2x2x128x32xf32> to vector<1x1x128x32xf32>
    %9 = vector.shape_cast %8 : vector<1x1x128x32xf32> to vector<128x32xf32>
    %10 = vector.shape_cast %7 : vector<4x8x128xf32> to vector<32x128xf32>
    %11 = arith.truncf %10 : vector<32x128xf32> to vector<32x128xbf16>
    %12 = arith.truncf %9 : vector<128x32xf32> to vector<128x32xbf16>
    %cst = arith.constant dense<0.000000e+00> : vector<32x32xf32>
    %13 = tpu.matmul %11, %12, %cst {dimension_numbers = #tpu.dot_dimension_numbers<[1], [0], [0], [1], [0, 0, 1, 1], [], []>} : vector<32x128xbf16>, vector<128x32xbf16>, vector<32x32xf32> -> vector<32x32xf32>
    %14 = arith.addf %6, %13 : vector<32x32xf32>
    %15 = vector.extract_strided_slice %4 {offsets = [0, 1, 0], sizes = [4, 8, 128], strides = [1, 1, 1]} : vector<5x9x128xf32> to vector<4x8x128xf32>
    %16 = vector.extract_strided_slice %5 {offsets = [0, 1, 0, 0], sizes = [1, 1, 128, 32], strides = [1, 1, 1, 1]} : vector<2x2x128x32xf32> to vector<1x1x128x32xf32>
    %17 = vector.shape_cast %16 : vector<1x1x128x32xf32> to vector<128x32xf32>
    %18 = vector.shape_cast %15 : vector<4x8x128xf32> to vector<32x128xf32>
    %19 = arith.truncf %18 : vector<32x128xf32> to vector<32x128xbf16>
    %20 = arith.truncf %17 : vector<128x32xf32> to vector<128x32xbf16>
    %cst_10 = arith.constant dense<0.000000e+00> : vector<32x32xf32>
    %21 = tpu.matmul %19, %20, %cst_10 {dimension_numbers = #tpu.dot_dimension_numbers<[1], [0], [0], [1], [0, 0, 1, 1], [], []>} : vector<32x128xbf16>, vector<128x32xbf16>, vector<32x32xf32> -> vector<32x32xf32>
    %22 = arith.addf %14, %21 : vector<32x32xf32>
    %23 = vector.extract_strided_slice %4 {offsets = [1, 0, 0], sizes = [4, 8, 128], strides = [1, 1, 1]} : vector<5x9x128xf32> to vector<4x8x128xf32>
    %24 = vector.extract_strided_slice %5 {offsets = [1, 0, 0, 0], sizes = [1, 1, 128, 32], strides = [1, 1, 1, 1]} : vector<2x2x128x32xf32> to vector<1x1x128x32xf32>
    %25 = vector.shape_cast %24 : vector<1x1x128x32xf32> to vector<128x32xf32>
    %26 = vector.shape_cast %23 : vector<4x8x128xf32> to vector<32x128xf32>
    %27 = arith.truncf %26 : vector<32x128xf32> to vector<32x128xbf16>
    %28 = arith.truncf %25 : vector<128x32xf32> to vector<128x32xbf16>
    %cst_11 = arith.constant dense<0.000000e+00> : vector<32x32xf32>
    %29 = tpu.matmul %27, %28, %cst_11 {dimension_numbers = #tpu.dot_dimension_numbers<[1], [0], [0], [1], [0, 0, 1, 1], [], []>} : vector<32x128xbf16>, vector<128x32xbf16>, vector<32x32xf32> -> vector<32x32xf32>
    %30 = arith.addf %22, %29 : vector<32x32xf32>
    %31 = vector.extract_strided_slice %4 {offsets = [1, 1, 0], sizes = [4, 8, 128], strides = [1, 1, 1]} : vector<5x9x128xf32> to vector<4x8x128xf32>
    %32 = vector.extract_strided_slice %5 {offsets = [1, 1, 0, 0], sizes = [1, 1, 128, 32], strides = [1, 1, 1, 1]} : vector<2x2x128x32xf32> to vector<1x1x128x32xf32>
    %33 = vector.shape_cast %32 : vector<1x1x128x32xf32> to vector<128x32xf32>
    %34 = vector.shape_cast %31 : vector<4x8x128xf32> to vector<32x128xf32>
    %35 = arith.truncf %34 : vector<32x128xf32> to vector<32x128xbf16>
    %36 = arith.truncf %33 : vector<128x32xf32> to vector<128x32xbf16>
    %cst_12 = arith.constant dense<0.000000e+00> : vector<32x32xf32>
    %37 = tpu.matmul %35, %36, %cst_12 {dimension_numbers = #tpu.dot_dimension_numbers<[1], [0], [0], [1], [0, 0, 1, 1], [], []>} : vector<32x128xbf16>, vector<128x32xbf16>, vector<32x32xf32> -> vector<32x32xf32>
    %38 = arith.addf %30, %37 : vector<32x32xf32>
    %c0_13 = arith.constant 0 : index
    %c0_14 = arith.constant 0 : index
    %39 = vector.load %arg10[%c0_13, %c0_14] : memref<32x32xf32, #tpu.memory_space<vmem>>, vector<32x32xf32>
    tpu.vector_store %arg10[%c0_13, %c0_14], %38 {strides = array<i32>} : memref<32x32xf32, #tpu.memory_space<vmem>>, vector<32x32xf32>,
    %c0_i32_15 = arith.constant 0 : i32
    %40 = arith.cmpi eq, %arg2, %c0_i32_15 : i32
    %41 = arith.extui %40 : i1 to i32
    %c0_i32_16 = arith.constant 0 : i32
    %42 = arith.cmpi ne, %41, %c0_i32_16 : i32
    scf.if %42 {
      %c0_17 = arith.constant 0 : index
      %c0_18 = arith.constant 0 : index
      %43 = vector.load %arg10[%c0_17, %c0_18] : memref<32x32xf32, #tpu.memory_space<vmem>>, vector<32x32xf32>
      %c0_19 = arith.constant 0 : index
      %c0_20 = arith.constant 0 : index
      %44 = vector.load %arg5[%c0_19, %c0_20] : memref<1x32xf32, #tpu.memory_space<vmem>>, vector<1x32xf32>
      %45 = vector.broadcast %44 : vector<1x32xf32> to vector<32x32xf32>
      %46 = arith.addf %43, %45 : vector<32x32xf32>
      %47 = vector.shape_cast %46 : vector<32x32xf32> to vector<4x8x32xf32>
      %c0_21 = arith.constant 0 : index
      %c0_22 = arith.constant 0 : index
      %c0_23 = arith.constant 0 : index
      %c0_24 = arith.constant 0 : index
      %48 = vector.load %arg6[%c0_21, %c0_22, %c0_23, %c0_24] : memref<1x4x8x1xf32, #tpu.memory_space<vmem>>, vector<1x4x8x1xf32>
      %49 = vector.shape_cast %48 : vector<1x4x8x1xf32> to vector<4x8x1xf32>
      %50 = vector.shape_cast %49 : vector<4x8x1xf32> to vector<32x1xf32>
      %c0_25 = arith.constant 0 : index
      %c0_26 = arith.constant 0 : index
      %c0_27 = arith.constant 0 : index
      %c0_28 = arith.constant 0 : index
      %51 = vector.load %arg7[%c0_25, %c0_26, %c0_27, %c0_28] : memref<1x1x1x32xf32, #tpu.memory_space<vmem>>, vector<1x1x1x32xf32>
      %52 = vector.shape_cast %51 : vector<1x1x1x32xf32> to vector<1x32xf32>
      %53 = vector.broadcast %50 : vector<32x1xf32> to vector<32x32xf32>
      %54 = vector.broadcast %52 : vector<1x32xf32> to vector<32x32xf32>
      %55 = arith.mulf %53, %54 : vector<32x32xf32>
      %c0_29 = arith.constant 0 : index
      %c0_30 = arith.constant 0 : index
      %56 = vector.load %arg8[%c0_29, %c0_30] : memref<1x32xf32, #tpu.memory_space<vmem>>, vector<1x32xf32>
      %57 = vector.broadcast %56 : vector<1x32xf32> to vector<32x32xf32>
      %58 = arith.addf %55, %57 : vector<32x32xf32>
      %59 = vector.shape_cast %47 : vector<4x8x32xf32> to vector<32x32xf32>
      %60 = arith.addf %59, %58 : vector<32x32xf32>
      %cst_31 = arith.constant 0.707106769 : f32
      %61 = vector.broadcast %cst_31 : f32 to vector<32x32xf32>
      %62 = arith.mulf %60, %61 : vector<32x32xf32>
      %63 = vector.shape_cast %62 : vector<32x32xf32> to vector<4x8x32xf32>
      %64 = vector.shape_cast %63 : vector<4x8x32xf32> to vector<1x4x8x32xf32>
      %c0_32 = arith.constant 0 : index
      %c0_33 = arith.constant 0 : index
      %c0_34 = arith.constant 0 : index
      %c0_35 = arith.constant 0 : index
      %65 = vector.load %arg9[%c0_32, %c0_33, %c0_34, %c0_35] : memref<1x4x8x32xf32, #tpu.memory_space<vmem>>, vector<1x4x8x32xf32>
      tpu.vector_store %arg9[%c0_32, %c0_33, %c0_34, %c0_35], %64 {strides = array<i32>} : memref<1x4x8x32xf32, #tpu.memory_space<vmem>>, vector<1x4x8x32xf32>,
    } else {
    }
    return
  }
  func.func @transform_0(%arg0: i32, %arg1: i32, %arg2: i32) -> (i32, i32, i32, i32) {
    %c0_i32 = arith.constant 0 : i32
    %c0_i32_0 = arith.constant 0 : i32
    %c0_i32_1 = arith.constant 0 : i32
    return %arg0, %c0_i32, %c0_i32_0, %arg2 : i32, i32, i32, i32
  }
  func.func @transform_1(%arg0: i32, %arg1: i32, %arg2: i32) -> (i32, i32, i32, i32) {
    %c0_i32 = arith.constant 0 : i32
    %c0_i32_0 = arith.constant 0 : i32
    %c0_i32_1 = arith.constant 0 : i32
    return %c0_i32, %c0_i32_0, %arg2, %arg1 : i32, i32, i32, i32
  }
  func.func @transform_2(%arg0: i32, %arg1: i32, %arg2: i32) -> (i32, i32) {
    %c0_i32 = arith.constant 0 : i32
    %c0_i32_0 = arith.constant 0 : i32
    return %c0_i32, %arg1 : i32, i32
  }
  func.func @transform_3(%arg0: i32, %arg1: i32, %arg2: i32) -> (i32, i32, i32, i32) {
    %c0_i32 = arith.constant 0 : i32
    %c0_i32_0 = arith.constant 0 : i32
    %c0_i32_1 = arith.constant 0 : i32
    %c0_i32_2 = arith.constant 0 : i32
    return %arg0, %c0_i32, %c0_i32_0, %c0_i32_1 : i32, i32, i32, i32
  }
  func.func @transform_4(%arg0: i32, %arg1: i32, %arg2: i32) -> (i32, i32, i32, i32) {
    %c0_i32 = arith.constant 0 : i32
    %c0_i32_0 = arith.constant 0 : i32
    %c0_i32_1 = arith.constant 0 : i32
    %c0_i32_2 = arith.constant 0 : i32
    return %c0_i32, %c0_i32_0, %c0_i32_1, %arg1 : i32, i32, i32, i32
  }
  func.func @transform_5(%arg0: i32, %arg1: i32, %arg2: i32) -> (i32, i32) {
    %c0_i32 = arith.constant 0 : i32
    %c0_i32_0 = arith.constant 0 : i32
    return %c0_i32, %arg1 : i32, i32
  }
  func.func @transform_6(%arg0: i32, %arg1: i32, %arg2: i32) -> (i32, i32, i32, i32) {
    %c0_i32 = arith.constant 0 : i32
    %c0_i32_0 = arith.constant 0 : i32
    %c0_i32_1 = arith.constant 0 : i32
    return %arg0, %c0_i32, %c0_i32_0, %arg1 : i32, i32, i32, i32
  }
}

module attributes {stable_mosaic.version = 11 : i64} {
  func.func @_conv_kernel(%arg0: i32, %arg1: i32, %arg2: i32, %arg3: memref<1x6x10x32xf32, #tpu.memory_space<vmem>>, %arg4: memref<3x3x32x32xf32, #tpu.memory_space<vmem>>, %arg5: memref<1x32xf32, #tpu.memory_space<vmem>>, %arg6: memref<1x4x8x32xf32, #tpu.memory_space<vmem>>, %arg7: memref<32x32xf32, #tpu.memory_space<vmem>>) attributes {dimension_semantics = [#tpu.dimension_semantics<parallel>, #tpu.dimension_semantics<parallel>, #tpu.dimension_semantics<arbitrary>], iteration_bounds = array<i64: 2, 1, 1>, scalar_prefetch = 0 : i64, scratch_operands = 1 : i64, tpu.core_type = #tpu.core_type<tc>, window_params = [{transform_indices = @transform_0, window_bounds = array<i64: 1, 6, 10, 32>}, {transform_indices = @transform_1, window_bounds = array<i64: 3, 3, 32, 32>}, {transform_indices = @transform_2, window_bounds = array<i64: 1, 32>}, {transform_indices = @transform_3, window_bounds = array<i64: 1, 4, 8, 32>}]} {
    %c0_i32 = arith.constant 0 : i32
    %0 = arith.cmpi eq, %arg2, %c0_i32 : i32
    %1 = arith.extui %0 : i1 to i32
    %c0_i32_0 = arith.constant 0 : i32
    %2 = arith.cmpi ne, %1, %c0_i32_0 : i32
    scf.if %2 {
      %cst_22 = arith.constant 0.000000e+00 : f32
      %83 = vector.broadcast %cst_22 : f32 to vector<32x32xf32>
      %c0_23 = arith.constant 0 : index
      %c0_24 = arith.constant 0 : index
      %84 = vector.load %arg7[%c0_23, %c0_24] : memref<32x32xf32, #tpu.memory_space<vmem>>, vector<32x32xf32>
      tpu.vector_store %arg7[%c0_23, %c0_24], %83 {strides = array<i32>} : memref<32x32xf32, #tpu.memory_space<vmem>>, vector<32x32xf32>,
    } else {
    }
    %c0 = arith.constant 0 : index
    %c0_1 = arith.constant 0 : index
    %c0_2 = arith.constant 0 : index
    %c0_3 = arith.constant 0 : index
    %3 = vector.load %arg3[%c0, %c0_1, %c0_2, %c0_3] : memref<1x6x10x32xf32, #tpu.memory_space<vmem>>, vector<1x6x10x32xf32>
    %4 = vector.shape_cast %3 : vector<1x6x10x32xf32> to vector<6x10x32xf32>
    %c0_4 = arith.constant 0 : index
    %c0_5 = arith.constant 0 : index
    %c0_6 = arith.constant 0 : index
    %c0_7 = arith.constant 0 : index
    %5 = vector.load %arg4[%c0_4, %c0_5, %c0_6, %c0_7] : memref<3x3x32x32xf32, #tpu.memory_space<vmem>>, vector<3x3x32x32xf32>
    %c0_8 = arith.constant 0 : index
    %c0_9 = arith.constant 0 : index
    %6 = vector.load %arg7[%c0_8, %c0_9] : memref<32x32xf32, #tpu.memory_space<vmem>>, vector<32x32xf32>
    %7 = vector.extract_strided_slice %4 {offsets = [0, 0, 0], sizes = [4, 8, 32], strides = [1, 1, 1]} : vector<6x10x32xf32> to vector<4x8x32xf32>
    %8 = vector.extract_strided_slice %5 {offsets = [0, 0, 0, 0], sizes = [1, 1, 32, 32], strides = [1, 1, 1, 1]} : vector<3x3x32x32xf32> to vector<1x1x32x32xf32>
    %9 = vector.shape_cast %8 : vector<1x1x32x32xf32> to vector<32x32xf32>
    %10 = vector.shape_cast %7 : vector<4x8x32xf32> to vector<32x32xf32>
    %11 = arith.truncf %10 : vector<32x32xf32> to vector<32x32xbf16>
    %12 = arith.truncf %9 : vector<32x32xf32> to vector<32x32xbf16>
    %cst = arith.constant dense<0.000000e+00> : vector<32x32xf32>
    %13 = tpu.matmul %11, %12, %cst {dimension_numbers = #tpu.dot_dimension_numbers<[1], [0], [0], [1], [0, 0, 1, 1], [], []>} : vector<32x32xbf16>, vector<32x32xbf16>, vector<32x32xf32> -> vector<32x32xf32>
    %14 = arith.addf %6, %13 : vector<32x32xf32>
    %15 = vector.extract_strided_slice %4 {offsets = [0, 1, 0], sizes = [4, 8, 32], strides = [1, 1, 1]} : vector<6x10x32xf32> to vector<4x8x32xf32>
    %16 = vector.extract_strided_slice %5 {offsets = [0, 1, 0, 0], sizes = [1, 1, 32, 32], strides = [1, 1, 1, 1]} : vector<3x3x32x32xf32> to vector<1x1x32x32xf32>
    %17 = vector.shape_cast %16 : vector<1x1x32x32xf32> to vector<32x32xf32>
    %18 = vector.shape_cast %15 : vector<4x8x32xf32> to vector<32x32xf32>
    %19 = arith.truncf %18 : vector<32x32xf32> to vector<32x32xbf16>
    %20 = arith.truncf %17 : vector<32x32xf32> to vector<32x32xbf16>
    %cst_10 = arith.constant dense<0.000000e+00> : vector<32x32xf32>
    %21 = tpu.matmul %19, %20, %cst_10 {dimension_numbers = #tpu.dot_dimension_numbers<[1], [0], [0], [1], [0, 0, 1, 1], [], []>} : vector<32x32xbf16>, vector<32x32xbf16>, vector<32x32xf32> -> vector<32x32xf32>
    %22 = arith.addf %14, %21 : vector<32x32xf32>
    %23 = vector.extract_strided_slice %4 {offsets = [0, 2, 0], sizes = [4, 8, 32], strides = [1, 1, 1]} : vector<6x10x32xf32> to vector<4x8x32xf32>
    %24 = vector.extract_strided_slice %5 {offsets = [0, 2, 0, 0], sizes = [1, 1, 32, 32], strides = [1, 1, 1, 1]} : vector<3x3x32x32xf32> to vector<1x1x32x32xf32>
    %25 = vector.shape_cast %24 : vector<1x1x32x32xf32> to vector<32x32xf32>
    %26 = vector.shape_cast %23 : vector<4x8x32xf32> to vector<32x32xf32>
    %27 = arith.truncf %26 : vector<32x32xf32> to vector<32x32xbf16>
    %28 = arith.truncf %25 : vector<32x32xf32> to vector<32x32xbf16>
    %cst_11 = arith.constant dense<0.000000e+00> : vector<32x32xf32>
    %29 = tpu.matmul %27, %28, %cst_11 {dimension_numbers = #tpu.dot_dimension_numbers<[1], [0], [0], [1], [0, 0, 1, 1], [], []>} : vector<32x32xbf16>, vector<32x32xbf16>, vector<32x32xf32> -> vector<32x32xf32>
    %30 = arith.addf %22, %29 : vector<32x32xf32>
    %31 = vector.extract_strided_slice %4 {offsets = [1, 0, 0], sizes = [4, 8, 32], strides = [1, 1, 1]} : vector<6x10x32xf32> to vector<4x8x32xf32>
    %32 = vector.extract_strided_slice %5 {offsets = [1, 0, 0, 0], sizes = [1, 1, 32, 32], strides = [1, 1, 1, 1]} : vector<3x3x32x32xf32> to vector<1x1x32x32xf32>
    %33 = vector.shape_cast %32 : vector<1x1x32x32xf32> to vector<32x32xf32>
    %34 = vector.shape_cast %31 : vector<4x8x32xf32> to vector<32x32xf32>
    %35 = arith.truncf %34 : vector<32x32xf32> to vector<32x32xbf16>
    %36 = arith.truncf %33 : vector<32x32xf32> to vector<32x32xbf16>
    %cst_12 = arith.constant dense<0.000000e+00> : vector<32x32xf32>
    %37 = tpu.matmul %35, %36, %cst_12 {dimension_numbers = #tpu.dot_dimension_numbers<[1], [0], [0], [1], [0, 0, 1, 1], [], []>} : vector<32x32xbf16>, vector<32x32xbf16>, vector<32x32xf32> -> vector<32x32xf32>
    %38 = arith.addf %30, %37 : vector<32x32xf32>
    %39 = vector.extract_strided_slice %4 {offsets = [1, 1, 0], sizes = [4, 8, 32], strides = [1, 1, 1]} : vector<6x10x32xf32> to vector<4x8x32xf32>
    %40 = vector.extract_strided_slice %5 {offsets = [1, 1, 0, 0], sizes = [1, 1, 32, 32], strides = [1, 1, 1, 1]} : vector<3x3x32x32xf32> to vector<1x1x32x32xf32>
    %41 = vector.shape_cast %40 : vector<1x1x32x32xf32> to vector<32x32xf32>
    %42 = vector.shape_cast %39 : vector<4x8x32xf32> to vector<32x32xf32>
    %43 = arith.truncf %42 : vector<32x32xf32> to vector<32x32xbf16>
    %44 = arith.truncf %41 : vector<32x32xf32> to vector<32x32xbf16>
    %cst_13 = arith.constant dense<0.000000e+00> : vector<32x32xf32>
    %45 = tpu.matmul %43, %44, %cst_13 {dimension_numbers = #tpu.dot_dimension_numbers<[1], [0], [0], [1], [0, 0, 1, 1], [], []>} : vector<32x32xbf16>, vector<32x32xbf16>, vector<32x32xf32> -> vector<32x32xf32>
    %46 = arith.addf %38, %45 : vector<32x32xf32>
    %47 = vector.extract_strided_slice %4 {offsets = [1, 2, 0], sizes = [4, 8, 32], strides = [1, 1, 1]} : vector<6x10x32xf32> to vector<4x8x32xf32>
    %48 = vector.extract_strided_slice %5 {offsets = [1, 2, 0, 0], sizes = [1, 1, 32, 32], strides = [1, 1, 1, 1]} : vector<3x3x32x32xf32> to vector<1x1x32x32xf32>
    %49 = vector.shape_cast %48 : vector<1x1x32x32xf32> to vector<32x32xf32>
    %50 = vector.shape_cast %47 : vector<4x8x32xf32> to vector<32x32xf32>
    %51 = arith.truncf %50 : vector<32x32xf32> to vector<32x32xbf16>
    %52 = arith.truncf %49 : vector<32x32xf32> to vector<32x32xbf16>
    %cst_14 = arith.constant dense<0.000000e+00> : vector<32x32xf32>
    %53 = tpu.matmul %51, %52, %cst_14 {dimension_numbers = #tpu.dot_dimension_numbers<[1], [0], [0], [1], [0, 0, 1, 1], [], []>} : vector<32x32xbf16>, vector<32x32xbf16>, vector<32x32xf32> -> vector<32x32xf32>
    %54 = arith.addf %46, %53 : vector<32x32xf32>
    %55 = vector.extract_strided_slice %4 {offsets = [2, 0, 0], sizes = [4, 8, 32], strides = [1, 1, 1]} : vector<6x10x32xf32> to vector<4x8x32xf32>
    %56 = vector.extract_strided_slice %5 {offsets = [2, 0, 0, 0], sizes = [1, 1, 32, 32], strides = [1, 1, 1, 1]} : vector<3x3x32x32xf32> to vector<1x1x32x32xf32>
    %57 = vector.shape_cast %56 : vector<1x1x32x32xf32> to vector<32x32xf32>
    %58 = vector.shape_cast %55 : vector<4x8x32xf32> to vector<32x32xf32>
    %59 = arith.truncf %58 : vector<32x32xf32> to vector<32x32xbf16>
    %60 = arith.truncf %57 : vector<32x32xf32> to vector<32x32xbf16>
    %cst_15 = arith.constant dense<0.000000e+00> : vector<32x32xf32>
    %61 = tpu.matmul %59, %60, %cst_15 {dimension_numbers = #tpu.dot_dimension_numbers<[1], [0], [0], [1], [0, 0, 1, 1], [], []>} : vector<32x32xbf16>, vector<32x32xbf16>, vector<32x32xf32> -> vector<32x32xf32>
    %62 = arith.addf %54, %61 : vector<32x32xf32>
    %63 = vector.extract_strided_slice %4 {offsets = [2, 1, 0], sizes = [4, 8, 32], strides = [1, 1, 1]} : vector<6x10x32xf32> to vector<4x8x32xf32>
    %64 = vector.extract_strided_slice %5 {offsets = [2, 1, 0, 0], sizes = [1, 1, 32, 32], strides = [1, 1, 1, 1]} : vector<3x3x32x32xf32> to vector<1x1x32x32xf32>
    %65 = vector.shape_cast %64 : vector<1x1x32x32xf32> to vector<32x32xf32>
    %66 = vector.shape_cast %63 : vector<4x8x32xf32> to vector<32x32xf32>
    %67 = arith.truncf %66 : vector<32x32xf32> to vector<32x32xbf16>
    %68 = arith.truncf %65 : vector<32x32xf32> to vector<32x32xbf16>
    %cst_16 = arith.constant dense<0.000000e+00> : vector<32x32xf32>
    %69 = tpu.matmul %67, %68, %cst_16 {dimension_numbers = #tpu.dot_dimension_numbers<[1], [0], [0], [1], [0, 0, 1, 1], [], []>} : vector<32x32xbf16>, vector<32x32xbf16>, vector<32x32xf32> -> vector<32x32xf32>
    %70 = arith.addf %62, %69 : vector<32x32xf32>
    %71 = vector.extract_strided_slice %4 {offsets = [2, 2, 0], sizes = [4, 8, 32], strides = [1, 1, 1]} : vector<6x10x32xf32> to vector<4x8x32xf32>
    %72 = vector.extract_strided_slice %5 {offsets = [2, 2, 0, 0], sizes = [1, 1, 32, 32], strides = [1, 1, 1, 1]} : vector<3x3x32x32xf32> to vector<1x1x32x32xf32>
    %73 = vector.shape_cast %72 : vector<1x1x32x32xf32> to vector<32x32xf32>
    %74 = vector.shape_cast %71 : vector<4x8x32xf32> to vector<32x32xf32>
    %75 = arith.truncf %74 : vector<32x32xf32> to vector<32x32xbf16>
    %76 = arith.truncf %73 : vector<32x32xf32> to vector<32x32xbf16>
    %cst_17 = arith.constant dense<0.000000e+00> : vector<32x32xf32>
    %77 = tpu.matmul %75, %76, %cst_17 {dimension_numbers = #tpu.dot_dimension_numbers<[1], [0], [0], [1], [0, 0, 1, 1], [], []>} : vector<32x32xbf16>, vector<32x32xbf16>, vector<32x32xf32> -> vector<32x32xf32>
    %78 = arith.addf %70, %77 : vector<32x32xf32>
    %c0_18 = arith.constant 0 : index
    %c0_19 = arith.constant 0 : index
    %79 = vector.load %arg7[%c0_18, %c0_19] : memref<32x32xf32, #tpu.memory_space<vmem>>, vector<32x32xf32>
    tpu.vector_store %arg7[%c0_18, %c0_19], %78 {strides = array<i32>} : memref<32x32xf32, #tpu.memory_space<vmem>>, vector<32x32xf32>,
    %c0_i32_20 = arith.constant 0 : i32
    %80 = arith.cmpi eq, %arg2, %c0_i32_20 : i32
    %81 = arith.extui %80 : i1 to i32
    %c0_i32_21 = arith.constant 0 : i32
    %82 = arith.cmpi ne, %81, %c0_i32_21 : i32
    scf.if %82 {
      %c0_22 = arith.constant 0 : index
      %c0_23 = arith.constant 0 : index
      %83 = vector.load %arg7[%c0_22, %c0_23] : memref<32x32xf32, #tpu.memory_space<vmem>>, vector<32x32xf32>
      %c0_24 = arith.constant 0 : index
      %c0_25 = arith.constant 0 : index
      %84 = vector.load %arg5[%c0_24, %c0_25] : memref<1x32xf32, #tpu.memory_space<vmem>>, vector<1x32xf32>
      %85 = vector.broadcast %84 : vector<1x32xf32> to vector<32x32xf32>
      %86 = arith.addf %83, %85 : vector<32x32xf32>
      %cst_26 = arith.constant 0.000000e+00 : f32
      %87 = vector.broadcast %cst_26 : f32 to vector<32x32xf32>
      %88 = arith.cmpf ogt, %86, %87 : vector<32x32xf32>
      %cst_27 = arith.constant 2.000000e-01 : f32
      %89 = vector.broadcast %cst_27 : f32 to vector<32x32xf32>
      %90 = arith.mulf %89, %86 : vector<32x32xf32>
      %91 = arith.select %88, %86, %90 : vector<32x32xi1>, vector<32x32xf32>
      %92 = vector.shape_cast %91 : vector<32x32xf32> to vector<4x8x32xf32>
      %93 = vector.shape_cast %92 : vector<4x8x32xf32> to vector<1x4x8x32xf32>
      %c0_28 = arith.constant 0 : index
      %c0_29 = arith.constant 0 : index
      %c0_30 = arith.constant 0 : index
      %c0_31 = arith.constant 0 : index
      %94 = vector.load %arg6[%c0_28, %c0_29, %c0_30, %c0_31] : memref<1x4x8x32xf32, #tpu.memory_space<vmem>>, vector<1x4x8x32xf32>
      tpu.vector_store %arg6[%c0_28, %c0_29, %c0_30, %c0_31], %93 {strides = array<i32>} : memref<1x4x8x32xf32, #tpu.memory_space<vmem>>, vector<1x4x8x32xf32>,
    } else {
    }
    return
  }
  func.func @transform_0(%arg0: i32, %arg1: i32, %arg2: i32) -> (i32, i32, i32, i32) {
    %c0_i32 = arith.constant 0 : i32
    %c0_i32_0 = arith.constant 0 : i32
    %c0_i32_1 = arith.constant 0 : i32
    return %arg0, %c0_i32, %c0_i32_0, %arg2 : i32, i32, i32, i32
  }
  func.func @transform_1(%arg0: i32, %arg1: i32, %arg2: i32) -> (i32, i32, i32, i32) {
    %c0_i32 = arith.constant 0 : i32
    %c0_i32_0 = arith.constant 0 : i32
    %c0_i32_1 = arith.constant 0 : i32
    return %c0_i32, %c0_i32_0, %arg2, %arg1 : i32, i32, i32, i32
  }
  func.func @transform_2(%arg0: i32, %arg1: i32, %arg2: i32) -> (i32, i32) {
    %c0_i32 = arith.constant 0 : i32
    %c0_i32_0 = arith.constant 0 : i32
    return %c0_i32, %arg1 : i32, i32
  }
  func.func @transform_3(%arg0: i32, %arg1: i32, %arg2: i32) -> (i32, i32, i32, i32) {
    %c0_i32 = arith.constant 0 : i32
    %c0_i32_0 = arith.constant 0 : i32
    %c0_i32_1 = arith.constant 0 : i32
    return %arg0, %c0_i32, %c0_i32_0, %arg1 : i32, i32, i32, i32
  }
}

module attributes {stable_mosaic.version = 11 : i64} {
  func.func @_conv_kernel(%arg0: i32, %arg1: i32, %arg2: i32, %arg3: memref<1x6x10x32xf32, #tpu.memory_space<vmem>>, %arg4: memref<3x3x32x32xf32, #tpu.memory_space<vmem>>, %arg5: memref<1x32xf32, #tpu.memory_space<vmem>>, %arg6: memref<1x4x8x32xf32, #tpu.memory_space<vmem>>, %arg7: memref<1x1x32x32xf32, #tpu.memory_space<vmem>>, %arg8: memref<1x32xf32, #tpu.memory_space<vmem>>, %arg9: memref<1x4x8x32xf32, #tpu.memory_space<vmem>>, %arg10: memref<32x32xf32, #tpu.memory_space<vmem>>) attributes {dimension_semantics = [#tpu.dimension_semantics<parallel>, #tpu.dimension_semantics<parallel>, #tpu.dimension_semantics<arbitrary>], iteration_bounds = array<i64: 2, 1, 1>, scalar_prefetch = 0 : i64, scratch_operands = 1 : i64, tpu.core_type = #tpu.core_type<tc>, window_params = [{transform_indices = @transform_0, window_bounds = array<i64: 1, 6, 10, 32>}, {transform_indices = @transform_1, window_bounds = array<i64: 3, 3, 32, 32>}, {transform_indices = @transform_2, window_bounds = array<i64: 1, 32>}, {transform_indices = @transform_3, window_bounds = array<i64: 1, 4, 8, 32>}, {transform_indices = @transform_4, window_bounds = array<i64: 1, 1, 32, 32>}, {transform_indices = @transform_5, window_bounds = array<i64: 1, 32>}, {transform_indices = @transform_6, window_bounds = array<i64: 1, 4, 8, 32>}]} {
    %c0_i32 = arith.constant 0 : i32
    %0 = arith.cmpi eq, %arg2, %c0_i32 : i32
    %1 = arith.extui %0 : i1 to i32
    %c0_i32_0 = arith.constant 0 : i32
    %2 = arith.cmpi ne, %1, %c0_i32_0 : i32
    scf.if %2 {
      %cst_22 = arith.constant 0.000000e+00 : f32
      %83 = vector.broadcast %cst_22 : f32 to vector<32x32xf32>
      %c0_23 = arith.constant 0 : index
      %c0_24 = arith.constant 0 : index
      %84 = vector.load %arg10[%c0_23, %c0_24] : memref<32x32xf32, #tpu.memory_space<vmem>>, vector<32x32xf32>
      tpu.vector_store %arg10[%c0_23, %c0_24], %83 {strides = array<i32>} : memref<32x32xf32, #tpu.memory_space<vmem>>, vector<32x32xf32>,
    } else {
    }
    %c0 = arith.constant 0 : index
    %c0_1 = arith.constant 0 : index
    %c0_2 = arith.constant 0 : index
    %c0_3 = arith.constant 0 : index
    %3 = vector.load %arg3[%c0, %c0_1, %c0_2, %c0_3] : memref<1x6x10x32xf32, #tpu.memory_space<vmem>>, vector<1x6x10x32xf32>
    %4 = vector.shape_cast %3 : vector<1x6x10x32xf32> to vector<6x10x32xf32>
    %c0_4 = arith.constant 0 : index
    %c0_5 = arith.constant 0 : index
    %c0_6 = arith.constant 0 : index
    %c0_7 = arith.constant 0 : index
    %5 = vector.load %arg4[%c0_4, %c0_5, %c0_6, %c0_7] : memref<3x3x32x32xf32, #tpu.memory_space<vmem>>, vector<3x3x32x32xf32>
    %c0_8 = arith.constant 0 : index
    %c0_9 = arith.constant 0 : index
    %6 = vector.load %arg10[%c0_8, %c0_9] : memref<32x32xf32, #tpu.memory_space<vmem>>, vector<32x32xf32>
    %7 = vector.extract_strided_slice %4 {offsets = [0, 0, 0], sizes = [4, 8, 32], strides = [1, 1, 1]} : vector<6x10x32xf32> to vector<4x8x32xf32>
    %8 = vector.extract_strided_slice %5 {offsets = [0, 0, 0, 0], sizes = [1, 1, 32, 32], strides = [1, 1, 1, 1]} : vector<3x3x32x32xf32> to vector<1x1x32x32xf32>
    %9 = vector.shape_cast %8 : vector<1x1x32x32xf32> to vector<32x32xf32>
    %10 = vector.shape_cast %7 : vector<4x8x32xf32> to vector<32x32xf32>
    %11 = arith.truncf %10 : vector<32x32xf32> to vector<32x32xbf16>
    %12 = arith.truncf %9 : vector<32x32xf32> to vector<32x32xbf16>
    %cst = arith.constant dense<0.000000e+00> : vector<32x32xf32>
    %13 = tpu.matmul %11, %12, %cst {dimension_numbers = #tpu.dot_dimension_numbers<[1], [0], [0], [1], [0, 0, 1, 1], [], []>} : vector<32x32xbf16>, vector<32x32xbf16>, vector<32x32xf32> -> vector<32x32xf32>
    %14 = arith.addf %6, %13 : vector<32x32xf32>
    %15 = vector.extract_strided_slice %4 {offsets = [0, 1, 0], sizes = [4, 8, 32], strides = [1, 1, 1]} : vector<6x10x32xf32> to vector<4x8x32xf32>
    %16 = vector.extract_strided_slice %5 {offsets = [0, 1, 0, 0], sizes = [1, 1, 32, 32], strides = [1, 1, 1, 1]} : vector<3x3x32x32xf32> to vector<1x1x32x32xf32>
    %17 = vector.shape_cast %16 : vector<1x1x32x32xf32> to vector<32x32xf32>
    %18 = vector.shape_cast %15 : vector<4x8x32xf32> to vector<32x32xf32>
    %19 = arith.truncf %18 : vector<32x32xf32> to vector<32x32xbf16>
    %20 = arith.truncf %17 : vector<32x32xf32> to vector<32x32xbf16>
    %cst_10 = arith.constant dense<0.000000e+00> : vector<32x32xf32>
    %21 = tpu.matmul %19, %20, %cst_10 {dimension_numbers = #tpu.dot_dimension_numbers<[1], [0], [0], [1], [0, 0, 1, 1], [], []>} : vector<32x32xbf16>, vector<32x32xbf16>, vector<32x32xf32> -> vector<32x32xf32>
    %22 = arith.addf %14, %21 : vector<32x32xf32>
    %23 = vector.extract_strided_slice %4 {offsets = [0, 2, 0], sizes = [4, 8, 32], strides = [1, 1, 1]} : vector<6x10x32xf32> to vector<4x8x32xf32>
    %24 = vector.extract_strided_slice %5 {offsets = [0, 2, 0, 0], sizes = [1, 1, 32, 32], strides = [1, 1, 1, 1]} : vector<3x3x32x32xf32> to vector<1x1x32x32xf32>
    %25 = vector.shape_cast %24 : vector<1x1x32x32xf32> to vector<32x32xf32>
    %26 = vector.shape_cast %23 : vector<4x8x32xf32> to vector<32x32xf32>
    %27 = arith.truncf %26 : vector<32x32xf32> to vector<32x32xbf16>
    %28 = arith.truncf %25 : vector<32x32xf32> to vector<32x32xbf16>
    %cst_11 = arith.constant dense<0.000000e+00> : vector<32x32xf32>
    %29 = tpu.matmul %27, %28, %cst_11 {dimension_numbers = #tpu.dot_dimension_numbers<[1], [0], [0], [1], [0, 0, 1, 1], [], []>} : vector<32x32xbf16>, vector<32x32xbf16>, vector<32x32xf32> -> vector<32x32xf32>
    %30 = arith.addf %22, %29 : vector<32x32xf32>
    %31 = vector.extract_strided_slice %4 {offsets = [1, 0, 0], sizes = [4, 8, 32], strides = [1, 1, 1]} : vector<6x10x32xf32> to vector<4x8x32xf32>
    %32 = vector.extract_strided_slice %5 {offsets = [1, 0, 0, 0], sizes = [1, 1, 32, 32], strides = [1, 1, 1, 1]} : vector<3x3x32x32xf32> to vector<1x1x32x32xf32>
    %33 = vector.shape_cast %32 : vector<1x1x32x32xf32> to vector<32x32xf32>
    %34 = vector.shape_cast %31 : vector<4x8x32xf32> to vector<32x32xf32>
    %35 = arith.truncf %34 : vector<32x32xf32> to vector<32x32xbf16>
    %36 = arith.truncf %33 : vector<32x32xf32> to vector<32x32xbf16>
    %cst_12 = arith.constant dense<0.000000e+00> : vector<32x32xf32>
    %37 = tpu.matmul %35, %36, %cst_12 {dimension_numbers = #tpu.dot_dimension_numbers<[1], [0], [0], [1], [0, 0, 1, 1], [], []>} : vector<32x32xbf16>, vector<32x32xbf16>, vector<32x32xf32> -> vector<32x32xf32>
    %38 = arith.addf %30, %37 : vector<32x32xf32>
    %39 = vector.extract_strided_slice %4 {offsets = [1, 1, 0], sizes = [4, 8, 32], strides = [1, 1, 1]} : vector<6x10x32xf32> to vector<4x8x32xf32>
    %40 = vector.extract_strided_slice %5 {offsets = [1, 1, 0, 0], sizes = [1, 1, 32, 32], strides = [1, 1, 1, 1]} : vector<3x3x32x32xf32> to vector<1x1x32x32xf32>
    %41 = vector.shape_cast %40 : vector<1x1x32x32xf32> to vector<32x32xf32>
    %42 = vector.shape_cast %39 : vector<4x8x32xf32> to vector<32x32xf32>
    %43 = arith.truncf %42 : vector<32x32xf32> to vector<32x32xbf16>
    %44 = arith.truncf %41 : vector<32x32xf32> to vector<32x32xbf16>
    %cst_13 = arith.constant dense<0.000000e+00> : vector<32x32xf32>
    %45 = tpu.matmul %43, %44, %cst_13 {dimension_numbers = #tpu.dot_dimension_numbers<[1], [0], [0], [1], [0, 0, 1, 1], [], []>} : vector<32x32xbf16>, vector<32x32xbf16>, vector<32x32xf32> -> vector<32x32xf32>
    %46 = arith.addf %38, %45 : vector<32x32xf32>
    %47 = vector.extract_strided_slice %4 {offsets = [1, 2, 0], sizes = [4, 8, 32], strides = [1, 1, 1]} : vector<6x10x32xf32> to vector<4x8x32xf32>
    %48 = vector.extract_strided_slice %5 {offsets = [1, 2, 0, 0], sizes = [1, 1, 32, 32], strides = [1, 1, 1, 1]} : vector<3x3x32x32xf32> to vector<1x1x32x32xf32>
    %49 = vector.shape_cast %48 : vector<1x1x32x32xf32> to vector<32x32xf32>
    %50 = vector.shape_cast %47 : vector<4x8x32xf32> to vector<32x32xf32>
    %51 = arith.truncf %50 : vector<32x32xf32> to vector<32x32xbf16>
    %52 = arith.truncf %49 : vector<32x32xf32> to vector<32x32xbf16>
    %cst_14 = arith.constant dense<0.000000e+00> : vector<32x32xf32>
    %53 = tpu.matmul %51, %52, %cst_14 {dimension_numbers = #tpu.dot_dimension_numbers<[1], [0], [0], [1], [0, 0, 1, 1], [], []>} : vector<32x32xbf16>, vector<32x32xbf16>, vector<32x32xf32> -> vector<32x32xf32>
    %54 = arith.addf %46, %53 : vector<32x32xf32>
    %55 = vector.extract_strided_slice %4 {offsets = [2, 0, 0], sizes = [4, 8, 32], strides = [1, 1, 1]} : vector<6x10x32xf32> to vector<4x8x32xf32>
    %56 = vector.extract_strided_slice %5 {offsets = [2, 0, 0, 0], sizes = [1, 1, 32, 32], strides = [1, 1, 1, 1]} : vector<3x3x32x32xf32> to vector<1x1x32x32xf32>
    %57 = vector.shape_cast %56 : vector<1x1x32x32xf32> to vector<32x32xf32>
    %58 = vector.shape_cast %55 : vector<4x8x32xf32> to vector<32x32xf32>
    %59 = arith.truncf %58 : vector<32x32xf32> to vector<32x32xbf16>
    %60 = arith.truncf %57 : vector<32x32xf32> to vector<32x32xbf16>
    %cst_15 = arith.constant dense<0.000000e+00> : vector<32x32xf32>
    %61 = tpu.matmul %59, %60, %cst_15 {dimension_numbers = #tpu.dot_dimension_numbers<[1], [0], [0], [1], [0, 0, 1, 1], [], []>} : vector<32x32xbf16>, vector<32x32xbf16>, vector<32x32xf32> -> vector<32x32xf32>
    %62 = arith.addf %54, %61 : vector<32x32xf32>
    %63 = vector.extract_strided_slice %4 {offsets = [2, 1, 0], sizes = [4, 8, 32], strides = [1, 1, 1]} : vector<6x10x32xf32> to vector<4x8x32xf32>
    %64 = vector.extract_strided_slice %5 {offsets = [2, 1, 0, 0], sizes = [1, 1, 32, 32], strides = [1, 1, 1, 1]} : vector<3x3x32x32xf32> to vector<1x1x32x32xf32>
    %65 = vector.shape_cast %64 : vector<1x1x32x32xf32> to vector<32x32xf32>
    %66 = vector.shape_cast %63 : vector<4x8x32xf32> to vector<32x32xf32>
    %67 = arith.truncf %66 : vector<32x32xf32> to vector<32x32xbf16>
    %68 = arith.truncf %65 : vector<32x32xf32> to vector<32x32xbf16>
    %cst_16 = arith.constant dense<0.000000e+00> : vector<32x32xf32>
    %69 = tpu.matmul %67, %68, %cst_16 {dimension_numbers = #tpu.dot_dimension_numbers<[1], [0], [0], [1], [0, 0, 1, 1], [], []>} : vector<32x32xbf16>, vector<32x32xbf16>, vector<32x32xf32> -> vector<32x32xf32>
    %70 = arith.addf %62, %69 : vector<32x32xf32>
    %71 = vector.extract_strided_slice %4 {offsets = [2, 2, 0], sizes = [4, 8, 32], strides = [1, 1, 1]} : vector<6x10x32xf32> to vector<4x8x32xf32>
    %72 = vector.extract_strided_slice %5 {offsets = [2, 2, 0, 0], sizes = [1, 1, 32, 32], strides = [1, 1, 1, 1]} : vector<3x3x32x32xf32> to vector<1x1x32x32xf32>
    %73 = vector.shape_cast %72 : vector<1x1x32x32xf32> to vector<32x32xf32>
    %74 = vector.shape_cast %71 : vector<4x8x32xf32> to vector<32x32xf32>
    %75 = arith.truncf %74 : vector<32x32xf32> to vector<32x32xbf16>
    %76 = arith.truncf %73 : vector<32x32xf32> to vector<32x32xbf16>
    %cst_17 = arith.constant dense<0.000000e+00> : vector<32x32xf32>
    %77 = tpu.matmul %75, %76, %cst_17 {dimension_numbers = #tpu.dot_dimension_numbers<[1], [0], [0], [1], [0, 0, 1, 1], [], []>} : vector<32x32xbf16>, vector<32x32xbf16>, vector<32x32xf32> -> vector<32x32xf32>
    %78 = arith.addf %70, %77 : vector<32x32xf32>
    %c0_18 = arith.constant 0 : index
    %c0_19 = arith.constant 0 : index
    %79 = vector.load %arg10[%c0_18, %c0_19] : memref<32x32xf32, #tpu.memory_space<vmem>>, vector<32x32xf32>
    tpu.vector_store %arg10[%c0_18, %c0_19], %78 {strides = array<i32>} : memref<32x32xf32, #tpu.memory_space<vmem>>, vector<32x32xf32>,
    %c0_i32_20 = arith.constant 0 : i32
    %80 = arith.cmpi eq, %arg2, %c0_i32_20 : i32
    %81 = arith.extui %80 : i1 to i32
    %c0_i32_21 = arith.constant 0 : i32
    %82 = arith.cmpi ne, %81, %c0_i32_21 : i32
    scf.if %82 {
      %c0_22 = arith.constant 0 : index
      %c0_23 = arith.constant 0 : index
      %83 = vector.load %arg10[%c0_22, %c0_23] : memref<32x32xf32, #tpu.memory_space<vmem>>, vector<32x32xf32>
      %c0_24 = arith.constant 0 : index
      %c0_25 = arith.constant 0 : index
      %84 = vector.load %arg5[%c0_24, %c0_25] : memref<1x32xf32, #tpu.memory_space<vmem>>, vector<1x32xf32>
      %85 = vector.broadcast %84 : vector<1x32xf32> to vector<32x32xf32>
      %86 = arith.addf %83, %85 : vector<32x32xf32>
      %cst_26 = arith.constant 0.000000e+00 : f32
      %87 = vector.broadcast %cst_26 : f32 to vector<32x32xf32>
      %88 = arith.cmpf ogt, %86, %87 : vector<32x32xf32>
      %cst_27 = arith.constant 2.000000e-01 : f32
      %89 = vector.broadcast %cst_27 : f32 to vector<32x32xf32>
      %90 = arith.mulf %89, %86 : vector<32x32xf32>
      %91 = arith.select %88, %86, %90 : vector<32x32xi1>, vector<32x32xf32>
      %92 = vector.shape_cast %91 : vector<32x32xf32> to vector<4x8x32xf32>
      %c0_28 = arith.constant 0 : index
      %c0_29 = arith.constant 0 : index
      %c0_30 = arith.constant 0 : index
      %c0_31 = arith.constant 0 : index
      %93 = vector.load %arg6[%c0_28, %c0_29, %c0_30, %c0_31] : memref<1x4x8x32xf32, #tpu.memory_space<vmem>>, vector<1x4x8x32xf32>
      %94 = vector.shape_cast %93 : vector<1x4x8x32xf32> to vector<4x8x32xf32>
      %95 = vector.shape_cast %94 : vector<4x8x32xf32> to vector<32x32xf32>
      %c0_32 = arith.constant 0 : index
      %c0_33 = arith.constant 0 : index
      %c0_34 = arith.constant 0 : index
      %c0_35 = arith.constant 0 : index
      %96 = vector.load %arg7[%c0_32, %c0_33, %c0_34, %c0_35] : memref<1x1x32x32xf32, #tpu.memory_space<vmem>>, vector<1x1x32x32xf32>
      %97 = vector.shape_cast %96 : vector<1x1x32x32xf32> to vector<32x32xf32>
      %98 = arith.truncf %95 : vector<32x32xf32> to vector<32x32xbf16>
      %99 = arith.truncf %97 : vector<32x32xf32> to vector<32x32xbf16>
      %cst_36 = arith.constant dense<0.000000e+00> : vector<32x32xf32>
      %100 = tpu.matmul %98, %99, %cst_36 {dimension_numbers = #tpu.dot_dimension_numbers<[1], [0], [0], [1], [0, 0, 1, 1], [], []>} : vector<32x32xbf16>, vector<32x32xbf16>, vector<32x32xf32> -> vector<32x32xf32>
      %c0_37 = arith.constant 0 : index
      %c0_38 = arith.constant 0 : index
      %101 = vector.load %arg8[%c0_37, %c0_38] : memref<1x32xf32, #tpu.memory_space<vmem>>, vector<1x32xf32>
      %102 = vector.broadcast %101 : vector<1x32xf32> to vector<32x32xf32>
      %103 = arith.addf %100, %102 : vector<32x32xf32>
      %104 = vector.shape_cast %92 : vector<4x8x32xf32> to vector<32x32xf32>
      %105 = arith.addf %104, %103 : vector<32x32xf32>
      %cst_39 = arith.constant 0.707106769 : f32
      %106 = vector.broadcast %cst_39 : f32 to vector<32x32xf32>
      %107 = arith.mulf %105, %106 : vector<32x32xf32>
      %108 = vector.shape_cast %107 : vector<32x32xf32> to vector<4x8x32xf32>
      %109 = vector.shape_cast %108 : vector<4x8x32xf32> to vector<1x4x8x32xf32>
      %c0_40 = arith.constant 0 : index
      %c0_41 = arith.constant 0 : index
      %c0_42 = arith.constant 0 : index
      %c0_43 = arith.constant 0 : index
      %110 = vector.load %arg9[%c0_40, %c0_41, %c0_42, %c0_43] : memref<1x4x8x32xf32, #tpu.memory_space<vmem>>, vector<1x4x8x32xf32>
      tpu.vector_store %arg9[%c0_40, %c0_41, %c0_42, %c0_43], %109 {strides = array<i32>} : memref<1x4x8x32xf32, #tpu.memory_space<vmem>>, vector<1x4x8x32xf32>,
    } else {
    }
    return
  }
  func.func @transform_0(%arg0: i32, %arg1: i32, %arg2: i32) -> (i32, i32, i32, i32) {
    %c0_i32 = arith.constant 0 : i32
    %c0_i32_0 = arith.constant 0 : i32
    %c0_i32_1 = arith.constant 0 : i32
    return %arg0, %c0_i32, %c0_i32_0, %arg2 : i32, i32, i32, i32
  }
  func.func @transform_1(%arg0: i32, %arg1: i32, %arg2: i32) -> (i32, i32, i32, i32) {
    %c0_i32 = arith.constant 0 : i32
    %c0_i32_0 = arith.constant 0 : i32
    %c0_i32_1 = arith.constant 0 : i32
    return %c0_i32, %c0_i32_0, %arg2, %arg1 : i32, i32, i32, i32
  }
  func.func @transform_2(%arg0: i32, %arg1: i32, %arg2: i32) -> (i32, i32) {
    %c0_i32 = arith.constant 0 : i32
    %c0_i32_0 = arith.constant 0 : i32
    return %c0_i32, %arg1 : i32, i32
  }
  func.func @transform_3(%arg0: i32, %arg1: i32, %arg2: i32) -> (i32, i32, i32, i32) {
    %c0_i32 = arith.constant 0 : i32
    %c0_i32_0 = arith.constant 0 : i32
    %c0_i32_1 = arith.constant 0 : i32
    %c0_i32_2 = arith.constant 0 : i32
    return %arg0, %c0_i32, %c0_i32_0, %c0_i32_1 : i32, i32, i32, i32
  }
  func.func @transform_4(%arg0: i32, %arg1: i32, %arg2: i32) -> (i32, i32, i32, i32) {
    %c0_i32 = arith.constant 0 : i32
    %c0_i32_0 = arith.constant 0 : i32
    %c0_i32_1 = arith.constant 0 : i32
    %c0_i32_2 = arith.constant 0 : i32
    return %c0_i32, %c0_i32_0, %c0_i32_1, %arg1 : i32, i32, i32, i32
  }
  func.func @transform_5(%arg0: i32, %arg1: i32, %arg2: i32) -> (i32, i32) {
    %c0_i32 = arith.constant 0 : i32
    %c0_i32_0 = arith.constant 0 : i32
    return %c0_i32, %arg1 : i32, i32
  }
  func.func @transform_6(%arg0: i32, %arg1: i32, %arg2: i32) -> (i32, i32, i32, i32) {
    %c0_i32 = arith.constant 0 : i32
    %c0_i32_0 = arith.constant 0 : i32
    %c0_i32_1 = arith.constant 0 : i32
    return %arg0, %c0_i32, %c0_i32_0, %arg1 : i32, i32, i32, i32
  }
}

</mosaic_0001>

<llo_original>
// kernel: forward.5
$region0: #{forward.5}
  #allocation0 [shape = 'u32[]', space=smem, size = 0x4, offset = 0x4, fixed_abs, tag = 'smem constant byte address 0x4 - core index']
  #allocation1 [shape = 'u32[144,128]{1,0:T(1,128)}', space=vmem, size = 0x12000, scoped, tag = 'internal scratch']
  #allocation2 [shape = 'f32[128,32]{1,0:T(8,128)}', space=vmem, size = 0x10000, scoped, tag = 'scratch operand']
  %s0 = inlined_call_operand.vmem [shape: f32[2,10,18,1], index: 0, kind: input, shape index: {}]
  %s1 = inlined_call_operand.vmem [shape: f32[3,3,1,32], index: 1, kind: input, shape index: {}]
  %s2 = inlined_call_operand.vmem [shape: f32[1,32], index: 2, kind: input, shape index: {}]
  %s3 = inlined_call_operand.vmem [shape: f32[2,8,16,32], index: 3, kind: output, shape index: {}]
  %s4 = sld [smem:[#allocation0]]
  $region53: #{forward.5} parent=0
    _
  %s6 = ssub.s32 1, %s4
  %s7 = scalar_select 0, %s6, %s4
  loop: start=0, step=1, limit=4
  $region2: #{forward.5} parent=0 // loop_pre_header
    _
  $region3: #{forward.5} parent=0 // loop_header
    %s9 = sphi 0, %s13
    %p10 = scmp.ge.s32.totalorder %s9, 4
    %s16 = sphi 0, %s35
    %s17 = sphi 0, %s31
    %s18 = sphi 0, %s27
    %s19 = sphi 0, %s16
    %s20 = sphi 0, %s17
    %s21 = sphi 0, %s18
    %s22 = sphi 0, %s19
    %s23 = sphi 0, %s20
    %s24 = sphi 0, %s21
    %s40 = sphi 0, %s42
    %s43 = sphi 0, %s40
    %s44 = sphi 0, %s43
    %s60 = sphi 0, %s44
    %s68 = sphi 0, %s70
    %s71 = sphi 0, %s68
    %s72 = sphi 0, %s71
    %s88 = sphi 0, %s72
    %s94 = sphi 0, %s96
    %s97 = sphi 0, %s94
    %s98 = sphi 0, %s97
    %s114 = sphi 0, %s98
    %s122 = sphi 0, %s124
    %s125 = sphi 0, %s122
    %s126 = sphi 0, %s125
    %s142 = sphi 0, %s126
  $region4: #{forward.5} parent=0 // loop_header_branch
    %12 = sbr.rel (%p10) target = $region8
  $region5: #{forward.5} parent=0 // loop_body
    %s14 = ssub.s32 %s9, 1
    %s15 = ssub.s32 %s9, 2
    %s25 = sadd.s32 1, %s18
    %p26 = scmp.ge.s32.totalorder %s25, 1
    %s27 = scalar_select %p26, 0, %s25
    %s28 = sadd.s32 1, %s17
    %s29 = scalar_select %p26, %s28, %s17
    %p30 = scmp.ge.s32.totalorder %s29, 1
    %s31 = scalar_select %p30, 0, %s29
    %s32 = sadd.s32 1, %s16
    %s33 = scalar_select %p30, %s32, %s16
    %p34 = scmp.ge.s32.totalorder %s33, 2
    %s35 = scalar_select %p34, 0, %s33
    %s36 = ssub.s32 %s16, %s35
    %s37 = ssub.s32 %s18, %s27
    %s38 = sor.u32 %s36, %s37
    %p39 = scmp.eq.s32.totalorder %s38, 0
    %s41 = sadd.s32 %s40, 1
    %s42 = scalar_select %p39, %s40, %s41
    %p45 = pneg %p39
    %p46 = scmp.eq.s32.totalorder %s9, 1
    %p47 = por %p45, %p46
    %p48 = scmp.ne.s32.totalorder %s40, %s43
    %p49 = scmp.eq.s32.totalorder %s9, 0
    %p50 = por %p48, %p49
    %p51 = scmp.ne.s32.totalorder %s40, %s43
    %p52 = scmp.eq.s32.totalorder %s14, 1
    %p53 = por %p51, %p52
    %p54 = scmp.ne.s32.totalorder %s43, %s44
    %p55 = scmp.eq.s32.totalorder %s14, 0
    %p56 = por %p54, %p55
    %p57 = scmp.ne.s32.totalorder %s43, %s44
    %p58 = scmp.eq.s32.totalorder %s15, 1
    %p59 = por %p57, %p58
    %p61 = scmp.ne.s32.totalorder %s44, %s60
    %p62 = scmp.eq.s32.totalorder %s15, 0
    %p63 = por %p61, %p62
    %s64 = ssub.s32 %s18, %s27
    %s65 = ssub.s32 %s17, %s31
    %s66 = sor.u32 %s64, %s65
    %p67 = scmp.eq.s32.totalorder %s66, 0
    %s69 = sadd.s32 %s68, 1
    %s70 = scalar_select %p67, %s68, %s69
    %p73 = pneg %p67
    %p74 = scmp.eq.s32.totalorder %s9, 1
    %p75 = por %p73, %p74
    %p76 = scmp.ne.s32.totalorder %s68, %s71
    %p77 = scmp.eq.s32.totalorder %s9, 0
    %p78 = por %p76, %p77
    %p79 = scmp.ne.s32.totalorder %s68, %s71
    %p80 = scmp.eq.s32.totalorder %s14, 1
    %p81 = por %p79, %p80
    %p82 = scmp.ne.s32.totalorder %s71, %s72
    %p83 = scmp.eq.s32.totalorder %s14, 0
    %p84 = por %p82, %p83
    %p85 = scmp.ne.s32.totalorder %s71, %s72
    %p86 = scmp.eq.s32.totalorder %s15, 1
    %p87 = por %p85, %p86
    %p89 = scmp.ne.s32.totalorder %s72, %s88
    %p90 = scmp.eq.s32.totalorder %s15, 0
    %p91 = por %p89, %p90
    %s92 = ssub.s32 %s17, %s31
    %p93 = scmp.eq.s32.totalorder %s92, 0
    %s95 = sadd.s32 %s94, 1
    %s96 = scalar_select %p93, %s94, %s95
    %p99 = pneg %p93
    %p100 = scmp.eq.s32.totalorder %s9, 1
    %p101 = por %p99, %p100
    %p102 = scmp.ne.s32.totalorder %s94, %s97
    %p103 = scmp.eq.s32.totalorder %s9, 0
    %p104 = por %p102, %p103
    %p105 = scmp.ne.s32.totalorder %s94, %s97
    %p106 = scmp.eq.s32.totalorder %s14, 1
    %p107 = por %p105, %p106
    %p108 = scmp.ne.s32.totalorder %s97, %s98
    %p109 = scmp.eq.s32.totalorder %s14, 0
    %p110 = por %p108, %p109
    %p111 = scmp.ne.s32.totalorder %s97, %s98
    %p112 = scmp.eq.s32.totalorder %s15, 1
    %p113 = por %p111, %p112
    %p115 = scmp.ne.s32.totalorder %s98, %s114
    %p116 = scmp.eq.s32.totalorder %s15, 0
    %p117 = por %p115, %p116
    %s118 = ssub.s32 %s16, %s35
    %s119 = ssub.s32 %s17, %s31
    %s120 = sor.u32 %s118, %s119
    %p121 = scmp.eq.s32.totalorder %s120, 0
    %s123 = sadd.s32 %s122, 1
    %s124 = scalar_select %p121, %s122, %s123
    %p127 = pneg %p121
    %p128 = scmp.eq.s32.totalorder %s9, 1
    %p129 = por %p127, %p128
    %p130 = scmp.ne.s32.totalorder %s122, %s125
    %p131 = scmp.eq.s32.totalorder %s9, 0
    %p132 = por %p130, %p131
    %p133 = scmp.ne.s32.totalorder %s122, %s125
    %p134 = scmp.eq.s32.totalorder %s14, 1
    %p135 = por %p133, %p134
    %p136 = scmp.ne.s32.totalorder %s125, %s126
    %p137 = scmp.eq.s32.totalorder %s14, 0
    %p138 = por %p136, %p137
    %p139 = scmp.ne.s32.totalorder %s125, %s126
    %p140 = scmp.eq.s32.totalorder %s15, 1
    %p141 = por %p139, %p140
    %p143 = scmp.ne.s32.totalorder %s126, %s142
    %p144 = scmp.eq.s32.totalorder %s15, 0
    %p145 = por %p143, %p144
    %p146 = scmp.le.s32.totalorder 1, %s9
    %p147 = scmp.lt.s32.totalorder %s9, 3
    %p148 = pnand %p146, %p147
    %p149 = pneg %p148
    // Predicated region
    $region9: #{forward.5} parent=5 // pred_check
      _
    $region10: #{forward.5} parent=5 // pred_check_branch
      %151 = sbr.rel (%p148) target = $region12
    $region11: #{forward.5} parent=5 // pred_region
      %s152 = ssub.s32 %s9, 1
      // Predicated region
      $region13: #{forward.5} parent=11 // pred_check
        %p153 = pneg %p84
      $region14: #{forward.5} parent=11 // pred_check_branch
        %155 = sbr.rel (%p153) target = $region16
      $region15: #{forward.5} parent=11 // pred_region
        %p156 = scmp.lt.s32.totalorder %s21, 0
        %s157 = scalar_select %p156, %s21, 0
        %p158 = scmp.lt.s32.totalorder %s20, 0
        %s159 = scalar_select %p158, %s20, 0
        %s160 = sadd.s32 %s159, %s157
        %s161 = scalar_lea.vmem %s1, %s160
      $region16: #{forward.5} parent=11 // pred_fallthru
        _
      // Predicated region
      $region17: #{forward.5} parent=11 // pred_check
        %p162 = pneg %p110
      $region18: #{forward.5} parent=11 // pred_check_branch
        %164 = sbr.rel (%p162) target = $region20
      $region19: #{forward.5} parent=11 // pred_region
        %p165 = scmp.lt.s32.totalorder %s20, 0
        %s166 = scalar_select %p165, %s20, 0
        %s167 = scalar_lea.vmem %s2, %s166
      $region20: #{forward.5} parent=11 // pred_fallthru
        _
    $region12: #{forward.5} parent=5 // pred_fallthru
      _
    %p168 = scmp.lt.s32.totalorder %s9, 2
    // Predicated region
    $region21: #{forward.5} parent=5 // pred_check
      %p169 = pneg %p168
    $region22: #{forward.5} parent=5 // pred_check_branch
      %171 = sbr.rel (%p169) target = $region24
    $region23: #{forward.5} parent=5 // pred_region
      // Predicated region
      $region25: #{forward.5} parent=23 // pred_check
        %p172 = pneg %p50
      $region26: #{forward.5} parent=23 // pred_check_branch
        %174 = sbr.rel (%p172) target = $region28
      $region27: #{forward.5} parent=23 // pred_region
        %p175 = scmp.lt.s32.totalorder %s16, 1
        %s176 = scalar_select %p175, %s16, 1
        %p177 = scmp.lt.s32.totalorder %s18, 0
        %s178 = scalar_select %p177, %s18, 0
        %s179 = smul.addr %s176, 30
        %s180 = sadd.s32 %s178, %s179
        %s181 = smul.addr %s180, 8
        %s182 = scalar_lea.vmem %s0, %s181
      $region28: #{forward.5} parent=23 // pred_fallthru
        _
    $region24: #{forward.5} parent=5 // pred_fallthru
      _
    %p183 = scmp.le.s32.totalorder 1, %s9
    %p184 = scmp.lt.s32.totalorder %s9, 3
    %p185 = pnand %p183, %p184
    %p186 = pneg %p185
    // Predicated region
    $region29: #{forward.5} parent=5 // pred_check
      _
    $region30: #{forward.5} parent=5 // pred_check_branch
      %188 = sbr.rel (%p185) target = $region32
    $region31: #{forward.5} parent=5 // pred_region
      %s189 = ssub.s32 %s9, 1
      %p190 = scmp.lt.s32.totalorder %s19, 1
      %s191 = scalar_select %p190, %s19, 1
      %p192 = scmp.lt.s32.totalorder %s21, 0
      %s193 = scalar_select %p192, %s21, 0
      %s194 = smul.addr %s191, 30
      %s195 = sadd.s32 %s193, %s194
      %s196 = smul.addr %s195, 8
      %s197 = scalar_lea.vmem %s0, %s196
      %p198 = pneg %p56
      %p199 = pneg %p53
      %p200 = scmp.lt.s32.totalorder %s21, 0
      %s201 = scalar_select %p200, %s21, 0
      %p202 = scmp.lt.s32.totalorder %s20, 0
      %s203 = scalar_select %p202, %s20, 0
      %s204 = sadd.s32 %s203, %s201
      %s205 = scalar_lea.vmem %s1, %s204
      %p206 = pneg %p84
      %p207 = pneg %p81
      %p208 = scmp.lt.s32.totalorder %s20, 0
      %s209 = scalar_select %p208, %s20, 0
      %s210 = scalar_lea.vmem %s2, %s209
      %p211 = pneg %p110
      %p212 = pneg %p107
      %p213 = pneg %p138
      %p214 = pneg %p135
      %p215 = scmp.lt.s32.totalorder %s19, 1
      %s216 = scalar_select %p215, %s19, 1
      %p217 = scmp.lt.s32.totalorder %s20, 0
      %s218 = scalar_select %p217, %s20, 0
      %s219 = smul.addr %s216, 16
      %s220 = sadd.s32 %s218, %s219
      %s221 = smul.addr %s220, 8
      %s222 = scalar_lea.vmem %s3, %s221
      %p223 = scmp.lt.s32.totalorder %s19, 1
      %s224 = scalar_select %p223, %s19, 1
      %p225 = scmp.lt.s32.totalorder %s21, 0
      %s226 = scalar_select %p225, %s21, 0
      %s227 = smul.addr %s224, 30
      %s228 = sadd.s32 %s226, %s227
      %s229 = smul.addr %s228, 8
      %s230 = scalar_lea.vmem %s0, %s229
      %p231 = scmp.lt.s32.totalorder %s21, 0
      %s232 = scalar_select %p231, %s21, 0
      %p233 = scmp.lt.s32.totalorder %s20, 0
      %s234 = scalar_select %p233, %s20, 0
      %s235 = sadd.s32 %s234, %s232
      %s236 = scalar_lea.vmem %s1, %s235
      %p237 = scmp.lt.s32.totalorder %s20, 0
      %s238 = scalar_select %p237, %s20, 0
      %s239 = scalar_lea.vmem %s2, %s238
      %p240 = scmp.lt.s32.totalorder %s19, 1
      %s241 = scalar_select %p240, %s19, 1
      %p242 = scmp.lt.s32.totalorder %s20, 0
      %s243 = scalar_select %p242, %s20, 0
      %s244 = smul.addr %s241, 16
      %s245 = sadd.s32 %s243, %s244
      %s246 = smul.addr %s245, 8
      %s247 = scalar_lea.vmem %s3, %s246
      %p248 = scmp.eq.s32.totalorder %s21, 0
      // Predicated region
      $region33: #{forward.5} parent=31 // pred_check
        %p249 = pneg %p248
      $region34: #{forward.5} parent=31 // pred_check_branch
        %251 = sbr.rel (%p249) target = $region36
      $region35: #{forward.5} parent=31 // pred_region
        %vm252 = vcmask 261120
        %253 = vst.msk [vmem:[#allocation2] sm:$0xff] %vm252, 0.0
        %254 = vst.msk [vmem:[#allocation2 + $0x8] sm:$0xff] %vm252, 0.0
        %255 = vst.msk [vmem:[#allocation2 + $0x10] sm:$0xff] %vm252, 0.0
        %256 = vst.msk [vmem:[#allocation2 + $0x18] sm:$0xff] %vm252, 0.0
        %257 = vst.msk [vmem:[#allocation2 + $0x20] sm:$0xff] %vm252, 0.0
        %258 = vst.msk [vmem:[#allocation2 + $0x28] sm:$0xff] %vm252, 0.0
        %259 = vst.msk [vmem:[#allocation2 + $0x30] sm:$0xff] %vm252, 0.0
        %260 = vst.msk [vmem:[#allocation2 + $0x38] sm:$0xff] %vm252, 0.0
        %261 = vst.msk [vmem:[#allocation2 + $0x40] sm:$0xff] %vm252, 0.0
        %262 = vst.msk [vmem:[#allocation2 + $0x48] sm:$0xff] %vm252, 0.0
        %263 = vst.msk [vmem:[#allocation2 + $0x50] sm:$0xff] %vm252, 0.0
        %264 = vst.msk [vmem:[#allocation2 + $0x58] sm:$0xff] %vm252, 0.0
        %265 = vst.msk [vmem:[#allocation2 + $0x60] sm:$0xff] %vm252, 0.0
        %266 = vst.msk [vmem:[#allocation2 + $0x68] sm:$0xff] %vm252, 0.0
        %267 = vst.msk [vmem:[#allocation2 + $0x70] sm:$0xff] %vm252, 0.0
        %268 = vst.msk [vmem:[#allocation2 + $0x78] sm:$0xff] %vm252, 0.0
      $region36: #{forward.5} parent=31 // pred_fallthru
        _
      %v269 = vld [vmem:[%s230] sm:$0xff]
      %v270 = vld [vmem:[%s230 + $0x8] sm:$0xff]
      %v271 = vld [vmem:[%s230 + $0x10] sm:$0x3]
      %v272 = vld [vmem:[%s230 + $0x18] sm:$0xff]
      %v273 = vld [vmem:[%s230 + $0x20] sm:$0xff]
      %v274 = vld [vmem:[%s230 + $0x28] sm:$0x3]
      %v275 = vld [vmem:[%s230 + $0x30] sm:$0xff]
      %v276 = vld [vmem:[%s230 + $0x38] sm:$0xff]
      %v277 = vld [vmem:[%s230 + $0x40] sm:$0x3]
      %v278 = vld [vmem:[%s230 + $0x48] sm:$0xff]
      %v279 = vld [vmem:[%s230 + $0x50] sm:$0xff]
      %v280 = vld [vmem:[%s230 + $0x58] sm:$0x3]
      %v281 = vld [vmem:[%s230 + $0x60] sm:$0xff]
      %v282 = vld [vmem:[%s230 + $0x68] sm:$0xff]
      %v283 = vld [vmem:[%s230 + $0x70] sm:$0x3]
      %v284 = vld [vmem:[%s230 + $0x78] sm:$0xff]
      %v285 = vld [vmem:[%s230 + $0x80] sm:$0xff]
      %v286 = vld [vmem:[%s230 + $0x88] sm:$0x3]
      %v287 = vld [vmem:[%s230 + $0x90] sm:$0xff]
      %v288 = vld [vmem:[%s230 + $0x98] sm:$0xff]
      %v289 = vld [vmem:[%s230 + $0xa0] sm:$0x3]
      %v290 = vld [vmem:[%s230 + $0xa8] sm:$0xff]
      %v291 = vld [vmem:[%s230 + $0xb0] sm:$0xff]
      %v292 = vld [vmem:[%s230 + $0xb8] sm:$0x3]
      %v293 = vld [vmem:[%s230 + $0xc0] sm:$0xff]
      %v294 = vld [vmem:[%s230 + $0xc8] sm:$0xff]
      %v295 = vld [vmem:[%s230 + $0xd0] sm:$0x3]
      %v296 = vld [vmem:[%s230 + $0xd8] sm:$0xff]
      %v297 = vld [vmem:[%s230 + $0xe0] sm:$0xff]
      %v298 = vld [vmem:[%s230 + $0xe8] sm:$0x3]
      %v299 = vld [vmem:[%s236] sm:$0x1]
      %v300 = vld [vmem:[%s236 + $0x1] sm:$0x1]
      %v301 = vld [vmem:[%s236 + $0x2] sm:$0x1]
      %v302 = vld [vmem:[%s236 + $0x3] sm:$0x1]
      %v303 = vld [vmem:[%s236 + $0x4] sm:$0x1]
      %v304 = vld [vmem:[%s236 + $0x5] sm:$0x1]
      %v305 = vld [vmem:[%s236 + $0x6] sm:$0x1]
      %v306 = vld [vmem:[%s236 + $0x7] sm:$0x1]
      %v307 = vld [vmem:[%s236 + $0x8] sm:$0x1]
      %v308 = vld [vmem:[#allocation2] sm:$0xff]
      %v309 = vld [vmem:[#allocation2 + $0x8] sm:$0xff]
      %v310 = vld [vmem:[#allocation2 + $0x10] sm:$0xff]
      %v311 = vld [vmem:[#allocation2 + $0x18] sm:$0xff]
      %v312 = vld [vmem:[#allocation2 + $0x20] sm:$0xff]
      %v313 = vld [vmem:[#allocation2 + $0x28] sm:$0xff]
      %v314 = vld [vmem:[#allocation2 + $0x30] sm:$0xff]
      %v315 = vld [vmem:[#allocation2 + $0x38] sm:$0xff]
      %v316 = vld [vmem:[#allocation2 + $0x40] sm:$0xff]
      %v317 = vld [vmem:[#allocation2 + $0x48] sm:$0xff]
      %v318 = vld [vmem:[#allocation2 + $0x50] sm:$0xff]
      %v319 = vld [vmem:[#allocation2 + $0x58] sm:$0xff]
      %v320 = vld [vmem:[#allocation2 + $0x60] sm:$0xff]
      %v321 = vld [vmem:[#allocation2 + $0x68] sm:$0xff]
      %v322 = vld [vmem:[#allocation2 + $0x70] sm:$0xff]
      %v323 = vld [vmem:[#allocation2 + $0x78] sm:$0xff]
      %325 = vset.pattern.permute.xlu0 0
      %326 = vperm.xlu0 %325, %v269
      %v327 = vpop.permute.xlu0 %326
      %330 = vset.pattern.permute.xlu0 0
      %331 = vperm.xlu0 %330, %v270
      %v332 = vpop.permute.xlu0 %331
      %335 = vset.pattern.permute.xlu0 0
      %336 = vperm.xlu0 %335, %v272
      %v337 = vpop.permute.xlu0 %336
      %340 = vset.pattern.permute.xlu0 0
      %341 = vperm.xlu0 %340, %v273
      %v342 = vpop.permute.xlu0 %341
      %345 = vset.pattern.permute.xlu0 0
      %346 = vperm.xlu0 %345, %v275
      %v347 = vpop.permute.xlu0 %346
      %350 = vset.pattern.permute.xlu0 0
      %351 = vperm.xlu0 %350, %v276
      %v352 = vpop.permute.xlu0 %351
      %355 = vset.pattern.permute.xlu0 0
      %356 = vperm.xlu0 %355, %v278
      %v357 = vpop.permute.xlu0 %356
      %360 = vset.pattern.permute.xlu0 0
      %361 = vperm.xlu0 %360, %v279
      %v362 = vpop.permute.xlu0 %361
      %365 = vset.pattern.permute.xlu0 0
      %366 = vperm.xlu0 %365, %v281
      %v367 = vpop.permute.xlu0 %366
      %370 = vset.pattern.permute.xlu0 0
      %371 = vperm.xlu0 %370, %v282
      %v372 = vpop.permute.xlu0 %371
      %375 = vset.pattern.permute.xlu0 0
      %376 = vperm.xlu0 %375, %v284
      %v377 = vpop.permute.xlu0 %376
      %380 = vset.pattern.permute.xlu0 0
      %381 = vperm.xlu0 %380, %v285
      %v382 = vpop.permute.xlu0 %381
      %385 = vset.pattern.permute.xlu0 0
      %386 = vperm.xlu0 %385, %v287
      %v387 = vpop.permute.xlu0 %386
      %390 = vset.pattern.permute.xlu0 0
      %391 = vperm.xlu0 %390, %v288
      %v392 = vpop.permute.xlu0 %391
      %395 = vset.pattern.permute.xlu0 0
      %396 = vperm.xlu0 %395, %v290
      %v397 = vpop.permute.xlu0 %396
      %400 = vset.pattern.permute.xlu0 0
      %401 = vperm.xlu0 %400, %v291
      %v402 = vpop.permute.xlu0 %401
      %v405 = vlaneseq
      %v406 = vshrl.u32 %v405, 7
      %v407 = vsub.s32 0, %v406
      %v408 = vrot.slane %v299, %v407
      %v410 = vmul.f32 %v327, %v408
      %v411 = vmul.f32 %v332, %v408
      %v412 = vmul.f32 %v337, %v408
      %v413 = vmul.f32 %v342, %v408
      %v414 = vmul.f32 %v347, %v408
      %v415 = vmul.f32 %v352, %v408
      %v416 = vmul.f32 %v357, %v408
      %v417 = vmul.f32 %v362, %v408
      %v418 = vmul.f32 %v367, %v408
      %v419 = vmul.f32 %v372, %v408
      %v420 = vmul.f32 %v377, %v408
      %v421 = vmul.f32 %v382, %v408
      %v422 = vmul.f32 %v387, %v408
      %v423 = vmul.f32 %v392, %v408
      %v424 = vmul.f32 %v397, %v408
      %v425 = vmul.f32 %v402, %v408
      %v426 = vadd.f32 %v308, %v410
      %v427 = vadd.f32 %v309, %v411
      %v428 = vadd.f32 %v310, %v412
      %v429 = vadd.f32 %v311, %v413
      %v430 = vadd.f32 %v312, %v414
      %v431 = vadd.f32 %v313, %v415
      %v432 = vadd.f32 %v314, %v416
      %v433 = vadd.f32 %v315, %v417
      %v434 = vadd.f32 %v316, %v418
      %v435 = vadd.f32 %v317, %v419
      %v436 = vadd.f32 %v318, %v420
      %v437 = vadd.f32 %v319, %v421
      %v438 = vadd.f32 %v320, %v422
      %v439 = vadd.f32 %v321, %v423
      %v440 = vadd.f32 %v322, %v424
      %v441 = vadd.f32 %v323, %v425
      %vm450 = vcmask 1046528
      %v451 = vrot.slane %v269, 1
      %v452 = vrot.slane %v270, 1
      %v453 = vsel %vm450, %v451, %v452
      %v454 = vrot.slane %v271, 1
      %v455 = vsel %vm450, %v452, %v454
      %v456 = vrot.slane %v272, 1
      %v457 = vrot.slane %v273, 1
      %v458 = vsel %vm450, %v456, %v457
      %v459 = vrot.slane %v274, 1
      %v460 = vsel %vm450, %v457, %v459
      %v461 = vrot.slane %v275, 1
      %v462 = vrot.slane %v276, 1
      %v463 = vsel %vm450, %v461, %v462
      %v464 = vrot.slane %v277, 1
      %v465 = vsel %vm450, %v462, %v464
      %v466 = vrot.slane %v278, 1
      %v467 = vrot.slane %v279, 1
      %v468 = vsel %vm450, %v466, %v467
      %v469 = vrot.slane %v280, 1
      %v470 = vsel %vm450, %v467, %v469
      %v471 = vrot.slane %v281, 1
      %v472 = vrot.slane %v282, 1
      %v473 = vsel %vm450, %v471, %v472
      %v474 = vrot.slane %v283, 1
      %v475 = vsel %vm450, %v472, %v474
      %v476 = vrot.slane %v284, 1
      %v477 = vrot.slane %v285, 1
      %v478 = vsel %vm450, %v476, %v477
      %v479 = vrot.slane %v286, 1
      %v480 = vsel %vm450, %v477, %v479
      %v481 = vrot.slane %v287, 1
      %v482 = vrot.slane %v288, 1
      %v483 = vsel %vm450, %v481, %v482
      %v484 = vrot.slane %v289, 1
      %v485 = vsel %vm450, %v482, %v484
      %v486 = vrot.slane %v290, 1
      %v487 = vrot.slane %v291, 1
      %v488 = vsel %vm450, %v486, %v487
      %v489 = vrot.slane %v292, 1
      %v490 = vsel %vm450, %v487, %v489
      %491 = vset.pattern.permute.xlu0 0
      %492 = vperm.xlu0 %491, %v453
      %v493 = vpop.permute.xlu0 %492
      %495 = vset.pattern.permute.xlu0 0
      %496 = vperm.xlu0 %495, %v455
      %v497 = vpop.permute.xlu0 %496
      %499 = vset.pattern.permute.xlu0 0
      %500 = vperm.xlu0 %499, %v458
      %v501 = vpop.permute.xlu0 %500
      %503 = vset.pattern.permute.xlu0 0
      %504 = vperm.xlu0 %503, %v460
      %v505 = vpop.permute.xlu0 %504
      %507 = vset.pattern.permute.xlu0 0
      %508 = vperm.xlu0 %507, %v463
      %v509 = vpop.permute.xlu0 %508
      %511 = vset.pattern.permute.xlu0 0
      %512 = vperm.xlu0 %511, %v465
      %v513 = vpop.permute.xlu0 %512
      %515 = vset.pattern.permute.xlu0 0
      %516 = vperm.xlu0 %515, %v468
      %v517 = vpop.permute.xlu0 %516
      %519 = vset.pattern.permute.xlu0 0
      %520 = vperm.xlu0 %519, %v470
      %v521 = vpop.permute.xlu0 %520
      %523 = vset.pattern.permute.xlu0 0
      %524 = vperm.xlu0 %523, %v473
      %v525 = vpop.permute.xlu0 %524
      %527 = vset.pattern.permute.xlu0 0
      %528 = vperm.xlu0 %527, %v475
      %v529 = vpop.permute.xlu0 %528
      %531 = vset.pattern.permute.xlu0 0
      %532 = vperm.xlu0 %531, %v478
      %v533 = vpop.permute.xlu0 %532
      %535 = vset.pattern.permute.xlu0 0
      %536 = vperm.xlu0 %535, %v480
      %v537 = vpop.permute.xlu0 %536
      %539 = vset.pattern.permute.xlu0 0
      %540 = vperm.xlu0 %539, %v483
      %v541 = vpop.permute.xlu0 %540
      %543 = vset.pattern.permute.xlu0 0
      %544 = vperm.xlu0 %543, %v485
      %v545 = vpop.permute.xlu0 %544
      %547 = vset.pattern.permute.xlu0 0
      %548 = vperm.xlu0 %547, %v488
      %v549 = vpop.permute.xlu0 %548
      %551 = vset.pattern.permute.xlu0 0
      %552 = vperm.xlu0 %551, %v490
      %v553 = vpop.permute.xlu0 %552
      %v556 = vlaneseq
      %v557 = vshrl.u32 %v556, 7
      %v558 = vsub.s32 0, %v557
      %v559 = vrot.slane %v300, %v558
      %v561 = vmul.f32 %v493, %v559
      %v562 = vmul.f32 %v497, %v559
      %v563 = vmul.f32 %v501, %v559
      %v564 = vmul.f32 %v505, %v559
      %v565 = vmul.f32 %v509, %v559
      %v566 = vmul.f32 %v513, %v559
      %v567 = vmul.f32 %v517, %v559
      %v568 = vmul.f32 %v521, %v559
      %v569 = vmul.f32 %v525, %v559
      %v570 = vmul.f32 %v529, %v559
      %v571 = vmul.f32 %v533, %v559
      %v572 = vmul.f32 %v537, %v559
      %v573 = vmul.f32 %v541, %v559
      %v574 = vmul.f32 %v545, %v559
      %v575 = vmul.f32 %v549, %v559
      %v576 = vmul.f32 %v553, %v559
      %v577 = vadd.f32 %v426, %v561
      %v578 = vadd.f32 %v427, %v562
      %v579 = vadd.f32 %v428, %v563
      %v580 = vadd.f32 %v429, %v564
      %v581 = vadd.f32 %v430, %v565
      %v582 = vadd.f32 %v431, %v566
      %v583 = vadd.f32 %v432, %v567
      %v584 = vadd.f32 %v433, %v568
      %v585 = vadd.f32 %v434, %v569
      %v586 = vadd.f32 %v435, %v570
      %v587 = vadd.f32 %v436, %v571
      %v588 = vadd.f32 %v437, %v572
      %v589 = vadd.f32 %v438, %v573
      %v590 = vadd.f32 %v439, %v574
      %v591 = vadd.f32 %v440, %v575
      %v592 = vadd.f32 %v441, %v576
      %vm593 = vcmask 1045504
      %v594 = vrot.slane %v269, 2
      %v595 = vrot.slane %v270, 2
      %v596 = vsel %vm593, %v594, %v595
      %v597 = vrot.slane %v271, 2
      %v598 = vsel %vm593, %v595, %v597
      %v599 = vrot.slane %v272, 2
      %v600 = vrot.slane %v273, 2
      %v601 = vsel %vm593, %v599, %v600
      %v602 = vrot.slane %v274, 2
      %v603 = vsel %vm593, %v600, %v602
      %v604 = vrot.slane %v275, 2
      %v605 = vrot.slane %v276, 2
      %v606 = vsel %vm593, %v604, %v605
      %v607 = vrot.slane %v277, 2
      %v608 = vsel %vm593, %v605, %v607
      %v609 = vrot.slane %v278, 2
      %v610 = vrot.slane %v279, 2
      %v611 = vsel %vm593, %v609, %v610
      %v612 = vrot.slane %v280, 2
      %v613 = vsel %vm593, %v610, %v612
      %v614 = vrot.slane %v281, 2
      %v615 = vrot.slane %v282, 2
      %v616 = vsel %vm593, %v614, %v615
      %v617 = vrot.slane %v283, 2
      %v618 = vsel %vm593, %v615, %v617
      %v619 = vrot.slane %v284, 2
      %v620 = vrot.slane %v285, 2
      %v621 = vsel %vm593, %v619, %v620
      %v622 = vrot.slane %v286, 2
      %v623 = vsel %vm593, %v620, %v622
      %v624 = vrot.slane %v287, 2
      %v625 = vrot.slane %v288, 2
      %v626 = vsel %vm593, %v624, %v625
      %v627 = vrot.slane %v289, 2
      %v628 = vsel %vm593, %v625, %v627
      %v629 = vrot.slane %v290, 2
      %v630 = vrot.slane %v291, 2
      %v631 = vsel %vm593, %v629, %v630
      %v632 = vrot.slane %v292, 2
      %v633 = vsel %vm593, %v630, %v632
      %634 = vset.pattern.permute.xlu0 0
      %635 = vperm.xlu0 %634, %v596
      %v636 = vpop.permute.xlu0 %635
      %638 = vset.pattern.permute.xlu0 0
      %639 = vperm.xlu0 %638, %v598
      %v640 = vpop.permute.xlu0 %639
      %642 = vset.pattern.permute.xlu0 0
      %643 = vperm.xlu0 %642, %v601
      %v644 = vpop.permute.xlu0 %643
      %646 = vset.pattern.permute.xlu0 0
      %647 = vperm.xlu0 %646, %v603
      %v648 = vpop.permute.xlu0 %647
      %650 = vset.pattern.permute.xlu0 0
      %651 = vperm.xlu0 %650, %v606
      %v652 = vpop.permute.xlu0 %651
      %654 = vset.pattern.permute.xlu0 0
      %655 = vperm.xlu0 %654, %v608
      %v656 = vpop.permute.xlu0 %655
      %658 = vset.pattern.permute.xlu0 0
      %659 = vperm.xlu0 %658, %v611
      %v660 = vpop.permute.xlu0 %659
      %662 = vset.pattern.permute.xlu0 0
      %663 = vperm.xlu0 %662, %v613
      %v664 = vpop.permute.xlu0 %663
      %666 = vset.pattern.permute.xlu0 0
      %667 = vperm.xlu0 %666, %v616
      %v668 = vpop.permute.xlu0 %667
      %670 = vset.pattern.permute.xlu0 0
      %671 = vperm.xlu0 %670, %v618
      %v672 = vpop.permute.xlu0 %671
      %674 = vset.pattern.permute.xlu0 0
      %675 = vperm.xlu0 %674, %v621
      %v676 = vpop.permute.xlu0 %675
      %678 = vset.pattern.permute.xlu0 0
      %679 = vperm.xlu0 %678, %v623
      %v680 = vpop.permute.xlu0 %679
      %682 = vset.pattern.permute.xlu0 0
      %683 = vperm.xlu0 %682, %v626
      %v684 = vpop.permute.xlu0 %683
      %686 = vset.pattern.permute.xlu0 0
      %687 = vperm.xlu0 %686, %v628
      %v688 = vpop.permute.xlu0 %687
      %690 = vset.pattern.permute.xlu0 0
      %691 = vperm.xlu0 %690, %v631
      %v692 = vpop.permute.xlu0 %691
      %694 = vset.pattern.permute.xlu0 0
      %695 = vperm.xlu0 %694, %v633
      %v696 = vpop.permute.xlu0 %695
      %v699 = vlaneseq
      %v700 = vshrl.u32 %v699, 7
      %v701 = vsub.s32 0, %v700
      %v702 = vrot.slane %v301, %v701
      %v704 = vmul.f32 %v636, %v702
      %v705 = vmul.f32 %v640, %v702
      %v706 = vmul.f32 %v644, %v702
      %v707 = vmul.f32 %v648, %v702
      %v708 = vmul.f32 %v652, %v702
      %v709 = vmul.f32 %v656, %v702
      %v710 = vmul.f32 %v660, %v702
      %v711 = vmul.f32 %v664, %v702
      %v712 = vmul.f32 %v668, %v702
      %v713 = vmul.f32 %v672, %v702
      %v714 = vmul.f32 %v676, %v702
      %v715 = vmul.f32 %v680, %v702
      %v716 = vmul.f32 %v684, %v702
      %v717 = vmul.f32 %v688, %v702
      %v718 = vmul.f32 %v692, %v702
      %v719 = vmul.f32 %v696, %v702
      %v720 = vadd.f32 %v577, %v704
      %v721 = vadd.f32 %v578, %v705
      %v722 = vadd.f32 %v579, %v706
      %v723 = vadd.f32 %v580, %v707
      %v724 = vadd.f32 %v581, %v708
      %v725 = vadd.f32 %v582, %v709
      %v726 = vadd.f32 %v583, %v710
      %v727 = vadd.f32 %v584, %v711
      %v728 = vadd.f32 %v585, %v712
      %v729 = vadd.f32 %v586, %v713
      %v730 = vadd.f32 %v587, %v714
      %v731 = vadd.f32 %v588, %v715
      %v732 = vadd.f32 %v589, %v716
      %v733 = vadd.f32 %v590, %v717
      %v734 = vadd.f32 %v591, %v718
      %v735 = vadd.f32 %v592, %v719
      %737 = vset.pattern.permute.xlu0 0
      %738 = vperm.xlu0 %737, %v293
      %v739 = vpop.permute.xlu0 %738
      %742 = vset.pattern.permute.xlu0 0
      %743 = vperm.xlu0 %742, %v294
      %v744 = vpop.permute.xlu0 %743
      %v747 = vlaneseq
      %v748 = vshrl.u32 %v747, 7
      %v749 = vsub.s32 0, %v748
      %v750 = vrot.slane %v302, %v749
      %v752 = vmul.f32 %v337, %v750
      %v753 = vmul.f32 %v342, %v750
      %v754 = vmul.f32 %v347, %v750
      %v755 = vmul.f32 %v352, %v750
      %v756 = vmul.f32 %v357, %v750
      %v757 = vmul.f32 %v362, %v750
      %v758 = vmul.f32 %v367, %v750
      %v759 = vmul.f32 %v372, %v750
      %v760 = vmul.f32 %v377, %v750
      %v761 = vmul.f32 %v382, %v750
      %v762 = vmul.f32 %v387, %v750
      %v763 = vmul.f32 %v392, %v750
      %v764 = vmul.f32 %v397, %v750
      %v765 = vmul.f32 %v402, %v750
      %v766 = vmul.f32 %v739, %v750
      %v767 = vmul.f32 %v744, %v750
      %v768 = vadd.f32 %v720, %v752
      %v769 = vadd.f32 %v721, %v753
      %v770 = vadd.f32 %v722, %v754
      %v771 = vadd.f32 %v723, %v755
      %v772 = vadd.f32 %v724, %v756
      %v773 = vadd.f32 %v725, %v757
      %v774 = vadd.f32 %v726, %v758
      %v775 = vadd.f32 %v727, %v759
      %v776 = vadd.f32 %v728, %v760
      %v777 = vadd.f32 %v729, %v761
      %v778 = vadd.f32 %v730, %v762
      %v779 = vadd.f32 %v731, %v763
      %v780 = vadd.f32 %v732, %v764
      %v781 = vadd.f32 %v733, %v765
      %v782 = vadd.f32 %v734, %v766
      %v783 = vadd.f32 %v735, %v767
      %v785 = vrot.slane %v293, 1
      %v786 = vrot.slane %v294, 1
      %v787 = vsel %vm450, %v785, %v786
      %v788 = vrot.slane %v295, 1
      %v789 = vsel %vm450, %v786, %v788
      %790 = vset.pattern.permute.xlu0 0
      %791 = vperm.xlu0 %790, %v787
      %v792 = vpop.permute.xlu0 %791
      %794 = vset.pattern.permute.xlu0 0
      %795 = vperm.xlu0 %794, %v789
      %v796 = vpop.permute.xlu0 %795
      %v799 = vlaneseq
      %v800 = vshrl.u32 %v799, 7
      %v801 = vsub.s32 0, %v800
      %v802 = vrot.slane %v303, %v801
      %v804 = vmul.f32 %v501, %v802
      %v805 = vmul.f32 %v505, %v802
      %v806 = vmul.f32 %v509, %v802
      %v807 = vmul.f32 %v513, %v802
      %v808 = vmul.f32 %v517, %v802
      %v809 = vmul.f32 %v521, %v802
      %v810 = vmul.f32 %v525, %v802
      %v811 = vmul.f32 %v529, %v802
      %v812 = vmul.f32 %v533, %v802
      %v813 = vmul.f32 %v537, %v802
      %v814 = vmul.f32 %v541, %v802
      %v815 = vmul.f32 %v545, %v802
      %v816 = vmul.f32 %v549, %v802
      %v817 = vmul.f32 %v553, %v802
      %v818 = vmul.f32 %v792, %v802
      %v819 = vmul.f32 %v796, %v802
      %v820 = vadd.f32 %v768, %v804
      %v821 = vadd.f32 %v769, %v805
      %v822 = vadd.f32 %v770, %v806
      %v823 = vadd.f32 %v771, %v807
      %v824 = vadd.f32 %v772, %v808
      %v825 = vadd.f32 %v773, %v809
      %v826 = vadd.f32 %v774, %v810
      %v827 = vadd.f32 %v775, %v811
      %v828 = vadd.f32 %v776, %v812
      %v829 = vadd.f32 %v777, %v813
      %v830 = vadd.f32 %v778, %v814
      %v831 = vadd.f32 %v779, %v815
      %v832 = vadd.f32 %v780, %v816
      %v833 = vadd.f32 %v781, %v817
      %v834 = vadd.f32 %v782, %v818
      %v835 = vadd.f32 %v783, %v819
      %v836 = vrot.slane %v293, 2
      %v837 = vrot.slane %v294, 2
      %v838 = vsel %vm593, %v836, %v837
      %v839 = vrot.slane %v295, 2
      %v840 = vsel %vm593, %v837, %v839
      %841 = vset.pattern.permute.xlu0 0
      %842 = vperm.xlu0 %841, %v838
      %v843 = vpop.permute.xlu0 %842
      %845 = vset.pattern.permute.xlu0 0
      %846 = vperm.xlu0 %845, %v840
      %v847 = vpop.permute.xlu0 %846
      %v850 = vlaneseq
      %v851 = vshrl.u32 %v850, 7
      %v852 = vsub.s32 0, %v851
      %v853 = vrot.slane %v304, %v852
      %v855 = vmul.f32 %v644, %v853
      %v856 = vmul.f32 %v648, %v853
      %v857 = vmul.f32 %v652, %v853
      %v858 = vmul.f32 %v656, %v853
      %v859 = vmul.f32 %v660, %v853
      %v860 = vmul.f32 %v664, %v853
      %v861 = vmul.f32 %v668, %v853
      %v862 = vmul.f32 %v672, %v853
      %v863 = vmul.f32 %v676, %v853
      %v864 = vmul.f32 %v680, %v853
      %v865 = vmul.f32 %v684, %v853
      %v866 = vmul.f32 %v688, %v853
      %v867 = vmul.f32 %v692, %v853
      %v868 = vmul.f32 %v696, %v853
      %v869 = vmul.f32 %v843, %v853
      %v870 = vmul.f32 %v847, %v853
      %v871 = vadd.f32 %v820, %v855
      %v872 = vadd.f32 %v821, %v856
      %v873 = vadd.f32 %v822, %v857
      %v874 = vadd.f32 %v823, %v858
      %v875 = vadd.f32 %v824, %v859
      %v876 = vadd.f32 %v825, %v860
      %v877 = vadd.f32 %v826, %v861
      %v878 = vadd.f32 %v827, %v862
      %v879 = vadd.f32 %v828, %v863
      %v880 = vadd.f32 %v829, %v864
      %v881 = vadd.f32 %v830, %v865
      %v882 = vadd.f32 %v831, %v866
      %v883 = vadd.f32 %v832, %v867
      %v884 = vadd.f32 %v833, %v868
      %v885 = vadd.f32 %v834, %v869
      %v886 = vadd.f32 %v835, %v870
      %888 = vset.pattern.permute.xlu0 0
      %889 = vperm.xlu0 %888, %v296
      %v890 = vpop.permute.xlu0 %889
      %893 = vset.pattern.permute.xlu0 0
      %894 = vperm.xlu0 %893, %v297
      %v895 = vpop.permute.xlu0 %894
      %v898 = vlaneseq
      %v899 = vshrl.u32 %v898, 7
      %v900 = vsub.s32 0, %v899
      %v901 = vrot.slane %v305, %v900
      %v903 = vmul.f32 %v347, %v901
      %v904 = vmul.f32 %v352, %v901
      %v905 = vmul.f32 %v357, %v901
      %v906 = vmul.f32 %v362, %v901
      %v907 = vmul.f32 %v367, %v901
      %v908 = vmul.f32 %v372, %v901
      %v909 = vmul.f32 %v377, %v901
      %v910 = vmul.f32 %v382, %v901
      %v911 = vmul.f32 %v387, %v901
      %v912 = vmul.f32 %v392, %v901
      %v913 = vmul.f32 %v397, %v901
      %v914 = vmul.f32 %v402, %v901
      %v915 = vmul.f32 %v739, %v901
      %v916 = vmul.f32 %v744, %v901
      %v917 = vmul.f32 %v890, %v901
      %v918 = vmul.f32 %v895, %v901
      %v919 = vadd.f32 %v871, %v903
      %v920 = vadd.f32 %v872, %v904
      %v921 = vadd.f32 %v873, %v905
      %v922 = vadd.f32 %v874, %v906
      %v923 = vadd.f32 %v875, %v907
      %v924 = vadd.f32 %v876, %v908
      %v925 = vadd.f32 %v877, %v909
      %v926 = vadd.f32 %v878, %v910
      %v927 = vadd.f32 %v879, %v911
      %v928 = vadd.f32 %v880, %v912
      %v929 = vadd.f32 %v881, %v913
      %v930 = vadd.f32 %v882, %v914
      %v931 = vadd.f32 %v883, %v915
      %v932 = vadd.f32 %v884, %v916
      %v933 = vadd.f32 %v885, %v917
      %v934 = vadd.f32 %v886, %v918
      %v936 = vrot.slane %v296, 1
      %v937 = vrot.slane %v297, 1
      %v938 = vsel %vm450, %v936, %v937
      %v939 = vrot.slane %v298, 1
      %v940 = vsel %vm450, %v937, %v939
      %941 = vset.pattern.permute.xlu0 0
      %942 = vperm.xlu0 %941, %v938
      %v943 = vpop.permute.xlu0 %942
      %945 = vset.pattern.permute.xlu0 0
      %946 = vperm.xlu0 %945, %v940
      %v947 = vpop.permute.xlu0 %946
      %v950 = vlaneseq
      %v951 = vshrl.u32 %v950, 7
      %v952 = vsub.s32 0, %v951
      %v953 = vrot.slane %v306, %v952
      %v955 = vmul.f32 %v509, %v953
      %v956 = vmul.f32 %v513, %v953
      %v957 = vmul.f32 %v517, %v953
      %v958 = vmul.f32 %v521, %v953
      %v959 = vmul.f32 %v525, %v953
      %v960 = vmul.f32 %v529, %v953
      %v961 = vmul.f32 %v533, %v953
      %v962 = vmul.f32 %v537, %v953
      %v963 = vmul.f32 %v541, %v953
      %v964 = vmul.f32 %v545, %v953
      %v965 = vmul.f32 %v549, %v953
      %v966 = vmul.f32 %v553, %v953
      %v967 = vmul.f32 %v792, %v953
      %v968 = vmul.f32 %v796, %v953
      %v969 = vmul.f32 %v943, %v953
      %v970 = vmul.f32 %v947, %v953
      %v971 = vadd.f32 %v919, %v955
      %v972 = vadd.f32 %v920, %v956
      %v973 = vadd.f32 %v921, %v957
      %v974 = vadd.f32 %v922, %v958
      %v975 = vadd.f32 %v923, %v959
      %v976 = vadd.f32 %v924, %v960
      %v977 = vadd.f32 %v925, %v961
      %v978 = vadd.f32 %v926, %v962
      %v979 = vadd.f32 %v927, %v963
      %v980 = vadd.f32 %v928, %v964
      %v981 = vadd.f32 %v929, %v965
      %v982 = vadd.f32 %v930, %v966
      %v983 = vadd.f32 %v931, %v967
      %v984 = vadd.f32 %v932, %v968
      %v985 = vadd.f32 %v933, %v969
      %v986 = vadd.f32 %v934, %v970
      %v987 = vrot.slane %v296, 2
      %v988 = vrot.slane %v297, 2
      %v989 = vsel %vm593, %v987, %v988
      %v990 = vrot.slane %v298, 2
      %v991 = vsel %vm593, %v988, %v990
      %992 = vset.pattern.permute.xlu0 0
      %993 = vperm.xlu0 %992, %v989
      %v994 = vpop.permute.xlu0 %993
      %996 = vset.pattern.permute.xlu0 0
      %997 = vperm.xlu0 %996, %v991
      %v998 = vpop.permute.xlu0 %997
      %v1001 = vlaneseq
      %v1002 = vshrl.u32 %v1001, 7
      %v1003 = vsub.s32 0, %v1002
      %v1004 = vrot.slane %v307, %v1003
      %v1006 = vmul.f32 %v652, %v1004
      %v1007 = vmul.f32 %v656, %v1004
      %v1008 = vmul.f32 %v660, %v1004
      %v1009 = vmul.f32 %v664, %v1004
      %v1010 = vmul.f32 %v668, %v1004
      %v1011 = vmul.f32 %v672, %v1004
      %v1012 = vmul.f32 %v676, %v1004
      %v1013 = vmul.f32 %v680, %v1004
      %v1014 = vmul.f32 %v684, %v1004
      %v1015 = vmul.f32 %v688, %v1004
      %v1016 = vmul.f32 %v692, %v1004
      %v1017 = vmul.f32 %v696, %v1004
      %v1018 = vmul.f32 %v843, %v1004
      %v1019 = vmul.f32 %v847, %v1004
      %v1020 = vmul.f32 %v994, %v1004
      %v1021 = vmul.f32 %v998, %v1004
      %v1022 = vadd.f32 %v971, %v1006
      %v1023 = vadd.f32 %v972, %v1007
      %v1024 = vadd.f32 %v973, %v1008
      %v1025 = vadd.f32 %v974, %v1009
      %v1026 = vadd.f32 %v975, %v1010
      %v1027 = vadd.f32 %v976, %v1011
      %v1028 = vadd.f32 %v977, %v1012
      %v1029 = vadd.f32 %v978, %v1013
      %v1030 = vadd.f32 %v979, %v1014
      %v1031 = vadd.f32 %v980, %v1015
      %v1032 = vadd.f32 %v981, %v1016
      %v1033 = vadd.f32 %v982, %v1017
      %v1034 = vadd.f32 %v983, %v1018
      %v1035 = vadd.f32 %v984, %v1019
      %v1036 = vadd.f32 %v985, %v1020
      %v1037 = vadd.f32 %v986, %v1021
      %vm1038 = vcmask 261120
      %1039 = vst.msk [vmem:[#allocation2] sm:$0xff] %vm1038, %v1022
      %1040 = vst.msk [vmem:[#allocation2 + $0x8] sm:$0xff] %vm1038, %v1023
      %1041 = vst.msk [vmem:[#allocation2 + $0x10] sm:$0xff] %vm1038, %v1024
      %1042 = vst.msk [vmem:[#allocation2 + $0x18] sm:$0xff] %vm1038, %v1025
      %1043 = vst.msk [vmem:[#allocation2 + $0x20] sm:$0xff] %vm1038, %v1026
      %1044 = vst.msk [vmem:[#allocation2 + $0x28] sm:$0xff] %vm1038, %v1027
      %1045 = vst.msk [vmem:[#allocation2 + $0x30] sm:$0xff] %vm1038, %v1028
      %1046 = vst.msk [vmem:[#allocation2 + $0x38] sm:$0xff] %vm1038, %v1029
      %1047 = vst.msk [vmem:[#allocation2 + $0x40] sm:$0xff] %vm1038, %v1030
      %1048 = vst.msk [vmem:[#allocation2 + $0x48] sm:$0xff] %vm1038, %v1031
      %1049 = vst.msk [vmem:[#allocation2 + $0x50] sm:$0xff] %vm1038, %v1032
      %1050 = vst.msk [vmem:[#allocation2 + $0x58] sm:$0xff] %vm1038, %v1033
      %1051 = vst.msk [vmem:[#allocation2 + $0x60] sm:$0xff] %vm1038, %v1034
      %1052 = vst.msk [vmem:[#allocation2 + $0x68] sm:$0xff] %vm1038, %v1035
      %1053 = vst.msk [vmem:[#allocation2 + $0x70] sm:$0xff] %vm1038, %v1036
      %1054 = vst.msk [vmem:[#allocation2 + $0x78] sm:$0xff] %vm1038, %v1037
      // Predicated region
      $region37: #{forward.5} parent=31 // pred_check
        %p1055 = pneg %p248
      $region38: #{forward.5} parent=31 // pred_check_branch
        %1057 = sbr.rel (%p1055) target = $region40
      $region39: #{forward.5} parent=31 // pred_region
        %v1058 = vld [vmem:[#allocation2] sm:$0xff]
        %v1059 = vld [vmem:[#allocation2 + $0x8] sm:$0xff]
        %v1060 = vld [vmem:[#allocation2 + $0x10] sm:$0xff]
        %v1061 = vld [vmem:[#allocation2 + $0x18] sm:$0xff]
        %v1062 = vld [vmem:[#allocation2 + $0x20] sm:$0xff]
        %v1063 = vld [vmem:[#allocation2 + $0x28] sm:$0xff]
        %v1064 = vld [vmem:[#allocation2 + $0x30] sm:$0xff]
        %v1065 = vld [vmem:[#allocation2 + $0x38] sm:$0xff]
        %v1066 = vld [vmem:[#allocation2 + $0x40] sm:$0xff]
        %v1067 = vld [vmem:[#allocation2 + $0x48] sm:$0xff]
        %v1068 = vld [vmem:[#allocation2 + $0x50] sm:$0xff]
        %v1069 = vld [vmem:[#allocation2 + $0x58] sm:$0xff]
        %v1070 = vld [vmem:[#allocation2 + $0x60] sm:$0xff]
        %v1071 = vld [vmem:[#allocation2 + $0x68] sm:$0xff]
        %v1072 = vld [vmem:[#allocation2 + $0x70] sm:$0xff]
        %v1073 = vld [vmem:[#allocation2 + $0x78] sm:$0xff]
        %v1074 = vld [vmem:[%s239] sm:$0x1]
        %v1076 = vlaneseq
        %v1077 = vshrl.u32 %v1076, 7
        %v1078 = vsub.s32 0, %v1077
        %v1079 = vrot.slane %v1074, %v1078
        %v1081 = vadd.f32 %v1058, %v1079
        %v1082 = vadd.f32 %v1059, %v1079
        %v1083 = vadd.f32 %v1060, %v1079
        %v1084 = vadd.f32 %v1061, %v1079
        %v1085 = vadd.f32 %v1062, %v1079
        %v1086 = vadd.f32 %v1063, %v1079
        %v1087 = vadd.f32 %v1064, %v1079
        %v1088 = vadd.f32 %v1065, %v1079
        %v1089 = vadd.f32 %v1066, %v1079
        %v1090 = vadd.f32 %v1067, %v1079
        %v1091 = vadd.f32 %v1068, %v1079
        %v1092 = vadd.f32 %v1069, %v1079
        %v1093 = vadd.f32 %v1070, %v1079
        %v1094 = vadd.f32 %v1071, %v1079
        %v1095 = vadd.f32 %v1072, %v1079
        %v1096 = vadd.f32 %v1073, %v1079
        %vm1097 = vcmp.gt.f32.partialorder %v1081, 0.0
        %vm1098 = vcmp.gt.f32.partialorder %v1082, 0.0
        %vm1099 = vcmp.gt.f32.partialorder %v1083, 0.0
        %vm1100 = vcmp.gt.f32.partialorder %v1084, 0.0
        %vm1101 = vcmp.gt.f32.partialorder %v1085, 0.0
        %vm1102 = vcmp.gt.f32.partialorder %v1086, 0.0
        %vm1103 = vcmp.gt.f32.partialorder %v1087, 0.0
        %vm1104 = vcmp.gt.f32.partialorder %v1088, 0.0
        %vm1105 = vcmp.gt.f32.partialorder %v1089, 0.0
        %vm1106 = vcmp.gt.f32.partialorder %v1090, 0.0
        %vm1107 = vcmp.gt.f32.partialorder %v1091, 0.0
        %vm1108 = vcmp.gt.f32.partialorder %v1092, 0.0
        %vm1109 = vcmp.gt.f32.partialorder %v1093, 0.0
        %vm1110 = vcmp.gt.f32.partialorder %v1094, 0.0
        %vm1111 = vcmp.gt.f32.partialorder %v1095, 0.0
        %vm1112 = vcmp.gt.f32.partialorder %v1096, 0.0
        %v1113 = vmul.f32 %v1081, 0.2
        %v1114 = vmul.f32 %v1082, 0.2
        %v1115 = vmul.f32 %v1083, 0.2
        %v1116 = vmul.f32 %v1084, 0.2
        %v1117 = vmul.f32 %v1085, 0.2
        %v1118 = vmul.f32 %v1086, 0.2
        %v1119 = vmul.f32 %v1087, 0.2
        %v1120 = vmul.f32 %v1088, 0.2
        %v1121 = vmul.f32 %v1089, 0.2
        %v1122 = vmul.f32 %v1090, 0.2
        %v1123 = vmul.f32 %v1091, 0.2
        %v1124 = vmul.f32 %v1092, 0.2
        %v1125 = vmul.f32 %v1093, 0.2
        %v1126 = vmul.f32 %v1094, 0.2
        %v1127 = vmul.f32 %v1095, 0.2
        %v1128 = vmul.f32 %v1096, 0.2
        %v1129 = vsel %vm1097, %v1081, %v1113
        %v1130 = vsel %vm1098, %v1082, %v1114
        %v1131 = vsel %vm1099, %v1083, %v1115
        %v1132 = vsel %vm1100, %v1084, %v1116
        %v1133 = vsel %vm1101, %v1085, %v1117
        %v1134 = vsel %vm1102, %v1086, %v1118
        %v1135 = vsel %vm1103, %v1087, %v1119
        %v1136 = vsel %vm1104, %v1088, %v1120
        %v1137 = vsel %vm1105, %v1089, %v1121
        %v1138 = vsel %vm1106, %v1090, %v1122
        %v1139 = vsel %vm1107, %v1091, %v1123
        %v1140 = vsel %vm1108, %v1092, %v1124
        %v1141 = vsel %vm1109, %v1093, %v1125
        %v1142 = vsel %vm1110, %v1094, %v1126
        %v1143 = vsel %vm1111, %v1095, %v1127
        %v1144 = vsel %vm1112, %v1096, %v1128
        %1145 = vst.msk [vmem:[%s247] sm:$0xff] %vm1038, %v1129
        %1146 = vst.msk [vmem:[%s247 + $0x8] sm:$0xff] %vm1038, %v1130
        %1147 = vst.msk [vmem:[%s247 + $0x10] sm:$0xff] %vm1038, %v1131
        %1148 = vst.msk [vmem:[%s247 + $0x18] sm:$0xff] %vm1038, %v1132
        %1149 = vst.msk [vmem:[%s247 + $0x20] sm:$0xff] %vm1038, %v1133
        %1150 = vst.msk [vmem:[%s247 + $0x28] sm:$0xff] %vm1038, %v1134
        %1151 = vst.msk [vmem:[%s247 + $0x30] sm:$0xff] %vm1038, %v1135
        %1152 = vst.msk [vmem:[%s247 + $0x38] sm:$0xff] %vm1038, %v1136
        %1153 = vst.msk [vmem:[%s247 + $0x40] sm:$0xff] %vm1038, %v1137
        %1154 = vst.msk [vmem:[%s247 + $0x48] sm:$0xff] %vm1038, %v1138
        %1155 = vst.msk [vmem:[%s247 + $0x50] sm:$0xff] %vm1038, %v1139
        %1156 = vst.msk [vmem:[%s247 + $0x58] sm:$0xff] %vm1038, %v1140
        %1157 = vst.msk [vmem:[%s247 + $0x60] sm:$0xff] %vm1038, %v1141
        %1158 = vst.msk [vmem:[%s247 + $0x68] sm:$0xff] %vm1038, %v1142
        %1159 = vst.msk [vmem:[%s247 + $0x70] sm:$0xff] %vm1038, %v1143
        %1160 = vst.msk [vmem:[%s247 + $0x78] sm:$0xff] %vm1038, %v1144
      $region40: #{forward.5} parent=31 // pred_fallthru
        _
      %p1161 = scmp.lt.s32.totalorder %s19, 1
      %s1162 = scalar_select %p1161, %s19, 1
      %p1163 = scmp.lt.s32.totalorder %s20, 0
      %s1164 = scalar_select %p1163, %s20, 0
      %s1165 = smul.addr %s1162, 16
      %s1166 = sadd.s32 %s1164, %s1165
      %s1167 = smul.addr %s1166, 8
      %s1168 = scalar_lea.vmem %s3, %s1167
      // Predicated region
      $region41: #{forward.5} parent=31 // pred_check
        %p1169 = pneg %p135
      $region42: #{forward.5} parent=31 // pred_check_branch
        %1171 = sbr.rel (%p1169) target = $region44
      $region43: #{forward.5} parent=31 // pred_region
        _
      $region44: #{forward.5} parent=31 // pred_fallthru
        _
    $region32: #{forward.5} parent=5 // pred_fallthru
      _
    %p1172 = scmp.le.s32.totalorder 2, %s9
    // Predicated region
    $region45: #{forward.5} parent=5 // pred_check
      %p1173 = pneg %p1172
    $region46: #{forward.5} parent=5 // pred_check_branch
      %1175 = sbr.rel (%p1173) target = $region48
    $region47: #{forward.5} parent=5 // pred_region
      %s1176 = ssub.s32 %s9, 2
      // Predicated region
      $region49: #{forward.5} parent=47 // pred_check
        %p1177 = pneg %p141
      $region50: #{forward.5} parent=47 // pred_check_branch
        %1179 = sbr.rel (%p1177) target = $region52
      $region51: #{forward.5} parent=47 // pred_region
        %p1180 = scmp.lt.s32.totalorder %s22, 1
        %s1181 = scalar_select %p1180, %s22, 1
        %p1182 = scmp.lt.s32.totalorder %s23, 0
        %s1183 = scalar_select %p1182, %s23, 0
        %s1184 = smul.addr %s1181, 16
        %s1185 = sadd.s32 %s1183, %s1184
        %s1186 = smul.addr %s1185, 8
        %s1187 = scalar_lea.vmem %s3, %s1186
      $region52: #{forward.5} parent=47 // pred_fallthru
        _
    $region48: #{forward.5} parent=5 // pred_fallthru
      _
  $region6: #{forward.5} parent=0 // loop_footer
    %s13 = sadd.s32 1, %s9
  $region7: #{forward.5} parent=0 // loop_footer_branch
    %8 = sbr.rel target = $region3
  $region8: #{forward.5} parent=0 // loop_exit
    _

// kernel: forward.7
$region0: #{forward.7}
  #allocation0 [shape = 'u32[]', space=smem, size = 0x4, offset = 0x4, fixed_abs, tag = 'smem constant byte address 0x4 - core index']
  #allocation1 [shape = 'u32[144,128]{1,0:T(1,128)}', space=vmem, size = 0x12000, scoped, tag = 'internal scratch']
  #allocation2 [shape = 'f32[32,32]{1,0:T(8,128)}', space=vmem, size = 0x4000, scoped, tag = 'scratch operand']
  %s0 = inlined_call_operand.vmem [shape: f32[2,5,9,128], index: 0, kind: input, shape index: {}]
  %s1 = inlined_call_operand.vmem [shape: f32[2,2,128,32], index: 1, kind: input, shape index: {}]
  %s2 = inlined_call_operand.vmem [shape: f32[1,32], index: 2, kind: input, shape index: {}]
  %s3 = inlined_call_operand.vmem [shape: f32[2,4,8,1], index: 3, kind: input, shape index: {}]
  %s4 = inlined_call_operand.vmem [shape: f32[1,1,1,32], index: 4, kind: input, shape index: {}]
  %s5 = inlined_call_operand.vmem [shape: f32[1,32], index: 5, kind: input, shape index: {}]
  %s6 = inlined_call_operand.vmem [shape: f32[2,4,8,32], index: 6, kind: output, shape index: {}]
  %s7 = sld [smem:[#allocation0]]
  $region65: #{forward.7} parent=0
    _
  %s9 = ssub.s32 1, %s7
  %s10 = scalar_select 0, %s9, %s7
  loop: start=0, step=1, limit=4
  $region2: #{forward.7} parent=0 // loop_pre_header
    _
  $region3: #{forward.7} parent=0 // loop_header
    %s12 = sphi 0, %s16
    %p13 = scmp.ge.s32.totalorder %s12, 4
    %s19 = sphi 0, %s38
    %s20 = sphi 0, %s34
    %s21 = sphi 0, %s30
    %s22 = sphi 0, %s19
    %s23 = sphi 0, %s20
    %s24 = sphi 0, %s21
    %s25 = sphi 0, %s22
    %s26 = sphi 0, %s23
    %s27 = sphi 0, %s24
    %s43 = sphi 0, %s45
    %s46 = sphi 0, %s43
    %s47 = sphi 0, %s46
    %s63 = sphi 0, %s47
    %s71 = sphi 0, %s73
    %s74 = sphi 0, %s71
    %s75 = sphi 0, %s74
    %s91 = sphi 0, %s75
    %s97 = sphi 0, %s99
    %s100 = sphi 0, %s97
    %s101 = sphi 0, %s100
    %s117 = sphi 0, %s101
    %s123 = sphi 0, %s125
    %s126 = sphi 0, %s123
    %s127 = sphi 0, %s126
    %s143 = sphi 0, %s127
    %s149 = sphi 0, %s151
    %s152 = sphi 0, %s149
    %s153 = sphi 0, %s152
    %s169 = sphi 0, %s153
    %s175 = sphi 0, %s177
    %s178 = sphi 0, %s175
    %s179 = sphi 0, %s178
    %s195 = sphi 0, %s179
    %s203 = sphi 0, %s205
    %s206 = sphi 0, %s203
    %s207 = sphi 0, %s206
    %s223 = sphi 0, %s207
  $region4: #{forward.7} parent=0 // loop_header_branch
    %15 = sbr.rel (%p13) target = $region8
  $region5: #{forward.7} parent=0 // loop_body
    %s17 = ssub.s32 %s12, 1
    %s18 = ssub.s32 %s12, 2
    %s28 = sadd.s32 1, %s21
    %p29 = scmp.ge.s32.totalorder %s28, 1
    %s30 = scalar_select %p29, 0, %s28
    %s31 = sadd.s32 1, %s20
    %s32 = scalar_select %p29, %s31, %s20
    %p33 = scmp.ge.s32.totalorder %s32, 1
    %s34 = scalar_select %p33, 0, %s32
    %s35 = sadd.s32 1, %s19
    %s36 = scalar_select %p33, %s35, %s19
    %p37 = scmp.ge.s32.totalorder %s36, 2
    %s38 = scalar_select %p37, 0, %s36
    %s39 = ssub.s32 %s19, %s38
    %s40 = ssub.s32 %s21, %s30
    %s41 = sor.u32 %s39, %s40
    %p42 = scmp.eq.s32.totalorder %s41, 0
    %s44 = sadd.s32 %s43, 1
    %s45 = scalar_select %p42, %s43, %s44
    %p48 = pneg %p42
    %p49 = scmp.eq.s32.totalorder %s12, 1
    %p50 = por %p48, %p49
    %p51 = scmp.ne.s32.totalorder %s43, %s46
    %p52 = scmp.eq.s32.totalorder %s12, 0
    %p53 = por %p51, %p52
    %p54 = scmp.ne.s32.totalorder %s43, %s46
    %p55 = scmp.eq.s32.totalorder %s17, 1
    %p56 = por %p54, %p55
    %p57 = scmp.ne.s32.totalorder %s46, %s47
    %p58 = scmp.eq.s32.totalorder %s17, 0
    %p59 = por %p57, %p58
    %p60 = scmp.ne.s32.totalorder %s46, %s47
    %p61 = scmp.eq.s32.totalorder %s18, 1
    %p62 = por %p60, %p61
    %p64 = scmp.ne.s32.totalorder %s47, %s63
    %p65 = scmp.eq.s32.totalorder %s18, 0
    %p66 = por %p64, %p65
    %s67 = ssub.s32 %s21, %s30
    %s68 = ssub.s32 %s20, %s34
    %s69 = sor.u32 %s67, %s68
    %p70 = scmp.eq.s32.totalorder %s69, 0
    %s72 = sadd.s32 %s71, 1
    %s73 = scalar_select %p70, %s71, %s72
    %p76 = pneg %p70
    %p77 = scmp.eq.s32.totalorder %s12, 1
    %p78 = por %p76, %p77
    %p79 = scmp.ne.s32.totalorder %s71, %s74
    %p80 = scmp.eq.s32.totalorder %s12, 0
    %p81 = por %p79, %p80
    %p82 = scmp.ne.s32.totalorder %s71, %s74
    %p83 = scmp.eq.s32.totalorder %s17, 1
    %p84 = por %p82, %p83
    %p85 = scmp.ne.s32.totalorder %s74, %s75
    %p86 = scmp.eq.s32.totalorder %s17, 0
    %p87 = por %p85, %p86
    %p88 = scmp.ne.s32.totalorder %s74, %s75
    %p89 = scmp.eq.s32.totalorder %s18, 1
    %p90 = por %p88, %p89
    %p92 = scmp.ne.s32.totalorder %s75, %s91
    %p93 = scmp.eq.s32.totalorder %s18, 0
    %p94 = por %p92, %p93
    %s95 = ssub.s32 %s20, %s34
    %p96 = scmp.eq.s32.totalorder %s95, 0
    %s98 = sadd.s32 %s97, 1
    %s99 = scalar_select %p96, %s97, %s98
    %p102 = pneg %p96
    %p103 = scmp.eq.s32.totalorder %s12, 1
    %p104 = por %p102, %p103
    %p105 = scmp.ne.s32.totalorder %s97, %s100
    %p106 = scmp.eq.s32.totalorder %s12, 0
    %p107 = por %p105, %p106
    %p108 = scmp.ne.s32.totalorder %s97, %s100
    %p109 = scmp.eq.s32.totalorder %s17, 1
    %p110 = por %p108, %p109
    %p111 = scmp.ne.s32.totalorder %s100, %s101
    %p112 = scmp.eq.s32.totalorder %s17, 0
    %p113 = por %p111, %p112
    %p114 = scmp.ne.s32.totalorder %s100, %s101
    %p115 = scmp.eq.s32.totalorder %s18, 1
    %p116 = por %p114, %p115
    %p118 = scmp.ne.s32.totalorder %s101, %s117
    %p119 = scmp.eq.s32.totalorder %s18, 0
    %p120 = por %p118, %p119
    %s121 = ssub.s32 %s19, %s38
    %p122 = scmp.eq.s32.totalorder %s121, 0
    %s124 = sadd.s32 %s123, 1
    %s125 = scalar_select %p122, %s123, %s124
    %p128 = pneg %p122
    %p129 = scmp.eq.s32.totalorder %s12, 1
    %p130 = por %p128, %p129
    %p131 = scmp.ne.s32.totalorder %s123, %s126
    %p132 = scmp.eq.s32.totalorder %s12, 0
    %p133 = por %p131, %p132
    %p134 = scmp.ne.s32.totalorder %s123, %s126
    %p135 = scmp.eq.s32.totalorder %s17, 1
    %p136 = por %p134, %p135
    %p137 = scmp.ne.s32.totalorder %s126, %s127
    %p138 = scmp.eq.s32.totalorder %s17, 0
    %p139 = por %p137, %p138
    %p140 = scmp.ne.s32.totalorder %s126, %s127
    %p141 = scmp.eq.s32.totalorder %s18, 1
    %p142 = por %p140, %p141
    %p144 = scmp.ne.s32.totalorder %s127, %s143
    %p145 = scmp.eq.s32.totalorder %s18, 0
    %p146 = por %p144, %p145
    %s147 = ssub.s32 %s20, %s34
    %p148 = scmp.eq.s32.totalorder %s147, 0
    %s150 = sadd.s32 %s149, 1
    %s151 = scalar_select %p148, %s149, %s150
    %p154 = pneg %p148
    %p155 = scmp.eq.s32.totalorder %s12, 1
    %p156 = por %p154, %p155
    %p157 = scmp.ne.s32.totalorder %s149, %s152
    %p158 = scmp.eq.s32.totalorder %s12, 0
    %p159 = por %p157, %p158
    %p160 = scmp.ne.s32.totalorder %s149, %s152
    %p161 = scmp.eq.s32.totalorder %s17, 1
    %p162 = por %p160, %p161
    %p163 = scmp.ne.s32.totalorder %s152, %s153
    %p164 = scmp.eq.s32.totalorder %s17, 0
    %p165 = por %p163, %p164
    %p166 = scmp.ne.s32.totalorder %s152, %s153
    %p167 = scmp.eq.s32.totalorder %s18, 1
    %p168 = por %p166, %p167
    %p170 = scmp.ne.s32.totalorder %s153, %s169
    %p171 = scmp.eq.s32.totalorder %s18, 0
    %p172 = por %p170, %p171
    %s173 = ssub.s32 %s20, %s34
    %p174 = scmp.eq.s32.totalorder %s173, 0
    %s176 = sadd.s32 %s175, 1
    %s177 = scalar_select %p174, %s175, %s176
    %p180 = pneg %p174
    %p181 = scmp.eq.s32.totalorder %s12, 1
    %p182 = por %p180, %p181
    %p183 = scmp.ne.s32.totalorder %s175, %s178
    %p184 = scmp.eq.s32.totalorder %s12, 0
    %p185 = por %p183, %p184
    %p186 = scmp.ne.s32.totalorder %s175, %s178
    %p187 = scmp.eq.s32.totalorder %s17, 1
    %p188 = por %p186, %p187
    %p189 = scmp.ne.s32.totalorder %s178, %s179
    %p190 = scmp.eq.s32.totalorder %s17, 0
    %p191 = por %p189, %p190
    %p192 = scmp.ne.s32.totalorder %s178, %s179
    %p193 = scmp.eq.s32.totalorder %s18, 1
    %p194 = por %p192, %p193
    %p196 = scmp.ne.s32.totalorder %s179, %s195
    %p197 = scmp.eq.s32.totalorder %s18, 0
    %p198 = por %p196, %p197
    %s199 = ssub.s32 %s19, %s38
    %s200 = ssub.s32 %s20, %s34
    %s201 = sor.u32 %s199, %s200
    %p202 = scmp.eq.s32.totalorder %s201, 0
    %s204 = sadd.s32 %s203, 1
    %s205 = scalar_select %p202, %s203, %s204
    %p208 = pneg %p202
    %p209 = scmp.eq.s32.totalorder %s12, 1
    %p210 = por %p208, %p209
    %p211 = scmp.ne.s32.totalorder %s203, %s206
    %p212 = scmp.eq.s32.totalorder %s12, 0
    %p213 = por %p211, %p212
    %p214 = scmp.ne.s32.totalorder %s203, %s206
    %p215 = scmp.eq.s32.totalorder %s17, 1
    %p216 = por %p214, %p215
    %p217 = scmp.ne.s32.totalorder %s206, %s207
    %p218 = scmp.eq.s32.totalorder %s17, 0
    %p219 = por %p217, %p218
    %p220 = scmp.ne.s32.totalorder %s206, %s207
    %p221 = scmp.eq.s32.totalorder %s18, 1
    %p222 = por %p220, %p221
    %p224 = scmp.ne.s32.totalorder %s207, %s223
    %p225 = scmp.eq.s32.totalorder %s18, 0
    %p226 = por %p224, %p225
    %p227 = scmp.le.s32.totalorder 1, %s12
    %p228 = scmp.lt.s32.totalorder %s12, 3
    %p229 = pnand %p227, %p228
    %p230 = pneg %p229
    // Predicated region
    $region9: #{forward.7} parent=5 // pred_check
      _
    $region10: #{forward.7} parent=5 // pred_check_branch
      %232 = sbr.rel (%p229) target = $region12
    $region11: #{forward.7} parent=5 // pred_region
      %s233 = ssub.s32 %s12, 1
      // Predicated region
      $region13: #{forward.7} parent=11 // pred_check
        %p234 = pneg %p87
      $region14: #{forward.7} parent=11 // pred_check_branch
        %236 = sbr.rel (%p234) target = $region16
      $region15: #{forward.7} parent=11 // pred_region
        %s237 = smul.u32 16, %s24
        %p238 = scmp.lt.s32.totalorder %s237, 15
        %s239 = scalar_select %p238, %s237, 15
        %p240 = scmp.lt.s32.totalorder %s23, 0
        %s241 = scalar_select %p240, %s23, 0
        %s242 = sadd.s32 %s241, %s239
        %s243 = smul.addr %s242, 8
        %s244 = scalar_lea.vmem %s1, %s243
        %s245 = smul.u32 16, %s24
      $region16: #{forward.7} parent=11 // pred_fallthru
        _
      // Predicated region
      $region17: #{forward.7} parent=11 // pred_check
        %p246 = pneg %p113
      $region18: #{forward.7} parent=11 // pred_check_branch
        %248 = sbr.rel (%p246) target = $region20
      $region19: #{forward.7} parent=11 // pred_region
        %p249 = scmp.lt.s32.totalorder %s23, 0
        %s250 = scalar_select %p249, %s23, 0
        %s251 = scalar_lea.vmem %s2, %s250
      $region20: #{forward.7} parent=11 // pred_fallthru
        _
      // Predicated region
      $region21: #{forward.7} parent=11 // pred_check
        %p252 = pneg %p165
      $region22: #{forward.7} parent=11 // pred_check_branch
        %254 = sbr.rel (%p252) target = $region24
      $region23: #{forward.7} parent=11 // pred_region
        %p255 = scmp.lt.s32.totalorder %s23, 0
        %s256 = scalar_select %p255, %s23, 0
        %s257 = scalar_lea.vmem %s4, %s256
      $region24: #{forward.7} parent=11 // pred_fallthru
        _
      // Predicated region
      $region25: #{forward.7} parent=11 // pred_check
        %p258 = pneg %p191
      $region26: #{forward.7} parent=11 // pred_check_branch
        %260 = sbr.rel (%p258) target = $region28
      $region27: #{forward.7} parent=11 // pred_region
        %p261 = scmp.lt.s32.totalorder %s23, 0
        %s262 = scalar_select %p261, %s23, 0
        %s263 = scalar_lea.vmem %s5, %s262
      $region28: #{forward.7} parent=11 // pred_fallthru
        _
    $region12: #{forward.7} parent=5 // pred_fallthru
      _
    %p264 = scmp.lt.s32.totalorder %s12, 2
    // Predicated region
    $region29: #{forward.7} parent=5 // pred_check
      %p265 = pneg %p264
    $region30: #{forward.7} parent=5 // pred_check_branch
      %267 = sbr.rel (%p265) target = $region32
    $region31: #{forward.7} parent=5 // pred_region
      // Predicated region
      $region33: #{forward.7} parent=31 // pred_check
        %p268 = pneg %p53
      $region34: #{forward.7} parent=31 // pred_check_branch
        %270 = sbr.rel (%p268) target = $region36
      $region35: #{forward.7} parent=31 // pred_region
        %p271 = scmp.lt.s32.totalorder %s19, 1
        %s272 = scalar_select %p271, %s19, 1
        %p273 = scmp.lt.s32.totalorder %s21, 0
        %s274 = scalar_select %p273, %s21, 0
        %s275 = smul.addr %s272, 10
        %s276 = sadd.s32 %s274, %s275
        %s277 = smul.addr %s276, 8
        %s278 = scalar_lea.vmem %s0, %s277
      $region36: #{forward.7} parent=31 // pred_fallthru
        _
      // Predicated region
      $region37: #{forward.7} parent=31 // pred_check
        %p279 = pneg %p133
      $region38: #{forward.7} parent=31 // pred_check_branch
        %281 = sbr.rel (%p279) target = $region40
      $region39: #{forward.7} parent=31 // pred_region
        %p282 = scmp.lt.s32.totalorder %s19, 1
        %s283 = scalar_select %p282, %s19, 1
        %s284 = smul.addr %s283, 4
        %s285 = smul.addr %s284, 8
        %s286 = scalar_lea.vmem %s3, %s285
      $region40: #{forward.7} parent=31 // pred_fallthru
        _
    $region32: #{forward.7} parent=5 // pred_fallthru
      _
    %p287 = scmp.le.s32.totalorder 1, %s12
    %p288 = scmp.lt.s32.totalorder %s12, 3
    %p289 = pnand %p287, %p288
    %p290 = pneg %p289
    // Predicated region
    $region41: #{forward.7} parent=5 // pred_check
      _
    $region42: #{forward.7} parent=5 // pred_check_branch
      %292 = sbr.rel (%p289) target = $region44
    $region43: #{forward.7} parent=5 // pred_region
      %s293 = ssub.s32 %s12, 1
      %p294 = scmp.lt.s32.totalorder %s22, 1
      %s295 = scalar_select %p294, %s22, 1
      %p296 = scmp.lt.s32.totalorder %s24, 0
      %s297 = scalar_select %p296, %s24, 0
      %s298 = smul.addr %s295, 10
      %s299 = sadd.s32 %s297, %s298
      %s300 = smul.addr %s299, 8
      %s301 = scalar_lea.vmem %s0, %s300
      %p302 = pneg %p59
      %p303 = pneg %p56
      %s304 = smul.u32 16, %s24
      %p305 = scmp.lt.s32.totalorder %s304, 15
      %s306 = scalar_select %p305, %s304, 15
      %p307 = scmp.lt.s32.totalorder %s23, 0
      %s308 = scalar_select %p307, %s23, 0
      %s309 = sadd.s32 %s308, %s306
      %s310 = smul.addr %s309, 8
      %s311 = scalar_lea.vmem %s1, %s310
      %p312 = pneg %p87
      %p313 = pneg %p84
      %p314 = scmp.lt.s32.totalorder %s23, 0
      %s315 = scalar_select %p314, %s23, 0
      %s316 = scalar_lea.vmem %s2, %s315
      %p317 = pneg %p113
      %p318 = pneg %p110
      %p319 = scmp.lt.s32.totalorder %s22, 1
      %s320 = scalar_select %p319, %s22, 1
      %s321 = smul.addr %s320, 4
      %s322 = smul.addr %s321, 8
      %s323 = scalar_lea.vmem %s3, %s322
      %p324 = pneg %p139
      %p325 = pneg %p136
      %p326 = scmp.lt.s32.totalorder %s23, 0
      %s327 = scalar_select %p326, %s23, 0
      %s328 = scalar_lea.vmem %s4, %s327
      %p329 = pneg %p165
      %p330 = pneg %p162
      %p331 = scmp.lt.s32.totalorder %s23, 0
      %s332 = scalar_select %p331, %s23, 0
      %s333 = scalar_lea.vmem %s5, %s332
      %p334 = pneg %p191
      %p335 = pneg %p188
      %p336 = pneg %p219
      %p337 = pneg %p216
      %p338 = scmp.lt.s32.totalorder %s22, 1
      %s339 = scalar_select %p338, %s22, 1
      %p340 = scmp.lt.s32.totalorder %s23, 0
      %s341 = scalar_select %p340, %s23, 0
      %s342 = smul.addr %s339, 4
      %s343 = sadd.s32 %s341, %s342
      %s344 = smul.addr %s343, 8
      %s345 = scalar_lea.vmem %s6, %s344
      %p346 = scmp.lt.s32.totalorder %s22, 1
      %s347 = scalar_select %p346, %s22, 1
      %p348 = scmp.lt.s32.totalorder %s24, 0
      %s349 = scalar_select %p348, %s24, 0
      %s350 = smul.addr %s347, 10
      %s351 = sadd.s32 %s349, %s350
      %s352 = smul.addr %s351, 8
      %s353 = scalar_lea.vmem %s0, %s352
      %s354 = smul.u32 16, %s24
      %p355 = scmp.lt.s32.totalorder %s354, 15
      %s356 = scalar_select %p355, %s354, 15
      %p357 = scmp.lt.s32.totalorder %s23, 0
      %s358 = scalar_select %p357, %s23, 0
      %s359 = sadd.s32 %s358, %s356
      %s360 = smul.addr %s359, 8
      %s361 = scalar_lea.vmem %s1, %s360
      %s362 = smul.u32 16, %s24
      %p363 = scmp.lt.s32.totalorder %s23, 0
      %s364 = scalar_select %p363, %s23, 0
      %s365 = scalar_lea.vmem %s2, %s364
      %p366 = scmp.lt.s32.totalorder %s22, 1
      %s367 = scalar_select %p366, %s22, 1
      %s368 = smul.addr %s367, 4
      %s369 = smul.addr %s368, 8
      %s370 = scalar_lea.vmem %s3, %s369
      %p371 = scmp.lt.s32.totalorder %s23, 0
      %s372 = scalar_select %p371, %s23, 0
      %s373 = scalar_lea.vmem %s4, %s372
      %p374 = scmp.lt.s32.totalorder %s23, 0
      %s375 = scalar_select %p374, %s23, 0
      %s376 = scalar_lea.vmem %s5, %s375
      %p377 = scmp.lt.s32.totalorder %s22, 1
      %s378 = scalar_select %p377, %s22, 1
      %p379 = scmp.lt.s32.totalorder %s23, 0
      %s380 = scalar_select %p379, %s23, 0
      %s381 = smul.addr %s378, 4
      %s382 = sadd.s32 %s380, %s381
      %s383 = smul.addr %s382, 8
      %s384 = scalar_lea.vmem %s6, %s383
      %p386 = scmp.eq.s32.totalorder %s24, 0
      // Predicated region
      $region45: #{forward.7} parent=43 // pred_check
        %p387 = pneg %p386
      $region46: #{forward.7} parent=43 // pred_check_branch
        %389 = sbr.rel (%p387) target = $region48
      $region47: #{forward.7} parent=43 // pred_region
        %vm390 = vcmask 261120
        %391 = vst.msk [vmem:[#allocation2] sm:$0xff] %vm390, 0.0
        %392 = vst.msk [vmem:[#allocation2 + $0x8] sm:$0xff] %vm390, 0.0
        %393 = vst.msk [vmem:[#allocation2 + $0x10] sm:$0xff] %vm390, 0.0
        %394 = vst.msk [vmem:[#allocation2 + $0x18] sm:$0xff] %vm390, 0.0
      $region48: #{forward.7} parent=43 // pred_fallthru
        _
      %v395 = vld [vmem:[%s353] sm:$0xff]
      %v396 = vld [vmem:[%s353 + $0x8] sm:$0x1]
      %v397 = vld [vmem:[%s353 + $0x10] sm:$0xff]
      %v398 = vld [vmem:[%s353 + $0x18] sm:$0x1]
      %v399 = vld [vmem:[%s353 + $0x20] sm:$0xff]
      %v400 = vld [vmem:[%s353 + $0x28] sm:$0x1]
      %v401 = vld [vmem:[%s353 + $0x30] sm:$0xff]
      %v402 = vld [vmem:[%s353 + $0x38] sm:$0x1]
      %v403 = vld [vmem:[%s353 + $0x40] sm:$0xff]
      %v404 = vld [vmem:[%s353 + $0x48] sm:$0x1]
      %v405 = vld [vmem:[%s361] sm:$0xff]
      %v406 = vld [vmem:[%s361 + $0x8] sm:$0xff]
      %v407 = vld [vmem:[%s361 + $0x10] sm:$0xff]
      %v408 = vld [vmem:[%s361 + $0x18] sm:$0xff]
      %v409 = vld [vmem:[%s361 + $0x20] sm:$0xff]
      %v410 = vld [vmem:[%s361 + $0x28] sm:$0xff]
      %v411 = vld [vmem:[%s361 + $0x30] sm:$0xff]
      %v412 = vld [vmem:[%s361 + $0x38] sm:$0xff]
      %v413 = vld [vmem:[%s361 + $0x40] sm:$0xff]
      %v414 = vld [vmem:[%s361 + $0x48] sm:$0xff]
      %v415 = vld [vmem:[%s361 + $0x50] sm:$0xff]
      %v416 = vld [vmem:[%s361 + $0x58] sm:$0xff]
      %v417 = vld [vmem:[%s361 + $0x60] sm:$0xff]
      %v418 = vld [vmem:[%s361 + $0x68] sm:$0xff]
      %v419 = vld [vmem:[%s361 + $0x70] sm:$0xff]
      %v420 = vld [vmem:[%s361 + $0x78] sm:$0xff]
      %v421 = vld [vmem:[%s361 + $0x80] sm:$0xff]
      %v422 = vld [vmem:[%s361 + $0x88] sm:$0xff]
      %v423 = vld [vmem:[%s361 + $0x90] sm:$0xff]
      %v424 = vld [vmem:[%s361 + $0x98] sm:$0xff]
      %v425 = vld [vmem:[%s361 + $0xa0] sm:$0xff]
      %v426 = vld [vmem:[%s361 + $0xa8] sm:$0xff]
      %v427 = vld [vmem:[%s361 + $0xb0] sm:$0xff]
      %v428 = vld [vmem:[%s361 + $0xb8] sm:$0xff]
      %v429 = vld [vmem:[%s361 + $0xc0] sm:$0xff]
      %v430 = vld [vmem:[%s361 + $0xc8] sm:$0xff]
      %v431 = vld [vmem:[%s361 + $0xd0] sm:$0xff]
      %v432 = vld [vmem:[%s361 + $0xd8] sm:$0xff]
      %v433 = vld [vmem:[%s361 + $0xe0] sm:$0xff]
      %v434 = vld [vmem:[%s361 + $0xe8] sm:$0xff]
      %v435 = vld [vmem:[%s361 + $0xf0] sm:$0xff]
      %v436 = vld [vmem:[%s361 + $0xf8] sm:$0xff]
      %v437 = vld [vmem:[%s361 + $0x100] sm:$0xff]
      %v438 = vld [vmem:[%s361 + $0x108] sm:$0xff]
      %v439 = vld [vmem:[%s361 + $0x110] sm:$0xff]
      %v440 = vld [vmem:[%s361 + $0x118] sm:$0xff]
      %v441 = vld [vmem:[%s361 + $0x120] sm:$0xff]
      %v442 = vld [vmem:[%s361 + $0x128] sm:$0xff]
      %v443 = vld [vmem:[%s361 + $0x130] sm:$0xff]
      %v444 = vld [vmem:[%s361 + $0x138] sm:$0xff]
      %v445 = vld [vmem:[%s361 + $0x140] sm:$0xff]
      %v446 = vld [vmem:[%s361 + $0x148] sm:$0xff]
      %v447 = vld [vmem:[%s361 + $0x150] sm:$0xff]
      %v448 = vld [vmem:[%s361 + $0x158] sm:$0xff]
      %v449 = vld [vmem:[%s361 + $0x160] sm:$0xff]
      %v450 = vld [vmem:[%s361 + $0x168] sm:$0xff]
      %v451 = vld [vmem:[%s361 + $0x170] sm:$0xff]
      %v452 = vld [vmem:[%s361 + $0x178] sm:$0xff]
      %v453 = vld [vmem:[%s361 + $0x180] sm:$0xff]
      %v454 = vld [vmem:[%s361 + $0x188] sm:$0xff]
      %v455 = vld [vmem:[%s361 + $0x190] sm:$0xff]
      %v456 = vld [vmem:[%s361 + $0x198] sm:$0xff]
      %v457 = vld [vmem:[%s361 + $0x1a0] sm:$0xff]
      %v458 = vld [vmem:[%s361 + $0x1a8] sm:$0xff]
      %v459 = vld [vmem:[%s361 + $0x1b0] sm:$0xff]
      %v460 = vld [vmem:[%s361 + $0x1b8] sm:$0xff]
      %v461 = vld [vmem:[%s361 + $0x1c0] sm:$0xff]
      %v462 = vld [vmem:[%s361 + $0x1c8] sm:$0xff]
      %v463 = vld [vmem:[%s361 + $0x1d0] sm:$0xff]
      %v464 = vld [vmem:[%s361 + $0x1d8] sm:$0xff]
      %v465 = vld [vmem:[%s361 + $0x1e0] sm:$0xff]
      %v466 = vld [vmem:[%s361 + $0x1e8] sm:$0xff]
      %v467 = vld [vmem:[%s361 + $0x1f0] sm:$0xff]
      %v468 = vld [vmem:[%s361 + $0x1f8] sm:$0xff]
      %v469 = vld [vmem:[#allocation2] sm:$0xff]
      %v470 = vld [vmem:[#allocation2 + $0x8] sm:$0xff]
      %v471 = vld [vmem:[#allocation2 + $0x10] sm:$0xff]
      %v472 = vld [vmem:[#allocation2 + $0x18] sm:$0xff]
      %v473 = vpack.c.bf16 %v397, %v395
      %v474 = vpack.c.bf16 %v401, %v399
      %v475 = vpack.c.bf16 %v406, %v405
      %v476 = vpack.c.bf16 %v408, %v407
      %v477 = vpack.c.bf16 %v410, %v409
      %v478 = vpack.c.bf16 %v412, %v411
      %v479 = vpack.c.bf16 %v414, %v413
      %v480 = vpack.c.bf16 %v416, %v415
      %v481 = vpack.c.bf16 %v418, %v417
      %v482 = vpack.c.bf16 %v420, %v419
      %483 = vmatprep.subr.bf16.mxu0 0
      %484 = vmatpush1.bf16.msra.mxu0 %v475
      %485 = vmatprep.subr.bf16.mxu0 0
      %486 = vmatpush1.bf16.msra.mxu0 %v476
      %487 = vmatprep.subr.bf16.mxu0 0
      %488 = vmatpush1.bf16.msra.mxu0 %v477
      %489 = vmatprep.subr.bf16.mxu0 0
      %490 = vmatpush1.bf16.msra.mxu0 %v478
      %491 = vmatprep.subr.bf16.mxu0 0
      %492 = vmatpush1.bf16.msra.mxu0 %v479
      %493 = vmatprep.subr.bf16.mxu0 0
      %494 = vmatpush1.bf16.msra.mxu0 %v480
      %495 = vmatprep.subr.bf16.mxu0 0
      %496 = vmatpush1.bf16.msra.mxu0 %v481
      %497 = vmatprep.subr.bf16.mxu0 0
      %498 = vmatpush1.bf16.msra.mxu0 %v482
      %499 = vmatprep.subr.bf16.mxu0 0
      %500 = vmatpush1.bf16.msra.mxu0 0
      %501 = vmatprep.subr.bf16.mxu0 0
      %502 = vmatpush1.bf16.msra.mxu0 0
      %503 = vmatprep.subr.bf16.mxu0 0
      %504 = vmatpush1.bf16.msra.mxu0 0
      %505 = vmatprep.subr.bf16.mxu0 0
      %506 = vmatpush1.bf16.msra.mxu0 0
      %507 = vmatprep.subr.bf16.mxu0 0
      %508 = vmatpush1.bf16.msra.mxu0 0
      %509 = vmatprep.subr.bf16.mxu0 0
      %510 = vmatpush1.bf16.msra.mxu0 0
      %511 = vmatprep.subr.bf16.mxu0 0
      %512 = vmatpush1.bf16.msra.mxu0 0
      %513 = vmatprep.subr.bf16.mxu0 0
      %514 = vmatpush1.bf16.msra.mxu0 0
      %515 = vmatprep.mubr.bf16.mxu0 0
      %516 = vmatmul.mubr.bf16.gmra.mrb[0].mxu0 %v473
      %v517 = vpop.f32.mrb[0].mxu0
      %v518 = vadd.f32 0.0, %v517
      %v519 = vpop.f32.mrb[0].mxu0
      %v520 = vpop.f32.mrb[0].mxu0
      %v521 = vadd.f32 0.0, %v520
      %v522 = vpop.f32.mrb[0].mxu0
      %523 = vmatprep.mubr.bf16.mxu0 0
      %524 = vmatmul.mubr.bf16.gmra.mrb[0].mxu0 %v474
      %v525 = vpop.f32.mrb[0].mxu0
      %v526 = vadd.f32 0.0, %v525
      %v527 = vpop.f32.mrb[0].mxu0
      %v528 = vpop.f32.mrb[0].mxu0
      %v529 = vadd.f32 0.0, %v528
      %v530 = vpop.f32.mrb[0].mxu0
      %531 = vdwg.mxu0
      %v532 = vadd.f32 %v469, %v518
      %v533 = vadd.f32 %v470, %v521
      %v534 = vadd.f32 %v471, %v526
      %v535 = vadd.f32 %v472, %v529
      %vm544 = vcmask 1046528
      %v545 = vrot.slane %v395, 1
      %v546 = vrot.slane %v396, 1
      %v547 = vsel %vm544, %v545, %v546
      %v548 = vrot.slane %v397, 1
      %v549 = vrot.slane %v398, 1
      %v550 = vsel %vm544, %v548, %v549
      %v551 = vrot.slane %v399, 1
      %v552 = vrot.slane %v400, 1
      %v553 = vsel %vm544, %v551, %v552
      %v554 = vrot.slane %v401, 1
      %v555 = vrot.slane %v402, 1
      %v556 = vsel %vm544, %v554, %v555
      %v561 = vpack.c.bf16 %v550, %v547
      %v562 = vpack.c.bf16 %v556, %v553
      %v563 = vpack.c.bf16 %v422, %v421
      %v564 = vpack.c.bf16 %v424, %v423
      %v565 = vpack.c.bf16 %v426, %v425
      %v566 = vpack.c.bf16 %v428, %v427
      %v567 = vpack.c.bf16 %v430, %v429
      %v568 = vpack.c.bf16 %v432, %v431
      %v569 = vpack.c.bf16 %v434, %v433
      %v570 = vpack.c.bf16 %v436, %v435
      %571 = vmatprep.subr.bf16.mxu0 0
      %572 = vmatpush1.bf16.msra.mxu0 %v563
      %573 = vmatprep.subr.bf16.mxu0 0
      %574 = vmatpush1.bf16.msra.mxu0 %v564
      %575 = vmatprep.subr.bf16.mxu0 0
      %576 = vmatpush1.bf16.msra.mxu0 %v565
      %577 = vmatprep.subr.bf16.mxu0 0
      %578 = vmatpush1.bf16.msra.mxu0 %v566
      %579 = vmatprep.subr.bf16.mxu0 0
      %580 = vmatpush1.bf16.msra.mxu0 %v567
      %581 = vmatprep.subr.bf16.mxu0 0
      %582 = vmatpush1.bf16.msra.mxu0 %v568
      %583 = vmatprep.subr.bf16.mxu0 0
      %584 = vmatpush1.bf16.msra.mxu0 %v569
      %585 = vmatprep.subr.bf16.mxu0 0
      %586 = vmatpush1.bf16.msra.mxu0 %v570
      %587 = vmatprep.subr.bf16.mxu0 0
      %588 = vmatpush1.bf16.msra.mxu0 0
      %589 = vmatprep.subr.bf16.mxu0 0
      %590 = vmatpush1.bf16.msra.mxu0 0
      %591 = vmatprep.subr.bf16.mxu0 0
      %592 = vmatpush1.bf16.msra.mxu0 0
      %593 = vmatprep.subr.bf16.mxu0 0
      %594 = vmatpush1.bf16.msra.mxu0 0
      %595 = vmatprep.subr.bf16.mxu0 0
      %596 = vmatpush1.bf16.msra.mxu0 0
      %597 = vmatprep.subr.bf16.mxu0 0
      %598 = vmatpush1.bf16.msra.mxu0 0
      %599 = vmatprep.subr.bf16.mxu0 0
      %600 = vmatpush1.bf16.msra.mxu0 0
      %601 = vmatprep.subr.bf16.mxu0 0
      %602 = vmatpush1.bf16.msra.mxu0 0
      %603 = vmatprep.mubr.bf16.mxu0 0
      %604 = vmatmul.mubr.bf16.gmra.mrb[0].mxu0 %v561
      %v605 = vpop.f32.mrb[0].mxu0
      %v606 = vadd.f32 0.0, %v605
      %v607 = vpop.f32.mrb[0].mxu0
      %v608 = vpop.f32.mrb[0].mxu0
      %v609 = vadd.f32 0.0, %v608
      %v610 = vpop.f32.mrb[0].mxu0
      %611 = vmatprep.mubr.bf16.mxu0 0
      %612 = vmatmul.mubr.bf16.gmra.mrb[0].mxu0 %v562
      %v613 = vpop.f32.mrb[0].mxu0
      %v614 = vadd.f32 0.0, %v613
      %v615 = vpop.f32.mrb[0].mxu0
      %v616 = vpop.f32.mrb[0].mxu0
      %v617 = vadd.f32 0.0, %v616
      %v618 = vpop.f32.mrb[0].mxu0
      %619 = vdwg.mxu0
      %v620 = vadd.f32 %v532, %v606
      %v621 = vadd.f32 %v533, %v609
      %v622 = vadd.f32 %v534, %v614
      %v623 = vadd.f32 %v535, %v617
      %v624 = vpack.c.bf16 %v399, %v397
      %v625 = vpack.c.bf16 %v403, %v401
      %v626 = vpack.c.bf16 %v438, %v437
      %v627 = vpack.c.bf16 %v440, %v439
      %v628 = vpack.c.bf16 %v442, %v441
      %v629 = vpack.c.bf16 %v444, %v443
      %v630 = vpack.c.bf16 %v446, %v445
      %v631 = vpack.c.bf16 %v448, %v447
      %v632 = vpack.c.bf16 %v450, %v449
      %v633 = vpack.c.bf16 %v452, %v451
      %634 = vmatprep.subr.bf16.mxu0 0
      %635 = vmatpush1.bf16.msra.mxu0 %v626
      %636 = vmatprep.subr.bf16.mxu0 0
      %637 = vmatpush1.bf16.msra.mxu0 %v627
      %638 = vmatprep.subr.bf16.mxu0 0
      %639 = vmatpush1.bf16.msra.mxu0 %v628
      %640 = vmatprep.subr.bf16.mxu0 0
      %641 = vmatpush1.bf16.msra.mxu0 %v629
      %642 = vmatprep.subr.bf16.mxu0 0
      %643 = vmatpush1.bf16.msra.mxu0 %v630
      %644 = vmatprep.subr.bf16.mxu0 0
      %645 = vmatpush1.bf16.msra.mxu0 %v631
      %646 = vmatprep.subr.bf16.mxu0 0
      %647 = vmatpush1.bf16.msra.mxu0 %v632
      %648 = vmatprep.subr.bf16.mxu0 0
      %649 = vmatpush1.bf16.msra.mxu0 %v633
      %650 = vmatprep.subr.bf16.mxu0 0
      %651 = vmatpush1.bf16.msra.mxu0 0
      %652 = vmatprep.subr.bf16.mxu0 0
      %653 = vmatpush1.bf16.msra.mxu0 0
      %654 = vmatprep.subr.bf16.mxu0 0
      %655 = vmatpush1.bf16.msra.mxu0 0
      %656 = vmatprep.subr.bf16.mxu0 0
      %657 = vmatpush1.bf16.msra.mxu0 0
      %658 = vmatprep.subr.bf16.mxu0 0
      %659 = vmatpush1.bf16.msra.mxu0 0
      %660 = vmatprep.subr.bf16.mxu0 0
      %661 = vmatpush1.bf16.msra.mxu0 0
      %662 = vmatprep.subr.bf16.mxu0 0
      %663 = vmatpush1.bf16.msra.mxu0 0
      %664 = vmatprep.subr.bf16.mxu0 0
      %665 = vmatpush1.bf16.msra.mxu0 0
      %666 = vmatprep.mubr.bf16.mxu0 0
      %667 = vmatmul.mubr.bf16.gmra.mrb[0].mxu0 %v624
      %v668 = vpop.f32.mrb[0].mxu0
      %v669 = vadd.f32 0.0, %v668
      %v670 = vpop.f32.mrb[0].mxu0
      %v671 = vpop.f32.mrb[0].mxu0
      %v672 = vadd.f32 0.0, %v671
      %v673 = vpop.f32.mrb[0].mxu0
      %674 = vmatprep.mubr.bf16.mxu0 0
      %675 = vmatmul.mubr.bf16.gmra.mrb[0].mxu0 %v625
      %v676 = vpop.f32.mrb[0].mxu0
      %v677 = vadd.f32 0.0, %v676
      %v678 = vpop.f32.mrb[0].mxu0
      %v679 = vpop.f32.mrb[0].mxu0
      %v680 = vadd.f32 0.0, %v679
      %v681 = vpop.f32.mrb[0].mxu0
      %682 = vdwg.mxu0
      %v683 = vadd.f32 %v620, %v669
      %v684 = vadd.f32 %v621, %v672
      %v685 = vadd.f32 %v622, %v677
      %v686 = vadd.f32 %v623, %v680
      %v689 = vrot.slane %v403, 1
      %v690 = vrot.slane %v404, 1
      %v691 = vsel %vm544, %v689, %v690
      %v693 = vpack.c.bf16 %v553, %v550
      %v694 = vpack.c.bf16 %v691, %v556
      %v695 = vpack.c.bf16 %v454, %v453
      %v696 = vpack.c.bf16 %v456, %v455
      %v697 = vpack.c.bf16 %v458, %v457
      %v698 = vpack.c.bf16 %v460, %v459
      %v699 = vpack.c.bf16 %v462, %v461
      %v700 = vpack.c.bf16 %v464, %v463
      %v701 = vpack.c.bf16 %v466, %v465
      %v702 = vpack.c.bf16 %v468, %v467
      %703 = vmatprep.subr.bf16.mxu0 0
      %704 = vmatpush1.bf16.msra.mxu0 %v695
      %705 = vmatprep.subr.bf16.mxu0 0
      %706 = vmatpush1.bf16.msra.mxu0 %v696
      %707 = vmatprep.subr.bf16.mxu0 0
      %708 = vmatpush1.bf16.msra.mxu0 %v697
      %709 = vmatprep.subr.bf16.mxu0 0
      %710 = vmatpush1.bf16.msra.mxu0 %v698
      %711 = vmatprep.subr.bf16.mxu0 0
      %712 = vmatpush1.bf16.msra.mxu0 %v699
      %713 = vmatprep.subr.bf16.mxu0 0
      %714 = vmatpush1.bf16.msra.mxu0 %v700
      %715 = vmatprep.subr.bf16.mxu0 0
      %716 = vmatpush1.bf16.msra.mxu0 %v701
      %717 = vmatprep.subr.bf16.mxu0 0
      %718 = vmatpush1.bf16.msra.mxu0 %v702
      %719 = vmatprep.subr.bf16.mxu0 0
      %720 = vmatpush1.bf16.msra.mxu0 0
      %721 = vmatprep.subr.bf16.mxu0 0
      %722 = vmatpush1.bf16.msra.mxu0 0
      %723 = vmatprep.subr.bf16.mxu0 0
      %724 = vmatpush1.bf16.msra.mxu0 0
      %725 = vmatprep.subr.bf16.mxu0 0
      %726 = vmatpush1.bf16.msra.mxu0 0
      %727 = vmatprep.subr.bf16.mxu0 0
      %728 = vmatpush1.bf16.msra.mxu0 0
      %729 = vmatprep.subr.bf16.mxu0 0
      %730 = vmatpush1.bf16.msra.mxu0 0
      %731 = vmatprep.subr.bf16.mxu0 0
      %732 = vmatpush1.bf16.msra.mxu0 0
      %733 = vmatprep.subr.bf16.mxu0 0
      %734 = vmatpush1.bf16.msra.mxu0 0
      %735 = vmatprep.mubr.bf16.mxu0 0
      %736 = vmatmul.mubr.bf16.gmra.mrb[0].mxu0 %v693
      %v737 = vpop.f32.mrb[0].mxu0
      %v738 = vadd.f32 0.0, %v737
      %v739 = vpop.f32.mrb[0].mxu0
      %v740 = vpop.f32.mrb[0].mxu0
      %v741 = vadd.f32 0.0, %v740
      %v742 = vpop.f32.mrb[0].mxu0
      %743 = vmatprep.mubr.bf16.mxu0 0
      %744 = vmatmul.mubr.bf16.gmra.mrb[0].mxu0 %v694
      %v745 = vpop.f32.mrb[0].mxu0
      %v746 = vadd.f32 0.0, %v745
      %v747 = vpop.f32.mrb[0].mxu0
      %v748 = vpop.f32.mrb[0].mxu0
      %v749 = vadd.f32 0.0, %v748
      %v750 = vpop.f32.mrb[0].mxu0
      %751 = vdwg.mxu0
      %v752 = vadd.f32 %v683, %v738
      %v753 = vadd.f32 %v684, %v741
      %v754 = vadd.f32 %v685, %v746
      %v755 = vadd.f32 %v686, %v749
      %vm756 = vcmask 261120
      %757 = vst.msk [vmem:[#allocation2] sm:$0xff] %vm756, %v752
      %758 = vst.msk [vmem:[#allocation2 + $0x8] sm:$0xff] %vm756, %v753
      %759 = vst.msk [vmem:[#allocation2 + $0x10] sm:$0xff] %vm756, %v754
      %760 = vst.msk [vmem:[#allocation2 + $0x18] sm:$0xff] %vm756, %v755
      // Predicated region
      $region49: #{forward.7} parent=43 // pred_check
        %p761 = pneg %p386
      $region50: #{forward.7} parent=43 // pred_check_branch
        %763 = sbr.rel (%p761) target = $region52
      $region51: #{forward.7} parent=43 // pred_region
        %v764 = vld [vmem:[#allocation2] sm:$0xff]
        %v765 = vld [vmem:[#allocation2 + $0x8] sm:$0xff]
        %v766 = vld [vmem:[#allocation2 + $0x10] sm:$0xff]
        %v767 = vld [vmem:[#allocation2 + $0x18] sm:$0xff]
        %v768 = vld [vmem:[%s365] sm:$0x1]
        %v770 = vlaneseq
        %v771 = vshrl.u32 %v770, 7
        %v772 = vsub.s32 0, %v771
        %v773 = vrot.slane %v768, %v772
        %v775 = vadd.f32 %v764, %v773
        %v776 = vadd.f32 %v765, %v773
        %v777 = vadd.f32 %v766, %v773
        %v778 = vadd.f32 %v767, %v773
        %v779 = vld [vmem:[%s370] sm:$0xff]
        %v780 = vld [vmem:[%s370 + $0x8] sm:$0xff]
        %v781 = vld [vmem:[%s370 + $0x10] sm:$0xff]
        %v782 = vld [vmem:[%s370 + $0x18] sm:$0xff]
        %v783 = vld [vmem:[%s373] sm:$0x1]
        %785 = vset.pattern.permute.xlu0 0
        %786 = vperm.xlu0 %785, %v779
        %v787 = vpop.permute.xlu0 %786
        %790 = vset.pattern.permute.xlu0 0
        %791 = vperm.xlu0 %790, %v780
        %v792 = vpop.permute.xlu0 %791
        %795 = vset.pattern.permute.xlu0 0
        %796 = vperm.xlu0 %795, %v781
        %v797 = vpop.permute.xlu0 %796
        %800 = vset.pattern.permute.xlu0 0
        %801 = vperm.xlu0 %800, %v782
        %v802 = vpop.permute.xlu0 %801
        %v805 = vlaneseq
        %v806 = vshrl.u32 %v805, 7
        %v807 = vsub.s32 0, %v806
        %v808 = vrot.slane %v783, %v807
        %v810 = vmul.f32 %v787, %v808
        %v811 = vmul.f32 %v792, %v808
        %v812 = vmul.f32 %v797, %v808
        %v813 = vmul.f32 %v802, %v808
        %v814 = vld [vmem:[%s376] sm:$0x1]
        %v816 = vlaneseq
        %v817 = vshrl.u32 %v816, 7
        %v818 = vsub.s32 0, %v817
        %v819 = vrot.slane %v814, %v818
        %v821 = vadd.f32 %v810, %v819
        %v822 = vadd.f32 %v811, %v819
        %v823 = vadd.f32 %v812, %v819
        %v824 = vadd.f32 %v813, %v819
        %v825 = vadd.f32 %v775, %v821
        %v826 = vadd.f32 %v776, %v822
        %v827 = vadd.f32 %v777, %v823
        %v828 = vadd.f32 %v778, %v824
        %v829 = vmul.f32 %v825, 0.70710677
        %v830 = vmul.f32 %v826, 0.70710677
        %v831 = vmul.f32 %v827, 0.70710677
        %v832 = vmul.f32 %v828, 0.70710677
        %833 = vst.msk [vmem:[%s384] sm:$0xff] %vm756, %v829
        %834 = vst.msk [vmem:[%s384 + $0x8] sm:$0xff] %vm756, %v830
        %835 = vst.msk [vmem:[%s384 + $0x10] sm:$0xff] %vm756, %v831
        %836 = vst.msk [vmem:[%s384 + $0x18] sm:$0xff] %vm756, %v832
      $region52: #{forward.7} parent=43 // pred_fallthru
        _
      %p837 = scmp.lt.s32.totalorder %s22, 1
      %s838 = scalar_select %p837, %s22, 1
      %p839 = scmp.lt.s32.totalorder %s23, 0
      %s840 = scalar_select %p839, %s23, 0
      %s841 = smul.addr %s838, 4
      %s842 = sadd.s32 %s840, %s841
      %s843 = smul.addr %s842, 8
      %s844 = scalar_lea.vmem %s6, %s843
      // Predicated region
      $region53: #{forward.7} parent=43 // pred_check
        %p845 = pneg %p216
      $region54: #{forward.7} parent=43 // pred_check_branch
        %847 = sbr.rel (%p845) target = $region56
      $region55: #{forward.7} parent=43 // pred_region
        _
      $region56: #{forward.7} parent=43 // pred_fallthru
        _
    $region44: #{forward.7} parent=5 // pred_fallthru
      _
    %p848 = scmp.le.s32.totalorder 2, %s12
    // Predicated region
    $region57: #{forward.7} parent=5 // pred_check
      %p849 = pneg %p848
    $region58: #{forward.7} parent=5 // pred_check_branch
      %851 = sbr.rel (%p849) target = $region60
    $region59: #{forward.7} parent=5 // pred_region
      %s852 = ssub.s32 %s12, 2
      // Predicated region
      $region61: #{forward.7} parent=59 // pred_check
        %p853 = pneg %p222
      $region62: #{forward.7} parent=59 // pred_check_branch
        %855 = sbr.rel (%p853) target = $region64
      $region63: #{forward.7} parent=59 // pred_region
        %p856 = scmp.lt.s32.totalorder %s25, 1
        %s857 = scalar_select %p856, %s25, 1
        %p858 = scmp.lt.s32.totalorder %s26, 0
        %s859 = scalar_select %p858, %s26, 0
        %s860 = smul.addr %s857, 4
        %s861 = sadd.s32 %s859, %s860
        %s862 = smul.addr %s861, 8
        %s863 = scalar_lea.vmem %s6, %s862
      $region64: #{forward.7} parent=59 // pred_fallthru
        _
    $region60: #{forward.7} parent=5 // pred_fallthru
      _
  $region6: #{forward.7} parent=0 // loop_footer
    %s16 = sadd.s32 1, %s12
  $region7: #{forward.7} parent=0 // loop_footer_branch
    %11 = sbr.rel target = $region3
  $region8: #{forward.7} parent=0 // loop_exit
    _

// kernel: forward.6
$region0: #{forward.6}
  #allocation0 [shape = 'u32[]', space=smem, size = 0x4, offset = 0x4, fixed_abs, tag = 'smem constant byte address 0x4 - core index']
  #allocation1 [shape = 'u32[144,128]{1,0:T(1,128)}', space=vmem, size = 0x12000, scoped, tag = 'internal scratch']
  #allocation2 [shape = 'f32[128,32]{1,0:T(8,128)}', space=vmem, size = 0x10000, scoped, tag = 'scratch operand']
  #allocation3 [shape = 'f32[10,18,32]{2,1,0:T(8,128)}', space=vmem, size = 0x1e000, scoped, tag = 'scratch operand']
  %s0 = inlined_call_operand.vmem [shape: f32[2,10,18,32], index: 0, kind: input, shape index: {}]
  %s1 = inlined_call_operand.vmem [shape: f32[3,3,32,32], index: 1, kind: input, shape index: {}]
  %s2 = inlined_call_operand.vmem [shape: f32[1,32], index: 2, kind: input, shape index: {}]
  %s3 = inlined_call_operand.vmem [shape: f32[2,8,16,32], index: 3, kind: output, shape index: {}]
  %s4 = sld [smem:[#allocation0]]
  $region53: #{forward.6} parent=0
    _
  %s6 = ssub.s32 1, %s4
  %s7 = scalar_select 0, %s6, %s4
  loop: start=0, step=1, limit=4
  $region2: #{forward.6} parent=0 // loop_pre_header
    _
  $region3: #{forward.6} parent=0 // loop_header
    %s9 = sphi 0, %s13
    %p10 = scmp.ge.s32.totalorder %s9, 4
    %s16 = sphi 0, %s35
    %s17 = sphi 0, %s31
    %s18 = sphi 0, %s27
    %s19 = sphi 0, %s16
    %s20 = sphi 0, %s17
    %s21 = sphi 0, %s18
    %s22 = sphi 0, %s19
    %s23 = sphi 0, %s20
    %s24 = sphi 0, %s21
    %s40 = sphi 0, %s42
    %s43 = sphi 0, %s40
    %s44 = sphi 0, %s43
    %s60 = sphi 0, %s44
    %s68 = sphi 0, %s70
    %s71 = sphi 0, %s68
    %s72 = sphi 0, %s71
    %s88 = sphi 0, %s72
    %s94 = sphi 0, %s96
    %s97 = sphi 0, %s94
    %s98 = sphi 0, %s97
    %s114 = sphi 0, %s98
    %s122 = sphi 0, %s124
    %s125 = sphi 0, %s122
    %s126 = sphi 0, %s125
    %s142 = sphi 0, %s126
  $region4: #{forward.6} parent=0 // loop_header_branch
    %12 = sbr.rel (%p10) target = $region8
  $region5: #{forward.6} parent=0 // loop_body
    %s14 = ssub.s32 %s9, 1
    %s15 = ssub.s32 %s9, 2
    %s25 = sadd.s32 1, %s18
    %p26 = scmp.ge.s32.totalorder %s25, 1
    %s27 = scalar_select %p26, 0, %s25
    %s28 = sadd.s32 1, %s17
    %s29 = scalar_select %p26, %s28, %s17
    %p30 = scmp.ge.s32.totalorder %s29, 1
    %s31 = scalar_select %p30, 0, %s29
    %s32 = sadd.s32 1, %s16
    %s33 = scalar_select %p30, %s32, %s16
    %p34 = scmp.ge.s32.totalorder %s33, 2
    %s35 = scalar_select %p34, 0, %s33
    %s36 = ssub.s32 %s16, %s35
    %s37 = ssub.s32 %s18, %s27
    %s38 = sor.u32 %s36, %s37
    %p39 = scmp.eq.s32.totalorder %s38, 0
    %s41 = sadd.s32 %s40, 1
    %s42 = scalar_select %p39, %s40, %s41
    %p45 = pneg %p39
    %p46 = scmp.eq.s32.totalorder %s9, 1
    %p47 = por %p45, %p46
    %p48 = scmp.ne.s32.totalorder %s40, %s43
    %p49 = scmp.eq.s32.totalorder %s9, 0
    %p50 = por %p48, %p49
    %p51 = scmp.ne.s32.totalorder %s40, %s43
    %p52 = scmp.eq.s32.totalorder %s14, 1
    %p53 = por %p51, %p52
    %p54 = scmp.ne.s32.totalorder %s43, %s44
    %p55 = scmp.eq.s32.totalorder %s14, 0
    %p56 = por %p54, %p55
    %p57 = scmp.ne.s32.totalorder %s43, %s44
    %p58 = scmp.eq.s32.totalorder %s15, 1
    %p59 = por %p57, %p58
    %p61 = scmp.ne.s32.totalorder %s44, %s60
    %p62 = scmp.eq.s32.totalorder %s15, 0
    %p63 = por %p61, %p62
    %s64 = ssub.s32 %s18, %s27
    %s65 = ssub.s32 %s17, %s31
    %s66 = sor.u32 %s64, %s65
    %p67 = scmp.eq.s32.totalorder %s66, 0
    %s69 = sadd.s32 %s68, 1
    %s70 = scalar_select %p67, %s68, %s69
    %p73 = pneg %p67
    %p74 = scmp.eq.s32.totalorder %s9, 1
    %p75 = por %p73, %p74
    %p76 = scmp.ne.s32.totalorder %s68, %s71
    %p77 = scmp.eq.s32.totalorder %s9, 0
    %p78 = por %p76, %p77
    %p79 = scmp.ne.s32.totalorder %s68, %s71
    %p80 = scmp.eq.s32.totalorder %s14, 1
    %p81 = por %p79, %p80
    %p82 = scmp.ne.s32.totalorder %s71, %s72
    %p83 = scmp.eq.s32.totalorder %s14, 0
    %p84 = por %p82, %p83
    %p85 = scmp.ne.s32.totalorder %s71, %s72
    %p86 = scmp.eq.s32.totalorder %s15, 1
    %p87 = por %p85, %p86
    %p89 = scmp.ne.s32.totalorder %s72, %s88
    %p90 = scmp.eq.s32.totalorder %s15, 0
    %p91 = por %p89, %p90
    %s92 = ssub.s32 %s17, %s31
    %p93 = scmp.eq.s32.totalorder %s92, 0
    %s95 = sadd.s32 %s94, 1
    %s96 = scalar_select %p93, %s94, %s95
    %p99 = pneg %p93
    %p100 = scmp.eq.s32.totalorder %s9, 1
    %p101 = por %p99, %p100
    %p102 = scmp.ne.s32.totalorder %s94, %s97
    %p103 = scmp.eq.s32.totalorder %s9, 0
    %p104 = por %p102, %p103
    %p105 = scmp.ne.s32.totalorder %s94, %s97
    %p106 = scmp.eq.s32.totalorder %s14, 1
    %p107 = por %p105, %p106
    %p108 = scmp.ne.s32.totalorder %s97, %s98
    %p109 = scmp.eq.s32.totalorder %s14, 0
    %p110 = por %p108, %p109
    %p111 = scmp.ne.s32.totalorder %s97, %s98
    %p112 = scmp.eq.s32.totalorder %s15, 1
    %p113 = por %p111, %p112
    %p115 = scmp.ne.s32.totalorder %s98, %s114
    %p116 = scmp.eq.s32.totalorder %s15, 0
    %p117 = por %p115, %p116
    %s118 = ssub.s32 %s16, %s35
    %s119 = ssub.s32 %s17, %s31
    %s120 = sor.u32 %s118, %s119
    %p121 = scmp.eq.s32.totalorder %s120, 0
    %s123 = sadd.s32 %s122, 1
    %s124 = scalar_select %p121, %s122, %s123
    %p127 = pneg %p121
    %p128 = scmp.eq.s32.totalorder %s9, 1
    %p129 = por %p127, %p128
    %p130 = scmp.ne.s32.totalorder %s122, %s125
    %p131 = scmp.eq.s32.totalorder %s9, 0
    %p132 = por %p130, %p131
    %p133 = scmp.ne.s32.totalorder %s122, %s125
    %p134 = scmp.eq.s32.totalorder %s14, 1
    %p135 = por %p133, %p134
    %p136 = scmp.ne.s32.totalorder %s125, %s126
    %p137 = scmp.eq.s32.totalorder %s14, 0
    %p138 = por %p136, %p137
    %p139 = scmp.ne.s32.totalorder %s125, %s126
    %p140 = scmp.eq.s32.totalorder %s15, 1
    %p141 = por %p139, %p140
    %p143 = scmp.ne.s32.totalorder %s126, %s142
    %p144 = scmp.eq.s32.totalorder %s15, 0
    %p145 = por %p143, %p144
    %p146 = scmp.le.s32.totalorder 1, %s9
    %p147 = scmp.lt.s32.totalorder %s9, 3
    %p148 = pnand %p146, %p147
    %p149 = pneg %p148
    // Predicated region
    $region9: #{forward.6} parent=5 // pred_check
      _
    $region10: #{forward.6} parent=5 // pred_check_branch
      %151 = sbr.rel (%p148) target = $region12
    $region11: #{forward.6} parent=5 // pred_region
      %s152 = ssub.s32 %s9, 1
      // Predicated region
      $region13: #{forward.6} parent=11 // pred_check
        %p153 = pneg %p84
      $region14: #{forward.6} parent=11 // pred_check_branch
        %155 = sbr.rel (%p153) target = $region16
      $region15: #{forward.6} parent=11 // pred_region
        %s156 = smul.u32 4, %s21
        %p157 = scmp.lt.s32.totalorder %s156, 3
        %s158 = scalar_select %p157, %s156, 3
        %p159 = scmp.lt.s32.totalorder %s20, 0
        %s160 = scalar_select %p159, %s20, 0
        %s161 = sadd.s32 %s160, %s158
        %s162 = smul.addr %s161, 8
        %s163 = scalar_lea.vmem %s1, %s162
        %s164 = smul.u32 4, %s21
      $region16: #{forward.6} parent=11 // pred_fallthru
        _
      // Predicated region
      $region17: #{forward.6} parent=11 // pred_check
        %p165 = pneg %p110
      $region18: #{forward.6} parent=11 // pred_check_branch
        %167 = sbr.rel (%p165) target = $region20
      $region19: #{forward.6} parent=11 // pred_region
        %p168 = scmp.lt.s32.totalorder %s20, 0
        %s169 = scalar_select %p168, %s20, 0
        %s170 = scalar_lea.vmem %s2, %s169
      $region20: #{forward.6} parent=11 // pred_fallthru
        _
    $region12: #{forward.6} parent=5 // pred_fallthru
      _
    %p171 = scmp.lt.s32.totalorder %s9, 2
    // Predicated region
    $region21: #{forward.6} parent=5 // pred_check
      %p172 = pneg %p171
    $region22: #{forward.6} parent=5 // pred_check_branch
      %174 = sbr.rel (%p172) target = $region24
    $region23: #{forward.6} parent=5 // pred_region
      // Predicated region
      $region25: #{forward.6} parent=23 // pred_check
        %p175 = pneg %p50
      $region26: #{forward.6} parent=23 // pred_check_branch
        %177 = sbr.rel (%p175) target = $region28
      $region27: #{forward.6} parent=23 // pred_region
        %p178 = scmp.lt.s32.totalorder %s16, 1
        %s179 = scalar_select %p178, %s16, 1
        %p180 = scmp.lt.s32.totalorder %s18, 0
        %s181 = scalar_select %p180, %s18, 0
        %s182 = smul.addr %s179, 30
        %s183 = sadd.s32 %s181, %s182
        %s184 = smul.addr %s183, 8
        %s185 = scalar_lea.vmem %s0, %s184
      $region28: #{forward.6} parent=23 // pred_fallthru
        _
    $region24: #{forward.6} parent=5 // pred_fallthru
      _
    %p186 = scmp.le.s32.totalorder 1, %s9
    %p187 = scmp.lt.s32.totalorder %s9, 3
    %p188 = pnand %p186, %p187
    %p189 = pneg %p188
    // Predicated region
    $region29: #{forward.6} parent=5 // pred_check
      _
    $region30: #{forward.6} parent=5 // pred_check_branch
      %191 = sbr.rel (%p188) target = $region32
    $region31: #{forward.6} parent=5 // pred_region
      %s192 = ssub.s32 %s9, 1
      %p193 = scmp.lt.s32.totalorder %s19, 1
      %s194 = scalar_select %p193, %s19, 1
      %p195 = scmp.lt.s32.totalorder %s21, 0
      %s196 = scalar_select %p195, %s21, 0
      %s197 = smul.addr %s194, 30
      %s198 = sadd.s32 %s196, %s197
      %s199 = smul.addr %s198, 8
      %s200 = scalar_lea.vmem %s0, %s199
      %p201 = pneg %p56
      %p202 = pneg %p53
      %s203 = smul.u32 4, %s21
      %p204 = scmp.lt.s32.totalorder %s203, 3
      %s205 = scalar_select %p204, %s203, 3
      %p206 = scmp.lt.s32.totalorder %s20, 0
      %s207 = scalar_select %p206, %s20, 0
      %s208 = sadd.s32 %s207, %s205
      %s209 = smul.addr %s208, 8
      %s210 = scalar_lea.vmem %s1, %s209
      %p211 = pneg %p84
      %p212 = pneg %p81
      %p213 = scmp.lt.s32.totalorder %s20, 0
      %s214 = scalar_select %p213, %s20, 0
      %s215 = scalar_lea.vmem %s2, %s214
      %p216 = pneg %p110
      %p217 = pneg %p107
      %p218 = pneg %p138
      %p219 = pneg %p135
      %p220 = scmp.lt.s32.totalorder %s19, 1
      %s221 = scalar_select %p220, %s19, 1
      %p222 = scmp.lt.s32.totalorder %s20, 0
      %s223 = scalar_select %p222, %s20, 0
      %s224 = smul.addr %s221, 16
      %s225 = sadd.s32 %s223, %s224
      %s226 = smul.addr %s225, 8
      %s227 = scalar_lea.vmem %s3, %s226
      %p228 = scmp.lt.s32.totalorder %s19, 1
      %s229 = scalar_select %p228, %s19, 1
      %p230 = scmp.lt.s32.totalorder %s21, 0
      %s231 = scalar_select %p230, %s21, 0
      %s232 = smul.addr %s229, 30
      %s233 = sadd.s32 %s231, %s232
      %s234 = smul.addr %s233, 8
      %s235 = scalar_lea.vmem %s0, %s234
      %s236 = smul.u32 4, %s21
      %p237 = scmp.lt.s32.totalorder %s236, 3
      %s238 = scalar_select %p237, %s236, 3
      %p239 = scmp.lt.s32.totalorder %s20, 0
      %s240 = scalar_select %p239, %s20, 0
      %s241 = sadd.s32 %s240, %s238
      %s242 = smul.addr %s241, 8
      %s243 = scalar_lea.vmem %s1, %s242
      %s244 = smul.u32 4, %s21
      %p245 = scmp.lt.s32.totalorder %s20, 0
      %s246 = scalar_select %p245, %s20, 0
      %s247 = scalar_lea.vmem %s2, %s246
      %p248 = scmp.lt.s32.totalorder %s19, 1
      %s249 = scalar_select %p248, %s19, 1
      %p250 = scmp.lt.s32.totalorder %s20, 0
      %s251 = scalar_select %p250, %s20, 0
      %s252 = smul.addr %s249, 16
      %s253 = sadd.s32 %s251, %s252
      %s254 = smul.addr %s253, 8
      %s255 = scalar_lea.vmem %s3, %s254
      %p257 = scmp.eq.s32.totalorder %s21, 0
      // Predicated region
      $region33: #{forward.6} parent=31 // pred_check
        %p258 = pneg %p257
      $region34: #{forward.6} parent=31 // pred_check_branch
        %260 = sbr.rel (%p258) target = $region36
      $region35: #{forward.6} parent=31 // pred_region
        %vm261 = vcmask 261120
        %262 = vst.msk [vmem:[#allocation2] sm:$0xff] %vm261, 0.0
        %263 = vst.msk [vmem:[#allocation2 + $0x8] sm:$0xff] %vm261, 0.0
        %264 = vst.msk [vmem:[#allocation2 + $0x10] sm:$0xff] %vm261, 0.0
        %265 = vst.msk [vmem:[#allocation2 + $0x18] sm:$0xff] %vm261, 0.0
        %266 = vst.msk [vmem:[#allocation2 + $0x20] sm:$0xff] %vm261, 0.0
        %267 = vst.msk [vmem:[#allocation2 + $0x28] sm:$0xff] %vm261, 0.0
        %268 = vst.msk [vmem:[#allocation2 + $0x30] sm:$0xff] %vm261, 0.0
        %269 = vst.msk [vmem:[#allocation2 + $0x38] sm:$0xff] %vm261, 0.0
        %270 = vst.msk [vmem:[#allocation2 + $0x40] sm:$0xff] %vm261, 0.0
        %271 = vst.msk [vmem:[#allocation2 + $0x48] sm:$0xff] %vm261, 0.0
        %272 = vst.msk [vmem:[#allocation2 + $0x50] sm:$0xff] %vm261, 0.0
        %273 = vst.msk [vmem:[#allocation2 + $0x58] sm:$0xff] %vm261, 0.0
        %274 = vst.msk [vmem:[#allocation2 + $0x60] sm:$0xff] %vm261, 0.0
        %275 = vst.msk [vmem:[#allocation2 + $0x68] sm:$0xff] %vm261, 0.0
        %276 = vst.msk [vmem:[#allocation2 + $0x70] sm:$0xff] %vm261, 0.0
        %277 = vst.msk [vmem:[#allocation2 + $0x78] sm:$0xff] %vm261, 0.0
      $region36: #{forward.6} parent=31 // pred_fallthru
        _
      %v278 = vld [vmem:[%s235] sm:$0xff]
      %v279 = vld [vmem:[%s235 + $0x8] sm:$0xff]
      %v280 = vld [vmem:[%s235 + $0x10] sm:$0x3]
      %v281 = vld [vmem:[%s235 + $0x18] sm:$0xff]
      %v282 = vld [vmem:[%s235 + $0x20] sm:$0xff]
      %v283 = vld [vmem:[%s235 + $0x28] sm:$0x3]
      %v284 = vld [vmem:[%s235 + $0x30] sm:$0xff]
      %v285 = vld [vmem:[%s235 + $0x38] sm:$0xff]
      %v286 = vld [vmem:[%s235 + $0x40] sm:$0x3]
      %v287 = vld [vmem:[%s235 + $0x48] sm:$0xff]
      %v288 = vld [vmem:[%s235 + $0x50] sm:$0xff]
      %v289 = vld [vmem:[%s235 + $0x58] sm:$0x3]
      %v290 = vld [vmem:[%s235 + $0x60] sm:$0xff]
      %v291 = vld [vmem:[%s235 + $0x68] sm:$0xff]
      %v292 = vld [vmem:[%s235 + $0x70] sm:$0x3]
      %v293 = vld [vmem:[%s235 + $0x78] sm:$0xff]
      %v294 = vld [vmem:[%s235 + $0x80] sm:$0xff]
      %v295 = vld [vmem:[%s235 + $0x88] sm:$0x3]
      %v296 = vld [vmem:[%s235 + $0x90] sm:$0xff]
      %v297 = vld [vmem:[%s235 + $0x98] sm:$0xff]
      %v298 = vld [vmem:[%s235 + $0xa0] sm:$0x3]
      %v299 = vld [vmem:[%s235 + $0xa8] sm:$0xff]
      %v300 = vld [vmem:[%s235 + $0xb0] sm:$0xff]
      %v301 = vld [vmem:[%s235 + $0xb8] sm:$0x3]
      %v302 = vld [vmem:[%s235 + $0xc0] sm:$0xff]
      %v303 = vld [vmem:[%s235 + $0xc8] sm:$0xff]
      %v304 = vld [vmem:[%s235 + $0xd0] sm:$0x3]
      %v305 = vld [vmem:[%s235 + $0xd8] sm:$0xff]
      %v306 = vld [vmem:[%s235 + $0xe0] sm:$0xff]
      %v307 = vld [vmem:[%s235 + $0xe8] sm:$0x3]
      %v308 = vld [vmem:[%s243] sm:$0xff]
      %v309 = vld [vmem:[%s243 + $0x8] sm:$0xff]
      %v310 = vld [vmem:[%s243 + $0x10] sm:$0xff]
      %v311 = vld [vmem:[%s243 + $0x18] sm:$0xff]
      %v312 = vld [vmem:[%s243 + $0x20] sm:$0xff]
      %v313 = vld [vmem:[%s243 + $0x28] sm:$0xff]
      %v314 = vld [vmem:[%s243 + $0x30] sm:$0xff]
      %v315 = vld [vmem:[%s243 + $0x38] sm:$0xff]
      %v316 = vld [vmem:[%s243 + $0x40] sm:$0xff]
      %v317 = vld [vmem:[%s243 + $0x48] sm:$0xff]
      %v318 = vld [vmem:[%s243 + $0x50] sm:$0xff]
      %v319 = vld [vmem:[%s243 + $0x58] sm:$0xff]
      %v320 = vld [vmem:[%s243 + $0x60] sm:$0xff]
      %v321 = vld [vmem:[%s243 + $0x68] sm:$0xff]
      %v322 = vld [vmem:[%s243 + $0x70] sm:$0xff]
      %v323 = vld [vmem:[%s243 + $0x78] sm:$0xff]
      %v324 = vld [vmem:[%s243 + $0x80] sm:$0xff]
      %v325 = vld [vmem:[%s243 + $0x88] sm:$0xff]
      %v326 = vld [vmem:[%s243 + $0x90] sm:$0xff]
      %v327 = vld [vmem:[%s243 + $0x98] sm:$0xff]
      %v328 = vld [vmem:[%s243 + $0xa0] sm:$0xff]
      %v329 = vld [vmem:[%s243 + $0xa8] sm:$0xff]
      %v330 = vld [vmem:[%s243 + $0xb0] sm:$0xff]
      %v331 = vld [vmem:[%s243 + $0xb8] sm:$0xff]
      %v332 = vld [vmem:[%s243 + $0xc0] sm:$0xff]
      %v333 = vld [vmem:[%s243 + $0xc8] sm:$0xff]
      %v334 = vld [vmem:[%s243 + $0xd0] sm:$0xff]
      %v335 = vld [vmem:[%s243 + $0xd8] sm:$0xff]
      %v336 = vld [vmem:[%s243 + $0xe0] sm:$0xff]
      %v337 = vld [vmem:[%s243 + $0xe8] sm:$0xff]
      %v338 = vld [vmem:[%s243 + $0xf0] sm:$0xff]
      %v339 = vld [vmem:[%s243 + $0xf8] sm:$0xff]
      %v340 = vld [vmem:[%s243 + $0x100] sm:$0xff]
      %v341 = vld [vmem:[%s243 + $0x108] sm:$0xff]
      %v342 = vld [vmem:[%s243 + $0x110] sm:$0xff]
      %v343 = vld [vmem:[%s243 + $0x118] sm:$0xff]
      %v344 = vld [vmem:[#allocation2] sm:$0xff]
      %v345 = vld [vmem:[#allocation2 + $0x8] sm:$0xff]
      %v346 = vld [vmem:[#allocation2 + $0x10] sm:$0xff]
      %v347 = vld [vmem:[#allocation2 + $0x18] sm:$0xff]
      %v348 = vld [vmem:[#allocation2 + $0x20] sm:$0xff]
      %v349 = vld [vmem:[#allocation2 + $0x28] sm:$0xff]
      %v350 = vld [vmem:[#allocation2 + $0x30] sm:$0xff]
      %v351 = vld [vmem:[#allocation2 + $0x38] sm:$0xff]
      %v352 = vld [vmem:[#allocation2 + $0x40] sm:$0xff]
      %v353 = vld [vmem:[#allocation2 + $0x48] sm:$0xff]
      %v354 = vld [vmem:[#allocation2 + $0x50] sm:$0xff]
      %v355 = vld [vmem:[#allocation2 + $0x58] sm:$0xff]
      %v356 = vld [vmem:[#allocation2 + $0x60] sm:$0xff]
      %v357 = vld [vmem:[#allocation2 + $0x68] sm:$0xff]
      %v358 = vld [vmem:[#allocation2 + $0x70] sm:$0xff]
      %v359 = vld [vmem:[#allocation2 + $0x78] sm:$0xff]
      %v360 = vpack.c.bf16 %v279, %v278
      %v361 = vpack.c.bf16 %v282, %v281
      %v362 = vpack.c.bf16 %v285, %v284
      %v363 = vpack.c.bf16 %v288, %v287
      %v364 = vpack.c.bf16 %v291, %v290
      %v365 = vpack.c.bf16 %v294, %v293
      %v366 = vpack.c.bf16 %v297, %v296
      %v367 = vpack.c.bf16 %v300, %v299
      %v368 = vpack.c.bf16 %v309, %v308
      %v369 = vpack.c.bf16 %v311, %v310
      %vm370 = vcmask 261120
      %v372 = vsel %vm370, %v360, 0
      %v375 = vsel %vm370, %v361, 0
      %v378 = vsel %vm370, %v362, 0
      %v381 = vsel %vm370, %v363, 0
      %v384 = vsel %vm370, %v364, 0
      %v387 = vsel %vm370, %v365, 0
      %v390 = vsel %vm370, %v366, 0
      %v393 = vsel %vm370, %v367, 0
      %395 = vmatprep.subr.bf16.mxu0 0
      %396 = vmatpush1.bf16.msra.mxu0 %v368
      %397 = vmatprep.subr.bf16.mxu0 0
      %398 = vmatpush1.bf16.msra.mxu0 %v369
      %399 = vmatprep.subr.bf16.mxu0 0
      %400 = vmatpush1.bf16.msra.mxu0 0
      %401 = vmatprep.subr.bf16.mxu0 0
      %402 = vmatpush1.bf16.msra.mxu0 0
      %403 = vmatprep.subr.bf16.mxu0 0
      %404 = vmatpush1.bf16.msra.mxu0 0
      %405 = vmatprep.subr.bf16.mxu0 0
      %406 = vmatpush1.bf16.msra.mxu0 0
      %407 = vmatprep.subr.bf16.mxu0 0
      %408 = vmatpush1.bf16.msra.mxu0 0
      %409 = vmatprep.subr.bf16.mxu0 0
      %410 = vmatpush1.bf16.msra.mxu0 0
      %411 = vmatprep.subr.bf16.mxu0 0
      %412 = vmatpush1.bf16.msra.mxu0 0
      %413 = vmatprep.subr.bf16.mxu0 0
      %414 = vmatpush1.bf16.msra.mxu0 0
      %415 = vmatprep.subr.bf16.mxu0 0
      %416 = vmatpush1.bf16.msra.mxu0 0
      %417 = vmatprep.subr.bf16.mxu0 0
      %418 = vmatpush1.bf16.msra.mxu0 0
      %419 = vmatprep.subr.bf16.mxu0 0
      %420 = vmatpush1.bf16.msra.mxu0 0
      %421 = vmatprep.subr.bf16.mxu0 0
      %422 = vmatpush1.bf16.msra.mxu0 0
      %423 = vmatprep.subr.bf16.mxu0 0
      %424 = vmatpush1.bf16.msra.mxu0 0
      %425 = vmatprep.subr.bf16.mxu0 0
      %426 = vmatpush1.bf16.msra.mxu0 0
      %427 = vmatprep.mubr.bf16.mxu0 0
      %428 = vmatmul.mubr.bf16.gmra.mrb[0].mxu0 %v372
      %v429 = vpop.f32.mrb[0].mxu0
      %v430 = vadd.f32 0.0, %v429
      %v431 = vpop.f32.mrb[0].mxu0
      %v432 = vpop.f32.mrb[0].mxu0
      %v433 = vadd.f32 0.0, %v432
      %v434 = vpop.f32.mrb[0].mxu0
      %435 = vmatprep.mubr.bf16.mxu0 0
      %436 = vmatmul.mubr.bf16.gmra.mrb[0].mxu0 %v375
      %v437 = vpop.f32.mrb[0].mxu0
      %v438 = vadd.f32 0.0, %v437
      %v439 = vpop.f32.mrb[0].mxu0
      %v440 = vpop.f32.mrb[0].mxu0
      %v441 = vadd.f32 0.0, %v440
      %v442 = vpop.f32.mrb[0].mxu0
      %443 = vmatprep.mubr.bf16.mxu0 0
      %444 = vmatmul.mubr.bf16.gmra.mrb[0].mxu0 %v378
      %v445 = vpop.f32.mrb[0].mxu0
      %v446 = vadd.f32 0.0, %v445
      %v447 = vpop.f32.mrb[0].mxu0
      %v448 = vpop.f32.mrb[0].mxu0
      %v449 = vadd.f32 0.0, %v448
      %v450 = vpop.f32.mrb[0].mxu0
      %451 = vmatprep.mubr.bf16.mxu0 0
      %452 = vmatmul.mubr.bf16.gmra.mrb[0].mxu0 %v381
      %v453 = vpop.f32.mrb[0].mxu0
      %v454 = vadd.f32 0.0, %v453
      %v455 = vpop.f32.mrb[0].mxu0
      %v456 = vpop.f32.mrb[0].mxu0
      %v457 = vadd.f32 0.0, %v456
      %v458 = vpop.f32.mrb[0].mxu0
      %459 = vmatprep.mubr.bf16.mxu0 0
      %460 = vmatmul.mubr.bf16.gmra.mrb[0].mxu0 %v384
      %v461 = vpop.f32.mrb[0].mxu0
      %v462 = vadd.f32 0.0, %v461
      %v463 = vpop.f32.mrb[0].mxu0
      %v464 = vpop.f32.mrb[0].mxu0
      %v465 = vadd.f32 0.0, %v464
      %v466 = vpop.f32.mrb[0].mxu0
      %467 = vmatprep.mubr.bf16.mxu0 0
      %468 = vmatmul.mubr.bf16.gmra.mrb[0].mxu0 %v387
      %v469 = vpop.f32.mrb[0].mxu0
      %v470 = vadd.f32 0.0, %v469
      %v471 = vpop.f32.mrb[0].mxu0
      %v472 = vpop.f32.mrb[0].mxu0
      %v473 = vadd.f32 0.0, %v472
      %v474 = vpop.f32.mrb[0].mxu0
      %475 = vmatprep.mubr.bf16.mxu0 0
      %476 = vmatmul.mubr.bf16.gmra.mrb[0].mxu0 %v390
      %v477 = vpop.f32.mrb[0].mxu0
      %v478 = vadd.f32 0.0, %v477
      %v479 = vpop.f32.mrb[0].mxu0
      %v480 = vpop.f32.mrb[0].mxu0
      %v481 = vadd.f32 0.0, %v480
      %v482 = vpop.f32.mrb[0].mxu0
      %483 = vmatprep.mubr.bf16.mxu0 0
      %484 = vmatmul.mubr.bf16.gmra.mrb[0].mxu0 %v393
      %v485 = vpop.f32.mrb[0].mxu0
      %v486 = vadd.f32 0.0, %v485
      %v487 = vpop.f32.mrb[0].mxu0
      %v488 = vpop.f32.mrb[0].mxu0
      %v489 = vadd.f32 0.0, %v488
      %v490 = vpop.f32.mrb[0].mxu0
      %491 = vdwg.mxu0
      %v492 = vadd.f32 %v344, %v430
      %v493 = vadd.f32 %v345, %v433
      %v494 = vadd.f32 %v346, %v438
      %v495 = vadd.f32 %v347, %v441
      %v496 = vadd.f32 %v348, %v446
      %v497 = vadd.f32 %v349, %v449
      %v498 = vadd.f32 %v350, %v454
      %v499 = vadd.f32 %v351, %v457
      %v500 = vadd.f32 %v352, %v462
      %v501 = vadd.f32 %v353, %v465
      %v502 = vadd.f32 %v354, %v470
      %v503 = vadd.f32 %v355, %v473
      %v504 = vadd.f32 %v356, %v478
      %v505 = vadd.f32 %v357, %v481
      %v506 = vadd.f32 %v358, %v486
      %v507 = vadd.f32 %v359, %v489
      %vm532 = vcmask 1046528
      %v533 = vrot.slane %v278, 1
      %v534 = vrot.slane %v279, 1
      %v535 = vsel %vm532, %v533, %v534
      %v536 = vrot.slane %v280, 1
      %v537 = vsel %vm532, %v534, %v536
      %v538 = vrot.slane %v281, 1
      %v539 = vrot.slane %v282, 1
      %v540 = vsel %vm532, %v538, %v539
      %v541 = vrot.slane %v283, 1
      %v542 = vsel %vm532, %v539, %v541
      %v543 = vrot.slane %v284, 1
      %v544 = vrot.slane %v285, 1
      %v545 = vsel %vm532, %v543, %v544
      %v546 = vrot.slane %v286, 1
      %v547 = vsel %vm532, %v544, %v546
      %v548 = vrot.slane %v287, 1
      %v549 = vrot.slane %v288, 1
      %v550 = vsel %vm532, %v548, %v549
      %v551 = vrot.slane %v289, 1
      %v552 = vsel %vm532, %v549, %v551
      %v553 = vrot.slane %v290, 1
      %v554 = vrot.slane %v291, 1
      %v555 = vsel %vm532, %v553, %v554
      %v556 = vrot.slane %v292, 1
      %v557 = vsel %vm532, %v554, %v556
      %v558 = vrot.slane %v293, 1
      %v559 = vrot.slane %v294, 1
      %v560 = vsel %vm532, %v558, %v559
      %v561 = vrot.slane %v295, 1
      %v562 = vsel %vm532, %v559, %v561
      %v563 = vrot.slane %v296, 1
      %v564 = vrot.slane %v297, 1
      %v565 = vsel %vm532, %v563, %v564
      %v566 = vrot.slane %v298, 1
      %v567 = vsel %vm532, %v564, %v566
      %v568 = vrot.slane %v299, 1
      %v569 = vrot.slane %v300, 1
      %v570 = vsel %vm532, %v568, %v569
      %v571 = vrot.slane %v301, 1
      %v572 = vsel %vm532, %v569, %v571
      %v589 = vpack.c.bf16 %v537, %v535
      %v590 = vpack.c.bf16 %v542, %v540
      %v591 = vpack.c.bf16 %v547, %v545
      %v592 = vpack.c.bf16 %v552, %v550
      %v593 = vpack.c.bf16 %v557, %v555
      %v594 = vpack.c.bf16 %v562, %v560
      %v595 = vpack.c.bf16 %v567, %v565
      %v596 = vpack.c.bf16 %v572, %v570
      %v597 = vpack.c.bf16 %v313, %v312
      %v598 = vpack.c.bf16 %v315, %v314
      %v600 = vsel %vm370, %v589, 0
      %v603 = vsel %vm370, %v590, 0
      %v606 = vsel %vm370, %v591, 0
      %v609 = vsel %vm370, %v592, 0
      %v612 = vsel %vm370, %v593, 0
      %v615 = vsel %vm370, %v594, 0
      %v618 = vsel %vm370, %v595, 0
      %v621 = vsel %vm370, %v596, 0
      %623 = vmatprep.subr.bf16.mxu0 0
      %624 = vmatpush1.bf16.msra.mxu0 %v597
      %625 = vmatprep.subr.bf16.mxu0 0
      %626 = vmatpush1.bf16.msra.mxu0 %v598
      %627 = vmatprep.subr.bf16.mxu0 0
      %628 = vmatpush1.bf16.msra.mxu0 0
      %629 = vmatprep.subr.bf16.mxu0 0
      %630 = vmatpush1.bf16.msra.mxu0 0
      %631 = vmatprep.subr.bf16.mxu0 0
      %632 = vmatpush1.bf16.msra.mxu0 0
      %633 = vmatprep.subr.bf16.mxu0 0
      %634 = vmatpush1.bf16.msra.mxu0 0
      %635 = vmatprep.subr.bf16.mxu0 0
      %636 = vmatpush1.bf16.msra.mxu0 0
      %637 = vmatprep.subr.bf16.mxu0 0
      %638 = vmatpush1.bf16.msra.mxu0 0
      %639 = vmatprep.subr.bf16.mxu0 0
      %640 = vmatpush1.bf16.msra.mxu0 0
      %641 = vmatprep.subr.bf16.mxu0 0
      %642 = vmatpush1.bf16.msra.mxu0 0
      %643 = vmatprep.subr.bf16.mxu0 0
      %644 = vmatpush1.bf16.msra.mxu0 0
      %645 = vmatprep.subr.bf16.mxu0 0
      %646 = vmatpush1.bf16.msra.mxu0 0
      %647 = vmatprep.subr.bf16.mxu0 0
      %648 = vmatpush1.bf16.msra.mxu0 0
      %649 = vmatprep.subr.bf16.mxu0 0
      %650 = vmatpush1.bf16.msra.mxu0 0
      %651 = vmatprep.subr.bf16.mxu0 0
      %652 = vmatpush1.bf16.msra.mxu0 0
      %653 = vmatprep.subr.bf16.mxu0 0
      %654 = vmatpush1.bf16.msra.mxu0 0
      %655 = vmatprep.mubr.bf16.mxu0 0
      %656 = vmatmul.mubr.bf16.gmra.mrb[0].mxu0 %v600
      %v657 = vpop.f32.mrb[0].mxu0
      %v658 = vadd.f32 0.0, %v657
      %v659 = vpop.f32.mrb[0].mxu0
      %v660 = vpop.f32.mrb[0].mxu0
      %v661 = vadd.f32 0.0, %v660
      %v662 = vpop.f32.mrb[0].mxu0
      %663 = vmatprep.mubr.bf16.mxu0 0
      %664 = vmatmul.mubr.bf16.gmra.mrb[0].mxu0 %v603
      %v665 = vpop.f32.mrb[0].mxu0
      %v666 = vadd.f32 0.0, %v665
      %v667 = vpop.f32.mrb[0].mxu0
      %v668 = vpop.f32.mrb[0].mxu0
      %v669 = vadd.f32 0.0, %v668
      %v670 = vpop.f32.mrb[0].mxu0
      %671 = vmatprep.mubr.bf16.mxu0 0
      %672 = vmatmul.mubr.bf16.gmra.mrb[0].mxu0 %v606
      %v673 = vpop.f32.mrb[0].mxu0
      %v674 = vadd.f32 0.0, %v673
      %v675 = vpop.f32.mrb[0].mxu0
      %v676 = vpop.f32.mrb[0].mxu0
      %v677 = vadd.f32 0.0, %v676
      %v678 = vpop.f32.mrb[0].mxu0
      %679 = vmatprep.mubr.bf16.mxu0 0
      %680 = vmatmul.mubr.bf16.gmra.mrb[0].mxu0 %v609
      %v681 = vpop.f32.mrb[0].mxu0
      %v682 = vadd.f32 0.0, %v681
      %v683 = vpop.f32.mrb[0].mxu0
      %v684 = vpop.f32.mrb[0].mxu0
      %v685 = vadd.f32 0.0, %v684
      %v686 = vpop.f32.mrb[0].mxu0
      %687 = vmatprep.mubr.bf16.mxu0 0
      %688 = vmatmul.mubr.bf16.gmra.mrb[0].mxu0 %v612
      %v689 = vpop.f32.mrb[0].mxu0
      %v690 = vadd.f32 0.0, %v689
      %v691 = vpop.f32.mrb[0].mxu0
      %v692 = vpop.f32.mrb[0].mxu0
      %v693 = vadd.f32 0.0, %v692
      %v694 = vpop.f32.mrb[0].mxu0
      %695 = vmatprep.mubr.bf16.mxu0 0
      %696 = vmatmul.mubr.bf16.gmra.mrb[0].mxu0 %v615
      %v697 = vpop.f32.mrb[0].mxu0
      %v698 = vadd.f32 0.0, %v697
      %v699 = vpop.f32.mrb[0].mxu0
      %v700 = vpop.f32.mrb[0].mxu0
      %v701 = vadd.f32 0.0, %v700
      %v702 = vpop.f32.mrb[0].mxu0
      %703 = vmatprep.mubr.bf16.mxu0 0
      %704 = vmatmul.mubr.bf16.gmra.mrb[0].mxu0 %v618
      %v705 = vpop.f32.mrb[0].mxu0
      %v706 = vadd.f32 0.0, %v705
      %v707 = vpop.f32.mrb[0].mxu0
      %v708 = vpop.f32.mrb[0].mxu0
      %v709 = vadd.f32 0.0, %v708
      %v710 = vpop.f32.mrb[0].mxu0
      %711 = vmatprep.mubr.bf16.mxu0 0
      %712 = vmatmul.mubr.bf16.gmra.mrb[0].mxu0 %v621
      %v713 = vpop.f32.mrb[0].mxu0
      %v714 = vadd.f32 0.0, %v713
      %v715 = vpop.f32.mrb[0].mxu0
      %v716 = vpop.f32.mrb[0].mxu0
      %v717 = vadd.f32 0.0, %v716
      %v718 = vpop.f32.mrb[0].mxu0
      %719 = vdwg.mxu0
      %v720 = vadd.f32 %v492, %v658
      %v721 = vadd.f32 %v493, %v661
      %v722 = vadd.f32 %v494, %v666
      %v723 = vadd.f32 %v495, %v669
      %v724 = vadd.f32 %v496, %v674
      %v725 = vadd.f32 %v497, %v677
      %v726 = vadd.f32 %v498, %v682
      %v727 = vadd.f32 %v499, %v685
      %v728 = vadd.f32 %v500, %v690
      %v729 = vadd.f32 %v501, %v693
      %v730 = vadd.f32 %v502, %v698
      %v731 = vadd.f32 %v503, %v701
      %v732 = vadd.f32 %v504, %v706
      %v733 = vadd.f32 %v505, %v709
      %v734 = vadd.f32 %v506, %v714
      %v735 = vadd.f32 %v507, %v717
      %vm736 = vcmask 1045504
      %v737 = vrot.slane %v278, 2
      %v738 = vrot.slane %v279, 2
      %v739 = vsel %vm736, %v737, %v738
      %v740 = vrot.slane %v280, 2
      %v741 = vsel %vm736, %v738, %v740
      %v742 = vrot.slane %v281, 2
      %v743 = vrot.slane %v282, 2
      %v744 = vsel %vm736, %v742, %v743
      %v745 = vrot.slane %v283, 2
      %v746 = vsel %vm736, %v743, %v745
      %v747 = vrot.slane %v284, 2
      %v748 = vrot.slane %v285, 2
      %v749 = vsel %vm736, %v747, %v748
      %v750 = vrot.slane %v286, 2
      %v751 = vsel %vm736, %v748, %v750
      %v752 = vrot.slane %v287, 2
      %v753 = vrot.slane %v288, 2
      %v754 = vsel %vm736, %v752, %v753
      %v755 = vrot.slane %v289, 2
      %v756 = vsel %vm736, %v753, %v755
      %v757 = vrot.slane %v290, 2
      %v758 = vrot.slane %v291, 2
      %v759 = vsel %vm736, %v757, %v758
      %v760 = vrot.slane %v292, 2
      %v761 = vsel %vm736, %v758, %v760
      %v762 = vrot.slane %v293, 2
      %v763 = vrot.slane %v294, 2
      %v764 = vsel %vm736, %v762, %v763
      %v765 = vrot.slane %v295, 2
      %v766 = vsel %vm736, %v763, %v765
      %v767 = vrot.slane %v296, 2
      %v768 = vrot.slane %v297, 2
      %v769 = vsel %vm736, %v767, %v768
      %v770 = vrot.slane %v298, 2
      %v771 = vsel %vm736, %v768, %v770
      %v772 = vrot.slane %v299, 2
      %v773 = vrot.slane %v300, 2
      %v774 = vsel %vm736, %v772, %v773
      %v775 = vrot.slane %v301, 2
      %v776 = vsel %vm736, %v773, %v775
      %v793 = vpack.c.bf16 %v741, %v739
      %v794 = vpack.c.bf16 %v746, %v744
      %v795 = vpack.c.bf16 %v751, %v749
      %v796 = vpack.c.bf16 %v756, %v754
      %v797 = vpack.c.bf16 %v761, %v759
      %v798 = vpack.c.bf16 %v766, %v764
      %v799 = vpack.c.bf16 %v771, %v769
      %v800 = vpack.c.bf16 %v776, %v774
      %v801 = vpack.c.bf16 %v317, %v316
      %v802 = vpack.c.bf16 %v319, %v318
      %v804 = vsel %vm370, %v793, 0
      %v807 = vsel %vm370, %v794, 0
      %v810 = vsel %vm370, %v795, 0
      %v813 = vsel %vm370, %v796, 0
      %v816 = vsel %vm370, %v797, 0
      %v819 = vsel %vm370, %v798, 0
      %v822 = vsel %vm370, %v799, 0
      %v825 = vsel %vm370, %v800, 0
      %827 = vmatprep.subr.bf16.mxu0 0
      %828 = vmatpush1.bf16.msra.mxu0 %v801
      %829 = vmatprep.subr.bf16.mxu0 0
      %830 = vmatpush1.bf16.msra.mxu0 %v802
      %831 = vmatprep.subr.bf16.mxu0 0
      %832 = vmatpush1.bf16.msra.mxu0 0
      %833 = vmatprep.subr.bf16.mxu0 0
      %834 = vmatpush1.bf16.msra.mxu0 0
      %835 = vmatprep.subr.bf16.mxu0 0
      %836 = vmatpush1.bf16.msra.mxu0 0
      %837 = vmatprep.subr.bf16.mxu0 0
      %838 = vmatpush1.bf16.msra.mxu0 0
      %839 = vmatprep.subr.bf16.mxu0 0
      %840 = vmatpush1.bf16.msra.mxu0 0
      %841 = vmatprep.subr.bf16.mxu0 0
      %842 = vmatpush1.bf16.msra.mxu0 0
      %843 = vmatprep.subr.bf16.mxu0 0
      %844 = vmatpush1.bf16.msra.mxu0 0
      %845 = vmatprep.subr.bf16.mxu0 0
      %846 = vmatpush1.bf16.msra.mxu0 0
      %847 = vmatprep.subr.bf16.mxu0 0
      %848 = vmatpush1.bf16.msra.mxu0 0
      %849 = vmatprep.subr.bf16.mxu0 0
      %850 = vmatpush1.bf16.msra.mxu0 0
      %851 = vmatprep.subr.bf16.mxu0 0
      %852 = vmatpush1.bf16.msra.mxu0 0
      %853 = vmatprep.subr.bf16.mxu0 0
      %854 = vmatpush1.bf16.msra.mxu0 0
      %855 = vmatprep.subr.bf16.mxu0 0
      %856 = vmatpush1.bf16.msra.mxu0 0
      %857 = vmatprep.subr.bf16.mxu0 0
      %858 = vmatpush1.bf16.msra.mxu0 0
      %859 = vmatprep.mubr.bf16.mxu0 0
      %860 = vmatmul.mubr.bf16.gmra.mrb[0].mxu0 %v804
      %v861 = vpop.f32.mrb[0].mxu0
      %v862 = vadd.f32 0.0, %v861
      %v863 = vpop.f32.mrb[0].mxu0
      %v864 = vpop.f32.mrb[0].mxu0
      %v865 = vadd.f32 0.0, %v864
      %v866 = vpop.f32.mrb[0].mxu0
      %867 = vmatprep.mubr.bf16.mxu0 0
      %868 = vmatmul.mubr.bf16.gmra.mrb[0].mxu0 %v807
      %v869 = vpop.f32.mrb[0].mxu0
      %v870 = vadd.f32 0.0, %v869
      %v871 = vpop.f32.mrb[0].mxu0
      %v872 = vpop.f32.mrb[0].mxu0
      %v873 = vadd.f32 0.0, %v872
      %v874 = vpop.f32.mrb[0].mxu0
      %875 = vmatprep.mubr.bf16.mxu0 0
      %876 = vmatmul.mubr.bf16.gmra.mrb[0].mxu0 %v810
      %v877 = vpop.f32.mrb[0].mxu0
      %v878 = vadd.f32 0.0, %v877
      %v879 = vpop.f32.mrb[0].mxu0
      %v880 = vpop.f32.mrb[0].mxu0
      %v881 = vadd.f32 0.0, %v880
      %v882 = vpop.f32.mrb[0].mxu0
      %883 = vmatprep.mubr.bf16.mxu0 0
      %884 = vmatmul.mubr.bf16.gmra.mrb[0].mxu0 %v813
      %v885 = vpop.f32.mrb[0].mxu0
      %v886 = vadd.f32 0.0, %v885
      %v887 = vpop.f32.mrb[0].mxu0
      %v888 = vpop.f32.mrb[0].mxu0
      %v889 = vadd.f32 0.0, %v888
      %v890 = vpop.f32.mrb[0].mxu0
      %891 = vmatprep.mubr.bf16.mxu0 0
      %892 = vmatmul.mubr.bf16.gmra.mrb[0].mxu0 %v816
      %v893 = vpop.f32.mrb[0].mxu0
      %v894 = vadd.f32 0.0, %v893
      %v895 = vpop.f32.mrb[0].mxu0
      %v896 = vpop.f32.mrb[0].mxu0
      %v897 = vadd.f32 0.0, %v896
      %v898 = vpop.f32.mrb[0].mxu0
      %899 = vmatprep.mubr.bf16.mxu0 0
      %900 = vmatmul.mubr.bf16.gmra.mrb[0].mxu0 %v819
      %v901 = vpop.f32.mrb[0].mxu0
      %v902 = vadd.f32 0.0, %v901
      %v903 = vpop.f32.mrb[0].mxu0
      %v904 = vpop.f32.mrb[0].mxu0
      %v905 = vadd.f32 0.0, %v904
      %v906 = vpop.f32.mrb[0].mxu0
      %907 = vmatprep.mubr.bf16.mxu0 0
      %908 = vmatmul.mubr.bf16.gmra.mrb[0].mxu0 %v822
      %v909 = vpop.f32.mrb[0].mxu0
      %v910 = vadd.f32 0.0, %v909
      %v911 = vpop.f32.mrb[0].mxu0
      %v912 = vpop.f32.mrb[0].mxu0
      %v913 = vadd.f32 0.0, %v912
      %v914 = vpop.f32.mrb[0].mxu0
      %915 = vmatprep.mubr.bf16.mxu0 0
      %916 = vmatmul.mubr.bf16.gmra.mrb[0].mxu0 %v825
      %v917 = vpop.f32.mrb[0].mxu0
      %v918 = vadd.f32 0.0, %v917
      %v919 = vpop.f32.mrb[0].mxu0
      %v920 = vpop.f32.mrb[0].mxu0
      %v921 = vadd.f32 0.0, %v920
      %v922 = vpop.f32.mrb[0].mxu0
      %923 = vdwg.mxu0
      %v924 = vadd.f32 %v720, %v862
      %v925 = vadd.f32 %v721, %v865
      %v926 = vadd.f32 %v722, %v870
      %v927 = vadd.f32 %v723, %v873
      %v928 = vadd.f32 %v724, %v878
      %v929 = vadd.f32 %v725, %v881
      %v930 = vadd.f32 %v726, %v886
      %v931 = vadd.f32 %v727, %v889
      %v932 = vadd.f32 %v728, %v894
      %v933 = vadd.f32 %v729, %v897
      %v934 = vadd.f32 %v730, %v902
      %v935 = vadd.f32 %v731, %v905
      %v936 = vadd.f32 %v732, %v910
      %v937 = vadd.f32 %v733, %v913
      %v938 = vadd.f32 %v734, %v918
      %v939 = vadd.f32 %v735, %v921
      %v940 = vpack.c.bf16 %v303, %v302
      %v941 = vpack.c.bf16 %v321, %v320
      %v942 = vpack.c.bf16 %v323, %v322
      %v944 = vsel %vm370, %v940, 0
      %946 = vmatprep.subr.bf16.mxu0 0
      %947 = vmatpush1.bf16.msra.mxu0 %v941
      %948 = vmatprep.subr.bf16.mxu0 0
      %949 = vmatpush1.bf16.msra.mxu0 %v942
      %950 = vmatprep.subr.bf16.mxu0 0
      %951 = vmatpush1.bf16.msra.mxu0 0
      %952 = vmatprep.subr.bf16.mxu0 0
      %953 = vmatpush1.bf16.msra.mxu0 0
      %954 = vmatprep.subr.bf16.mxu0 0
      %955 = vmatpush1.bf16.msra.mxu0 0
      %956 = vmatprep.subr.bf16.mxu0 0
      %957 = vmatpush1.bf16.msra.mxu0 0
      %958 = vmatprep.subr.bf16.mxu0 0
      %959 = vmatpush1.bf16.msra.mxu0 0
      %960 = vmatprep.subr.bf16.mxu0 0
      %961 = vmatpush1.bf16.msra.mxu0 0
      %962 = vmatprep.subr.bf16.mxu0 0
      %963 = vmatpush1.bf16.msra.mxu0 0
      %964 = vmatprep.subr.bf16.mxu0 0
      %965 = vmatpush1.bf16.msra.mxu0 0
      %966 = vmatprep.subr.bf16.mxu0 0
      %967 = vmatpush1.bf16.msra.mxu0 0
      %968 = vmatprep.subr.bf16.mxu0 0
      %969 = vmatpush1.bf16.msra.mxu0 0
      %970 = vmatprep.subr.bf16.mxu0 0
      %971 = vmatpush1.bf16.msra.mxu0 0
      %972 = vmatprep.subr.bf16.mxu0 0
      %973 = vmatpush1.bf16.msra.mxu0 0
      %974 = vmatprep.subr.bf16.mxu0 0
      %975 = vmatpush1.bf16.msra.mxu0 0
      %976 = vmatprep.subr.bf16.mxu0 0
      %977 = vmatpush1.bf16.msra.mxu0 0
      %978 = vmatprep.mubr.bf16.mxu0 0
      %979 = vmatmul.mubr.bf16.gmra.mrb[0].mxu0 %v375
      %v980 = vpop.f32.mrb[0].mxu0
      %v981 = vadd.f32 0.0, %v980
      %v982 = vpop.f32.mrb[0].mxu0
      %v983 = vpop.f32.mrb[0].mxu0
      %v984 = vadd.f32 0.0, %v983
      %v985 = vpop.f32.mrb[0].mxu0
      %986 = vmatprep.mubr.bf16.mxu0 0
      %987 = vmatmul.mubr.bf16.gmra.mrb[0].mxu0 %v378
      %v988 = vpop.f32.mrb[0].mxu0
      %v989 = vadd.f32 0.0, %v988
      %v990 = vpop.f32.mrb[0].mxu0
      %v991 = vpop.f32.mrb[0].mxu0
      %v992 = vadd.f32 0.0, %v991
      %v993 = vpop.f32.mrb[0].mxu0
      %994 = vmatprep.mubr.bf16.mxu0 0
      %995 = vmatmul.mubr.bf16.gmra.mrb[0].mxu0 %v381
      %v996 = vpop.f32.mrb[0].mxu0
      %v997 = vadd.f32 0.0, %v996
      %v998 = vpop.f32.mrb[0].mxu0
      %v999 = vpop.f32.mrb[0].mxu0
      %v1000 = vadd.f32 0.0, %v999
      %v1001 = vpop.f32.mrb[0].mxu0
      %1002 = vmatprep.mubr.bf16.mxu0 0
      %1003 = vmatmul.mubr.bf16.gmra.mrb[0].mxu0 %v384
      %v1004 = vpop.f32.mrb[0].mxu0
      %v1005 = vadd.f32 0.0, %v1004
      %v1006 = vpop.f32.mrb[0].mxu0
      %v1007 = vpop.f32.mrb[0].mxu0
      %v1008 = vadd.f32 0.0, %v1007
      %v1009 = vpop.f32.mrb[0].mxu0
      %1010 = vmatprep.mubr.bf16.mxu0 0
      %1011 = vmatmul.mubr.bf16.gmra.mrb[0].mxu0 %v387
      %v1012 = vpop.f32.mrb[0].mxu0
      %v1013 = vadd.f32 0.0, %v1012
      %v1014 = vpop.f32.mrb[0].mxu0
      %v1015 = vpop.f32.mrb[0].mxu0
      %v1016 = vadd.f32 0.0, %v1015
      %v1017 = vpop.f32.mrb[0].mxu0
      %1018 = vmatprep.mubr.bf16.mxu0 0
      %1019 = vmatmul.mubr.bf16.gmra.mrb[0].mxu0 %v390
      %v1020 = vpop.f32.mrb[0].mxu0
      %v1021 = vadd.f32 0.0, %v1020
      %v1022 = vpop.f32.mrb[0].mxu0
      %v1023 = vpop.f32.mrb[0].mxu0
      %v1024 = vadd.f32 0.0, %v1023
      %v1025 = vpop.f32.mrb[0].mxu0
      %1026 = vmatprep.mubr.bf16.mxu0 0
      %1027 = vmatmul.mubr.bf16.gmra.mrb[0].mxu0 %v393
      %v1028 = vpop.f32.mrb[0].mxu0
      %v1029 = vadd.f32 0.0, %v1028
      %v1030 = vpop.f32.mrb[0].mxu0
      %v1031 = vpop.f32.mrb[0].mxu0
      %v1032 = vadd.f32 0.0, %v1031
      %v1033 = vpop.f32.mrb[0].mxu0
      %1034 = vmatprep.mubr.bf16.mxu0 0
      %1035 = vmatmul.mubr.bf16.gmra.mrb[0].mxu0 %v944
      %v1036 = vpop.f32.mrb[0].mxu0
      %v1037 = vadd.f32 0.0, %v1036
      %v1038 = vpop.f32.mrb[0].mxu0
      %v1039 = vpop.f32.mrb[0].mxu0
      %v1040 = vadd.f32 0.0, %v1039
      %v1041 = vpop.f32.mrb[0].mxu0
      %1042 = vdwg.mxu0
      %v1043 = vadd.f32 %v924, %v981
      %v1044 = vadd.f32 %v925, %v984
      %v1045 = vadd.f32 %v926, %v989
      %v1046 = vadd.f32 %v927, %v992
      %v1047 = vadd.f32 %v928, %v997
      %v1048 = vadd.f32 %v929, %v1000
      %v1049 = vadd.f32 %v930, %v1005
      %v1050 = vadd.f32 %v931, %v1008
      %v1051 = vadd.f32 %v932, %v1013
      %v1052 = vadd.f32 %v933, %v1016
      %v1053 = vadd.f32 %v934, %v1021
      %v1054 = vadd.f32 %v935, %v1024
      %v1055 = vadd.f32 %v936, %v1029
      %v1056 = vadd.f32 %v937, %v1032
      %v1057 = vadd.f32 %v938, %v1037
      %v1058 = vadd.f32 %v939, %v1040
      %v1062 = vrot.slane %v302, 1
      %v1063 = vrot.slane %v303, 1
      %v1064 = vsel %vm532, %v1062, %v1063
      %v1065 = vrot.slane %v304, 1
      %v1066 = vsel %vm532, %v1063, %v1065
      %v1069 = vpack.c.bf16 %v1066, %v1064
      %v1070 = vpack.c.bf16 %v325, %v324
      %v1071 = vpack.c.bf16 %v327, %v326
      %v1073 = vsel %vm370, %v1069, 0
      %1075 = vmatprep.subr.bf16.mxu0 0
      %1076 = vmatpush1.bf16.msra.mxu0 %v1070
      %1077 = vmatprep.subr.bf16.mxu0 0
      %1078 = vmatpush1.bf16.msra.mxu0 %v1071
      %1079 = vmatprep.subr.bf16.mxu0 0
      %1080 = vmatpush1.bf16.msra.mxu0 0
      %1081 = vmatprep.subr.bf16.mxu0 0
      %1082 = vmatpush1.bf16.msra.mxu0 0
      %1083 = vmatprep.subr.bf16.mxu0 0
      %1084 = vmatpush1.bf16.msra.mxu0 0
      %1085 = vmatprep.subr.bf16.mxu0 0
      %1086 = vmatpush1.bf16.msra.mxu0 0
      %1087 = vmatprep.subr.bf16.mxu0 0
      %1088 = vmatpush1.bf16.msra.mxu0 0
      %1089 = vmatprep.subr.bf16.mxu0 0
      %1090 = vmatpush1.bf16.msra.mxu0 0
      %1091 = vmatprep.subr.bf16.mxu0 0
      %1092 = vmatpush1.bf16.msra.mxu0 0
      %1093 = vmatprep.subr.bf16.mxu0 0
      %1094 = vmatpush1.bf16.msra.mxu0 0
      %1095 = vmatprep.subr.bf16.mxu0 0
      %1096 = vmatpush1.bf16.msra.mxu0 0
      %1097 = vmatprep.subr.bf16.mxu0 0
      %1098 = vmatpush1.bf16.msra.mxu0 0
      %1099 = vmatprep.subr.bf16.mxu0 0
      %1100 = vmatpush1.bf16.msra.mxu0 0
      %1101 = vmatprep.subr.bf16.mxu0 0
      %1102 = vmatpush1.bf16.msra.mxu0 0
      %1103 = vmatprep.subr.bf16.mxu0 0
      %1104 = vmatpush1.bf16.msra.mxu0 0
      %1105 = vmatprep.subr.bf16.mxu0 0
      %1106 = vmatpush1.bf16.msra.mxu0 0
      %1107 = vmatprep.mubr.bf16.mxu0 0
      %1108 = vmatmul.mubr.bf16.gmra.mrb[0].mxu0 %v603
      %v1109 = vpop.f32.mrb[0].mxu0
      %v1110 = vadd.f32 0.0, %v1109
      %v1111 = vpop.f32.mrb[0].mxu0
      %v1112 = vpop.f32.mrb[0].mxu0
      %v1113 = vadd.f32 0.0, %v1112
      %v1114 = vpop.f32.mrb[0].mxu0
      %1115 = vmatprep.mubr.bf16.mxu0 0
      %1116 = vmatmul.mubr.bf16.gmra.mrb[0].mxu0 %v606
      %v1117 = vpop.f32.mrb[0].mxu0
      %v1118 = vadd.f32 0.0, %v1117
      %v1119 = vpop.f32.mrb[0].mxu0
      %v1120 = vpop.f32.mrb[0].mxu0
      %v1121 = vadd.f32 0.0, %v1120
      %v1122 = vpop.f32.mrb[0].mxu0
      %1123 = vmatprep.mubr.bf16.mxu0 0
      %1124 = vmatmul.mubr.bf16.gmra.mrb[0].mxu0 %v609
      %v1125 = vpop.f32.mrb[0].mxu0
      %v1126 = vadd.f32 0.0, %v1125
      %v1127 = vpop.f32.mrb[0].mxu0
      %v1128 = vpop.f32.mrb[0].mxu0
      %v1129 = vadd.f32 0.0, %v1128
      %v1130 = vpop.f32.mrb[0].mxu0
      %1131 = vmatprep.mubr.bf16.mxu0 0
      %1132 = vmatmul.mubr.bf16.gmra.mrb[0].mxu0 %v612
      %v1133 = vpop.f32.mrb[0].mxu0
      %v1134 = vadd.f32 0.0, %v1133
      %v1135 = vpop.f32.mrb[0].mxu0
      %v1136 = vpop.f32.mrb[0].mxu0
      %v1137 = vadd.f32 0.0, %v1136
      %v1138 = vpop.f32.mrb[0].mxu0
      %1139 = vmatprep.mubr.bf16.mxu0 0
      %1140 = vmatmul.mubr.bf16.gmra.mrb[0].mxu0 %v615
      %v1141 = vpop.f32.mrb[0].mxu0
      %v1142 = vadd.f32 0.0, %v1141
      %v1143 = vpop.f32.mrb[0].mxu0
      %v1144 = vpop.f32.mrb[0].mxu0
      %v1145 = vadd.f32 0.0, %v1144
      %v1146 = vpop.f32.mrb[0].mxu0
      %1147 = vmatprep.mubr.bf16.mxu0 0
      %1148 = vmatmul.mubr.bf16.gmra.mrb[0].mxu0 %v618
      %v1149 = vpop.f32.mrb[0].mxu0
      %v1150 = vadd.f32 0.0, %v1149
      %v1151 = vpop.f32.mrb[0].mxu0
      %v1152 = vpop.f32.mrb[0].mxu0
      %v1153 = vadd.f32 0.0, %v1152
      %v1154 = vpop.f32.mrb[0].mxu0
      %1155 = vmatprep.mubr.bf16.mxu0 0
      %1156 = vmatmul.mubr.bf16.gmra.mrb[0].mxu0 %v621
      %v1157 = vpop.f32.mrb[0].mxu0
      %v1158 = vadd.f32 0.0, %v1157
      %v1159 = vpop.f32.mrb[0].mxu0
      %v1160 = vpop.f32.mrb[0].mxu0
      %v1161 = vadd.f32 0.0, %v1160
      %v1162 = vpop.f32.mrb[0].mxu0
      %1163 = vmatprep.mubr.bf16.mxu0 0
      %1164 = vmatmul.mubr.bf16.gmra.mrb[0].mxu0 %v1073
      %v1165 = vpop.f32.mrb[0].mxu0
      %v1166 = vadd.f32 0.0, %v1165
      %v1167 = vpop.f32.mrb[0].mxu0
      %v1168 = vpop.f32.mrb[0].mxu0
      %v1169 = vadd.f32 0.0, %v1168
      %v1170 = vpop.f32.mrb[0].mxu0
      %1171 = vdwg.mxu0
      %v1172 = vadd.f32 %v1043, %v1110
      %v1173 = vadd.f32 %v1044, %v1113
      %v1174 = vadd.f32 %v1045, %v1118
      %v1175 = vadd.f32 %v1046, %v1121
      %v1176 = vadd.f32 %v1047, %v1126
      %v1177 = vadd.f32 %v1048, %v1129
      %v1178 = vadd.f32 %v1049, %v1134
      %v1179 = vadd.f32 %v1050, %v1137
      %v1180 = vadd.f32 %v1051, %v1142
      %v1181 = vadd.f32 %v1052, %v1145
      %v1182 = vadd.f32 %v1053, %v1150
      %v1183 = vadd.f32 %v1054, %v1153
      %v1184 = vadd.f32 %v1055, %v1158
      %v1185 = vadd.f32 %v1056, %v1161
      %v1186 = vadd.f32 %v1057, %v1166
      %v1187 = vadd.f32 %v1058, %v1169
      %v1188 = vrot.slane %v302, 2
      %v1189 = vrot.slane %v303, 2
      %v1190 = vsel %vm736, %v1188, %v1189
      %v1191 = vrot.slane %v304, 2
      %v1192 = vsel %vm736, %v1189, %v1191
      %v1195 = vpack.c.bf16 %v1192, %v1190
      %v1196 = vpack.c.bf16 %v329, %v328
      %v1197 = vpack.c.bf16 %v331, %v330
      %v1199 = vsel %vm370, %v1195, 0
      %1201 = vmatprep.subr.bf16.mxu0 0
      %1202 = vmatpush1.bf16.msra.mxu0 %v1196
      %1203 = vmatprep.subr.bf16.mxu0 0
      %1204 = vmatpush1.bf16.msra.mxu0 %v1197
      %1205 = vmatprep.subr.bf16.mxu0 0
      %1206 = vmatpush1.bf16.msra.mxu0 0
      %1207 = vmatprep.subr.bf16.mxu0 0
      %1208 = vmatpush1.bf16.msra.mxu0 0
      %1209 = vmatprep.subr.bf16.mxu0 0
      %1210 = vmatpush1.bf16.msra.mxu0 0
      %1211 = vmatprep.subr.bf16.mxu0 0
      %1212 = vmatpush1.bf16.msra.mxu0 0
      %1213 = vmatprep.subr.bf16.mxu0 0
      %1214 = vmatpush1.bf16.msra.mxu0 0
      %1215 = vmatprep.subr.bf16.mxu0 0
      %1216 = vmatpush1.bf16.msra.mxu0 0
      %1217 = vmatprep.subr.bf16.mxu0 0
      %1218 = vmatpush1.bf16.msra.mxu0 0
      %1219 = vmatprep.subr.bf16.mxu0 0
      %1220 = vmatpush1.bf16.msra.mxu0 0
      %1221 = vmatprep.subr.bf16.mxu0 0
      %1222 = vmatpush1.bf16.msra.mxu0 0
      %1223 = vmatprep.subr.bf16.mxu0 0
      %1224 = vmatpush1.bf16.msra.mxu0 0
      %1225 = vmatprep.subr.bf16.mxu0 0
      %1226 = vmatpush1.bf16.msra.mxu0 0
      %1227 = vmatprep.subr.bf16.mxu0 0
      %1228 = vmatpush1.bf16.msra.mxu0 0
      %1229 = vmatprep.subr.bf16.mxu0 0
      %1230 = vmatpush1.bf16.msra.mxu0 0
      %1231 = vmatprep.subr.bf16.mxu0 0
      %1232 = vmatpush1.bf16.msra.mxu0 0
      %1233 = vmatprep.mubr.bf16.mxu0 0
      %1234 = vmatmul.mubr.bf16.gmra.mrb[0].mxu0 %v807
      %v1235 = vpop.f32.mrb[0].mxu0
      %v1236 = vadd.f32 0.0, %v1235
      %v1237 = vpop.f32.mrb[0].mxu0
      %v1238 = vpop.f32.mrb[0].mxu0
      %v1239 = vadd.f32 0.0, %v1238
      %v1240 = vpop.f32.mrb[0].mxu0
      %1241 = vmatprep.mubr.bf16.mxu0 0
      %1242 = vmatmul.mubr.bf16.gmra.mrb[0].mxu0 %v810
      %v1243 = vpop.f32.mrb[0].mxu0
      %v1244 = vadd.f32 0.0, %v1243
      %v1245 = vpop.f32.mrb[0].mxu0
      %v1246 = vpop.f32.mrb[0].mxu0
      %v1247 = vadd.f32 0.0, %v1246
      %v1248 = vpop.f32.mrb[0].mxu0
      %1249 = vmatprep.mubr.bf16.mxu0 0
      %1250 = vmatmul.mubr.bf16.gmra.mrb[0].mxu0 %v813
      %v1251 = vpop.f32.mrb[0].mxu0
      %v1252 = vadd.f32 0.0, %v1251
      %v1253 = vpop.f32.mrb[0].mxu0
      %v1254 = vpop.f32.mrb[0].mxu0
      %v1255 = vadd.f32 0.0, %v1254
      %v1256 = vpop.f32.mrb[0].mxu0
      %1257 = vmatprep.mubr.bf16.mxu0 0
      %1258 = vmatmul.mubr.bf16.gmra.mrb[0].mxu0 %v816
      %v1259 = vpop.f32.mrb[0].mxu0
      %v1260 = vadd.f32 0.0, %v1259
      %v1261 = vpop.f32.mrb[0].mxu0
      %v1262 = vpop.f32.mrb[0].mxu0
      %v1263 = vadd.f32 0.0, %v1262
      %v1264 = vpop.f32.mrb[0].mxu0
      %1265 = vmatprep.mubr.bf16.mxu0 0
      %1266 = vmatmul.mubr.bf16.gmra.mrb[0].mxu0 %v819
      %v1267 = vpop.f32.mrb[0].mxu0
      %v1268 = vadd.f32 0.0, %v1267
      %v1269 = vpop.f32.mrb[0].mxu0
      %v1270 = vpop.f32.mrb[0].mxu0
      %v1271 = vadd.f32 0.0, %v1270
      %v1272 = vpop.f32.mrb[0].mxu0
      %1273 = vmatprep.mubr.bf16.mxu0 0
      %1274 = vmatmul.mubr.bf16.gmra.mrb[0].mxu0 %v822
      %v1275 = vpop.f32.mrb[0].mxu0
      %v1276 = vadd.f32 0.0, %v1275
      %v1277 = vpop.f32.mrb[0].mxu0
      %v1278 = vpop.f32.mrb[0].mxu0
      %v1279 = vadd.f32 0.0, %v1278
      %v1280 = vpop.f32.mrb[0].mxu0
      %1281 = vmatprep.mubr.bf16.mxu0 0
      %1282 = vmatmul.mubr.bf16.gmra.mrb[0].mxu0 %v825
      %v1283 = vpop.f32.mrb[0].mxu0
      %v1284 = vadd.f32 0.0, %v1283
      %v1285 = vpop.f32.mrb[0].mxu0
      %v1286 = vpop.f32.mrb[0].mxu0
      %v1287 = vadd.f32 0.0, %v1286
      %v1288 = vpop.f32.mrb[0].mxu0
      %1289 = vmatprep.mubr.bf16.mxu0 0
      %1290 = vmatmul.mubr.bf16.gmra.mrb[0].mxu0 %v1199
      %v1291 = vpop.f32.mrb[0].mxu0
      %v1292 = vadd.f32 0.0, %v1291
      %v1293 = vpop.f32.mrb[0].mxu0
      %v1294 = vpop.f32.mrb[0].mxu0
      %v1295 = vadd.f32 0.0, %v1294
      %v1296 = vpop.f32.mrb[0].mxu0
      %1297 = vdwg.mxu0
      %v1298 = vadd.f32 %v1172, %v1236
      %v1299 = vadd.f32 %v1173, %v1239
      %v1300 = vadd.f32 %v1174, %v1244
      %v1301 = vadd.f32 %v1175, %v1247
      %v1302 = vadd.f32 %v1176, %v1252
      %v1303 = vadd.f32 %v1177, %v1255
      %v1304 = vadd.f32 %v1178, %v1260
      %v1305 = vadd.f32 %v1179, %v1263
      %v1306 = vadd.f32 %v1180, %v1268
      %v1307 = vadd.f32 %v1181, %v1271
      %v1308 = vadd.f32 %v1182, %v1276
      %v1309 = vadd.f32 %v1183, %v1279
      %v1310 = vadd.f32 %v1184, %v1284
      %v1311 = vadd.f32 %v1185, %v1287
      %v1312 = vadd.f32 %v1186, %v1292
      %v1313 = vadd.f32 %v1187, %v1295
      %v1314 = vpack.c.bf16 %v306, %v305
      %v1315 = vpack.c.bf16 %v333, %v332
      %v1316 = vpack.c.bf16 %v335, %v334
      %v1318 = vsel %vm370, %v1314, 0
      %1320 = vmatprep.subr.bf16.mxu0 0
      %1321 = vmatpush1.bf16.msra.mxu0 %v1315
      %1322 = vmatprep.subr.bf16.mxu0 0
      %1323 = vmatpush1.bf16.msra.mxu0 %v1316
      %1324 = vmatprep.subr.bf16.mxu0 0
      %1325 = vmatpush1.bf16.msra.mxu0 0
      %1326 = vmatprep.subr.bf16.mxu0 0
      %1327 = vmatpush1.bf16.msra.mxu0 0
      %1328 = vmatprep.subr.bf16.mxu0 0
      %1329 = vmatpush1.bf16.msra.mxu0 0
      %1330 = vmatprep.subr.bf16.mxu0 0
      %1331 = vmatpush1.bf16.msra.mxu0 0
      %1332 = vmatprep.subr.bf16.mxu0 0
      %1333 = vmatpush1.bf16.msra.mxu0 0
      %1334 = vmatprep.subr.bf16.mxu0 0
      %1335 = vmatpush1.bf16.msra.mxu0 0
      %1336 = vmatprep.subr.bf16.mxu0 0
      %1337 = vmatpush1.bf16.msra.mxu0 0
      %1338 = vmatprep.subr.bf16.mxu0 0
      %1339 = vmatpush1.bf16.msra.mxu0 0
      %1340 = vmatprep.subr.bf16.mxu0 0
      %1341 = vmatpush1.bf16.msra.mxu0 0
      %1342 = vmatprep.subr.bf16.mxu0 0
      %1343 = vmatpush1.bf16.msra.mxu0 0
      %1344 = vmatprep.subr.bf16.mxu0 0
      %1345 = vmatpush1.bf16.msra.mxu0 0
      %1346 = vmatprep.subr.bf16.mxu0 0
      %1347 = vmatpush1.bf16.msra.mxu0 0
      %1348 = vmatprep.subr.bf16.mxu0 0
      %1349 = vmatpush1.bf16.msra.mxu0 0
      %1350 = vmatprep.subr.bf16.mxu0 0
      %1351 = vmatpush1.bf16.msra.mxu0 0
      %1352 = vmatprep.mubr.bf16.mxu0 0
      %1353 = vmatmul.mubr.bf16.gmra.mrb[0].mxu0 %v378
      %v1354 = vpop.f32.mrb[0].mxu0
      %v1355 = vadd.f32 0.0, %v1354
      %v1356 = vpop.f32.mrb[0].mxu0
      %v1357 = vpop.f32.mrb[0].mxu0
      %v1358 = vadd.f32 0.0, %v1357
      %v1359 = vpop.f32.mrb[0].mxu0
      %1360 = vmatprep.mubr.bf16.mxu0 0
      %1361 = vmatmul.mubr.bf16.gmra.mrb[0].mxu0 %v381
      %v1362 = vpop.f32.mrb[0].mxu0
      %v1363 = vadd.f32 0.0, %v1362
      %v1364 = vpop.f32.mrb[0].mxu0
      %v1365 = vpop.f32.mrb[0].mxu0
      %v1366 = vadd.f32 0.0, %v1365
      %v1367 = vpop.f32.mrb[0].mxu0
      %1368 = vmatprep.mubr.bf16.mxu0 0
      %1369 = vmatmul.mubr.bf16.gmra.mrb[0].mxu0 %v384
      %v1370 = vpop.f32.mrb[0].mxu0
      %v1371 = vadd.f32 0.0, %v1370
      %v1372 = vpop.f32.mrb[0].mxu0
      %v1373 = vpop.f32.mrb[0].mxu0
      %v1374 = vadd.f32 0.0, %v1373
      %v1375 = vpop.f32.mrb[0].mxu0
      %1376 = vmatprep.mubr.bf16.mxu0 0
      %1377 = vmatmul.mubr.bf16.gmra.mrb[0].mxu0 %v387
      %v1378 = vpop.f32.mrb[0].mxu0
      %v1379 = vadd.f32 0.0, %v1378
      %v1380 = vpop.f32.mrb[0].mxu0
      %v1381 = vpop.f32.mrb[0].mxu0
      %v1382 = vadd.f32 0.0, %v1381
      %v1383 = vpop.f32.mrb[0].mxu0
      %1384 = vmatprep.mubr.bf16.mxu0 0
      %1385 = vmatmul.mubr.bf16.gmra.mrb[0].mxu0 %v390
      %v1386 = vpop.f32.mrb[0].mxu0
      %v1387 = vadd.f32 0.0, %v1386
      %v1388 = vpop.f32.mrb[0].mxu0
      %v1389 = vpop.f32.mrb[0].mxu0
      %v1390 = vadd.f32 0.0, %v1389
      %v1391 = vpop.f32.mrb[0].mxu0
      %1392 = vmatprep.mubr.bf16.mxu0 0
      %1393 = vmatmul.mubr.bf16.gmra.mrb[0].mxu0 %v393
      %v1394 = vpop.f32.mrb[0].mxu0
      %v1395 = vadd.f32 0.0, %v1394
      %v1396 = vpop.f32.mrb[0].mxu0
      %v1397 = vpop.f32.mrb[0].mxu0
      %v1398 = vadd.f32 0.0, %v1397
      %v1399 = vpop.f32.mrb[0].mxu0
      %1400 = vmatprep.mubr.bf16.mxu0 0
      %1401 = vmatmul.mubr.bf16.gmra.mrb[0].mxu0 %v944
      %v1402 = vpop.f32.mrb[0].mxu0
      %v1403 = vadd.f32 0.0, %v1402
      %v1404 = vpop.f32.mrb[0].mxu0
      %v1405 = vpop.f32.mrb[0].mxu0
      %v1406 = vadd.f32 0.0, %v1405
      %v1407 = vpop.f32.mrb[0].mxu0
      %1408 = vmatprep.mubr.bf16.mxu0 0
      %1409 = vmatmul.mubr.bf16.gmra.mrb[0].mxu0 %v1318
      %v1410 = vpop.f32.mrb[0].mxu0
      %v1411 = vadd.f32 0.0, %v1410
      %v1412 = vpop.f32.mrb[0].mxu0
      %v1413 = vpop.f32.mrb[0].mxu0
      %v1414 = vadd.f32 0.0, %v1413
      %v1415 = vpop.f32.mrb[0].mxu0
      %1416 = vdwg.mxu0
      %v1417 = vadd.f32 %v1298, %v1355
      %v1418 = vadd.f32 %v1299, %v1358
      %v1419 = vadd.f32 %v1300, %v1363
      %v1420 = vadd.f32 %v1301, %v1366
      %v1421 = vadd.f32 %v1302, %v1371
      %v1422 = vadd.f32 %v1303, %v1374
      %v1423 = vadd.f32 %v1304, %v1379
      %v1424 = vadd.f32 %v1305, %v1382
      %v1425 = vadd.f32 %v1306, %v1387
      %v1426 = vadd.f32 %v1307, %v1390
      %v1427 = vadd.f32 %v1308, %v1395
      %v1428 = vadd.f32 %v1309, %v1398
      %v1429 = vadd.f32 %v1310, %v1403
      %v1430 = vadd.f32 %v1311, %v1406
      %v1431 = vadd.f32 %v1312, %v1411
      %v1432 = vadd.f32 %v1313, %v1414
      %v1436 = vrot.slane %v305, 1
      %v1437 = vrot.slane %v306, 1
      %v1438 = vsel %vm532, %v1436, %v1437
      %v1439 = vrot.slane %v307, 1
      %v1440 = vsel %vm532, %v1437, %v1439
      %v1443 = vpack.c.bf16 %v1440, %v1438
      %v1444 = vpack.c.bf16 %v337, %v336
      %v1445 = vpack.c.bf16 %v339, %v338
      %v1447 = vsel %vm370, %v1443, 0
      %1449 = vmatprep.subr.bf16.mxu0 0
      %1450 = vmatpush1.bf16.msra.mxu0 %v1444
      %1451 = vmatprep.subr.bf16.mxu0 0
      %1452 = vmatpush1.bf16.msra.mxu0 %v1445
      %1453 = vmatprep.subr.bf16.mxu0 0
      %1454 = vmatpush1.bf16.msra.mxu0 0
      %1455 = vmatprep.subr.bf16.mxu0 0
      %1456 = vmatpush1.bf16.msra.mxu0 0
      %1457 = vmatprep.subr.bf16.mxu0 0
      %1458 = vmatpush1.bf16.msra.mxu0 0
      %1459 = vmatprep.subr.bf16.mxu0 0
      %1460 = vmatpush1.bf16.msra.mxu0 0
      %1461 = vmatprep.subr.bf16.mxu0 0
      %1462 = vmatpush1.bf16.msra.mxu0 0
      %1463 = vmatprep.subr.bf16.mxu0 0
      %1464 = vmatpush1.bf16.msra.mxu0 0
      %1465 = vmatprep.subr.bf16.mxu0 0
      %1466 = vmatpush1.bf16.msra.mxu0 0
      %1467 = vmatprep.subr.bf16.mxu0 0
      %1468 = vmatpush1.bf16.msra.mxu0 0
      %1469 = vmatprep.subr.bf16.mxu0 0
      %1470 = vmatpush1.bf16.msra.mxu0 0
      %1471 = vmatprep.subr.bf16.mxu0 0
      %1472 = vmatpush1.bf16.msra.mxu0 0
      %1473 = vmatprep.subr.bf16.mxu0 0
      %1474 = vmatpush1.bf16.msra.mxu0 0
      %1475 = vmatprep.subr.bf16.mxu0 0
      %1476 = vmatpush1.bf16.msra.mxu0 0
      %1477 = vmatprep.subr.bf16.mxu0 0
      %1478 = vmatpush1.bf16.msra.mxu0 0
      %1479 = vmatprep.subr.bf16.mxu0 0
      %1480 = vmatpush1.bf16.msra.mxu0 0
      %1481 = vmatprep.mubr.bf16.mxu0 0
      %1482 = vmatmul.mubr.bf16.gmra.mrb[0].mxu0 %v606
      %v1483 = vpop.f32.mrb[0].mxu0
      %v1484 = vadd.f32 0.0, %v1483
      %v1485 = vpop.f32.mrb[0].mxu0
      %v1486 = vpop.f32.mrb[0].mxu0
      %v1487 = vadd.f32 0.0, %v1486
      %v1488 = vpop.f32.mrb[0].mxu0
      %1489 = vmatprep.mubr.bf16.mxu0 0
      %1490 = vmatmul.mubr.bf16.gmra.mrb[0].mxu0 %v609
      %v1491 = vpop.f32.mrb[0].mxu0
      %v1492 = vadd.f32 0.0, %v1491
      %v1493 = vpop.f32.mrb[0].mxu0
      %v1494 = vpop.f32.mrb[0].mxu0
      %v1495 = vadd.f32 0.0, %v1494
      %v1496 = vpop.f32.mrb[0].mxu0
      %1497 = vmatprep.mubr.bf16.mxu0 0
      %1498 = vmatmul.mubr.bf16.gmra.mrb[0].mxu0 %v612
      %v1499 = vpop.f32.mrb[0].mxu0
      %v1500 = vadd.f32 0.0, %v1499
      %v1501 = vpop.f32.mrb[0].mxu0
      %v1502 = vpop.f32.mrb[0].mxu0
      %v1503 = vadd.f32 0.0, %v1502
      %v1504 = vpop.f32.mrb[0].mxu0
      %1505 = vmatprep.mubr.bf16.mxu0 0
      %1506 = vmatmul.mubr.bf16.gmra.mrb[0].mxu0 %v615
      %v1507 = vpop.f32.mrb[0].mxu0
      %v1508 = vadd.f32 0.0, %v1507
      %v1509 = vpop.f32.mrb[0].mxu0
      %v1510 = vpop.f32.mrb[0].mxu0
      %v1511 = vadd.f32 0.0, %v1510
      %v1512 = vpop.f32.mrb[0].mxu0
      %1513 = vmatprep.mubr.bf16.mxu0 0
      %1514 = vmatmul.mubr.bf16.gmra.mrb[0].mxu0 %v618
      %v1515 = vpop.f32.mrb[0].mxu0
      %v1516 = vadd.f32 0.0, %v1515
      %v1517 = vpop.f32.mrb[0].mxu0
      %v1518 = vpop.f32.mrb[0].mxu0
      %v1519 = vadd.f32 0.0, %v1518
      %v1520 = vpop.f32.mrb[0].mxu0
      %1521 = vmatprep.mubr.bf16.mxu0 0
      %1522 = vmatmul.mubr.bf16.gmra.mrb[0].mxu0 %v621
      %v1523 = vpop.f32.mrb[0].mxu0
      %v1524 = vadd.f32 0.0, %v1523
      %v1525 = vpop.f32.mrb[0].mxu0
      %v1526 = vpop.f32.mrb[0].mxu0
      %v1527 = vadd.f32 0.0, %v1526
      %v1528 = vpop.f32.mrb[0].mxu0
      %1529 = vmatprep.mubr.bf16.mxu0 0
      %1530 = vmatmul.mubr.bf16.gmra.mrb[0].mxu0 %v1073
      %v1531 = vpop.f32.mrb[0].mxu0
      %v1532 = vadd.f32 0.0, %v1531
      %v1533 = vpop.f32.mrb[0].mxu0
      %v1534 = vpop.f32.mrb[0].mxu0
      %v1535 = vadd.f32 0.0, %v1534
      %v1536 = vpop.f32.mrb[0].mxu0
      %1537 = vmatprep.mubr.bf16.mxu0 0
      %1538 = vmatmul.mubr.bf16.gmra.mrb[0].mxu0 %v1447
      %v1539 = vpop.f32.mrb[0].mxu0
      %v1540 = vadd.f32 0.0, %v1539
      %v1541 = vpop.f32.mrb[0].mxu0
      %v1542 = vpop.f32.mrb[0].mxu0
      %v1543 = vadd.f32 0.0, %v1542
      %v1544 = vpop.f32.mrb[0].mxu0
      %1545 = vdwg.mxu0
      %v1546 = vadd.f32 %v1417, %v1484
      %v1547 = vadd.f32 %v1418, %v1487
      %v1548 = vadd.f32 %v1419, %v1492
      %v1549 = vadd.f32 %v1420, %v1495
      %v1550 = vadd.f32 %v1421, %v1500
      %v1551 = vadd.f32 %v1422, %v1503
      %v1552 = vadd.f32 %v1423, %v1508
      %v1553 = vadd.f32 %v1424, %v1511
      %v1554 = vadd.f32 %v1425, %v1516
      %v1555 = vadd.f32 %v1426, %v1519
      %v1556 = vadd.f32 %v1427, %v1524
      %v1557 = vadd.f32 %v1428, %v1527
      %v1558 = vadd.f32 %v1429, %v1532
      %v1559 = vadd.f32 %v1430, %v1535
      %v1560 = vadd.f32 %v1431, %v1540
      %v1561 = vadd.f32 %v1432, %v1543
      %v1562 = vrot.slane %v305, 2
      %v1563 = vrot.slane %v306, 2
      %v1564 = vsel %vm736, %v1562, %v1563
      %v1565 = vrot.slane %v307, 2
      %v1566 = vsel %vm736, %v1563, %v1565
      %v1569 = vpack.c.bf16 %v1566, %v1564
      %v1570 = vpack.c.bf16 %v341, %v340
      %v1571 = vpack.c.bf16 %v343, %v342
      %v1573 = vsel %vm370, %v1569, 0
      %1575 = vmatprep.subr.bf16.mxu0 0
      %1576 = vmatpush1.bf16.msra.mxu0 %v1570
      %1577 = vmatprep.subr.bf16.mxu0 0
      %1578 = vmatpush1.bf16.msra.mxu0 %v1571
      %1579 = vmatprep.subr.bf16.mxu0 0
      %1580 = vmatpush1.bf16.msra.mxu0 0
      %1581 = vmatprep.subr.bf16.mxu0 0
      %1582 = vmatpush1.bf16.msra.mxu0 0
      %1583 = vmatprep.subr.bf16.mxu0 0
      %1584 = vmatpush1.bf16.msra.mxu0 0
      %1585 = vmatprep.subr.bf16.mxu0 0
      %1586 = vmatpush1.bf16.msra.mxu0 0
      %1587 = vmatprep.subr.bf16.mxu0 0
      %1588 = vmatpush1.bf16.msra.mxu0 0
      %1589 = vmatprep.subr.bf16.mxu0 0
      %1590 = vmatpush1.bf16.msra.mxu0 0
      %1591 = vmatprep.subr.bf16.mxu0 0
      %1592 = vmatpush1.bf16.msra.mxu0 0
      %1593 = vmatprep.subr.bf16.mxu0 0
      %1594 = vmatpush1.bf16.msra.mxu0 0
      %1595 = vmatprep.subr.bf16.mxu0 0
      %1596 = vmatpush1.bf16.msra.mxu0 0
      %1597 = vmatprep.subr.bf16.mxu0 0
      %1598 = vmatpush1.bf16.msra.mxu0 0
      %1599 = vmatprep.subr.bf16.mxu0 0
      %1600 = vmatpush1.bf16.msra.mxu0 0
      %1601 = vmatprep.subr.bf16.mxu0 0
      %1602 = vmatpush1.bf16.msra.mxu0 0
      %1603 = vmatprep.subr.bf16.mxu0 0
      %1604 = vmatpush1.bf16.msra.mxu0 0
      %1605 = vmatprep.subr.bf16.mxu0 0
      %1606 = vmatpush1.bf16.msra.mxu0 0
      %1607 = vmatprep.mubr.bf16.mxu0 0
      %1608 = vmatmul.mubr.bf16.gmra.mrb[0].mxu0 %v810
      %v1609 = vpop.f32.mrb[0].mxu0
      %v1610 = vadd.f32 0.0, %v1609
      %v1611 = vpop.f32.mrb[0].mxu0
      %v1612 = vpop.f32.mrb[0].mxu0
      %v1613 = vadd.f32 0.0, %v1612
      %v1614 = vpop.f32.mrb[0].mxu0
      %1615 = vmatprep.mubr.bf16.mxu0 0
      %1616 = vmatmul.mubr.bf16.gmra.mrb[0].mxu0 %v813
      %v1617 = vpop.f32.mrb[0].mxu0
      %v1618 = vadd.f32 0.0, %v1617
      %v1619 = vpop.f32.mrb[0].mxu0
      %v1620 = vpop.f32.mrb[0].mxu0
      %v1621 = vadd.f32 0.0, %v1620
      %v1622 = vpop.f32.mrb[0].mxu0
      %1623 = vmatprep.mubr.bf16.mxu0 0
      %1624 = vmatmul.mubr.bf16.gmra.mrb[0].mxu0 %v816
      %v1625 = vpop.f32.mrb[0].mxu0
      %v1626 = vadd.f32 0.0, %v1625
      %v1627 = vpop.f32.mrb[0].mxu0
      %v1628 = vpop.f32.mrb[0].mxu0
      %v1629 = vadd.f32 0.0, %v1628
      %v1630 = vpop.f32.mrb[0].mxu0
      %1631 = vmatprep.mubr.bf16.mxu0 0
      %1632 = vmatmul.mubr.bf16.gmra.mrb[0].mxu0 %v819
      %v1633 = vpop.f32.mrb[0].mxu0
      %v1634 = vadd.f32 0.0, %v1633
      %v1635 = vpop.f32.mrb[0].mxu0
      %v1636 = vpop.f32.mrb[0].mxu0
      %v1637 = vadd.f32 0.0, %v1636
      %v1638 = vpop.f32.mrb[0].mxu0
      %1639 = vmatprep.mubr.bf16.mxu0 0
      %1640 = vmatmul.mubr.bf16.gmra.mrb[0].mxu0 %v822
      %v1641 = vpop.f32.mrb[0].mxu0
      %v1642 = vadd.f32 0.0, %v1641
      %v1643 = vpop.f32.mrb[0].mxu0
      %v1644 = vpop.f32.mrb[0].mxu0
      %v1645 = vadd.f32 0.0, %v1644
      %v1646 = vpop.f32.mrb[0].mxu0
      %1647 = vmatprep.mubr.bf16.mxu0 0
      %1648 = vmatmul.mubr.bf16.gmra.mrb[0].mxu0 %v825
      %v1649 = vpop.f32.mrb[0].mxu0
      %v1650 = vadd.f32 0.0, %v1649
      %v1651 = vpop.f32.mrb[0].mxu0
      %v1652 = vpop.f32.mrb[0].mxu0
      %v1653 = vadd.f32 0.0, %v1652
      %v1654 = vpop.f32.mrb[0].mxu0
      %1655 = vmatprep.mubr.bf16.mxu0 0
      %1656 = vmatmul.mubr.bf16.gmra.mrb[0].mxu0 %v1199
      %v1657 = vpop.f32.mrb[0].mxu0
      %v1658 = vadd.f32 0.0, %v1657
      %v1659 = vpop.f32.mrb[0].mxu0
      %v1660 = vpop.f32.mrb[0].mxu0
      %v1661 = vadd.f32 0.0, %v1660
      %v1662 = vpop.f32.mrb[0].mxu0
      %1663 = vmatprep.mubr.bf16.mxu0 0
      %1664 = vmatmul.mubr.bf16.gmra.mrb[0].mxu0 %v1573
      %v1665 = vpop.f32.mrb[0].mxu0
      %v1666 = vadd.f32 0.0, %v1665
      %v1667 = vpop.f32.mrb[0].mxu0
      %v1668 = vpop.f32.mrb[0].mxu0
      %v1669 = vadd.f32 0.0, %v1668
      %v1670 = vpop.f32.mrb[0].mxu0
      %1671 = vdwg.mxu0
      %v1672 = vadd.f32 %v1546, %v1610
      %v1673 = vadd.f32 %v1547, %v1613
      %v1674 = vadd.f32 %v1548, %v1618
      %v1675 = vadd.f32 %v1549, %v1621
      %v1676 = vadd.f32 %v1550, %v1626
      %v1677 = vadd.f32 %v1551, %v1629
      %v1678 = vadd.f32 %v1552, %v1634
      %v1679 = vadd.f32 %v1553, %v1637
      %v1680 = vadd.f32 %v1554, %v1642
      %v1681 = vadd.f32 %v1555, %v1645
      %v1682 = vadd.f32 %v1556, %v1650
      %v1683 = vadd.f32 %v1557, %v1653
      %v1684 = vadd.f32 %v1558, %v1658
      %v1685 = vadd.f32 %v1559, %v1661
      %v1686 = vadd.f32 %v1560, %v1666
      %v1687 = vadd.f32 %v1561, %v1669
      %1688 = vst.msk [vmem:[#allocation2] sm:$0xff] %vm370, %v1672
      %1689 = vst.msk [vmem:[#allocation2 + $0x8] sm:$0xff] %vm370, %v1673
      %1690 = vst.msk [vmem:[#allocation2 + $0x10] sm:$0xff] %vm370, %v1674
      %1691 = vst.msk [vmem:[#allocation2 + $0x18] sm:$0xff] %vm370, %v1675
      %1692 = vst.msk [vmem:[#allocation2 + $0x20] sm:$0xff] %vm370, %v1676
      %1693 = vst.msk [vmem:[#allocation2 + $0x28] sm:$0xff] %vm370, %v1677
      %1694 = vst.msk [vmem:[#allocation2 + $0x30] sm:$0xff] %vm370, %v1678
      %1695 = vst.msk [vmem:[#allocation2 + $0x38] sm:$0xff] %vm370, %v1679
      %1696 = vst.msk [vmem:[#allocation2 + $0x40] sm:$0xff] %vm370, %v1680
      %1697 = vst.msk [vmem:[#allocation2 + $0x48] sm:$0xff] %vm370, %v1681
      %1698 = vst.msk [vmem:[#allocation2 + $0x50] sm:$0xff] %vm370, %v1682
      %1699 = vst.msk [vmem:[#allocation2 + $0x58] sm:$0xff] %vm370, %v1683
      %1700 = vst.msk [vmem:[#allocation2 + $0x60] sm:$0xff] %vm370, %v1684
      %1701 = vst.msk [vmem:[#allocation2 + $0x68] sm:$0xff] %vm370, %v1685
      %1702 = vst.msk [vmem:[#allocation2 + $0x70] sm:$0xff] %vm370, %v1686
      %1703 = vst.msk [vmem:[#allocation2 + $0x78] sm:$0xff] %vm370, %v1687
      // Predicated region
      $region37: #{forward.6} parent=31 // pred_check
        %p1704 = pneg %p257
      $region38: #{forward.6} parent=31 // pred_check_branch
        %1706 = sbr.rel (%p1704) target = $region40
      $region39: #{forward.6} parent=31 // pred_region
        %v1707 = vld [vmem:[#allocation2] sm:$0xff]
        %v1708 = vld [vmem:[#allocation2 + $0x8] sm:$0xff]
        %v1709 = vld [vmem:[#allocation2 + $0x10] sm:$0xff]
        %v1710 = vld [vmem:[#allocation2 + $0x18] sm:$0xff]
        %v1711 = vld [vmem:[#allocation2 + $0x20] sm:$0xff]
        %v1712 = vld [vmem:[#allocation2 + $0x28] sm:$0xff]
        %v1713 = vld [vmem:[#allocation2 + $0x30] sm:$0xff]
        %v1714 = vld [vmem:[#allocation2 + $0x38] sm:$0xff]
        %v1715 = vld [vmem:[#allocation2 + $0x40] sm:$0xff]
        %v1716 = vld [vmem:[#allocation2 + $0x48] sm:$0xff]
        %v1717 = vld [vmem:[#allocation2 + $0x50] sm:$0xff]
        %v1718 = vld [vmem:[#allocation2 + $0x58] sm:$0xff]
        %v1719 = vld [vmem:[#allocation2 + $0x60] sm:$0xff]
        %v1720 = vld [vmem:[#allocation2 + $0x68] sm:$0xff]
        %v1721 = vld [vmem:[#allocation2 + $0x70] sm:$0xff]
        %v1722 = vld [vmem:[#allocation2 + $0x78] sm:$0xff]
        %v1723 = vld [vmem:[%s247] sm:$0x1]
        %v1725 = vlaneseq
        %v1726 = vshrl.u32 %v1725, 7
        %v1727 = vsub.s32 0, %v1726
        %v1728 = vrot.slane %v1723, %v1727
        %v1730 = vadd.f32 %v1707, %v1728
        %v1731 = vadd.f32 %v1708, %v1728
        %v1732 = vadd.f32 %v1709, %v1728
        %v1733 = vadd.f32 %v1710, %v1728
        %v1734 = vadd.f32 %v1711, %v1728
        %v1735 = vadd.f32 %v1712, %v1728
        %v1736 = vadd.f32 %v1713, %v1728
        %v1737 = vadd.f32 %v1714, %v1728
        %v1738 = vadd.f32 %v1715, %v1728
        %v1739 = vadd.f32 %v1716, %v1728
        %v1740 = vadd.f32 %v1717, %v1728
        %v1741 = vadd.f32 %v1718, %v1728
        %v1742 = vadd.f32 %v1719, %v1728
        %v1743 = vadd.f32 %v1720, %v1728
        %v1744 = vadd.f32 %v1721, %v1728
        %v1745 = vadd.f32 %v1722, %v1728
        %vm1746 = vcmp.gt.f32.partialorder %v1730, 0.0
        %vm1747 = vcmp.gt.f32.partialorder %v1731, 0.0
        %vm1748 = vcmp.gt.f32.partialorder %v1732, 0.0
        %vm1749 = vcmp.gt.f32.partialorder %v1733, 0.0
        %vm1750 = vcmp.gt.f32.partialorder %v1734, 0.0
        %vm1751 = vcmp.gt.f32.partialorder %v1735, 0.0
        %vm1752 = vcmp.gt.f32.partialorder %v1736, 0.0
        %vm1753 = vcmp.gt.f32.partialorder %v1737, 0.0
        %vm1754 = vcmp.gt.f32.partialorder %v1738, 0.0
        %vm1755 = vcmp.gt.f32.partialorder %v1739, 0.0
        %vm1756 = vcmp.gt.f32.partialorder %v1740, 0.0
        %vm1757 = vcmp.gt.f32.partialorder %v1741, 0.0
        %vm1758 = vcmp.gt.f32.partialorder %v1742, 0.0
        %vm1759 = vcmp.gt.f32.partialorder %v1743, 0.0
        %vm1760 = vcmp.gt.f32.partialorder %v1744, 0.0
        %vm1761 = vcmp.gt.f32.partialorder %v1745, 0.0
        %v1762 = vmul.f32 %v1730, 0.2
        %v1763 = vmul.f32 %v1731, 0.2
        %v1764 = vmul.f32 %v1732, 0.2
        %v1765 = vmul.f32 %v1733, 0.2
        %v1766 = vmul.f32 %v1734, 0.2
        %v1767 = vmul.f32 %v1735, 0.2
        %v1768 = vmul.f32 %v1736, 0.2
        %v1769 = vmul.f32 %v1737, 0.2
        %v1770 = vmul.f32 %v1738, 0.2
        %v1771 = vmul.f32 %v1739, 0.2
        %v1772 = vmul.f32 %v1740, 0.2
        %v1773 = vmul.f32 %v1741, 0.2
        %v1774 = vmul.f32 %v1742, 0.2
        %v1775 = vmul.f32 %v1743, 0.2
        %v1776 = vmul.f32 %v1744, 0.2
        %v1777 = vmul.f32 %v1745, 0.2
        %v1778 = vsel %vm1746, %v1730, %v1762
        %v1779 = vsel %vm1747, %v1731, %v1763
        %v1780 = vsel %vm1748, %v1732, %v1764
        %v1781 = vsel %vm1749, %v1733, %v1765
        %v1782 = vsel %vm1750, %v1734, %v1766
        %v1783 = vsel %vm1751, %v1735, %v1767
        %v1784 = vsel %vm1752, %v1736, %v1768
        %v1785 = vsel %vm1753, %v1737, %v1769
        %v1786 = vsel %vm1754, %v1738, %v1770
        %v1787 = vsel %vm1755, %v1739, %v1771
        %v1788 = vsel %vm1756, %v1740, %v1772
        %v1789 = vsel %vm1757, %v1741, %v1773
        %v1790 = vsel %vm1758, %v1742, %v1774
        %v1791 = vsel %vm1759, %v1743, %v1775
        %v1792 = vsel %vm1760, %v1744, %v1776
        %v1793 = vsel %vm1761, %v1745, %v1777
        %s1794 = scalar_lea.vmem [#allocation3], 24
        %1795 = vst.msk [vmem:[%s1794 + $0x1] sm:$0xff] %vm370, %v1778
        %1796 = vst.msk [vmem:[%s1794 + $0x9] sm:$0xff] %vm370, %v1779
        %1797 = vst.msk [vmem:[%s1794 + $0x19] sm:$0xff] %vm370, %v1780
        %1798 = vst.msk [vmem:[%s1794 + $0x21] sm:$0xff] %vm370, %v1781
        %1799 = vst.msk [vmem:[%s1794 + $0x31] sm:$0xff] %vm370, %v1782
        %1800 = vst.msk [vmem:[%s1794 + $0x39] sm:$0xff] %vm370, %v1783
        %1801 = vst.msk [vmem:[%s1794 + $0x49] sm:$0xff] %vm370, %v1784
        %1802 = vst.msk [vmem:[%s1794 + $0x51] sm:$0xff] %vm370, %v1785
        %1803 = vst.msk [vmem:[%s1794 + $0x61] sm:$0xff] %vm370, %v1786
        %1804 = vst.msk [vmem:[%s1794 + $0x69] sm:$0xff] %vm370, %v1787
        %1805 = vst.msk [vmem:[%s1794 + $0x79] sm:$0xff] %vm370, %v1788
        %1806 = vst.msk [vmem:[%s1794 + $0x81] sm:$0xff] %vm370, %v1789
        %1807 = vst.msk [vmem:[%s1794 + $0x91] sm:$0xff] %vm370, %v1790
        %1808 = vst.msk [vmem:[%s1794 + $0x99] sm:$0xff] %vm370, %v1791
        %1809 = vst.msk [vmem:[%s1794 + $0xa9] sm:$0xff] %vm370, %v1792
        %1810 = vst.msk [vmem:[%s1794 + $0xb1] sm:$0xff] %vm370, %v1793
        %1811 = vst.msk [vmem:[#allocation3 + $0x1] sm:$0xff] %vm370, %v1780
        %1812 = vst.msk [vmem:[#allocation3 + $0x9] sm:$0xff] %vm370, %v1781
        %s1813 = scalar_lea.vmem [#allocation3], 216
        %1814 = vst.msk [vmem:[%s1813 + $0x1] sm:$0xff] %vm370, %v1790
        %1815 = vst.msk [vmem:[%s1813 + $0x9] sm:$0xff] %vm370, %v1791
        %v1816 = vld [vmem:[#allocation3 + $0x2] sm:$0x1]
        %v1817 = vld [vmem:[#allocation3 + $0x1a] sm:$0x1]
        %v1818 = vld [vmem:[#allocation3 + $0x32] sm:$0x1]
        %v1819 = vld [vmem:[#allocation3 + $0x4a] sm:$0x1]
        %v1820 = vld [vmem:[#allocation3 + $0x62] sm:$0x1]
        %v1821 = vld [vmem:[#allocation3 + $0x7a] sm:$0x1]
        %v1822 = vld [vmem:[#allocation3 + $0x92] sm:$0x1]
        %v1823 = vld [vmem:[#allocation3 + $0xaa] sm:$0x1]
        %v1824 = vld [vmem:[#allocation3 + $0xc2] sm:$0x1]
        %v1825 = vld [vmem:[#allocation3 + $0xda] sm:$0x1]
        %vm1826 = vcmask 253952
        %1827 = vst.msk [vmem:[#allocation3] sm:$0x1] %vm1826, %v1816
        %1828 = vst.msk [vmem:[#allocation3 + $0x18] sm:$0x1] %vm1826, %v1817
        %1829 = vst.msk [vmem:[#allocation3 + $0x30] sm:$0x1] %vm1826, %v1818
        %1830 = vst.msk [vmem:[#allocation3 + $0x48] sm:$0x1] %vm1826, %v1819
        %1831 = vst.msk [vmem:[#allocation3 + $0x60] sm:$0x1] %vm1826, %v1820
        %1832 = vst.msk [vmem:[#allocation3 + $0x78] sm:$0x1] %vm1826, %v1821
        %1833 = vst.msk [vmem:[#allocation3 + $0x90] sm:$0x1] %vm1826, %v1822
        %1834 = vst.msk [vmem:[#allocation3 + $0xa8] sm:$0x1] %vm1826, %v1823
        %1835 = vst.msk [vmem:[#allocation3 + $0xc0] sm:$0x1] %vm1826, %v1824
        %1836 = vst.msk [vmem:[#allocation3 + $0xd8] sm:$0x1] %vm1826, %v1825
        %v1837 = vld [vmem:[#allocation3 + $0xf] sm:$0x1]
        %v1838 = vld [vmem:[#allocation3 + $0x27] sm:$0x1]
        %v1839 = vld [vmem:[#allocation3 + $0x3f] sm:$0x1]
        %v1840 = vld [vmem:[#allocation3 + $0x57] sm:$0x1]
        %v1841 = vld [vmem:[#allocation3 + $0x6f] sm:$0x1]
        %v1842 = vld [vmem:[#allocation3 + $0x87] sm:$0x1]
        %v1843 = vld [vmem:[#allocation3 + $0x9f] sm:$0x1]
        %v1844 = vld [vmem:[#allocation3 + $0xb7] sm:$0x1]
        %v1845 = vld [vmem:[#allocation3 + $0xcf] sm:$0x1]
        %v1846 = vld [vmem:[#allocation3 + $0xe7] sm:$0x1]
        %1847 = vst.msk [vmem:[#allocation3 + $0x11] sm:$0x1] %vm1826, %v1837
        %1848 = vst.msk [vmem:[#allocation3 + $0x29] sm:$0x1] %vm1826, %v1838
        %1849 = vst.msk [vmem:[#allocation3 + $0x41] sm:$0x1] %vm1826, %v1839
        %1850 = vst.msk [vmem:[#allocation3 + $0x59] sm:$0x1] %vm1826, %v1840
        %1851 = vst.msk [vmem:[#allocation3 + $0x71] sm:$0x1] %vm1826, %v1841
        %1852 = vst.msk [vmem:[#allocation3 + $0x89] sm:$0x1] %vm1826, %v1842
        %1853 = vst.msk [vmem:[#allocation3 + $0xa1] sm:$0x1] %vm1826, %v1843
        %1854 = vst.msk [vmem:[#allocation3 + $0xb9] sm:$0x1] %vm1826, %v1844
        %1855 = vst.msk [vmem:[#allocation3 + $0xd1] sm:$0x1] %vm1826, %v1845
        %1856 = vst.msk [vmem:[#allocation3 + $0xe9] sm:$0x1] %vm1826, %v1846
        %v1857 = vld [vmem:[#allocation3] sm:$0xff]
        %v1858 = vld [vmem:[#allocation3 + $0x8] sm:$0xff]
        %v1859 = vld [vmem:[#allocation3 + $0x10] sm:$0x3]
        %v1860 = vld [vmem:[#allocation3 + $0x18] sm:$0xff]
        %v1861 = vld [vmem:[#allocation3 + $0x20] sm:$0xff]
        %v1862 = vld [vmem:[#allocation3 + $0x28] sm:$0x3]
        %v1863 = vld [vmem:[#allocation3 + $0x30] sm:$0xff]
        %v1864 = vld [vmem:[#allocation3 + $0x38] sm:$0xff]
        %v1865 = vld [vmem:[#allocation3 + $0x40] sm:$0x3]
        %v1866 = vld [vmem:[#allocation3 + $0x48] sm:$0xff]
        %v1867 = vld [vmem:[#allocation3 + $0x50] sm:$0xff]
        %v1868 = vld [vmem:[#allocation3 + $0x58] sm:$0x3]
        %v1869 = vld [vmem:[#allocation3 + $0x60] sm:$0xff]
        %v1870 = vld [vmem:[#allocation3 + $0x68] sm:$0xff]
        %v1871 = vld [vmem:[#allocation3 + $0x70] sm:$0x3]
        %v1872 = vld [vmem:[#allocation3 + $0x78] sm:$0xff]
        %v1873 = vld [vmem:[#allocation3 + $0x80] sm:$0xff]
        %v1874 = vld [vmem:[#allocation3 + $0x88] sm:$0x3]
        %v1875 = vld [vmem:[#allocation3 + $0x90] sm:$0xff]
        %v1876 = vld [vmem:[#allocation3 + $0x98] sm:$0xff]
        %v1877 = vld [vmem:[#allocation3 + $0xa0] sm:$0x3]
        %v1878 = vld [vmem:[#allocation3 + $0xa8] sm:$0xff]
        %v1879 = vld [vmem:[#allocation3 + $0xb0] sm:$0xff]
        %v1880 = vld [vmem:[#allocation3 + $0xb8] sm:$0x3]
        %v1881 = vld [vmem:[#allocation3 + $0xc0] sm:$0xff]
        %v1882 = vld [vmem:[#allocation3 + $0xc8] sm:$0xff]
        %v1883 = vld [vmem:[#allocation3 + $0xd0] sm:$0x3]
        %v1884 = vld [vmem:[#allocation3 + $0xd8] sm:$0xff]
        %v1885 = vld [vmem:[#allocation3 + $0xe0] sm:$0xff]
        %v1886 = vld [vmem:[#allocation3 + $0xe8] sm:$0x3]
        %v1887 = vmul.f32 %v1857, 0.0625
        %v1888 = vmul.f32 %v1858, 0.0625
        %v1889 = vmul.f32 %v1860, 0.0625
        %v1890 = vmul.f32 %v1861, 0.0625
        %v1891 = vmul.f32 %v1863, 0.0625
        %v1892 = vmul.f32 %v1864, 0.0625
        %v1893 = vmul.f32 %v1866, 0.0625
        %v1894 = vmul.f32 %v1867, 0.0625
        %v1895 = vmul.f32 %v1869, 0.0625
        %v1896 = vmul.f32 %v1870, 0.0625
        %v1897 = vmul.f32 %v1872, 0.0625
        %v1898 = vmul.f32 %v1873, 0.0625
        %v1899 = vmul.f32 %v1875, 0.0625
        %v1900 = vmul.f32 %v1876, 0.0625
        %v1901 = vmul.f32 %v1878, 0.0625
        %v1902 = vmul.f32 %v1879, 0.0625
        %v1903 = vadd.f32 %v1887, 0.0
        %v1904 = vadd.f32 %v1888, 0.0
        %v1905 = vadd.f32 %v1889, 0.0
        %v1906 = vadd.f32 %v1890, 0.0
        %v1907 = vadd.f32 %v1891, 0.0
        %v1908 = vadd.f32 %v1892, 0.0
        %v1909 = vadd.f32 %v1893, 0.0
        %v1910 = vadd.f32 %v1894, 0.0
        %v1911 = vadd.f32 %v1895, 0.0
        %v1912 = vadd.f32 %v1896, 0.0
        %v1913 = vadd.f32 %v1897, 0.0
        %v1914 = vadd.f32 %v1898, 0.0
        %v1915 = vadd.f32 %v1899, 0.0
        %v1916 = vadd.f32 %v1900, 0.0
        %v1917 = vadd.f32 %v1901, 0.0
        %v1918 = vadd.f32 %v1902, 0.0
        %v1919 = vmul.f32 %v1857, 0.125
        %v1920 = vmul.f32 %v1858, 0.125
        %v1921 = vmul.f32 %v1859, 0.125
        %v1922 = vmul.f32 %v1860, 0.125
        %v1923 = vmul.f32 %v1861, 0.125
        %v1924 = vmul.f32 %v1862, 0.125
        %v1925 = vmul.f32 %v1863, 0.125
        %v1926 = vmul.f32 %v1864, 0.125
        %v1927 = vmul.f32 %v1865, 0.125
        %v1928 = vmul.f32 %v1866, 0.125
        %v1929 = vmul.f32 %v1867, 0.125
        %v1930 = vmul.f32 %v1868, 0.125
        %v1931 = vmul.f32 %v1869, 0.125
        %v1932 = vmul.f32 %v1870, 0.125
        %v1933 = vmul.f32 %v1871, 0.125
        %v1934 = vmul.f32 %v1872, 0.125
        %v1935 = vmul.f32 %v1873, 0.125
        %v1936 = vmul.f32 %v1874, 0.125
        %v1937 = vmul.f32 %v1875, 0.125
        %v1938 = vmul.f32 %v1876, 0.125
        %v1939 = vmul.f32 %v1877, 0.125
        %v1940 = vmul.f32 %v1878, 0.125
        %v1941 = vmul.f32 %v1879, 0.125
        %v1942 = vmul.f32 %v1880, 0.125
        %v1967 = vrot.slane %v1919, 1
        %v1968 = vrot.slane %v1920, 1
        %v1969 = vsel %vm532, %v1967, %v1968
        %v1970 = vrot.slane %v1921, 1
        %v1971 = vsel %vm532, %v1968, %v1970
        %v1972 = vrot.slane %v1922, 1
        %v1973 = vrot.slane %v1923, 1
        %v1974 = vsel %vm532, %v1972, %v1973
        %v1975 = vrot.slane %v1924, 1
        %v1976 = vsel %vm532, %v1973, %v1975
        %v1977 = vrot.slane %v1925, 1
        %v1978 = vrot.slane %v1926, 1
        %v1979 = vsel %vm532, %v1977, %v1978
        %v1980 = vrot.slane %v1927, 1
        %v1981 = vsel %vm532, %v1978, %v1980
        %v1982 = vrot.slane %v1928, 1
        %v1983 = vrot.slane %v1929, 1
        %v1984 = vsel %vm532, %v1982, %v1983
        %v1985 = vrot.slane %v1930, 1
        %v1986 = vsel %vm532, %v1983, %v1985
        %v1987 = vrot.slane %v1931, 1
        %v1988 = vrot.slane %v1932, 1
        %v1989 = vsel %vm532, %v1987, %v1988
        %v1990 = vrot.slane %v1933, 1
        %v1991 = vsel %vm532, %v1988, %v1990
        %v1992 = vrot.slane %v1934, 1
        %v1993 = vrot.slane %v1935, 1
        %v1994 = vsel %vm532, %v1992, %v1993
        %v1995 = vrot.slane %v1936, 1
        %v1996 = vsel %vm532, %v1993, %v1995
        %v1997 = vrot.slane %v1937, 1
        %v1998 = vrot.slane %v1938, 1
        %v1999 = vsel %vm532, %v1997, %v1998
        %v2000 = vrot.slane %v1939, 1
        %v2001 = vsel %vm532, %v1998, %v2000
        %v2002 = vrot.slane %v1940, 1
        %v2003 = vrot.slane %v1941, 1
        %v2004 = vsel %vm532, %v2002, %v2003
        %v2005 = vrot.slane %v1942, 1
        %v2006 = vsel %vm532, %v2003, %v2005
        %v2023 = vadd.f32 %v1903, %v1969
        %v2024 = vadd.f32 %v1904, %v1971
        %v2025 = vadd.f32 %v1905, %v1974
        %v2026 = vadd.f32 %v1906, %v1976
        %v2027 = vadd.f32 %v1907, %v1979
        %v2028 = vadd.f32 %v1908, %v1981
        %v2029 = vadd.f32 %v1909, %v1984
        %v2030 = vadd.f32 %v1910, %v1986
        %v2031 = vadd.f32 %v1911, %v1989
        %v2032 = vadd.f32 %v1912, %v1991
        %v2033 = vadd.f32 %v1913, %v1994
        %v2034 = vadd.f32 %v1914, %v1996
        %v2035 = vadd.f32 %v1915, %v1999
        %v2036 = vadd.f32 %v1916, %v2001
        %v2037 = vadd.f32 %v1917, %v2004
        %v2038 = vadd.f32 %v1918, %v2006
        %v2039 = vmul.f32 %v1859, 0.0625
        %v2040 = vmul.f32 %v1862, 0.0625
        %v2041 = vmul.f32 %v1865, 0.0625
        %v2042 = vmul.f32 %v1868, 0.0625
        %v2043 = vmul.f32 %v1871, 0.0625
        %v2044 = vmul.f32 %v1874, 0.0625
        %v2045 = vmul.f32 %v1877, 0.0625
        %v2046 = vmul.f32 %v1880, 0.0625
        %v2071 = vrot.slane %v1887, 2
        %v2072 = vrot.slane %v1888, 2
        %v2073 = vsel %vm736, %v2071, %v2072
        %v2074 = vrot.slane %v2039, 2
        %v2075 = vsel %vm736, %v2072, %v2074
        %v2076 = vrot.slane %v1889, 2
        %v2077 = vrot.slane %v1890, 2
        %v2078 = vsel %vm736, %v2076, %v2077
        %v2079 = vrot.slane %v2040, 2
        %v2080 = vsel %vm736, %v2077, %v2079
        %v2081 = vrot.slane %v1891, 2
        %v2082 = vrot.slane %v1892, 2
        %v2083 = vsel %vm736, %v2081, %v2082
        %v2084 = vrot.slane %v2041, 2
        %v2085 = vsel %vm736, %v2082, %v2084
        %v2086 = vrot.slane %v1893, 2
        %v2087 = vrot.slane %v1894, 2
        %v2088 = vsel %vm736, %v2086, %v2087
        %v2089 = vrot.slane %v2042, 2
        %v2090 = vsel %vm736, %v2087, %v2089
        %v2091 = vrot.slane %v1895, 2
        %v2092 = vrot.slane %v1896, 2
        %v2093 = vsel %vm736, %v2091, %v2092
        %v2094 = vrot.slane %v2043, 2
        %v2095 = vsel %vm736, %v2092, %v2094
        %v2096 = vrot.slane %v1897, 2
        %v2097 = vrot.slane %v1898, 2
        %v2098 = vsel %vm736, %v2096, %v2097
        %v2099 = vrot.slane %v2044, 2
        %v2100 = vsel %vm736, %v2097, %v2099
        %v2101 = vrot.slane %v1899, 2
        %v2102 = vrot.slane %v1900, 2
        %v2103 = vsel %vm736, %v2101, %v2102
        %v2104 = vrot.slane %v2045, 2
        %v2105 = vsel %vm736, %v2102, %v2104
        %v2106 = vrot.slane %v1901, 2
        %v2107 = vrot.slane %v1902, 2
        %v2108 = vsel %vm736, %v2106, %v2107
        %v2109 = vrot.slane %v2046, 2
        %v2110 = vsel %vm736, %v2107, %v2109
        %v2127 = vadd.f32 %v2023, %v2073
        %v2128 = vadd.f32 %v2024, %v2075
        %v2129 = vadd.f32 %v2025, %v2078
        %v2130 = vadd.f32 %v2026, %v2080
        %v2131 = vadd.f32 %v2027, %v2083
        %v2132 = vadd.f32 %v2028, %v2085
        %v2133 = vadd.f32 %v2029, %v2088
        %v2134 = vadd.f32 %v2030, %v2090
        %v2135 = vadd.f32 %v2031, %v2093
        %v2136 = vadd.f32 %v2032, %v2095
        %v2137 = vadd.f32 %v2033, %v2098
        %v2138 = vadd.f32 %v2034, %v2100
        %v2139 = vadd.f32 %v2035, %v2103
        %v2140 = vadd.f32 %v2036, %v2105
        %v2141 = vadd.f32 %v2037, %v2108
        %v2142 = vadd.f32 %v2038, %v2110
        %v2143 = vmul.f32 %v1881, 0.125
        %v2144 = vmul.f32 %v1882, 0.125
        %v2145 = vadd.f32 %v2127, %v1922
        %v2146 = vadd.f32 %v2128, %v1923
        %v2147 = vadd.f32 %v2129, %v1925
        %v2148 = vadd.f32 %v2130, %v1926
        %v2149 = vadd.f32 %v2131, %v1928
        %v2150 = vadd.f32 %v2132, %v1929
        %v2151 = vadd.f32 %v2133, %v1931
        %v2152 = vadd.f32 %v2134, %v1932
        %v2153 = vadd.f32 %v2135, %v1934
        %v2154 = vadd.f32 %v2136, %v1935
        %v2155 = vadd.f32 %v2137, %v1937
        %v2156 = vadd.f32 %v2138, %v1938
        %v2157 = vadd.f32 %v2139, %v1940
        %v2158 = vadd.f32 %v2140, %v1941
        %v2159 = vadd.f32 %v2141, %v2143
        %v2160 = vadd.f32 %v2142, %v2144
        %v2161 = vmul.f32 %v1860, 0.25
        %v2162 = vmul.f32 %v1861, 0.25
        %v2163 = vmul.f32 %v1862, 0.25
        %v2164 = vmul.f32 %v1863, 0.25
        %v2165 = vmul.f32 %v1864, 0.25
        %v2166 = vmul.f32 %v1865, 0.25
        %v2167 = vmul.f32 %v1866, 0.25
        %v2168 = vmul.f32 %v1867, 0.25
        %v2169 = vmul.f32 %v1868, 0.25
        %v2170 = vmul.f32 %v1869, 0.25
        %v2171 = vmul.f32 %v1870, 0.25
        %v2172 = vmul.f32 %v1871, 0.25
        %v2173 = vmul.f32 %v1872, 0.25
        %v2174 = vmul.f32 %v1873, 0.25
        %v2175 = vmul.f32 %v1874, 0.25
        %v2176 = vmul.f32 %v1875, 0.25
        %v2177 = vmul.f32 %v1876, 0.25
        %v2178 = vmul.f32 %v1877, 0.25
        %v2179 = vmul.f32 %v1878, 0.25
        %v2180 = vmul.f32 %v1879, 0.25
        %v2181 = vmul.f32 %v1880, 0.25
        %v2182 = vmul.f32 %v1881, 0.25
        %v2183 = vmul.f32 %v1882, 0.25
        %v2184 = vmul.f32 %v1883, 0.25
        %v2209 = vrot.slane %v2161, 1
        %v2210 = vrot.slane %v2162, 1
        %v2211 = vsel %vm532, %v2209, %v2210
        %v2212 = vrot.slane %v2163, 1
        %v2213 = vsel %vm532, %v2210, %v2212
        %v2214 = vrot.slane %v2164, 1
        %v2215 = vrot.slane %v2165, 1
        %v2216 = vsel %vm532, %v2214, %v2215
        %v2217 = vrot.slane %v2166, 1
        %v2218 = vsel %vm532, %v2215, %v2217
        %v2219 = vrot.slane %v2167, 1
        %v2220 = vrot.slane %v2168, 1
        %v2221 = vsel %vm532, %v2219, %v2220
        %v2222 = vrot.slane %v2169, 1
        %v2223 = vsel %vm532, %v2220, %v2222
        %v2224 = vrot.slane %v2170, 1
        %v2225 = vrot.slane %v2171, 1
        %v2226 = vsel %vm532, %v2224, %v2225
        %v2227 = vrot.slane %v2172, 1
        %v2228 = vsel %vm532, %v2225, %v2227
        %v2229 = vrot.slane %v2173, 1
        %v2230 = vrot.slane %v2174, 1
        %v2231 = vsel %vm532, %v2229, %v2230
        %v2232 = vrot.slane %v2175, 1
        %v2233 = vsel %vm532, %v2230, %v2232
        %v2234 = vrot.slane %v2176, 1
        %v2235 = vrot.slane %v2177, 1
        %v2236 = vsel %vm532, %v2234, %v2235
        %v2237 = vrot.slane %v2178, 1
        %v2238 = vsel %vm532, %v2235, %v2237
        %v2239 = vrot.slane %v2179, 1
        %v2240 = vrot.slane %v2180, 1
        %v2241 = vsel %vm532, %v2239, %v2240
        %v2242 = vrot.slane %v2181, 1
        %v2243 = vsel %vm532, %v2240, %v2242
        %v2244 = vrot.slane %v2182, 1
        %v2245 = vrot.slane %v2183, 1
        %v2246 = vsel %vm532, %v2244, %v2245
        %v2247 = vrot.slane %v2184, 1
        %v2248 = vsel %vm532, %v2245, %v2247
        %v2265 = vadd.f32 %v2145, %v2211
        %v2266 = vadd.f32 %v2146, %v2213
        %v2267 = vadd.f32 %v2147, %v2216
        %v2268 = vadd.f32 %v2148, %v2218
        %v2269 = vadd.f32 %v2149, %v2221
        %v2270 = vadd.f32 %v2150, %v2223
        %v2271 = vadd.f32 %v2151, %v2226
        %v2272 = vadd.f32 %v2152, %v2228
        %v2273 = vadd.f32 %v2153, %v2231
        %v2274 = vadd.f32 %v2154, %v2233
        %v2275 = vadd.f32 %v2155, %v2236
        %v2276 = vadd.f32 %v2156, %v2238
        %v2277 = vadd.f32 %v2157, %v2241
        %v2278 = vadd.f32 %v2158, %v2243
        %v2279 = vadd.f32 %v2159, %v2246
        %v2280 = vadd.f32 %v2160, %v2248
        %v2281 = vmul.f32 %v1883, 0.125
        %v2285 = vrot.slane %v1922, 2
        %v2286 = vrot.slane %v1923, 2
        %v2287 = vsel %vm736, %v2285, %v2286
        %v2288 = vrot.slane %v1924, 2
        %v2289 = vsel %vm736, %v2286, %v2288
        %v2290 = vrot.slane %v1925, 2
        %v2291 = vrot.slane %v1926, 2
        %v2292 = vsel %vm736, %v2290, %v2291
        %v2293 = vrot.slane %v1927, 2
        %v2294 = vsel %vm736, %v2291, %v2293
        %v2295 = vrot.slane %v1928, 2
        %v2296 = vrot.slane %v1929, 2
        %v2297 = vsel %vm736, %v2295, %v2296
        %v2298 = vrot.slane %v1930, 2
        %v2299 = vsel %vm736, %v2296, %v2298
        %v2300 = vrot.slane %v1931, 2
        %v2301 = vrot.slane %v1932, 2
        %v2302 = vsel %vm736, %v2300, %v2301
        %v2303 = vrot.slane %v1933, 2
        %v2304 = vsel %vm736, %v2301, %v2303
        %v2305 = vrot.slane %v1934, 2
        %v2306 = vrot.slane %v1935, 2
        %v2307 = vsel %vm736, %v2305, %v2306
        %v2308 = vrot.slane %v1936, 2
        %v2309 = vsel %vm736, %v2306, %v2308
        %v2310 = vrot.slane %v1937, 2
        %v2311 = vrot.slane %v1938, 2
        %v2312 = vsel %vm736, %v2310, %v2311
        %v2313 = vrot.slane %v1939, 2
        %v2314 = vsel %vm736, %v2311, %v2313
        %v2315 = vrot.slane %v1940, 2
        %v2316 = vrot.slane %v1941, 2
        %v2317 = vsel %vm736, %v2315, %v2316
        %v2318 = vrot.slane %v1942, 2
        %v2319 = vsel %vm736, %v2316, %v2318
        %v2320 = vrot.slane %v2143, 2
        %v2321 = vrot.slane %v2144, 2
        %v2322 = vsel %vm736, %v2320, %v2321
        %v2323 = vrot.slane %v2281, 2
        %v2324 = vsel %vm736, %v2321, %v2323
        %v2341 = vadd.f32 %v2265, %v2287
        %v2342 = vadd.f32 %v2266, %v2289
        %v2343 = vadd.f32 %v2267, %v2292
        %v2344 = vadd.f32 %v2268, %v2294
        %v2345 = vadd.f32 %v2269, %v2297
        %v2346 = vadd.f32 %v2270, %v2299
        %v2347 = vadd.f32 %v2271, %v2302
        %v2348 = vadd.f32 %v2272, %v2304
        %v2349 = vadd.f32 %v2273, %v2307
        %v2350 = vadd.f32 %v2274, %v2309
        %v2351 = vadd.f32 %v2275, %v2312
        %v2352 = vadd.f32 %v2276, %v2314
        %v2353 = vadd.f32 %v2277, %v2317
        %v2354 = vadd.f32 %v2278, %v2319
        %v2355 = vadd.f32 %v2279, %v2322
        %v2356 = vadd.f32 %v2280, %v2324
        %v2357 = vmul.f32 %v1881, 0.0625
        %v2358 = vmul.f32 %v1882, 0.0625
        %v2359 = vmul.f32 %v1884, 0.0625
        %v2360 = vmul.f32 %v1885, 0.0625
        %v2361 = vadd.f32 %v2341, %v1891
        %v2362 = vadd.f32 %v2342, %v1892
        %v2363 = vadd.f32 %v2343, %v1893
        %v2364 = vadd.f32 %v2344, %v1894
        %v2365 = vadd.f32 %v2345, %v1895
        %v2366 = vadd.f32 %v2346, %v1896
        %v2367 = vadd.f32 %v2347, %v1897
        %v2368 = vadd.f32 %v2348, %v1898
        %v2369 = vadd.f32 %v2349, %v1899
        %v2370 = vadd.f32 %v2350, %v1900
        %v2371 = vadd.f32 %v2351, %v1901
        %v2372 = vadd.f32 %v2352, %v1902
        %v2373 = vadd.f32 %v2353, %v2357
        %v2374 = vadd.f32 %v2354, %v2358
        %v2375 = vadd.f32 %v2355, %v2359
        %v2376 = vadd.f32 %v2356, %v2360
        %v2377 = vmul.f32 %v1884, 0.125
        %v2378 = vmul.f32 %v1885, 0.125
        %v2379 = vmul.f32 %v1886, 0.125
        %v2383 = vrot.slane %v2143, 1
        %v2384 = vrot.slane %v2144, 1
        %v2385 = vsel %vm532, %v2383, %v2384
        %v2386 = vrot.slane %v2281, 1
        %v2387 = vsel %vm532, %v2384, %v2386
        %v2388 = vrot.slane %v2377, 1
        %v2389 = vrot.slane %v2378, 1
        %v2390 = vsel %vm532, %v2388, %v2389
        %v2391 = vrot.slane %v2379, 1
        %v2392 = vsel %vm532, %v2389, %v2391
        %v2397 = vadd.f32 %v2361, %v1979
        %v2398 = vadd.f32 %v2362, %v1981
        %v2399 = vadd.f32 %v2363, %v1984
        %v2400 = vadd.f32 %v2364, %v1986
        %v2401 = vadd.f32 %v2365, %v1989
        %v2402 = vadd.f32 %v2366, %v1991
        %v2403 = vadd.f32 %v2367, %v1994
        %v2404 = vadd.f32 %v2368, %v1996
        %v2405 = vadd.f32 %v2369, %v1999
        %v2406 = vadd.f32 %v2370, %v2001
        %v2407 = vadd.f32 %v2371, %v2004
        %v2408 = vadd.f32 %v2372, %v2006
        %v2409 = vadd.f32 %v2373, %v2385
        %v2410 = vadd.f32 %v2374, %v2387
        %v2411 = vadd.f32 %v2375, %v2390
        %v2412 = vadd.f32 %v2376, %v2392
        %v2413 = vmul.f32 %v1883, 0.0625
        %v2414 = vmul.f32 %v1886, 0.0625
        %v2421 = vrot.slane %v2357, 2
        %v2422 = vrot.slane %v2358, 2
        %v2423 = vsel %vm736, %v2421, %v2422
        %v2424 = vrot.slane %v2413, 2
        %v2425 = vsel %vm736, %v2422, %v2424
        %v2426 = vrot.slane %v2359, 2
        %v2427 = vrot.slane %v2360, 2
        %v2428 = vsel %vm736, %v2426, %v2427
        %v2429 = vrot.slane %v2414, 2
        %v2430 = vsel %vm736, %v2427, %v2429
        %v2435 = vadd.f32 %v2397, %v2083
        %v2436 = vadd.f32 %v2398, %v2085
        %v2437 = vadd.f32 %v2399, %v2088
        %v2438 = vadd.f32 %v2400, %v2090
        %v2439 = vadd.f32 %v2401, %v2093
        %v2440 = vadd.f32 %v2402, %v2095
        %v2441 = vadd.f32 %v2403, %v2098
        %v2442 = vadd.f32 %v2404, %v2100
        %v2443 = vadd.f32 %v2405, %v2103
        %v2444 = vadd.f32 %v2406, %v2105
        %v2445 = vadd.f32 %v2407, %v2108
        %v2446 = vadd.f32 %v2408, %v2110
        %v2447 = vadd.f32 %v2409, %v2423
        %v2448 = vadd.f32 %v2410, %v2425
        %v2449 = vadd.f32 %v2411, %v2428
        %v2450 = vadd.f32 %v2412, %v2430
        %2451 = vst.msk [vmem:[%s255] sm:$0xff] %vm370, %v2435
        %2452 = vst.msk [vmem:[%s255 + $0x8] sm:$0xff] %vm370, %v2436
        %2453 = vst.msk [vmem:[%s255 + $0x10] sm:$0xff] %vm370, %v2437
        %2454 = vst.msk [vmem:[%s255 + $0x18] sm:$0xff] %vm370, %v2438
        %2455 = vst.msk [vmem:[%s255 + $0x20] sm:$0xff] %vm370, %v2439
        %2456 = vst.msk [vmem:[%s255 + $0x28] sm:$0xff] %vm370, %v2440
        %2457 = vst.msk [vmem:[%s255 + $0x30] sm:$0xff] %vm370, %v2441
        %2458 = vst.msk [vmem:[%s255 + $0x38] sm:$0xff] %vm370, %v2442
        %2459 = vst.msk [vmem:[%s255 + $0x40] sm:$0xff] %vm370, %v2443
        %2460 = vst.msk [vmem:[%s255 + $0x48] sm:$0xff] %vm370, %v2444
        %2461 = vst.msk [vmem:[%s255 + $0x50] sm:$0xff] %vm370, %v2445
        %2462 = vst.msk [vmem:[%s255 + $0x58] sm:$0xff] %vm370, %v2446
        %2463 = vst.msk [vmem:[%s255 + $0x60] sm:$0xff] %vm370, %v2447
        %2464 = vst.msk [vmem:[%s255 + $0x68] sm:$0xff] %vm370, %v2448
        %2465 = vst.msk [vmem:[%s255 + $0x70] sm:$0xff] %vm370, %v2449
        %2466 = vst.msk [vmem:[%s255 + $0x78] sm:$0xff] %vm370, %v2450
      $region40: #{forward.6} parent=31 // pred_fallthru
        _
      %p2467 = scmp.lt.s32.totalorder %s19, 1
      %s2468 = scalar_select %p2467, %s19, 1
      %p2469 = scmp.lt.s32.totalorder %s20, 0
      %s2470 = scalar_select %p2469, %s20, 0
      %s2471 = smul.addr %s2468, 16
      %s2472 = sadd.s32 %s2470, %s2471
      %s2473 = smul.addr %s2472, 8
      %s2474 = scalar_lea.vmem %s3, %s2473
      // Predicated region
      $region41: #{forward.6} parent=31 // pred_check
        %p2475 = pneg %p135
      $region42: #{forward.6} parent=31 // pred_check_branch
        %2477 = sbr.rel (%p2475) target = $region44
      $region43: #{forward.6} parent=31 // pred_region
        _
      $region44: #{forward.6} parent=31 // pred_fallthru
        _
    $region32: #{forward.6} parent=5 // pred_fallthru
      _
    %p2478 = scmp.le.s32.totalorder 2, %s9
    // Predicated region
    $region45: #{forward.6} parent=5 // pred_check
      %p2479 = pneg %p2478
    $region46: #{forward.6} parent=5 // pred_check_branch
      %2481 = sbr.rel (%p2479) target = $region48
    $region47: #{forward.6} parent=5 // pred_region
      %s2482 = ssub.s32 %s9, 2
      // Predicated region
      $region49: #{forward.6} parent=47 // pred_check
        %p2483 = pneg %p141
      $region50: #{forward.6} parent=47 // pred_check_branch
        %2485 = sbr.rel (%p2483) target = $region52
      $region51: #{forward.6} parent=47 // pred_region
        %p2486 = scmp.lt.s32.totalorder %s22, 1
        %s2487 = scalar_select %p2486, %s22, 1
        %p2488 = scmp.lt.s32.totalorder %s23, 0
        %s2489 = scalar_select %p2488, %s23, 0
        %s2490 = smul.addr %s2487, 16
        %s2491 = sadd.s32 %s2489, %s2490
        %s2492 = smul.addr %s2491, 8
        %s2493 = scalar_lea.vmem %s3, %s2492
      $region52: #{forward.6} parent=47 // pred_fallthru
        _
    $region48: #{forward.6} parent=5 // pred_fallthru
      _
  $region6: #{forward.6} parent=0 // loop_footer
    %s13 = sadd.s32 1, %s9
  $region7: #{forward.6} parent=0 // loop_footer_branch
    %8 = sbr.rel target = $region3
  $region8: #{forward.6} parent=0 // loop_exit
    _

// kernel: forward.8
$region0: #{forward.8}
  #allocation0 [shape = 'u32[]', space=smem, size = 0x4, offset = 0x4, fixed_abs, tag = 'smem constant byte address 0x4 - core index']
  #allocation1 [shape = 'u32[144,128]{1,0:T(1,128)}', space=vmem, size = 0x12000, scoped, tag = 'internal scratch']
  #allocation2 [shape = 'f32[32,32]{1,0:T(8,128)}', space=vmem, size = 0x4000, scoped, tag = 'scratch operand']
  %s0 = inlined_call_operand.vmem [shape: f32[2,6,10,32], index: 0, kind: input, shape index: {}]
  %s1 = inlined_call_operand.vmem [shape: f32[3,3,32,32], index: 1, kind: input, shape index: {}]
  %s2 = inlined_call_operand.vmem [shape: f32[1,32], index: 2, kind: input, shape index: {}]
  %s3 = inlined_call_operand.vmem [shape: f32[2,4,8,32], index: 3, kind: output, shape index: {}]
  %s4 = sld [smem:[#allocation0]]
  $region53: #{forward.8} parent=0
    _
  %s6 = ssub.s32 1, %s4
  %s7 = scalar_select 0, %s6, %s4
  loop: start=0, step=1, limit=4
  $region2: #{forward.8} parent=0 // loop_pre_header
    _
  $region3: #{forward.8} parent=0 // loop_header
    %s9 = sphi 0, %s13
    %p10 = scmp.ge.s32.totalorder %s9, 4
    %s16 = sphi 0, %s35
    %s17 = sphi 0, %s31
    %s18 = sphi 0, %s27
    %s19 = sphi 0, %s16
    %s20 = sphi 0, %s17
    %s21 = sphi 0, %s18
    %s22 = sphi 0, %s19
    %s23 = sphi 0, %s20
    %s24 = sphi 0, %s21
    %s40 = sphi 0, %s42
    %s43 = sphi 0, %s40
    %s44 = sphi 0, %s43
    %s60 = sphi 0, %s44
    %s68 = sphi 0, %s70
    %s71 = sphi 0, %s68
    %s72 = sphi 0, %s71
    %s88 = sphi 0, %s72
    %s94 = sphi 0, %s96
    %s97 = sphi 0, %s94
    %s98 = sphi 0, %s97
    %s114 = sphi 0, %s98
    %s122 = sphi 0, %s124
    %s125 = sphi 0, %s122
    %s126 = sphi 0, %s125
    %s142 = sphi 0, %s126
  $region4: #{forward.8} parent=0 // loop_header_branch
    %12 = sbr.rel (%p10) target = $region8
  $region5: #{forward.8} parent=0 // loop_body
    %s14 = ssub.s32 %s9, 1
    %s15 = ssub.s32 %s9, 2
    %s25 = sadd.s32 1, %s18
    %p26 = scmp.ge.s32.totalorder %s25, 1
    %s27 = scalar_select %p26, 0, %s25
    %s28 = sadd.s32 1, %s17
    %s29 = scalar_select %p26, %s28, %s17
    %p30 = scmp.ge.s32.totalorder %s29, 1
    %s31 = scalar_select %p30, 0, %s29
    %s32 = sadd.s32 1, %s16
    %s33 = scalar_select %p30, %s32, %s16
    %p34 = scmp.ge.s32.totalorder %s33, 2
    %s35 = scalar_select %p34, 0, %s33
    %s36 = ssub.s32 %s16, %s35
    %s37 = ssub.s32 %s18, %s27
    %s38 = sor.u32 %s36, %s37
    %p39 = scmp.eq.s32.totalorder %s38, 0
    %s41 = sadd.s32 %s40, 1
    %s42 = scalar_select %p39, %s40, %s41
    %p45 = pneg %p39
    %p46 = scmp.eq.s32.totalorder %s9, 1
    %p47 = por %p45, %p46
    %p48 = scmp.ne.s32.totalorder %s40, %s43
    %p49 = scmp.eq.s32.totalorder %s9, 0
    %p50 = por %p48, %p49
    %p51 = scmp.ne.s32.totalorder %s40, %s43
    %p52 = scmp.eq.s32.totalorder %s14, 1
    %p53 = por %p51, %p52
    %p54 = scmp.ne.s32.totalorder %s43, %s44
    %p55 = scmp.eq.s32.totalorder %s14, 0
    %p56 = por %p54, %p55
    %p57 = scmp.ne.s32.totalorder %s43, %s44
    %p58 = scmp.eq.s32.totalorder %s15, 1
    %p59 = por %p57, %p58
    %p61 = scmp.ne.s32.totalorder %s44, %s60
    %p62 = scmp.eq.s32.totalorder %s15, 0
    %p63 = por %p61, %p62
    %s64 = ssub.s32 %s18, %s27
    %s65 = ssub.s32 %s17, %s31
    %s66 = sor.u32 %s64, %s65
    %p67 = scmp.eq.s32.totalorder %s66, 0
    %s69 = sadd.s32 %s68, 1
    %s70 = scalar_select %p67, %s68, %s69
    %p73 = pneg %p67
    %p74 = scmp.eq.s32.totalorder %s9, 1
    %p75 = por %p73, %p74
    %p76 = scmp.ne.s32.totalorder %s68, %s71
    %p77 = scmp.eq.s32.totalorder %s9, 0
    %p78 = por %p76, %p77
    %p79 = scmp.ne.s32.totalorder %s68, %s71
    %p80 = scmp.eq.s32.totalorder %s14, 1
    %p81 = por %p79, %p80
    %p82 = scmp.ne.s32.totalorder %s71, %s72
    %p83 = scmp.eq.s32.totalorder %s14, 0
    %p84 = por %p82, %p83
    %p85 = scmp.ne.s32.totalorder %s71, %s72
    %p86 = scmp.eq.s32.totalorder %s15, 1
    %p87 = por %p85, %p86
    %p89 = scmp.ne.s32.totalorder %s72, %s88
    %p90 = scmp.eq.s32.totalorder %s15, 0
    %p91 = por %p89, %p90
    %s92 = ssub.s32 %s17, %s31
    %p93 = scmp.eq.s32.totalorder %s92, 0
    %s95 = sadd.s32 %s94, 1
    %s96 = scalar_select %p93, %s94, %s95
    %p99 = pneg %p93
    %p100 = scmp.eq.s32.totalorder %s9, 1
    %p101 = por %p99, %p100
    %p102 = scmp.ne.s32.totalorder %s94, %s97
    %p103 = scmp.eq.s32.totalorder %s9, 0
    %p104 = por %p102, %p103
    %p105 = scmp.ne.s32.totalorder %s94, %s97
    %p106 = scmp.eq.s32.totalorder %s14, 1
    %p107 = por %p105, %p106
    %p108 = scmp.ne.s32.totalorder %s97, %s98
    %p109 = scmp.eq.s32.totalorder %s14, 0
    %p110 = por %p108, %p109
    %p111 = scmp.ne.s32.totalorder %s97, %s98
    %p112 = scmp.eq.s32.totalorder %s15, 1
    %p113 = por %p111, %p112
    %p115 = scmp.ne.s32.totalorder %s98, %s114
    %p116 = scmp.eq.s32.totalorder %s15, 0
    %p117 = por %p115, %p116
    %s118 = ssub.s32 %s16, %s35
    %s119 = ssub.s32 %s17, %s31
    %s120 = sor.u32 %s118, %s119
    %p121 = scmp.eq.s32.totalorder %s120, 0
    %s123 = sadd.s32 %s122, 1
    %s124 = scalar_select %p121, %s122, %s123
    %p127 = pneg %p121
    %p128 = scmp.eq.s32.totalorder %s9, 1
    %p129 = por %p127, %p128
    %p130 = scmp.ne.s32.totalorder %s122, %s125
    %p131 = scmp.eq.s32.totalorder %s9, 0
    %p132 = por %p130, %p131
    %p133 = scmp.ne.s32.totalorder %s122, %s125
    %p134 = scmp.eq.s32.totalorder %s14, 1
    %p135 = por %p133, %p134
    %p136 = scmp.ne.s32.totalorder %s125, %s126
    %p137 = scmp.eq.s32.totalorder %s14, 0
    %p138 = por %p136, %p137
    %p139 = scmp.ne.s32.totalorder %s125, %s126
    %p140 = scmp.eq.s32.totalorder %s15, 1
    %p141 = por %p139, %p140
    %p143 = scmp.ne.s32.totalorder %s126, %s142
    %p144 = scmp.eq.s32.totalorder %s15, 0
    %p145 = por %p143, %p144
    %p146 = scmp.le.s32.totalorder 1, %s9
    %p147 = scmp.lt.s32.totalorder %s9, 3
    %p148 = pnand %p146, %p147
    %p149 = pneg %p148
    // Predicated region
    $region9: #{forward.8} parent=5 // pred_check
      _
    $region10: #{forward.8} parent=5 // pred_check_branch
      %151 = sbr.rel (%p148) target = $region12
    $region11: #{forward.8} parent=5 // pred_region
      %s152 = ssub.s32 %s9, 1
      // Predicated region
      $region13: #{forward.8} parent=11 // pred_check
        %p153 = pneg %p84
      $region14: #{forward.8} parent=11 // pred_check_branch
        %155 = sbr.rel (%p153) target = $region16
      $region15: #{forward.8} parent=11 // pred_region
        %s156 = smul.u32 4, %s21
        %p157 = scmp.lt.s32.totalorder %s156, 3
        %s158 = scalar_select %p157, %s156, 3
        %p159 = scmp.lt.s32.totalorder %s20, 0
        %s160 = scalar_select %p159, %s20, 0
        %s161 = sadd.s32 %s160, %s158
        %s162 = smul.addr %s161, 8
        %s163 = scalar_lea.vmem %s1, %s162
        %s164 = smul.u32 4, %s21
      $region16: #{forward.8} parent=11 // pred_fallthru
        _
      // Predicated region
      $region17: #{forward.8} parent=11 // pred_check
        %p165 = pneg %p110
      $region18: #{forward.8} parent=11 // pred_check_branch
        %167 = sbr.rel (%p165) target = $region20
      $region19: #{forward.8} parent=11 // pred_region
        %p168 = scmp.lt.s32.totalorder %s20, 0
        %s169 = scalar_select %p168, %s20, 0
        %s170 = scalar_lea.vmem %s2, %s169
      $region20: #{forward.8} parent=11 // pred_fallthru
        _
    $region12: #{forward.8} parent=5 // pred_fallthru
      _
    %p171 = scmp.lt.s32.totalorder %s9, 2
    // Predicated region
    $region21: #{forward.8} parent=5 // pred_check
      %p172 = pneg %p171
    $region22: #{forward.8} parent=5 // pred_check_branch
      %174 = sbr.rel (%p172) target = $region24
    $region23: #{forward.8} parent=5 // pred_region
      // Predicated region
      $region25: #{forward.8} parent=23 // pred_check
        %p175 = pneg %p50
      $region26: #{forward.8} parent=23 // pred_check_branch
        %177 = sbr.rel (%p175) target = $region28
      $region27: #{forward.8} parent=23 // pred_region
        %p178 = scmp.lt.s32.totalorder %s16, 1
        %s179 = scalar_select %p178, %s16, 1
        %p180 = scmp.lt.s32.totalorder %s18, 0
        %s181 = scalar_select %p180, %s18, 0
        %s182 = smul.addr %s179, 12
        %s183 = sadd.s32 %s181, %s182
        %s184 = smul.addr %s183, 8
        %s185 = scalar_lea.vmem %s0, %s184
      $region28: #{forward.8} parent=23 // pred_fallthru
        _
    $region24: #{forward.8} parent=5 // pred_fallthru
      _
    %p186 = scmp.le.s32.totalorder 1, %s9
    %p187 = scmp.lt.s32.totalorder %s9, 3
    %p188 = pnand %p186, %p187
    %p189 = pneg %p188
    // Predicated region
    $region29: #{forward.8} parent=5 // pred_check
      _
    $region30: #{forward.8} parent=5 // pred_check_branch
      %191 = sbr.rel (%p188) target = $region32
    $region31: #{forward.8} parent=5 // pred_region
      %s192 = ssub.s32 %s9, 1
      %p193 = scmp.lt.s32.totalorder %s19, 1
      %s194 = scalar_select %p193, %s19, 1
      %p195 = scmp.lt.s32.totalorder %s21, 0
      %s196 = scalar_select %p195, %s21, 0
      %s197 = smul.addr %s194, 12
      %s198 = sadd.s32 %s196, %s197
      %s199 = smul.addr %s198, 8
      %s200 = scalar_lea.vmem %s0, %s199
      %p201 = pneg %p56
      %p202 = pneg %p53
      %s203 = smul.u32 4, %s21
      %p204 = scmp.lt.s32.totalorder %s203, 3
      %s205 = scalar_select %p204, %s203, 3
      %p206 = scmp.lt.s32.totalorder %s20, 0
      %s207 = scalar_select %p206, %s20, 0
      %s208 = sadd.s32 %s207, %s205
      %s209 = smul.addr %s208, 8
      %s210 = scalar_lea.vmem %s1, %s209
      %p211 = pneg %p84
      %p212 = pneg %p81
      %p213 = scmp.lt.s32.totalorder %s20, 0
      %s214 = scalar_select %p213, %s20, 0
      %s215 = scalar_lea.vmem %s2, %s214
      %p216 = pneg %p110
      %p217 = pneg %p107
      %p218 = pneg %p138
      %p219 = pneg %p135
      %p220 = scmp.lt.s32.totalorder %s19, 1
      %s221 = scalar_select %p220, %s19, 1
      %p222 = scmp.lt.s32.totalorder %s20, 0
      %s223 = scalar_select %p222, %s20, 0
      %s224 = smul.addr %s221, 4
      %s225 = sadd.s32 %s223, %s224
      %s226 = smul.addr %s225, 8
      %s227 = scalar_lea.vmem %s3, %s226
      %p228 = scmp.lt.s32.totalorder %s19, 1
      %s229 = scalar_select %p228, %s19, 1
      %p230 = scmp.lt.s32.totalorder %s21, 0
      %s231 = scalar_select %p230, %s21, 0
      %s232 = smul.addr %s229, 12
      %s233 = sadd.s32 %s231, %s232
      %s234 = smul.addr %s233, 8
      %s235 = scalar_lea.vmem %s0, %s234
      %s236 = smul.u32 4, %s21
      %p237 = scmp.lt.s32.totalorder %s236, 3
      %s238 = scalar_select %p237, %s236, 3
      %p239 = scmp.lt.s32.totalorder %s20, 0
      %s240 = scalar_select %p239, %s20, 0
      %s241 = sadd.s32 %s240, %s238
      %s242 = smul.addr %s241, 8
      %s243 = scalar_lea.vmem %s1, %s242
      %s244 = smul.u32 4, %s21
      %p245 = scmp.lt.s32.totalorder %s20, 0
      %s246 = scalar_select %p245, %s20, 0
      %s247 = scalar_lea.vmem %s2, %s246
      %p248 = scmp.lt.s32.totalorder %s19, 1
      %s249 = scalar_select %p248, %s19, 1
      %p250 = scmp.lt.s32.totalorder %s20, 0
      %s251 = scalar_select %p250, %s20, 0
      %s252 = smul.addr %s249, 4
      %s253 = sadd.s32 %s251, %s252
      %s254 = smul.addr %s253, 8
      %s255 = scalar_lea.vmem %s3, %s254
      %p257 = scmp.eq.s32.totalorder %s21, 0
      // Predicated region
      $region33: #{forward.8} parent=31 // pred_check
        %p258 = pneg %p257
      $region34: #{forward.8} parent=31 // pred_check_branch
        %260 = sbr.rel (%p258) target = $region36
      $region35: #{forward.8} parent=31 // pred_region
        %vm261 = vcmask 261120
        %262 = vst.msk [vmem:[#allocation2] sm:$0xff] %vm261, 0.0
        %263 = vst.msk [vmem:[#allocation2 + $0x8] sm:$0xff] %vm261, 0.0
        %264 = vst.msk [vmem:[#allocation2 + $0x10] sm:$0xff] %vm261, 0.0
        %265 = vst.msk [vmem:[#allocation2 + $0x18] sm:$0xff] %vm261, 0.0
      $region36: #{forward.8} parent=31 // pred_fallthru
        _
      %v266 = vld [vmem:[%s235] sm:$0xff]
      %v267 = vld [vmem:[%s235 + $0x8] sm:$0x3]
      %v268 = vld [vmem:[%s235 + $0x10] sm:$0xff]
      %v269 = vld [vmem:[%s235 + $0x18] sm:$0x3]
      %v270 = vld [vmem:[%s235 + $0x20] sm:$0xff]
      %v271 = vld [vmem:[%s235 + $0x28] sm:$0x3]
      %v272 = vld [vmem:[%s235 + $0x30] sm:$0xff]
      %v273 = vld [vmem:[%s235 + $0x38] sm:$0x3]
      %v274 = vld [vmem:[%s235 + $0x40] sm:$0xff]
      %v275 = vld [vmem:[%s235 + $0x48] sm:$0x3]
      %v276 = vld [vmem:[%s235 + $0x50] sm:$0xff]
      %v277 = vld [vmem:[%s235 + $0x58] sm:$0x3]
      %v278 = vld [vmem:[%s243] sm:$0xff]
      %v279 = vld [vmem:[%s243 + $0x8] sm:$0xff]
      %v280 = vld [vmem:[%s243 + $0x10] sm:$0xff]
      %v281 = vld [vmem:[%s243 + $0x18] sm:$0xff]
      %v282 = vld [vmem:[%s243 + $0x20] sm:$0xff]
      %v283 = vld [vmem:[%s243 + $0x28] sm:$0xff]
      %v284 = vld [vmem:[%s243 + $0x30] sm:$0xff]
      %v285 = vld [vmem:[%s243 + $0x38] sm:$0xff]
      %v286 = vld [vmem:[%s243 + $0x40] sm:$0xff]
      %v287 = vld [vmem:[%s243 + $0x48] sm:$0xff]
      %v288 = vld [vmem:[%s243 + $0x50] sm:$0xff]
      %v289 = vld [vmem:[%s243 + $0x58] sm:$0xff]
      %v290 = vld [vmem:[%s243 + $0x60] sm:$0xff]
      %v291 = vld [vmem:[%s243 + $0x68] sm:$0xff]
      %v292 = vld [vmem:[%s243 + $0x70] sm:$0xff]
      %v293 = vld [vmem:[%s243 + $0x78] sm:$0xff]
      %v294 = vld [vmem:[%s243 + $0x80] sm:$0xff]
      %v295 = vld [vmem:[%s243 + $0x88] sm:$0xff]
      %v296 = vld [vmem:[%s243 + $0x90] sm:$0xff]
      %v297 = vld [vmem:[%s243 + $0x98] sm:$0xff]
      %v298 = vld [vmem:[%s243 + $0xa0] sm:$0xff]
      %v299 = vld [vmem:[%s243 + $0xa8] sm:$0xff]
      %v300 = vld [vmem:[%s243 + $0xb0] sm:$0xff]
      %v301 = vld [vmem:[%s243 + $0xb8] sm:$0xff]
      %v302 = vld [vmem:[%s243 + $0xc0] sm:$0xff]
      %v303 = vld [vmem:[%s243 + $0xc8] sm:$0xff]
      %v304 = vld [vmem:[%s243 + $0xd0] sm:$0xff]
      %v305 = vld [vmem:[%s243 + $0xd8] sm:$0xff]
      %v306 = vld [vmem:[%s243 + $0xe0] sm:$0xff]
      %v307 = vld [vmem:[%s243 + $0xe8] sm:$0xff]
      %v308 = vld [vmem:[%s243 + $0xf0] sm:$0xff]
      %v309 = vld [vmem:[%s243 + $0xf8] sm:$0xff]
      %v310 = vld [vmem:[%s243 + $0x100] sm:$0xff]
      %v311 = vld [vmem:[%s243 + $0x108] sm:$0xff]
      %v312 = vld [vmem:[%s243 + $0x110] sm:$0xff]
      %v313 = vld [vmem:[%s243 + $0x118] sm:$0xff]
      %v314 = vld [vmem:[#allocation2] sm:$0xff]
      %v315 = vld [vmem:[#allocation2 + $0x8] sm:$0xff]
      %v316 = vld [vmem:[#allocation2 + $0x10] sm:$0xff]
      %v317 = vld [vmem:[#allocation2 + $0x18] sm:$0xff]
      %v318 = vpack.c.bf16 %v268, %v266
      %v319 = vpack.c.bf16 %v272, %v270
      %v320 = vpack.c.bf16 %v279, %v278
      %v321 = vpack.c.bf16 %v281, %v280
      %vm322 = vcmask 261120
      %v324 = vsel %vm322, %v318, 0
      %v327 = vsel %vm322, %v319, 0
      %329 = vmatprep.subr.bf16.mxu0 0
      %330 = vmatpush1.bf16.msra.mxu0 %v320
      %331 = vmatprep.subr.bf16.mxu0 0
      %332 = vmatpush1.bf16.msra.mxu0 %v321
      %333 = vmatprep.subr.bf16.mxu0 0
      %334 = vmatpush1.bf16.msra.mxu0 0
      %335 = vmatprep.subr.bf16.mxu0 0
      %336 = vmatpush1.bf16.msra.mxu0 0
      %337 = vmatprep.subr.bf16.mxu0 0
      %338 = vmatpush1.bf16.msra.mxu0 0
      %339 = vmatprep.subr.bf16.mxu0 0
      %340 = vmatpush1.bf16.msra.mxu0 0
      %341 = vmatprep.subr.bf16.mxu0 0
      %342 = vmatpush1.bf16.msra.mxu0 0
      %343 = vmatprep.subr.bf16.mxu0 0
      %344 = vmatpush1.bf16.msra.mxu0 0
      %345 = vmatprep.subr.bf16.mxu0 0
      %346 = vmatpush1.bf16.msra.mxu0 0
      %347 = vmatprep.subr.bf16.mxu0 0
      %348 = vmatpush1.bf16.msra.mxu0 0
      %349 = vmatprep.subr.bf16.mxu0 0
      %350 = vmatpush1.bf16.msra.mxu0 0
      %351 = vmatprep.subr.bf16.mxu0 0
      %352 = vmatpush1.bf16.msra.mxu0 0
      %353 = vmatprep.subr.bf16.mxu0 0
      %354 = vmatpush1.bf16.msra.mxu0 0
      %355 = vmatprep.subr.bf16.mxu0 0
      %356 = vmatpush1.bf16.msra.mxu0 0
      %357 = vmatprep.subr.bf16.mxu0 0
      %358 = vmatpush1.bf16.msra.mxu0 0
      %359 = vmatprep.subr.bf16.mxu0 0
      %360 = vmatpush1.bf16.msra.mxu0 0
      %361 = vmatprep.mubr.bf16.mxu0 0
      %362 = vmatmul.mubr.bf16.gmra.mrb[0].mxu0 %v324
      %v363 = vpop.f32.mrb[0].mxu0
      %v364 = vadd.f32 0.0, %v363
      %v365 = vpop.f32.mrb[0].mxu0
      %v366 = vpop.f32.mrb[0].mxu0
      %v367 = vadd.f32 0.0, %v366
      %v368 = vpop.f32.mrb[0].mxu0
      %369 = vmatprep.mubr.bf16.mxu0 0
      %370 = vmatmul.mubr.bf16.gmra.mrb[0].mxu0 %v327
      %v371 = vpop.f32.mrb[0].mxu0
      %v372 = vadd.f32 0.0, %v371
      %v373 = vpop.f32.mrb[0].mxu0
      %v374 = vpop.f32.mrb[0].mxu0
      %v375 = vadd.f32 0.0, %v374
      %v376 = vpop.f32.mrb[0].mxu0
      %377 = vdwg.mxu0
      %v378 = vadd.f32 %v314, %v364
      %v379 = vadd.f32 %v315, %v367
      %v380 = vadd.f32 %v316, %v372
      %v381 = vadd.f32 %v317, %v375
      %vm390 = vcmask 1046528
      %v391 = vrot.slane %v266, 1
      %v392 = vrot.slane %v267, 1
      %v393 = vsel %vm390, %v391, %v392
      %v394 = vrot.slane %v268, 1
      %v395 = vrot.slane %v269, 1
      %v396 = vsel %vm390, %v394, %v395
      %v397 = vrot.slane %v270, 1
      %v398 = vrot.slane %v271, 1
      %v399 = vsel %vm390, %v397, %v398
      %v400 = vrot.slane %v272, 1
      %v401 = vrot.slane %v273, 1
      %v402 = vsel %vm390, %v400, %v401
      %v407 = vpack.c.bf16 %v396, %v393
      %v408 = vpack.c.bf16 %v402, %v399
      %v409 = vpack.c.bf16 %v283, %v282
      %v410 = vpack.c.bf16 %v285, %v284
      %v412 = vsel %vm322, %v407, 0
      %v415 = vsel %vm322, %v408, 0
      %417 = vmatprep.subr.bf16.mxu0 0
      %418 = vmatpush1.bf16.msra.mxu0 %v409
      %419 = vmatprep.subr.bf16.mxu0 0
      %420 = vmatpush1.bf16.msra.mxu0 %v410
      %421 = vmatprep.subr.bf16.mxu0 0
      %422 = vmatpush1.bf16.msra.mxu0 0
      %423 = vmatprep.subr.bf16.mxu0 0
      %424 = vmatpush1.bf16.msra.mxu0 0
      %425 = vmatprep.subr.bf16.mxu0 0
      %426 = vmatpush1.bf16.msra.mxu0 0
      %427 = vmatprep.subr.bf16.mxu0 0
      %428 = vmatpush1.bf16.msra.mxu0 0
      %429 = vmatprep.subr.bf16.mxu0 0
      %430 = vmatpush1.bf16.msra.mxu0 0
      %431 = vmatprep.subr.bf16.mxu0 0
      %432 = vmatpush1.bf16.msra.mxu0 0
      %433 = vmatprep.subr.bf16.mxu0 0
      %434 = vmatpush1.bf16.msra.mxu0 0
      %435 = vmatprep.subr.bf16.mxu0 0
      %436 = vmatpush1.bf16.msra.mxu0 0
      %437 = vmatprep.subr.bf16.mxu0 0
      %438 = vmatpush1.bf16.msra.mxu0 0
      %439 = vmatprep.subr.bf16.mxu0 0
      %440 = vmatpush1.bf16.msra.mxu0 0
      %441 = vmatprep.subr.bf16.mxu0 0
      %442 = vmatpush1.bf16.msra.mxu0 0
      %443 = vmatprep.subr.bf16.mxu0 0
      %444 = vmatpush1.bf16.msra.mxu0 0
      %445 = vmatprep.subr.bf16.mxu0 0
      %446 = vmatpush1.bf16.msra.mxu0 0
      %447 = vmatprep.subr.bf16.mxu0 0
      %448 = vmatpush1.bf16.msra.mxu0 0
      %449 = vmatprep.mubr.bf16.mxu0 0
      %450 = vmatmul.mubr.bf16.gmra.mrb[0].mxu0 %v412
      %v451 = vpop.f32.mrb[0].mxu0
      %v452 = vadd.f32 0.0, %v451
      %v453 = vpop.f32.mrb[0].mxu0
      %v454 = vpop.f32.mrb[0].mxu0
      %v455 = vadd.f32 0.0, %v454
      %v456 = vpop.f32.mrb[0].mxu0
      %457 = vmatprep.mubr.bf16.mxu0 0
      %458 = vmatmul.mubr.bf16.gmra.mrb[0].mxu0 %v415
      %v459 = vpop.f32.mrb[0].mxu0
      %v460 = vadd.f32 0.0, %v459
      %v461 = vpop.f32.mrb[0].mxu0
      %v462 = vpop.f32.mrb[0].mxu0
      %v463 = vadd.f32 0.0, %v462
      %v464 = vpop.f32.mrb[0].mxu0
      %465 = vdwg.mxu0
      %v466 = vadd.f32 %v378, %v452
      %v467 = vadd.f32 %v379, %v455
      %v468 = vadd.f32 %v380, %v460
      %v469 = vadd.f32 %v381, %v463
      %vm470 = vcmask 1045504
      %v471 = vrot.slane %v266, 2
      %v472 = vrot.slane %v267, 2
      %v473 = vsel %vm470, %v471, %v472
      %v474 = vrot.slane %v268, 2
      %v475 = vrot.slane %v269, 2
      %v476 = vsel %vm470, %v474, %v475
      %v477 = vrot.slane %v270, 2
      %v478 = vrot.slane %v271, 2
      %v479 = vsel %vm470, %v477, %v478
      %v480 = vrot.slane %v272, 2
      %v481 = vrot.slane %v273, 2
      %v482 = vsel %vm470, %v480, %v481
      %v487 = vpack.c.bf16 %v476, %v473
      %v488 = vpack.c.bf16 %v482, %v479
      %v489 = vpack.c.bf16 %v287, %v286
      %v490 = vpack.c.bf16 %v289, %v288
      %v492 = vsel %vm322, %v487, 0
      %v495 = vsel %vm322, %v488, 0
      %497 = vmatprep.subr.bf16.mxu0 0
      %498 = vmatpush1.bf16.msra.mxu0 %v489
      %499 = vmatprep.subr.bf16.mxu0 0
      %500 = vmatpush1.bf16.msra.mxu0 %v490
      %501 = vmatprep.subr.bf16.mxu0 0
      %502 = vmatpush1.bf16.msra.mxu0 0
      %503 = vmatprep.subr.bf16.mxu0 0
      %504 = vmatpush1.bf16.msra.mxu0 0
      %505 = vmatprep.subr.bf16.mxu0 0
      %506 = vmatpush1.bf16.msra.mxu0 0
      %507 = vmatprep.subr.bf16.mxu0 0
      %508 = vmatpush1.bf16.msra.mxu0 0
      %509 = vmatprep.subr.bf16.mxu0 0
      %510 = vmatpush1.bf16.msra.mxu0 0
      %511 = vmatprep.subr.bf16.mxu0 0
      %512 = vmatpush1.bf16.msra.mxu0 0
      %513 = vmatprep.subr.bf16.mxu0 0
      %514 = vmatpush1.bf16.msra.mxu0 0
      %515 = vmatprep.subr.bf16.mxu0 0
      %516 = vmatpush1.bf16.msra.mxu0 0
      %517 = vmatprep.subr.bf16.mxu0 0
      %518 = vmatpush1.bf16.msra.mxu0 0
      %519 = vmatprep.subr.bf16.mxu0 0
      %520 = vmatpush1.bf16.msra.mxu0 0
      %521 = vmatprep.subr.bf16.mxu0 0
      %522 = vmatpush1.bf16.msra.mxu0 0
      %523 = vmatprep.subr.bf16.mxu0 0
      %524 = vmatpush1.bf16.msra.mxu0 0
      %525 = vmatprep.subr.bf16.mxu0 0
      %526 = vmatpush1.bf16.msra.mxu0 0
      %527 = vmatprep.subr.bf16.mxu0 0
      %528 = vmatpush1.bf16.msra.mxu0 0
      %529 = vmatprep.mubr.bf16.mxu0 0
      %530 = vmatmul.mubr.bf16.gmra.mrb[0].mxu0 %v492
      %v531 = vpop.f32.mrb[0].mxu0
      %v532 = vadd.f32 0.0, %v531
      %v533 = vpop.f32.mrb[0].mxu0
      %v534 = vpop.f32.mrb[0].mxu0
      %v535 = vadd.f32 0.0, %v534
      %v536 = vpop.f32.mrb[0].mxu0
      %537 = vmatprep.mubr.bf16.mxu0 0
      %538 = vmatmul.mubr.bf16.gmra.mrb[0].mxu0 %v495
      %v539 = vpop.f32.mrb[0].mxu0
      %v540 = vadd.f32 0.0, %v539
      %v541 = vpop.f32.mrb[0].mxu0
      %v542 = vpop.f32.mrb[0].mxu0
      %v543 = vadd.f32 0.0, %v542
      %v544 = vpop.f32.mrb[0].mxu0
      %545 = vdwg.mxu0
      %v546 = vadd.f32 %v466, %v532
      %v547 = vadd.f32 %v467, %v535
      %v548 = vadd.f32 %v468, %v540
      %v549 = vadd.f32 %v469, %v543
      %v550 = vpack.c.bf16 %v270, %v268
      %v551 = vpack.c.bf16 %v274, %v272
      %v552 = vpack.c.bf16 %v291, %v290
      %v553 = vpack.c.bf16 %v293, %v292
      %v555 = vsel %vm322, %v550, 0
      %v558 = vsel %vm322, %v551, 0
      %560 = vmatprep.subr.bf16.mxu0 0
      %561 = vmatpush1.bf16.msra.mxu0 %v552
      %562 = vmatprep.subr.bf16.mxu0 0
      %563 = vmatpush1.bf16.msra.mxu0 %v553
      %564 = vmatprep.subr.bf16.mxu0 0
      %565 = vmatpush1.bf16.msra.mxu0 0
      %566 = vmatprep.subr.bf16.mxu0 0
      %567 = vmatpush1.bf16.msra.mxu0 0
      %568 = vmatprep.subr.bf16.mxu0 0
      %569 = vmatpush1.bf16.msra.mxu0 0
      %570 = vmatprep.subr.bf16.mxu0 0
      %571 = vmatpush1.bf16.msra.mxu0 0
      %572 = vmatprep.subr.bf16.mxu0 0
      %573 = vmatpush1.bf16.msra.mxu0 0
      %574 = vmatprep.subr.bf16.mxu0 0
      %575 = vmatpush1.bf16.msra.mxu0 0
      %576 = vmatprep.subr.bf16.mxu0 0
      %577 = vmatpush1.bf16.msra.mxu0 0
      %578 = vmatprep.subr.bf16.mxu0 0
      %579 = vmatpush1.bf16.msra.mxu0 0
      %580 = vmatprep.subr.bf16.mxu0 0
      %581 = vmatpush1.bf16.msra.mxu0 0
      %582 = vmatprep.subr.bf16.mxu0 0
      %583 = vmatpush1.bf16.msra.mxu0 0
      %584 = vmatprep.subr.bf16.mxu0 0
      %585 = vmatpush1.bf16.msra.mxu0 0
      %586 = vmatprep.subr.bf16.mxu0 0
      %587 = vmatpush1.bf16.msra.mxu0 0
      %588 = vmatprep.subr.bf16.mxu0 0
      %589 = vmatpush1.bf16.msra.mxu0 0
      %590 = vmatprep.subr.bf16.mxu0 0
      %591 = vmatpush1.bf16.msra.mxu0 0
      %592 = vmatprep.mubr.bf16.mxu0 0
      %593 = vmatmul.mubr.bf16.gmra.mrb[0].mxu0 %v555
      %v594 = vpop.f32.mrb[0].mxu0
      %v595 = vadd.f32 0.0, %v594
      %v596 = vpop.f32.mrb[0].mxu0
      %v597 = vpop.f32.mrb[0].mxu0
      %v598 = vadd.f32 0.0, %v597
      %v599 = vpop.f32.mrb[0].mxu0
      %600 = vmatprep.mubr.bf16.mxu0 0
      %601 = vmatmul.mubr.bf16.gmra.mrb[0].mxu0 %v558
      %v602 = vpop.f32.mrb[0].mxu0
      %v603 = vadd.f32 0.0, %v602
      %v604 = vpop.f32.mrb[0].mxu0
      %v605 = vpop.f32.mrb[0].mxu0
      %v606 = vadd.f32 0.0, %v605
      %v607 = vpop.f32.mrb[0].mxu0
      %608 = vdwg.mxu0
      %v609 = vadd.f32 %v546, %v595
      %v610 = vadd.f32 %v547, %v598
      %v611 = vadd.f32 %v548, %v603
      %v612 = vadd.f32 %v549, %v606
      %v615 = vrot.slane %v274, 1
      %v616 = vrot.slane %v275, 1
      %v617 = vsel %vm390, %v615, %v616
      %v619 = vpack.c.bf16 %v399, %v396
      %v620 = vpack.c.bf16 %v617, %v402
      %v621 = vpack.c.bf16 %v295, %v294
      %v622 = vpack.c.bf16 %v297, %v296
      %v624 = vsel %vm322, %v619, 0
      %v627 = vsel %vm322, %v620, 0
      %629 = vmatprep.subr.bf16.mxu0 0
      %630 = vmatpush1.bf16.msra.mxu0 %v621
      %631 = vmatprep.subr.bf16.mxu0 0
      %632 = vmatpush1.bf16.msra.mxu0 %v622
      %633 = vmatprep.subr.bf16.mxu0 0
      %634 = vmatpush1.bf16.msra.mxu0 0
      %635 = vmatprep.subr.bf16.mxu0 0
      %636 = vmatpush1.bf16.msra.mxu0 0
      %637 = vmatprep.subr.bf16.mxu0 0
      %638 = vmatpush1.bf16.msra.mxu0 0
      %639 = vmatprep.subr.bf16.mxu0 0
      %640 = vmatpush1.bf16.msra.mxu0 0
      %641 = vmatprep.subr.bf16.mxu0 0
      %642 = vmatpush1.bf16.msra.mxu0 0
      %643 = vmatprep.subr.bf16.mxu0 0
      %644 = vmatpush1.bf16.msra.mxu0 0
      %645 = vmatprep.subr.bf16.mxu0 0
      %646 = vmatpush1.bf16.msra.mxu0 0
      %647 = vmatprep.subr.bf16.mxu0 0
      %648 = vmatpush1.bf16.msra.mxu0 0
      %649 = vmatprep.subr.bf16.mxu0 0
      %650 = vmatpush1.bf16.msra.mxu0 0
      %651 = vmatprep.subr.bf16.mxu0 0
      %652 = vmatpush1.bf16.msra.mxu0 0
      %653 = vmatprep.subr.bf16.mxu0 0
      %654 = vmatpush1.bf16.msra.mxu0 0
      %655 = vmatprep.subr.bf16.mxu0 0
      %656 = vmatpush1.bf16.msra.mxu0 0
      %657 = vmatprep.subr.bf16.mxu0 0
      %658 = vmatpush1.bf16.msra.mxu0 0
      %659 = vmatprep.subr.bf16.mxu0 0
      %660 = vmatpush1.bf16.msra.mxu0 0
      %661 = vmatprep.mubr.bf16.mxu0 0
      %662 = vmatmul.mubr.bf16.gmra.mrb[0].mxu0 %v624
      %v663 = vpop.f32.mrb[0].mxu0
      %v664 = vadd.f32 0.0, %v663
      %v665 = vpop.f32.mrb[0].mxu0
      %v666 = vpop.f32.mrb[0].mxu0
      %v667 = vadd.f32 0.0, %v666
      %v668 = vpop.f32.mrb[0].mxu0
      %669 = vmatprep.mubr.bf16.mxu0 0
      %670 = vmatmul.mubr.bf16.gmra.mrb[0].mxu0 %v627
      %v671 = vpop.f32.mrb[0].mxu0
      %v672 = vadd.f32 0.0, %v671
      %v673 = vpop.f32.mrb[0].mxu0
      %v674 = vpop.f32.mrb[0].mxu0
      %v675 = vadd.f32 0.0, %v674
      %v676 = vpop.f32.mrb[0].mxu0
      %677 = vdwg.mxu0
      %v678 = vadd.f32 %v609, %v664
      %v679 = vadd.f32 %v610, %v667
      %v680 = vadd.f32 %v611, %v672
      %v681 = vadd.f32 %v612, %v675
      %v682 = vrot.slane %v274, 2
      %v683 = vrot.slane %v275, 2
      %v684 = vsel %vm470, %v682, %v683
      %v686 = vpack.c.bf16 %v479, %v476
      %v687 = vpack.c.bf16 %v684, %v482
      %v688 = vpack.c.bf16 %v299, %v298
      %v689 = vpack.c.bf16 %v301, %v300
      %v691 = vsel %vm322, %v686, 0
      %v694 = vsel %vm322, %v687, 0
      %696 = vmatprep.subr.bf16.mxu0 0
      %697 = vmatpush1.bf16.msra.mxu0 %v688
      %698 = vmatprep.subr.bf16.mxu0 0
      %699 = vmatpush1.bf16.msra.mxu0 %v689
      %700 = vmatprep.subr.bf16.mxu0 0
      %701 = vmatpush1.bf16.msra.mxu0 0
      %702 = vmatprep.subr.bf16.mxu0 0
      %703 = vmatpush1.bf16.msra.mxu0 0
      %704 = vmatprep.subr.bf16.mxu0 0
      %705 = vmatpush1.bf16.msra.mxu0 0
      %706 = vmatprep.subr.bf16.mxu0 0
      %707 = vmatpush1.bf16.msra.mxu0 0
      %708 = vmatprep.subr.bf16.mxu0 0
      %709 = vmatpush1.bf16.msra.mxu0 0
      %710 = vmatprep.subr.bf16.mxu0 0
      %711 = vmatpush1.bf16.msra.mxu0 0
      %712 = vmatprep.subr.bf16.mxu0 0
      %713 = vmatpush1.bf16.msra.mxu0 0
      %714 = vmatprep.subr.bf16.mxu0 0
      %715 = vmatpush1.bf16.msra.mxu0 0
      %716 = vmatprep.subr.bf16.mxu0 0
      %717 = vmatpush1.bf16.msra.mxu0 0
      %718 = vmatprep.subr.bf16.mxu0 0
      %719 = vmatpush1.bf16.msra.mxu0 0
      %720 = vmatprep.subr.bf16.mxu0 0
      %721 = vmatpush1.bf16.msra.mxu0 0
      %722 = vmatprep.subr.bf16.mxu0 0
      %723 = vmatpush1.bf16.msra.mxu0 0
      %724 = vmatprep.subr.bf16.mxu0 0
      %725 = vmatpush1.bf16.msra.mxu0 0
      %726 = vmatprep.subr.bf16.mxu0 0
      %727 = vmatpush1.bf16.msra.mxu0 0
      %728 = vmatprep.mubr.bf16.mxu0 0
      %729 = vmatmul.mubr.bf16.gmra.mrb[0].mxu0 %v691
      %v730 = vpop.f32.mrb[0].mxu0
      %v731 = vadd.f32 0.0, %v730
      %v732 = vpop.f32.mrb[0].mxu0
      %v733 = vpop.f32.mrb[0].mxu0
      %v734 = vadd.f32 0.0, %v733
      %v735 = vpop.f32.mrb[0].mxu0
      %736 = vmatprep.mubr.bf16.mxu0 0
      %737 = vmatmul.mubr.bf16.gmra.mrb[0].mxu0 %v694
      %v738 = vpop.f32.mrb[0].mxu0
      %v739 = vadd.f32 0.0, %v738
      %v740 = vpop.f32.mrb[0].mxu0
      %v741 = vpop.f32.mrb[0].mxu0
      %v742 = vadd.f32 0.0, %v741
      %v743 = vpop.f32.mrb[0].mxu0
      %744 = vdwg.mxu0
      %v745 = vadd.f32 %v678, %v731
      %v746 = vadd.f32 %v679, %v734
      %v747 = vadd.f32 %v680, %v739
      %v748 = vadd.f32 %v681, %v742
      %v749 = vpack.c.bf16 %v276, %v274
      %v750 = vpack.c.bf16 %v303, %v302
      %v751 = vpack.c.bf16 %v305, %v304
      %v753 = vsel %vm322, %v749, 0
      %755 = vmatprep.subr.bf16.mxu0 0
      %756 = vmatpush1.bf16.msra.mxu0 %v750
      %757 = vmatprep.subr.bf16.mxu0 0
      %758 = vmatpush1.bf16.msra.mxu0 %v751
      %759 = vmatprep.subr.bf16.mxu0 0
      %760 = vmatpush1.bf16.msra.mxu0 0
      %761 = vmatprep.subr.bf16.mxu0 0
      %762 = vmatpush1.bf16.msra.mxu0 0
      %763 = vmatprep.subr.bf16.mxu0 0
      %764 = vmatpush1.bf16.msra.mxu0 0
      %765 = vmatprep.subr.bf16.mxu0 0
      %766 = vmatpush1.bf16.msra.mxu0 0
      %767 = vmatprep.subr.bf16.mxu0 0
      %768 = vmatpush1.bf16.msra.mxu0 0
      %769 = vmatprep.subr.bf16.mxu0 0
      %770 = vmatpush1.bf16.msra.mxu0 0
      %771 = vmatprep.subr.bf16.mxu0 0
      %772 = vmatpush1.bf16.msra.mxu0 0
      %773 = vmatprep.subr.bf16.mxu0 0
      %774 = vmatpush1.bf16.msra.mxu0 0
      %775 = vmatprep.subr.bf16.mxu0 0
      %776 = vmatpush1.bf16.msra.mxu0 0
      %777 = vmatprep.subr.bf16.mxu0 0
      %778 = vmatpush1.bf16.msra.mxu0 0
      %779 = vmatprep.subr.bf16.mxu0 0
      %780 = vmatpush1.bf16.msra.mxu0 0
      %781 = vmatprep.subr.bf16.mxu0 0
      %782 = vmatpush1.bf16.msra.mxu0 0
      %783 = vmatprep.subr.bf16.mxu0 0
      %784 = vmatpush1.bf16.msra.mxu0 0
      %785 = vmatprep.subr.bf16.mxu0 0
      %786 = vmatpush1.bf16.msra.mxu0 0
      %787 = vmatprep.mubr.bf16.mxu0 0
      %788 = vmatmul.mubr.bf16.gmra.mrb[0].mxu0 %v327
      %v789 = vpop.f32.mrb[0].mxu0
      %v790 = vadd.f32 0.0, %v789
      %v791 = vpop.f32.mrb[0].mxu0
      %v792 = vpop.f32.mrb[0].mxu0
      %v793 = vadd.f32 0.0, %v792
      %v794 = vpop.f32.mrb[0].mxu0
      %795 = vmatprep.mubr.bf16.mxu0 0
      %796 = vmatmul.mubr.bf16.gmra.mrb[0].mxu0 %v753
      %v797 = vpop.f32.mrb[0].mxu0
      %v798 = vadd.f32 0.0, %v797
      %v799 = vpop.f32.mrb[0].mxu0
      %v800 = vpop.f32.mrb[0].mxu0
      %v801 = vadd.f32 0.0, %v800
      %v802 = vpop.f32.mrb[0].mxu0
      %803 = vdwg.mxu0
      %v804 = vadd.f32 %v745, %v790
      %v805 = vadd.f32 %v746, %v793
      %v806 = vadd.f32 %v747, %v798
      %v807 = vadd.f32 %v748, %v801
      %v810 = vrot.slane %v276, 1
      %v811 = vrot.slane %v277, 1
      %v812 = vsel %vm390, %v810, %v811
      %v814 = vpack.c.bf16 %v812, %v617
      %v815 = vpack.c.bf16 %v307, %v306
      %v816 = vpack.c.bf16 %v309, %v308
      %v818 = vsel %vm322, %v814, 0
      %820 = vmatprep.subr.bf16.mxu0 0
      %821 = vmatpush1.bf16.msra.mxu0 %v815
      %822 = vmatprep.subr.bf16.mxu0 0
      %823 = vmatpush1.bf16.msra.mxu0 %v816
      %824 = vmatprep.subr.bf16.mxu0 0
      %825 = vmatpush1.bf16.msra.mxu0 0
      %826 = vmatprep.subr.bf16.mxu0 0
      %827 = vmatpush1.bf16.msra.mxu0 0
      %828 = vmatprep.subr.bf16.mxu0 0
      %829 = vmatpush1.bf16.msra.mxu0 0
      %830 = vmatprep.subr.bf16.mxu0 0
      %831 = vmatpush1.bf16.msra.mxu0 0
      %832 = vmatprep.subr.bf16.mxu0 0
      %833 = vmatpush1.bf16.msra.mxu0 0
      %834 = vmatprep.subr.bf16.mxu0 0
      %835 = vmatpush1.bf16.msra.mxu0 0
      %836 = vmatprep.subr.bf16.mxu0 0
      %837 = vmatpush1.bf16.msra.mxu0 0
      %838 = vmatprep.subr.bf16.mxu0 0
      %839 = vmatpush1.bf16.msra.mxu0 0
      %840 = vmatprep.subr.bf16.mxu0 0
      %841 = vmatpush1.bf16.msra.mxu0 0
      %842 = vmatprep.subr.bf16.mxu0 0
      %843 = vmatpush1.bf16.msra.mxu0 0
      %844 = vmatprep.subr.bf16.mxu0 0
      %845 = vmatpush1.bf16.msra.mxu0 0
      %846 = vmatprep.subr.bf16.mxu0 0
      %847 = vmatpush1.bf16.msra.mxu0 0
      %848 = vmatprep.subr.bf16.mxu0 0
      %849 = vmatpush1.bf16.msra.mxu0 0
      %850 = vmatprep.subr.bf16.mxu0 0
      %851 = vmatpush1.bf16.msra.mxu0 0
      %852 = vmatprep.mubr.bf16.mxu0 0
      %853 = vmatmul.mubr.bf16.gmra.mrb[0].mxu0 %v415
      %v854 = vpop.f32.mrb[0].mxu0
      %v855 = vadd.f32 0.0, %v854
      %v856 = vpop.f32.mrb[0].mxu0
      %v857 = vpop.f32.mrb[0].mxu0
      %v858 = vadd.f32 0.0, %v857
      %v859 = vpop.f32.mrb[0].mxu0
      %860 = vmatprep.mubr.bf16.mxu0 0
      %861 = vmatmul.mubr.bf16.gmra.mrb[0].mxu0 %v818
      %v862 = vpop.f32.mrb[0].mxu0
      %v863 = vadd.f32 0.0, %v862
      %v864 = vpop.f32.mrb[0].mxu0
      %v865 = vpop.f32.mrb[0].mxu0
      %v866 = vadd.f32 0.0, %v865
      %v867 = vpop.f32.mrb[0].mxu0
      %868 = vdwg.mxu0
      %v869 = vadd.f32 %v804, %v855
      %v870 = vadd.f32 %v805, %v858
      %v871 = vadd.f32 %v806, %v863
      %v872 = vadd.f32 %v807, %v866
      %v873 = vrot.slane %v276, 2
      %v874 = vrot.slane %v277, 2
      %v875 = vsel %vm470, %v873, %v874
      %v877 = vpack.c.bf16 %v875, %v684
      %v878 = vpack.c.bf16 %v311, %v310
      %v879 = vpack.c.bf16 %v313, %v312
      %v881 = vsel %vm322, %v877, 0
      %883 = vmatprep.subr.bf16.mxu0 0
      %884 = vmatpush1.bf16.msra.mxu0 %v878
      %885 = vmatprep.subr.bf16.mxu0 0
      %886 = vmatpush1.bf16.msra.mxu0 %v879
      %887 = vmatprep.subr.bf16.mxu0 0
      %888 = vmatpush1.bf16.msra.mxu0 0
      %889 = vmatprep.subr.bf16.mxu0 0
      %890 = vmatpush1.bf16.msra.mxu0 0
      %891 = vmatprep.subr.bf16.mxu0 0
      %892 = vmatpush1.bf16.msra.mxu0 0
      %893 = vmatprep.subr.bf16.mxu0 0
      %894 = vmatpush1.bf16.msra.mxu0 0
      %895 = vmatprep.subr.bf16.mxu0 0
      %896 = vmatpush1.bf16.msra.mxu0 0
      %897 = vmatprep.subr.bf16.mxu0 0
      %898 = vmatpush1.bf16.msra.mxu0 0
      %899 = vmatprep.subr.bf16.mxu0 0
      %900 = vmatpush1.bf16.msra.mxu0 0
      %901 = vmatprep.subr.bf16.mxu0 0
      %902 = vmatpush1.bf16.msra.mxu0 0
      %903 = vmatprep.subr.bf16.mxu0 0
      %904 = vmatpush1.bf16.msra.mxu0 0
      %905 = vmatprep.subr.bf16.mxu0 0
      %906 = vmatpush1.bf16.msra.mxu0 0
      %907 = vmatprep.subr.bf16.mxu0 0
      %908 = vmatpush1.bf16.msra.mxu0 0
      %909 = vmatprep.subr.bf16.mxu0 0
      %910 = vmatpush1.bf16.msra.mxu0 0
      %911 = vmatprep.subr.bf16.mxu0 0
      %912 = vmatpush1.bf16.msra.mxu0 0
      %913 = vmatprep.subr.bf16.mxu0 0
      %914 = vmatpush1.bf16.msra.mxu0 0
      %915 = vmatprep.mubr.bf16.mxu0 0
      %916 = vmatmul.mubr.bf16.gmra.mrb[0].mxu0 %v495
      %v917 = vpop.f32.mrb[0].mxu0
      %v918 = vadd.f32 0.0, %v917
      %v919 = vpop.f32.mrb[0].mxu0
      %v920 = vpop.f32.mrb[0].mxu0
      %v921 = vadd.f32 0.0, %v920
      %v922 = vpop.f32.mrb[0].mxu0
      %923 = vmatprep.mubr.bf16.mxu0 0
      %924 = vmatmul.mubr.bf16.gmra.mrb[0].mxu0 %v881
      %v925 = vpop.f32.mrb[0].mxu0
      %v926 = vadd.f32 0.0, %v925
      %v927 = vpop.f32.mrb[0].mxu0
      %v928 = vpop.f32.mrb[0].mxu0
      %v929 = vadd.f32 0.0, %v928
      %v930 = vpop.f32.mrb[0].mxu0
      %931 = vdwg.mxu0
      %v932 = vadd.f32 %v869, %v918
      %v933 = vadd.f32 %v870, %v921
      %v934 = vadd.f32 %v871, %v926
      %v935 = vadd.f32 %v872, %v929
      %936 = vst.msk [vmem:[#allocation2] sm:$0xff] %vm322, %v932
      %937 = vst.msk [vmem:[#allocation2 + $0x8] sm:$0xff] %vm322, %v933
      %938 = vst.msk [vmem:[#allocation2 + $0x10] sm:$0xff] %vm322, %v934
      %939 = vst.msk [vmem:[#allocation2 + $0x18] sm:$0xff] %vm322, %v935
      // Predicated region
      $region37: #{forward.8} parent=31 // pred_check
        %p940 = pneg %p257
      $region38: #{forward.8} parent=31 // pred_check_branch
        %942 = sbr.rel (%p940) target = $region40
      $region39: #{forward.8} parent=31 // pred_region
        %v943 = vld [vmem:[#allocation2] sm:$0xff]
        %v944 = vld [vmem:[#allocation2 + $0x8] sm:$0xff]
        %v945 = vld [vmem:[#allocation2 + $0x10] sm:$0xff]
        %v946 = vld [vmem:[#allocation2 + $0x18] sm:$0xff]
        %v947 = vld [vmem:[%s247] sm:$0x1]
        %v949 = vlaneseq
        %v950 = vshrl.u32 %v949, 7
        %v951 = vsub.s32 0, %v950
        %v952 = vrot.slane %v947, %v951
        %v954 = vadd.f32 %v943, %v952
        %v955 = vadd.f32 %v944, %v952
        %v956 = vadd.f32 %v945, %v952
        %v957 = vadd.f32 %v946, %v952
        %vm958 = vcmp.gt.f32.partialorder %v954, 0.0
        %vm959 = vcmp.gt.f32.partialorder %v955, 0.0
        %vm960 = vcmp.gt.f32.partialorder %v956, 0.0
        %vm961 = vcmp.gt.f32.partialorder %v957, 0.0
        %v962 = vmul.f32 %v954, 0.2
        %v963 = vmul.f32 %v955, 0.2
        %v964 = vmul.f32 %v956, 0.2
        %v965 = vmul.f32 %v957, 0.2
        %v966 = vsel %vm958, %v954, %v962
        %v967 = vsel %vm959, %v955, %v963
        %v968 = vsel %vm960, %v956, %v964
        %v969 = vsel %vm961, %v957, %v965
        %970 = vst.msk [vmem:[%s255] sm:$0xff] %vm322, %v966
        %971 = vst.msk [vmem:[%s255 + $0x8] sm:$0xff] %vm322, %v967
        %972 = vst.msk [vmem:[%s255 + $0x10] sm:$0xff] %vm322, %v968
        %973 = vst.msk [vmem:[%s255 + $0x18] sm:$0xff] %vm322, %v969
      $region40: #{forward.8} parent=31 // pred_fallthru
        _
      %p974 = scmp.lt.s32.totalorder %s19, 1
      %s975 = scalar_select %p974, %s19, 1
      %p976 = scmp.lt.s32.totalorder %s20, 0
      %s977 = scalar_select %p976, %s20, 0
      %s978 = smul.addr %s975, 4
      %s979 = sadd.s32 %s977, %s978
      %s980 = smul.addr %s979, 8
      %s981 = scalar_lea.vmem %s3, %s980
      // Predicated region
      $region41: #{forward.8} parent=31 // pred_check
        %p982 = pneg %p135
      $region42: #{forward.8} parent=31 // pred_check_branch
        %984 = sbr.rel (%p982) target = $region44
      $region43: #{forward.8} parent=31 // pred_region
        _
      $region44: #{forward.8} parent=31 // pred_fallthru
        _
    $region32: #{forward.8} parent=5 // pred_fallthru
      _
    %p985 = scmp.le.s32.totalorder 2, %s9
    // Predicated region
    $region45: #{forward.8} parent=5 // pred_check
      %p986 = pneg %p985
    $region46: #{forward.8} parent=5 // pred_check_branch
      %988 = sbr.rel (%p986) target = $region48
    $region47: #{forward.8} parent=5 // pred_region
      %s989 = ssub.s32 %s9, 2
      // Predicated region
      $region49: #{forward.8} parent=47 // pred_check
        %p990 = pneg %p141
      $region50: #{forward.8} parent=47 // pred_check_branch
        %992 = sbr.rel (%p990) target = $region52
      $region51: #{forward.8} parent=47 // pred_region
        %p993 = scmp.lt.s32.totalorder %s22, 1
        %s994 = scalar_select %p993, %s22, 1
        %p995 = scmp.lt.s32.totalorder %s23, 0
        %s996 = scalar_select %p995, %s23, 0
        %s997 = smul.addr %s994, 4
        %s998 = sadd.s32 %s996, %s997
        %s999 = smul.addr %s998, 8
        %s1000 = scalar_lea.vmem %s3, %s999
      $region52: #{forward.8} parent=47 // pred_fallthru
        _
    $region48: #{forward.8} parent=5 // pred_fallthru
      _
  $region6: #{forward.8} parent=0 // loop_footer
    %s13 = sadd.s32 1, %s9
  $region7: #{forward.8} parent=0 // loop_footer_branch
    %8 = sbr.rel target = $region3
  $region8: #{forward.8} parent=0 // loop_exit
    _

// kernel: forward.9
$region0: #{forward.9}
  #allocation0 [shape = 'u32[]', space=smem, size = 0x4, offset = 0x4, fixed_abs, tag = 'smem constant byte address 0x4 - core index']
  #allocation1 [shape = 'u32[144,128]{1,0:T(1,128)}', space=vmem, size = 0x12000, scoped, tag = 'internal scratch']
  #allocation2 [shape = 'f32[32,32]{1,0:T(8,128)}', space=vmem, size = 0x4000, scoped, tag = 'scratch operand']
  %s0 = inlined_call_operand.vmem [shape: f32[2,6,10,32], index: 0, kind: input, shape index: {}]
  %s1 = inlined_call_operand.vmem [shape: f32[3,3,32,32], index: 1, kind: input, shape index: {}]
  %s2 = inlined_call_operand.vmem [shape: f32[1,32], index: 2, kind: input, shape index: {}]
  %s3 = inlined_call_operand.vmem [shape: f32[2,4,8,32], index: 3, kind: input, shape index: {}]
  %s4 = inlined_call_operand.vmem [shape: f32[1,1,32,32], index: 4, kind: input, shape index: {}]
  %s5 = inlined_call_operand.vmem [shape: f32[1,32], index: 5, kind: input, shape index: {}]
  %s6 = inlined_call_operand.hbm [shape: f32[2,4,8,32], index: 6, kind: output, shape index: {}]
  %s7 = sld [smem:[#allocation0]]
  $region65: #{forward.9} parent=0
    _
  %s9 = ssub.s32 1, %s7
  %s10 = scalar_select 0, %s9, %s7
  $region1: #{forward.9} parent=0
    #allocation3 [shape = 'u8[32768]{0}', space=vmem, size = 0x8000, scoped, tag = 'output window, operand 0']
    #allocation4 [shape = 's32[2]{0}', space=sflag, size = 0x8, scoped, tag = 'scoped memory for forward.9']
    %11 = vsyncpa [#allocation4], 0
    %s12 = scalar_lea.sflag [#allocation4], 1
    %13 = vsyncpa %s12, 0
    loop: start=0, step=1, limit=4
    $region2: #{forward.9} parent=1 // loop_pre_header
      _
    $region3: #{forward.9} parent=1 // loop_header
      %s15 = sphi 0, %s19
      %p16 = scmp.ge.s32.totalorder %s15, 4
      %s22 = sphi 0, %s41
      %s23 = sphi 0, %s37
      %s24 = sphi 0, %s33
      %s25 = sphi 0, %s22
      %s26 = sphi 0, %s23
      %s27 = sphi 0, %s24
      %s28 = sphi 0, %s25
      %s29 = sphi 0, %s26
      %s30 = sphi 0, %s27
      %s46 = sphi 0, %s48
      %s49 = sphi 0, %s46
      %s50 = sphi 0, %s49
      %s66 = sphi 0, %s50
      %s74 = sphi 0, %s76
      %s77 = sphi 0, %s74
      %s78 = sphi 0, %s77
      %s94 = sphi 0, %s78
      %s100 = sphi 0, %s102
      %s103 = sphi 0, %s100
      %s104 = sphi 0, %s103
      %s120 = sphi 0, %s104
      %s126 = sphi 0, %s128
      %s129 = sphi 0, %s126
      %s130 = sphi 0, %s129
      %s146 = sphi 0, %s130
      %s152 = sphi 0, %s154
      %s155 = sphi 0, %s152
      %s156 = sphi 0, %s155
      %s172 = sphi 0, %s156
      %s178 = sphi 0, %s180
      %s181 = sphi 0, %s178
      %s182 = sphi 0, %s181
      %s198 = sphi 0, %s182
      %s206 = sphi 0, %s208
      %s209 = sphi 0, %s206
      %s210 = sphi 0, %s209
      %s226 = sphi 0, %s210
    $region4: #{forward.9} parent=1 // loop_header_branch
      %18 = sbr.rel (%p16) target = $region8
    $region5: #{forward.9} parent=1 // loop_body
      %s20 = ssub.s32 %s15, 1
      %s21 = ssub.s32 %s15, 2
      %s31 = sadd.s32 1, %s24
      %p32 = scmp.ge.s32.totalorder %s31, 1
      %s33 = scalar_select %p32, 0, %s31
      %s34 = sadd.s32 1, %s23
      %s35 = scalar_select %p32, %s34, %s23
      %p36 = scmp.ge.s32.totalorder %s35, 1
      %s37 = scalar_select %p36, 0, %s35
      %s38 = sadd.s32 1, %s22
      %s39 = scalar_select %p36, %s38, %s22
      %p40 = scmp.ge.s32.totalorder %s39, 2
      %s41 = scalar_select %p40, 0, %s39
      %s42 = ssub.s32 %s22, %s41
      %s43 = ssub.s32 %s24, %s33
      %s44 = sor.u32 %s42, %s43
      %p45 = scmp.eq.s32.totalorder %s44, 0
      %s47 = sadd.s32 %s46, 1
      %s48 = scalar_select %p45, %s46, %s47
      %p51 = pneg %p45
      %p52 = scmp.eq.s32.totalorder %s15, 1
      %p53 = por %p51, %p52
      %p54 = scmp.ne.s32.totalorder %s46, %s49
      %p55 = scmp.eq.s32.totalorder %s15, 0
      %p56 = por %p54, %p55
      %p57 = scmp.ne.s32.totalorder %s46, %s49
      %p58 = scmp.eq.s32.totalorder %s20, 1
      %p59 = por %p57, %p58
      %p60 = scmp.ne.s32.totalorder %s49, %s50
      %p61 = scmp.eq.s32.totalorder %s20, 0
      %p62 = por %p60, %p61
      %p63 = scmp.ne.s32.totalorder %s49, %s50
      %p64 = scmp.eq.s32.totalorder %s21, 1
      %p65 = por %p63, %p64
      %p67 = scmp.ne.s32.totalorder %s50, %s66
      %p68 = scmp.eq.s32.totalorder %s21, 0
      %p69 = por %p67, %p68
      %s70 = ssub.s32 %s24, %s33
      %s71 = ssub.s32 %s23, %s37
      %s72 = sor.u32 %s70, %s71
      %p73 = scmp.eq.s32.totalorder %s72, 0
      %s75 = sadd.s32 %s74, 1
      %s76 = scalar_select %p73, %s74, %s75
      %p79 = pneg %p73
      %p80 = scmp.eq.s32.totalorder %s15, 1
      %p81 = por %p79, %p80
      %p82 = scmp.ne.s32.totalorder %s74, %s77
      %p83 = scmp.eq.s32.totalorder %s15, 0
      %p84 = por %p82, %p83
      %p85 = scmp.ne.s32.totalorder %s74, %s77
      %p86 = scmp.eq.s32.totalorder %s20, 1
      %p87 = por %p85, %p86
      %p88 = scmp.ne.s32.totalorder %s77, %s78
      %p89 = scmp.eq.s32.totalorder %s20, 0
      %p90 = por %p88, %p89
      %p91 = scmp.ne.s32.totalorder %s77, %s78
      %p92 = scmp.eq.s32.totalorder %s21, 1
      %p93 = por %p91, %p92
      %p95 = scmp.ne.s32.totalorder %s78, %s94
      %p96 = scmp.eq.s32.totalorder %s21, 0
      %p97 = por %p95, %p96
      %s98 = ssub.s32 %s23, %s37
      %p99 = scmp.eq.s32.totalorder %s98, 0
      %s101 = sadd.s32 %s100, 1
      %s102 = scalar_select %p99, %s100, %s101
      %p105 = pneg %p99
      %p106 = scmp.eq.s32.totalorder %s15, 1
      %p107 = por %p105, %p106
      %p108 = scmp.ne.s32.totalorder %s100, %s103
      %p109 = scmp.eq.s32.totalorder %s15, 0
      %p110 = por %p108, %p109
      %p111 = scmp.ne.s32.totalorder %s100, %s103
      %p112 = scmp.eq.s32.totalorder %s20, 1
      %p113 = por %p111, %p112
      %p114 = scmp.ne.s32.totalorder %s103, %s104
      %p115 = scmp.eq.s32.totalorder %s20, 0
      %p116 = por %p114, %p115
      %p117 = scmp.ne.s32.totalorder %s103, %s104
      %p118 = scmp.eq.s32.totalorder %s21, 1
      %p119 = por %p117, %p118
      %p121 = scmp.ne.s32.totalorder %s104, %s120
      %p122 = scmp.eq.s32.totalorder %s21, 0
      %p123 = por %p121, %p122
      %s124 = ssub.s32 %s22, %s41
      %p125 = scmp.eq.s32.totalorder %s124, 0
      %s127 = sadd.s32 %s126, 1
      %s128 = scalar_select %p125, %s126, %s127
      %p131 = pneg %p125
      %p132 = scmp.eq.s32.totalorder %s15, 1
      %p133 = por %p131, %p132
      %p134 = scmp.ne.s32.totalorder %s126, %s129
      %p135 = scmp.eq.s32.totalorder %s15, 0
      %p136 = por %p134, %p135
      %p137 = scmp.ne.s32.totalorder %s126, %s129
      %p138 = scmp.eq.s32.totalorder %s20, 1
      %p139 = por %p137, %p138
      %p140 = scmp.ne.s32.totalorder %s129, %s130
      %p141 = scmp.eq.s32.totalorder %s20, 0
      %p142 = por %p140, %p141
      %p143 = scmp.ne.s32.totalorder %s129, %s130
      %p144 = scmp.eq.s32.totalorder %s21, 1
      %p145 = por %p143, %p144
      %p147 = scmp.ne.s32.totalorder %s130, %s146
      %p148 = scmp.eq.s32.totalorder %s21, 0
      %p149 = por %p147, %p148
      %s150 = ssub.s32 %s23, %s37
      %p151 = scmp.eq.s32.totalorder %s150, 0
      %s153 = sadd.s32 %s152, 1
      %s154 = scalar_select %p151, %s152, %s153
      %p157 = pneg %p151
      %p158 = scmp.eq.s32.totalorder %s15, 1
      %p159 = por %p157, %p158
      %p160 = scmp.ne.s32.totalorder %s152, %s155
      %p161 = scmp.eq.s32.totalorder %s15, 0
      %p162 = por %p160, %p161
      %p163 = scmp.ne.s32.totalorder %s152, %s155
      %p164 = scmp.eq.s32.totalorder %s20, 1
      %p165 = por %p163, %p164
      %p166 = scmp.ne.s32.totalorder %s155, %s156
      %p167 = scmp.eq.s32.totalorder %s20, 0
      %p168 = por %p166, %p167
      %p169 = scmp.ne.s32.totalorder %s155, %s156
      %p170 = scmp.eq.s32.totalorder %s21, 1
      %p171 = por %p169, %p170
      %p173 = scmp.ne.s32.totalorder %s156, %s172
      %p174 = scmp.eq.s32.totalorder %s21, 0
      %p175 = por %p173, %p174
      %s176 = ssub.s32 %s23, %s37
      %p177 = scmp.eq.s32.totalorder %s176, 0
      %s179 = sadd.s32 %s178, 1
      %s180 = scalar_select %p177, %s178, %s179
      %p183 = pneg %p177
      %p184 = scmp.eq.s32.totalorder %s15, 1
      %p185 = por %p183, %p184
      %p186 = scmp.ne.s32.totalorder %s178, %s181
      %p187 = scmp.eq.s32.totalorder %s15, 0
      %p188 = por %p186, %p187
      %p189 = scmp.ne.s32.totalorder %s178, %s181
      %p190 = scmp.eq.s32.totalorder %s20, 1
      %p191 = por %p189, %p190
      %p192 = scmp.ne.s32.totalorder %s181, %s182
      %p193 = scmp.eq.s32.totalorder %s20, 0
      %p194 = por %p192, %p193
      %p195 = scmp.ne.s32.totalorder %s181, %s182
      %p196 = scmp.eq.s32.totalorder %s21, 1
      %p197 = por %p195, %p196
      %p199 = scmp.ne.s32.totalorder %s182, %s198
      %p200 = scmp.eq.s32.totalorder %s21, 0
      %p201 = por %p199, %p200
      %s202 = ssub.s32 %s22, %s41
      %s203 = ssub.s32 %s23, %s37
      %s204 = sor.u32 %s202, %s203
      %p205 = scmp.eq.s32.totalorder %s204, 0
      %s207 = sadd.s32 %s206, 1
      %s208 = scalar_select %p205, %s206, %s207
      %p211 = pneg %p205
      %p212 = scmp.eq.s32.totalorder %s15, 1
      %p213 = por %p211, %p212
      %p214 = scmp.ne.s32.totalorder %s206, %s209
      %p215 = scmp.eq.s32.totalorder %s15, 0
      %p216 = por %p214, %p215
      %p217 = scmp.ne.s32.totalorder %s206, %s209
      %p218 = scmp.eq.s32.totalorder %s20, 1
      %p219 = por %p217, %p218
      %p220 = scmp.ne.s32.totalorder %s209, %s210
      %p221 = scmp.eq.s32.totalorder %s20, 0
      %p222 = por %p220, %p221
      %p223 = scmp.ne.s32.totalorder %s209, %s210
      %p224 = scmp.eq.s32.totalorder %s21, 1
      %p225 = por %p223, %p224
      %p227 = scmp.ne.s32.totalorder %s210, %s226
      %p228 = scmp.eq.s32.totalorder %s21, 0
      %p229 = por %p227, %p228
      %p230 = scmp.le.s32.totalorder 1, %s15
      %p231 = scmp.lt.s32.totalorder %s15, 3
      %p232 = pnand %p230, %p231
      %p233 = pneg %p232
      // Predicated region
      $region9: #{forward.9} parent=5 // pred_check
        _
      $region10: #{forward.9} parent=5 // pred_check_branch
        %235 = sbr.rel (%p232) target = $region12
      $region11: #{forward.9} parent=5 // pred_region
        %s236 = ssub.s32 %s15, 1
        // Predicated region
        $region13: #{forward.9} parent=11 // pred_check
          %p237 = pneg %p90
        $region14: #{forward.9} parent=11 // pred_check_branch
          %239 = sbr.rel (%p237) target = $region16
        $region15: #{forward.9} parent=11 // pred_region
          %s240 = smul.u32 4, %s27
          %p241 = scmp.lt.s32.totalorder %s240, 3
          %s242 = scalar_select %p241, %s240, 3
          %p243 = scmp.lt.s32.totalorder %s26, 0
          %s244 = scalar_select %p243, %s26, 0
          %s245 = sadd.s32 %s244, %s242
          %s246 = smul.addr %s245, 8
          %s247 = scalar_lea.vmem %s1, %s246
          %s248 = smul.u32 4, %s27
        $region16: #{forward.9} parent=11 // pred_fallthru
          _
        // Predicated region
        $region17: #{forward.9} parent=11 // pred_check
          %p249 = pneg %p116
        $region18: #{forward.9} parent=11 // pred_check_branch
          %251 = sbr.rel (%p249) target = $region20
        $region19: #{forward.9} parent=11 // pred_region
          %p252 = scmp.lt.s32.totalorder %s26, 0
          %s253 = scalar_select %p252, %s26, 0
          %s254 = scalar_lea.vmem %s2, %s253
        $region20: #{forward.9} parent=11 // pred_fallthru
          _
        // Predicated region
        $region21: #{forward.9} parent=11 // pred_check
          %p255 = pneg %p168
        $region22: #{forward.9} parent=11 // pred_check_branch
          %257 = sbr.rel (%p255) target = $region24
        $region23: #{forward.9} parent=11 // pred_region
          %p258 = scmp.lt.s32.totalorder %s26, 0
          %s259 = scalar_select %p258, %s26, 0
          %s260 = smul.addr %s259, 8
          %s261 = scalar_lea.vmem %s4, %s260
        $region24: #{forward.9} parent=11 // pred_fallthru
          _
        // Predicated region
        $region25: #{forward.9} parent=11 // pred_check
          %p262 = pneg %p194
        $region26: #{forward.9} parent=11 // pred_check_branch
          %264 = sbr.rel (%p262) target = $region28
        $region27: #{forward.9} parent=11 // pred_region
          %p265 = scmp.lt.s32.totalorder %s26, 0
          %s266 = scalar_select %p265, %s26, 0
          %s267 = scalar_lea.vmem %s5, %s266
        $region28: #{forward.9} parent=11 // pred_fallthru
          _
      $region12: #{forward.9} parent=5 // pred_fallthru
        _
      %p268 = scmp.lt.s32.totalorder %s15, 2
      // Predicated region
      $region29: #{forward.9} parent=5 // pred_check
        %p269 = pneg %p268
      $region30: #{forward.9} parent=5 // pred_check_branch
        %271 = sbr.rel (%p269) target = $region32
      $region31: #{forward.9} parent=5 // pred_region
        // Predicated region
        $region33: #{forward.9} parent=31 // pred_check
          %p272 = pneg %p56
        $region34: #{forward.9} parent=31 // pred_check_branch
          %274 = sbr.rel (%p272) target = $region36
        $region35: #{forward.9} parent=31 // pred_region
          %p275 = scmp.lt.s32.totalorder %s22, 1
          %s276 = scalar_select %p275, %s22, 1
          %p277 = scmp.lt.s32.totalorder %s24, 0
          %s278 = scalar_select %p277, %s24, 0
          %s279 = smul.addr %s276, 12
          %s280 = sadd.s32 %s278, %s279
          %s281 = smul.addr %s280, 8
          %s282 = scalar_lea.vmem %s0, %s281
        $region36: #{forward.9} parent=31 // pred_fallthru
          _
        // Predicated region
        $region37: #{forward.9} parent=31 // pred_check
          %p283 = pneg %p136
        $region38: #{forward.9} parent=31 // pred_check_branch
          %285 = sbr.rel (%p283) target = $region40
        $region39: #{forward.9} parent=31 // pred_region
          %p286 = scmp.lt.s32.totalorder %s22, 1
          %s287 = scalar_select %p286, %s22, 1
          %s288 = smul.addr %s287, 4
          %s289 = smul.addr %s288, 8
          %s290 = scalar_lea.vmem %s3, %s289
        $region40: #{forward.9} parent=31 // pred_fallthru
          _
      $region32: #{forward.9} parent=5 // pred_fallthru
        _
      %p291 = scmp.le.s32.totalorder 1, %s15
      %p292 = scmp.lt.s32.totalorder %s15, 3
      %p293 = pnand %p291, %p292
      %p294 = pneg %p293
      // Predicated region
      $region41: #{forward.9} parent=5 // pred_check
        _
      $region42: #{forward.9} parent=5 // pred_check_branch
        %296 = sbr.rel (%p293) target = $region44
      $region43: #{forward.9} parent=5 // pred_region
        %s297 = ssub.s32 %s15, 1
        %p298 = scmp.lt.s32.totalorder %s25, 1
        %s299 = scalar_select %p298, %s25, 1
        %p300 = scmp.lt.s32.totalorder %s27, 0
        %s301 = scalar_select %p300, %s27, 0
        %s302 = smul.addr %s299, 12
        %s303 = sadd.s32 %s301, %s302
        %s304 = smul.addr %s303, 8
        %s305 = scalar_lea.vmem %s0, %s304
        %p306 = pneg %p62
        %p307 = pneg %p59
        %s308 = smul.u32 4, %s27
        %p309 = scmp.lt.s32.totalorder %s308, 3
        %s310 = scalar_select %p309, %s308, 3
        %p311 = scmp.lt.s32.totalorder %s26, 0
        %s312 = scalar_select %p311, %s26, 0
        %s313 = sadd.s32 %s312, %s310
        %s314 = smul.addr %s313, 8
        %s315 = scalar_lea.vmem %s1, %s314
        %p316 = pneg %p90
        %p317 = pneg %p87
        %p318 = scmp.lt.s32.totalorder %s26, 0
        %s319 = scalar_select %p318, %s26, 0
        %s320 = scalar_lea.vmem %s2, %s319
        %p321 = pneg %p116
        %p322 = pneg %p113
        %p323 = scmp.lt.s32.totalorder %s25, 1
        %s324 = scalar_select %p323, %s25, 1
        %s325 = smul.addr %s324, 4
        %s326 = smul.addr %s325, 8
        %s327 = scalar_lea.vmem %s3, %s326
        %p328 = pneg %p142
        %p329 = pneg %p139
        %p330 = scmp.lt.s32.totalorder %s26, 0
        %s331 = scalar_select %p330, %s26, 0
        %s332 = smul.addr %s331, 8
        %s333 = scalar_lea.vmem %s4, %s332
        %p334 = pneg %p168
        %p335 = pneg %p165
        %p336 = scmp.lt.s32.totalorder %s26, 0
        %s337 = scalar_select %p336, %s26, 0
        %s338 = scalar_lea.vmem %s5, %s337
        %p339 = pneg %p194
        %p340 = pneg %p191
        %p341 = pneg %p222
        %p342 = pneg %p219
        %s343 = sand.u32 %s209, 1
        %s344 = scalar_lea.sflag [#allocation4], %s343
        %s345 = sand.u32 %s209, 1
        %s346 = smul.addr %s345, 32
        %s347 = scalar_lea.vmem [#allocation3], %s346
        %p348 = scmp.lt.s32.totalorder %s25, 1
        %s349 = scalar_select %p348, %s25, 1
        %p350 = scmp.lt.s32.totalorder %s27, 0
        %s351 = scalar_select %p350, %s27, 0
        %s352 = smul.addr %s349, 12
        %s353 = sadd.s32 %s351, %s352
        %s354 = smul.addr %s353, 8
        %s355 = scalar_lea.vmem %s0, %s354
        %s356 = smul.u32 4, %s27
        %p357 = scmp.lt.s32.totalorder %s356, 3
        %s358 = scalar_select %p357, %s356, 3
        %p359 = scmp.lt.s32.totalorder %s26, 0
        %s360 = scalar_select %p359, %s26, 0
        %s361 = sadd.s32 %s360, %s358
        %s362 = smul.addr %s361, 8
        %s363 = scalar_lea.vmem %s1, %s362
        %s364 = smul.u32 4, %s27
        %p365 = scmp.lt.s32.totalorder %s26, 0
        %s366 = scalar_select %p365, %s26, 0
        %s367 = scalar_lea.vmem %s2, %s366
        %p368 = scmp.lt.s32.totalorder %s25, 1
        %s369 = scalar_select %p368, %s25, 1
        %s370 = smul.addr %s369, 4
        %s371 = smul.addr %s370, 8
        %s372 = scalar_lea.vmem %s3, %s371
        %p373 = scmp.lt.s32.totalorder %s26, 0
        %s374 = scalar_select %p373, %s26, 0
        %s375 = smul.addr %s374, 8
        %s376 = scalar_lea.vmem %s4, %s375
        %p377 = scmp.lt.s32.totalorder %s26, 0
        %s378 = scalar_select %p377, %s26, 0
        %s379 = scalar_lea.vmem %s5, %s378
        %p381 = scmp.eq.s32.totalorder %s27, 0
        // Predicated region
        $region45: #{forward.9} parent=43 // pred_check
          %p382 = pneg %p381
        $region46: #{forward.9} parent=43 // pred_check_branch
          %384 = sbr.rel (%p382) target = $region48
        $region47: #{forward.9} parent=43 // pred_region
          %vm385 = vcmask 261120
          %386 = vst.msk [vmem:[#allocation2] sm:$0xff] %vm385, 0.0
          %387 = vst.msk [vmem:[#allocation2 + $0x8] sm:$0xff] %vm385, 0.0
          %388 = vst.msk [vmem:[#allocation2 + $0x10] sm:$0xff] %vm385, 0.0
          %389 = vst.msk [vmem:[#allocation2 + $0x18] sm:$0xff] %vm385, 0.0
        $region48: #{forward.9} parent=43 // pred_fallthru
          _
        %v390 = vld [vmem:[%s355] sm:$0xff]
        %v391 = vld [vmem:[%s355 + $0x8] sm:$0x3]
        %v392 = vld [vmem:[%s355 + $0x10] sm:$0xff]
        %v393 = vld [vmem:[%s355 + $0x18] sm:$0x3]
        %v394 = vld [vmem:[%s355 + $0x20] sm:$0xff]
        %v395 = vld [vmem:[%s355 + $0x28] sm:$0x3]
        %v396 = vld [vmem:[%s355 + $0x30] sm:$0xff]
        %v397 = vld [vmem:[%s355 + $0x38] sm:$0x3]
        %v398 = vld [vmem:[%s355 + $0x40] sm:$0xff]
        %v399 = vld [vmem:[%s355 + $0x48] sm:$0x3]
        %v400 = vld [vmem:[%s355 + $0x50] sm:$0xff]
        %v401 = vld [vmem:[%s355 + $0x58] sm:$0x3]
        %v402 = vld [vmem:[%s363] sm:$0xff]
        %v403 = vld [vmem:[%s363 + $0x8] sm:$0xff]
        %v404 = vld [vmem:[%s363 + $0x10] sm:$0xff]
        %v405 = vld [vmem:[%s363 + $0x18] sm:$0xff]
        %v406 = vld [vmem:[%s363 + $0x20] sm:$0xff]
        %v407 = vld [vmem:[%s363 + $0x28] sm:$0xff]
        %v408 = vld [vmem:[%s363 + $0x30] sm:$0xff]
        %v409 = vld [vmem:[%s363 + $0x38] sm:$0xff]
        %v410 = vld [vmem:[%s363 + $0x40] sm:$0xff]
        %v411 = vld [vmem:[%s363 + $0x48] sm:$0xff]
        %v412 = vld [vmem:[%s363 + $0x50] sm:$0xff]
        %v413 = vld [vmem:[%s363 + $0x58] sm:$0xff]
        %v414 = vld [vmem:[%s363 + $0x60] sm:$0xff]
        %v415 = vld [vmem:[%s363 + $0x68] sm:$0xff]
        %v416 = vld [vmem:[%s363 + $0x70] sm:$0xff]
        %v417 = vld [vmem:[%s363 + $0x78] sm:$0xff]
        %v418 = vld [vmem:[%s363 + $0x80] sm:$0xff]
        %v419 = vld [vmem:[%s363 + $0x88] sm:$0xff]
        %v420 = vld [vmem:[%s363 + $0x90] sm:$0xff]
        %v421 = vld [vmem:[%s363 + $0x98] sm:$0xff]
        %v422 = vld [vmem:[%s363 + $0xa0] sm:$0xff]
        %v423 = vld [vmem:[%s363 + $0xa8] sm:$0xff]
        %v424 = vld [vmem:[%s363 + $0xb0] sm:$0xff]
        %v425 = vld [vmem:[%s363 + $0xb8] sm:$0xff]
        %v426 = vld [vmem:[%s363 + $0xc0] sm:$0xff]
        %v427 = vld [vmem:[%s363 + $0xc8] sm:$0xff]
        %v428 = vld [vmem:[%s363 + $0xd0] sm:$0xff]
        %v429 = vld [vmem:[%s363 + $0xd8] sm:$0xff]
        %v430 = vld [vmem:[%s363 + $0xe0] sm:$0xff]
        %v431 = vld [vmem:[%s363 + $0xe8] sm:$0xff]
        %v432 = vld [vmem:[%s363 + $0xf0] sm:$0xff]
        %v433 = vld [vmem:[%s363 + $0xf8] sm:$0xff]
        %v434 = vld [vmem:[%s363 + $0x100] sm:$0xff]
        %v435 = vld [vmem:[%s363 + $0x108] sm:$0xff]
        %v436 = vld [vmem:[%s363 + $0x110] sm:$0xff]
        %v437 = vld [vmem:[%s363 + $0x118] sm:$0xff]
        %v438 = vld [vmem:[#allocation2] sm:$0xff]
        %v439 = vld [vmem:[#allocation2 + $0x8] sm:$0xff]
        %v440 = vld [vmem:[#allocation2 + $0x10] sm:$0xff]
        %v441 = vld [vmem:[#allocation2 + $0x18] sm:$0xff]
        %v442 = vpack.c.bf16 %v392, %v390
        %v443 = vpack.c.bf16 %v396, %v394
        %v444 = vpack.c.bf16 %v403, %v402
        %v445 = vpack.c.bf16 %v405, %v404
        %vm446 = vcmask 261120
        %v448 = vsel %vm446, %v442, 0
        %v451 = vsel %vm446, %v443, 0
        %453 = vmatprep.subr.bf16.mxu0 0
        %454 = vmatpush1.bf16.msra.mxu0 %v444
        %455 = vmatprep.subr.bf16.mxu0 0
        %456 = vmatpush1.bf16.msra.mxu0 %v445
        %457 = vmatprep.subr.bf16.mxu0 0
        %458 = vmatpush1.bf16.msra.mxu0 0
        %459 = vmatprep.subr.bf16.mxu0 0
        %460 = vmatpush1.bf16.msra.mxu0 0
        %461 = vmatprep.subr.bf16.mxu0 0
        %462 = vmatpush1.bf16.msra.mxu0 0
        %463 = vmatprep.subr.bf16.mxu0 0
        %464 = vmatpush1.bf16.msra.mxu0 0
        %465 = vmatprep.subr.bf16.mxu0 0
        %466 = vmatpush1.bf16.msra.mxu0 0
        %467 = vmatprep.subr.bf16.mxu0 0
        %468 = vmatpush1.bf16.msra.mxu0 0
        %469 = vmatprep.subr.bf16.mxu0 0
        %470 = vmatpush1.bf16.msra.mxu0 0
        %471 = vmatprep.subr.bf16.mxu0 0
        %472 = vmatpush1.bf16.msra.mxu0 0
        %473 = vmatprep.subr.bf16.mxu0 0
        %474 = vmatpush1.bf16.msra.mxu0 0
        %475 = vmatprep.subr.bf16.mxu0 0
        %476 = vmatpush1.bf16.msra.mxu0 0
        %477 = vmatprep.subr.bf16.mxu0 0
        %478 = vmatpush1.bf16.msra.mxu0 0
        %479 = vmatprep.subr.bf16.mxu0 0
        %480 = vmatpush1.bf16.msra.mxu0 0
        %481 = vmatprep.subr.bf16.mxu0 0
        %482 = vmatpush1.bf16.msra.mxu0 0
        %483 = vmatprep.subr.bf16.mxu0 0
        %484 = vmatpush1.bf16.msra.mxu0 0
        %485 = vmatprep.mubr.bf16.mxu0 0
        %486 = vmatmul.mubr.bf16.gmra.mrb[0].mxu0 %v448
        %v487 = vpop.f32.mrb[0].mxu0
        %v488 = vadd.f32 0.0, %v487
        %v489 = vpop.f32.mrb[0].mxu0
        %v490 = vpop.f32.mrb[0].mxu0
        %v491 = vadd.f32 0.0, %v490
        %v492 = vpop.f32.mrb[0].mxu0
        %493 = vmatprep.mubr.bf16.mxu0 0
        %494 = vmatmul.mubr.bf16.gmra.mrb[0].mxu0 %v451
        %v495 = vpop.f32.mrb[0].mxu0
        %v496 = vadd.f32 0.0, %v495
        %v497 = vpop.f32.mrb[0].mxu0
        %v498 = vpop.f32.mrb[0].mxu0
        %v499 = vadd.f32 0.0, %v498
        %v500 = vpop.f32.mrb[0].mxu0
        %501 = vdwg.mxu0
        %v502 = vadd.f32 %v438, %v488
        %v503 = vadd.f32 %v439, %v491
        %v504 = vadd.f32 %v440, %v496
        %v505 = vadd.f32 %v441, %v499
        %vm514 = vcmask 1046528
        %v515 = vrot.slane %v390, 1
        %v516 = vrot.slane %v391, 1
        %v517 = vsel %vm514, %v515, %v516
        %v518 = vrot.slane %v392, 1
        %v519 = vrot.slane %v393, 1
        %v520 = vsel %vm514, %v518, %v519
        %v521 = vrot.slane %v394, 1
        %v522 = vrot.slane %v395, 1
        %v523 = vsel %vm514, %v521, %v522
        %v524 = vrot.slane %v396, 1
        %v525 = vrot.slane %v397, 1
        %v526 = vsel %vm514, %v524, %v525
        %v531 = vpack.c.bf16 %v520, %v517
        %v532 = vpack.c.bf16 %v526, %v523
        %v533 = vpack.c.bf16 %v407, %v406
        %v534 = vpack.c.bf16 %v409, %v408
        %v536 = vsel %vm446, %v531, 0
        %v539 = vsel %vm446, %v532, 0
        %541 = vmatprep.subr.bf16.mxu0 0
        %542 = vmatpush1.bf16.msra.mxu0 %v533
        %543 = vmatprep.subr.bf16.mxu0 0
        %544 = vmatpush1.bf16.msra.mxu0 %v534
        %545 = vmatprep.subr.bf16.mxu0 0
        %546 = vmatpush1.bf16.msra.mxu0 0
        %547 = vmatprep.subr.bf16.mxu0 0
        %548 = vmatpush1.bf16.msra.mxu0 0
        %549 = vmatprep.subr.bf16.mxu0 0
        %550 = vmatpush1.bf16.msra.mxu0 0
        %551 = vmatprep.subr.bf16.mxu0 0
        %552 = vmatpush1.bf16.msra.mxu0 0
        %553 = vmatprep.subr.bf16.mxu0 0
        %554 = vmatpush1.bf16.msra.mxu0 0
        %555 = vmatprep.subr.bf16.mxu0 0
        %556 = vmatpush1.bf16.msra.mxu0 0
        %557 = vmatprep.subr.bf16.mxu0 0
        %558 = vmatpush1.bf16.msra.mxu0 0
        %559 = vmatprep.subr.bf16.mxu0 0
        %560 = vmatpush1.bf16.msra.mxu0 0
        %561 = vmatprep.subr.bf16.mxu0 0
        %562 = vmatpush1.bf16.msra.mxu0 0
        %563 = vmatprep.subr.bf16.mxu0 0
        %564 = vmatpush1.bf16.msra.mxu0 0
        %565 = vmatprep.subr.bf16.mxu0 0
        %566 = vmatpush1.bf16.msra.mxu0 0
        %567 = vmatprep.subr.bf16.mxu0 0
        %568 = vmatpush1.bf16.msra.mxu0 0
        %569 = vmatprep.subr.bf16.mxu0 0
        %570 = vmatpush1.bf16.msra.mxu0 0
        %571 = vmatprep.subr.bf16.mxu0 0
        %572 = vmatpush1.bf16.msra.mxu0 0
        %573 = vmatprep.mubr.bf16.mxu0 0
        %574 = vmatmul.mubr.bf16.gmra.mrb[0].mxu0 %v536
        %v575 = vpop.f32.mrb[0].mxu0
        %v576 = vadd.f32 0.0, %v575
        %v577 = vpop.f32.mrb[0].mxu0
        %v578 = vpop.f32.mrb[0].mxu0
        %v579 = vadd.f32 0.0, %v578
        %v580 = vpop.f32.mrb[0].mxu0
        %581 = vmatprep.mubr.bf16.mxu0 0
        %582 = vmatmul.mubr.bf16.gmra.mrb[0].mxu0 %v539
        %v583 = vpop.f32.mrb[0].mxu0
        %v584 = vadd.f32 0.0, %v583
        %v585 = vpop.f32.mrb[0].mxu0
        %v586 = vpop.f32.mrb[0].mxu0
        %v587 = vadd.f32 0.0, %v586
        %v588 = vpop.f32.mrb[0].mxu0
        %589 = vdwg.mxu0
        %v590 = vadd.f32 %v502, %v576
        %v591 = vadd.f32 %v503, %v579
        %v592 = vadd.f32 %v504, %v584
        %v593 = vadd.f32 %v505, %v587
        %vm594 = vcmask 1045504
        %v595 = vrot.slane %v390, 2
        %v596 = vrot.slane %v391, 2
        %v597 = vsel %vm594, %v595, %v596
        %v598 = vrot.slane %v392, 2
        %v599 = vrot.slane %v393, 2
        %v600 = vsel %vm594, %v598, %v599
        %v601 = vrot.slane %v394, 2
        %v602 = vrot.slane %v395, 2
        %v603 = vsel %vm594, %v601, %v602
        %v604 = vrot.slane %v396, 2
        %v605 = vrot.slane %v397, 2
        %v606 = vsel %vm594, %v604, %v605
        %v611 = vpack.c.bf16 %v600, %v597
        %v612 = vpack.c.bf16 %v606, %v603
        %v613 = vpack.c.bf16 %v411, %v410
        %v614 = vpack.c.bf16 %v413, %v412
        %v616 = vsel %vm446, %v611, 0
        %v619 = vsel %vm446, %v612, 0
        %621 = vmatprep.subr.bf16.mxu0 0
        %622 = vmatpush1.bf16.msra.mxu0 %v613
        %623 = vmatprep.subr.bf16.mxu0 0
        %624 = vmatpush1.bf16.msra.mxu0 %v614
        %625 = vmatprep.subr.bf16.mxu0 0
        %626 = vmatpush1.bf16.msra.mxu0 0
        %627 = vmatprep.subr.bf16.mxu0 0
        %628 = vmatpush1.bf16.msra.mxu0 0
        %629 = vmatprep.subr.bf16.mxu0 0
        %630 = vmatpush1.bf16.msra.mxu0 0
        %631 = vmatprep.subr.bf16.mxu0 0
        %632 = vmatpush1.bf16.msra.mxu0 0
        %633 = vmatprep.subr.bf16.mxu0 0
        %634 = vmatpush1.bf16.msra.mxu0 0
        %635 = vmatprep.subr.bf16.mxu0 0
        %636 = vmatpush1.bf16.msra.mxu0 0
        %637 = vmatprep.subr.bf16.mxu0 0
        %638 = vmatpush1.bf16.msra.mxu0 0
        %639 = vmatprep.subr.bf16.mxu0 0
        %640 = vmatpush1.bf16.msra.mxu0 0
        %641 = vmatprep.subr.bf16.mxu0 0
        %642 = vmatpush1.bf16.msra.mxu0 0
        %643 = vmatprep.subr.bf16.mxu0 0
        %644 = vmatpush1.bf16.msra.mxu0 0
        %645 = vmatprep.subr.bf16.mxu0 0
        %646 = vmatpush1.bf16.msra.mxu0 0
        %647 = vmatprep.subr.bf16.mxu0 0
        %648 = vmatpush1.bf16.msra.mxu0 0
        %649 = vmatprep.subr.bf16.mxu0 0
        %650 = vmatpush1.bf16.msra.mxu0 0
        %651 = vmatprep.subr.bf16.mxu0 0
        %652 = vmatpush1.bf16.msra.mxu0 0
        %653 = vmatprep.mubr.bf16.mxu0 0
        %654 = vmatmul.mubr.bf16.gmra.mrb[0].mxu0 %v616
        %v655 = vpop.f32.mrb[0].mxu0
        %v656 = vadd.f32 0.0, %v655
        %v657 = vpop.f32.mrb[0].mxu0
        %v658 = vpop.f32.mrb[0].mxu0
        %v659 = vadd.f32 0.0, %v658
        %v660 = vpop.f32.mrb[0].mxu0
        %661 = vmatprep.mubr.bf16.mxu0 0
        %662 = vmatmul.mubr.bf16.gmra.mrb[0].mxu0 %v619
        %v663 = vpop.f32.mrb[0].mxu0
        %v664 = vadd.f32 0.0, %v663
        %v665 = vpop.f32.mrb[0].mxu0
        %v666 = vpop.f32.mrb[0].mxu0
        %v667 = vadd.f32 0.0, %v666
        %v668 = vpop.f32.mrb[0].mxu0
        %669 = vdwg.mxu0
        %v670 = vadd.f32 %v590, %v656
        %v671 = vadd.f32 %v591, %v659
        %v672 = vadd.f32 %v592, %v664
        %v673 = vadd.f32 %v593, %v667
        %v674 = vpack.c.bf16 %v394, %v392
        %v675 = vpack.c.bf16 %v398, %v396
        %v676 = vpack.c.bf16 %v415, %v414
        %v677 = vpack.c.bf16 %v417, %v416
        %v679 = vsel %vm446, %v674, 0
        %v682 = vsel %vm446, %v675, 0
        %684 = vmatprep.subr.bf16.mxu0 0
        %685 = vmatpush1.bf16.msra.mxu0 %v676
        %686 = vmatprep.subr.bf16.mxu0 0
        %687 = vmatpush1.bf16.msra.mxu0 %v677
        %688 = vmatprep.subr.bf16.mxu0 0
        %689 = vmatpush1.bf16.msra.mxu0 0
        %690 = vmatprep.subr.bf16.mxu0 0
        %691 = vmatpush1.bf16.msra.mxu0 0
        %692 = vmatprep.subr.bf16.mxu0 0
        %693 = vmatpush1.bf16.msra.mxu0 0
        %694 = vmatprep.subr.bf16.mxu0 0
        %695 = vmatpush1.bf16.msra.mxu0 0
        %696 = vmatprep.subr.bf16.mxu0 0
        %697 = vmatpush1.bf16.msra.mxu0 0
        %698 = vmatprep.subr.bf16.mxu0 0
        %699 = vmatpush1.bf16.msra.mxu0 0
        %700 = vmatprep.subr.bf16.mxu0 0
        %701 = vmatpush1.bf16.msra.mxu0 0
        %702 = vmatprep.subr.bf16.mxu0 0
        %703 = vmatpush1.bf16.msra.mxu0 0
        %704 = vmatprep.subr.bf16.mxu0 0
        %705 = vmatpush1.bf16.msra.mxu0 0
        %706 = vmatprep.subr.bf16.mxu0 0
        %707 = vmatpush1.bf16.msra.mxu0 0
        %708 = vmatprep.subr.bf16.mxu0 0
        %709 = vmatpush1.bf16.msra.mxu0 0
        %710 = vmatprep.subr.bf16.mxu0 0
        %711 = vmatpush1.bf16.msra.mxu0 0
        %712 = vmatprep.subr.bf16.mxu0 0
        %713 = vmatpush1.bf16.msra.mxu0 0
        %714 = vmatprep.subr.bf16.mxu0 0
        %715 = vmatpush1.bf16.msra.mxu0 0
        %716 = vmatprep.mubr.bf16.mxu0 0
        %717 = vmatmul.mubr.bf16.gmra.mrb[0].mxu0 %v679
        %v718 = vpop.f32.mrb[0].mxu0
        %v719 = vadd.f32 0.0, %v718
        %v720 = vpop.f32.mrb[0].mxu0
        %v721 = vpop.f32.mrb[0].mxu0
        %v722 = vadd.f32 0.0, %v721
        %v723 = vpop.f32.mrb[0].mxu0
        %724 = vmatprep.mubr.bf16.mxu0 0
        %725 = vmatmul.mubr.bf16.gmra.mrb[0].mxu0 %v682
        %v726 = vpop.f32.mrb[0].mxu0
        %v727 = vadd.f32 0.0, %v726
        %v728 = vpop.f32.mrb[0].mxu0
        %v729 = vpop.f32.mrb[0].mxu0
        %v730 = vadd.f32 0.0, %v729
        %v731 = vpop.f32.mrb[0].mxu0
        %732 = vdwg.mxu0
        %v733 = vadd.f32 %v670, %v719
        %v734 = vadd.f32 %v671, %v722
        %v735 = vadd.f32 %v672, %v727
        %v736 = vadd.f32 %v673, %v730
        %v739 = vrot.slane %v398, 1
        %v740 = vrot.slane %v399, 1
        %v741 = vsel %vm514, %v739, %v740
        %v743 = vpack.c.bf16 %v523, %v520
        %v744 = vpack.c.bf16 %v741, %v526
        %v745 = vpack.c.bf16 %v419, %v418
        %v746 = vpack.c.bf16 %v421, %v420
        %v748 = vsel %vm446, %v743, 0
        %v751 = vsel %vm446, %v744, 0
        %753 = vmatprep.subr.bf16.mxu0 0
        %754 = vmatpush1.bf16.msra.mxu0 %v745
        %755 = vmatprep.subr.bf16.mxu0 0
        %756 = vmatpush1.bf16.msra.mxu0 %v746
        %757 = vmatprep.subr.bf16.mxu0 0
        %758 = vmatpush1.bf16.msra.mxu0 0
        %759 = vmatprep.subr.bf16.mxu0 0
        %760 = vmatpush1.bf16.msra.mxu0 0
        %761 = vmatprep.subr.bf16.mxu0 0
        %762 = vmatpush1.bf16.msra.mxu0 0
        %763 = vmatprep.subr.bf16.mxu0 0
        %764 = vmatpush1.bf16.msra.mxu0 0
        %765 = vmatprep.subr.bf16.mxu0 0
        %766 = vmatpush1.bf16.msra.mxu0 0
        %767 = vmatprep.subr.bf16.mxu0 0
        %768 = vmatpush1.bf16.msra.mxu0 0
        %769 = vmatprep.subr.bf16.mxu0 0
        %770 = vmatpush1.bf16.msra.mxu0 0
        %771 = vmatprep.subr.bf16.mxu0 0
        %772 = vmatpush1.bf16.msra.mxu0 0
        %773 = vmatprep.subr.bf16.mxu0 0
        %774 = vmatpush1.bf16.msra.mxu0 0
        %775 = vmatprep.subr.bf16.mxu0 0
        %776 = vmatpush1.bf16.msra.mxu0 0
        %777 = vmatprep.subr.bf16.mxu0 0
        %778 = vmatpush1.bf16.msra.mxu0 0
        %779 = vmatprep.subr.bf16.mxu0 0
        %780 = vmatpush1.bf16.msra.mxu0 0
        %781 = vmatprep.subr.bf16.mxu0 0
        %782 = vmatpush1.bf16.msra.mxu0 0
        %783 = vmatprep.subr.bf16.mxu0 0
        %784 = vmatpush1.bf16.msra.mxu0 0
        %785 = vmatprep.mubr.bf16.mxu0 0
        %786 = vmatmul.mubr.bf16.gmra.mrb[0].mxu0 %v748
        %v787 = vpop.f32.mrb[0].mxu0
        %v788 = vadd.f32 0.0, %v787
        %v789 = vpop.f32.mrb[0].mxu0
        %v790 = vpop.f32.mrb[0].mxu0
        %v791 = vadd.f32 0.0, %v790
        %v792 = vpop.f32.mrb[0].mxu0
        %793 = vmatprep.mubr.bf16.mxu0 0
        %794 = vmatmul.mubr.bf16.gmra.mrb[0].mxu0 %v751
        %v795 = vpop.f32.mrb[0].mxu0
        %v796 = vadd.f32 0.0, %v795
        %v797 = vpop.f32.mrb[0].mxu0
        %v798 = vpop.f32.mrb[0].mxu0
        %v799 = vadd.f32 0.0, %v798
        %v800 = vpop.f32.mrb[0].mxu0
        %801 = vdwg.mxu0
        %v802 = vadd.f32 %v733, %v788
        %v803 = vadd.f32 %v734, %v791
        %v804 = vadd.f32 %v735, %v796
        %v805 = vadd.f32 %v736, %v799
        %v806 = vrot.slane %v398, 2
        %v807 = vrot.slane %v399, 2
        %v808 = vsel %vm594, %v806, %v807
        %v810 = vpack.c.bf16 %v603, %v600
        %v811 = vpack.c.bf16 %v808, %v606
        %v812 = vpack.c.bf16 %v423, %v422
        %v813 = vpack.c.bf16 %v425, %v424
        %v815 = vsel %vm446, %v810, 0
        %v818 = vsel %vm446, %v811, 0
        %820 = vmatprep.subr.bf16.mxu0 0
        %821 = vmatpush1.bf16.msra.mxu0 %v812
        %822 = vmatprep.subr.bf16.mxu0 0
        %823 = vmatpush1.bf16.msra.mxu0 %v813
        %824 = vmatprep.subr.bf16.mxu0 0
        %825 = vmatpush1.bf16.msra.mxu0 0
        %826 = vmatprep.subr.bf16.mxu0 0
        %827 = vmatpush1.bf16.msra.mxu0 0
        %828 = vmatprep.subr.bf16.mxu0 0
        %829 = vmatpush1.bf16.msra.mxu0 0
        %830 = vmatprep.subr.bf16.mxu0 0
        %831 = vmatpush1.bf16.msra.mxu0 0
        %832 = vmatprep.subr.bf16.mxu0 0
        %833 = vmatpush1.bf16.msra.mxu0 0
        %834 = vmatprep.subr.bf16.mxu0 0
        %835 = vmatpush1.bf16.msra.mxu0 0
        %836 = vmatprep.subr.bf16.mxu0 0
        %837 = vmatpush1.bf16.msra.mxu0 0
        %838 = vmatprep.subr.bf16.mxu0 0
        %839 = vmatpush1.bf16.msra.mxu0 0
        %840 = vmatprep.subr.bf16.mxu0 0
        %841 = vmatpush1.bf16.msra.mxu0 0
        %842 = vmatprep.subr.bf16.mxu0 0
        %843 = vmatpush1.bf16.msra.mxu0 0
        %844 = vmatprep.subr.bf16.mxu0 0
        %845 = vmatpush1.bf16.msra.mxu0 0
        %846 = vmatprep.subr.bf16.mxu0 0
        %847 = vmatpush1.bf16.msra.mxu0 0
        %848 = vmatprep.subr.bf16.mxu0 0
        %849 = vmatpush1.bf16.msra.mxu0 0
        %850 = vmatprep.subr.bf16.mxu0 0
        %851 = vmatpush1.bf16.msra.mxu0 0
        %852 = vmatprep.mubr.bf16.mxu0 0
        %853 = vmatmul.mubr.bf16.gmra.mrb[0].mxu0 %v815
        %v854 = vpop.f32.mrb[0].mxu0
        %v855 = vadd.f32 0.0, %v854
        %v856 = vpop.f32.mrb[0].mxu0
        %v857 = vpop.f32.mrb[0].mxu0
        %v858 = vadd.f32 0.0, %v857
        %v859 = vpop.f32.mrb[0].mxu0
        %860 = vmatprep.mubr.bf16.mxu0 0
        %861 = vmatmul.mubr.bf16.gmra.mrb[0].mxu0 %v818
        %v862 = vpop.f32.mrb[0].mxu0
        %v863 = vadd.f32 0.0, %v862
        %v864 = vpop.f32.mrb[0].mxu0
        %v865 = vpop.f32.mrb[0].mxu0
        %v866 = vadd.f32 0.0, %v865
        %v867 = vpop.f32.mrb[0].mxu0
        %868 = vdwg.mxu0
        %v869 = vadd.f32 %v802, %v855
        %v870 = vadd.f32 %v803, %v858
        %v871 = vadd.f32 %v804, %v863
        %v872 = vadd.f32 %v805, %v866
        %v873 = vpack.c.bf16 %v400, %v398
        %v874 = vpack.c.bf16 %v427, %v426
        %v875 = vpack.c.bf16 %v429, %v428
        %v877 = vsel %vm446, %v873, 0
        %879 = vmatprep.subr.bf16.mxu0 0
        %880 = vmatpush1.bf16.msra.mxu0 %v874
        %881 = vmatprep.subr.bf16.mxu0 0
        %882 = vmatpush1.bf16.msra.mxu0 %v875
        %883 = vmatprep.subr.bf16.mxu0 0
        %884 = vmatpush1.bf16.msra.mxu0 0
        %885 = vmatprep.subr.bf16.mxu0 0
        %886 = vmatpush1.bf16.msra.mxu0 0
        %887 = vmatprep.subr.bf16.mxu0 0
        %888 = vmatpush1.bf16.msra.mxu0 0
        %889 = vmatprep.subr.bf16.mxu0 0
        %890 = vmatpush1.bf16.msra.mxu0 0
        %891 = vmatprep.subr.bf16.mxu0 0
        %892 = vmatpush1.bf16.msra.mxu0 0
        %893 = vmatprep.subr.bf16.mxu0 0
        %894 = vmatpush1.bf16.msra.mxu0 0
        %895 = vmatprep.subr.bf16.mxu0 0
        %896 = vmatpush1.bf16.msra.mxu0 0
        %897 = vmatprep.subr.bf16.mxu0 0
        %898 = vmatpush1.bf16.msra.mxu0 0
        %899 = vmatprep.subr.bf16.mxu0 0
        %900 = vmatpush1.bf16.msra.mxu0 0
        %901 = vmatprep.subr.bf16.mxu0 0
        %902 = vmatpush1.bf16.msra.mxu0 0
        %903 = vmatprep.subr.bf16.mxu0 0
        %904 = vmatpush1.bf16.msra.mxu0 0
        %905 = vmatprep.subr.bf16.mxu0 0
        %906 = vmatpush1.bf16.msra.mxu0 0
        %907 = vmatprep.subr.bf16.mxu0 0
        %908 = vmatpush1.bf16.msra.mxu0 0
        %909 = vmatprep.subr.bf16.mxu0 0
        %910 = vmatpush1.bf16.msra.mxu0 0
        %911 = vmatprep.mubr.bf16.mxu0 0
        %912 = vmatmul.mubr.bf16.gmra.mrb[0].mxu0 %v451
        %v913 = vpop.f32.mrb[0].mxu0
        %v914 = vadd.f32 0.0, %v913
        %v915 = vpop.f32.mrb[0].mxu0
        %v916 = vpop.f32.mrb[0].mxu0
        %v917 = vadd.f32 0.0, %v916
        %v918 = vpop.f32.mrb[0].mxu0
        %919 = vmatprep.mubr.bf16.mxu0 0
        %920 = vmatmul.mubr.bf16.gmra.mrb[0].mxu0 %v877
        %v921 = vpop.f32.mrb[0].mxu0
        %v922 = vadd.f32 0.0, %v921
        %v923 = vpop.f32.mrb[0].mxu0
        %v924 = vpop.f32.mrb[0].mxu0
        %v925 = vadd.f32 0.0, %v924
        %v926 = vpop.f32.mrb[0].mxu0
        %927 = vdwg.mxu0
        %v928 = vadd.f32 %v869, %v914
        %v929 = vadd.f32 %v870, %v917
        %v930 = vadd.f32 %v871, %v922
        %v931 = vadd.f32 %v872, %v925
        %v934 = vrot.slane %v400, 1
        %v935 = vrot.slane %v401, 1
        %v936 = vsel %vm514, %v934, %v935
        %v938 = vpack.c.bf16 %v936, %v741
        %v939 = vpack.c.bf16 %v431, %v430
        %v940 = vpack.c.bf16 %v433, %v432
        %v942 = vsel %vm446, %v938, 0
        %944 = vmatprep.subr.bf16.mxu0 0
        %945 = vmatpush1.bf16.msra.mxu0 %v939
        %946 = vmatprep.subr.bf16.mxu0 0
        %947 = vmatpush1.bf16.msra.mxu0 %v940
        %948 = vmatprep.subr.bf16.mxu0 0
        %949 = vmatpush1.bf16.msra.mxu0 0
        %950 = vmatprep.subr.bf16.mxu0 0
        %951 = vmatpush1.bf16.msra.mxu0 0
        %952 = vmatprep.subr.bf16.mxu0 0
        %953 = vmatpush1.bf16.msra.mxu0 0
        %954 = vmatprep.subr.bf16.mxu0 0
        %955 = vmatpush1.bf16.msra.mxu0 0
        %956 = vmatprep.subr.bf16.mxu0 0
        %957 = vmatpush1.bf16.msra.mxu0 0
        %958 = vmatprep.subr.bf16.mxu0 0
        %959 = vmatpush1.bf16.msra.mxu0 0
        %960 = vmatprep.subr.bf16.mxu0 0
        %961 = vmatpush1.bf16.msra.mxu0 0
        %962 = vmatprep.subr.bf16.mxu0 0
        %963 = vmatpush1.bf16.msra.mxu0 0
        %964 = vmatprep.subr.bf16.mxu0 0
        %965 = vmatpush1.bf16.msra.mxu0 0
        %966 = vmatprep.subr.bf16.mxu0 0
        %967 = vmatpush1.bf16.msra.mxu0 0
        %968 = vmatprep.subr.bf16.mxu0 0
        %969 = vmatpush1.bf16.msra.mxu0 0
        %970 = vmatprep.subr.bf16.mxu0 0
        %971 = vmatpush1.bf16.msra.mxu0 0
        %972 = vmatprep.subr.bf16.mxu0 0
        %973 = vmatpush1.bf16.msra.mxu0 0
        %974 = vmatprep.subr.bf16.mxu0 0
        %975 = vmatpush1.bf16.msra.mxu0 0
        %976 = vmatprep.mubr.bf16.mxu0 0
        %977 = vmatmul.mubr.bf16.gmra.mrb[0].mxu0 %v539
        %v978 = vpop.f32.mrb[0].mxu0
        %v979 = vadd.f32 0.0, %v978
        %v980 = vpop.f32.mrb[0].mxu0
        %v981 = vpop.f32.mrb[0].mxu0
        %v982 = vadd.f32 0.0, %v981
        %v983 = vpop.f32.mrb[0].mxu0
        %984 = vmatprep.mubr.bf16.mxu0 0
        %985 = vmatmul.mubr.bf16.gmra.mrb[0].mxu0 %v942
        %v986 = vpop.f32.mrb[0].mxu0
        %v987 = vadd.f32 0.0, %v986
        %v988 = vpop.f32.mrb[0].mxu0
        %v989 = vpop.f32.mrb[0].mxu0
        %v990 = vadd.f32 0.0, %v989
        %v991 = vpop.f32.mrb[0].mxu0
        %992 = vdwg.mxu0
        %v993 = vadd.f32 %v928, %v979
        %v994 = vadd.f32 %v929, %v982
        %v995 = vadd.f32 %v930, %v987
        %v996 = vadd.f32 %v931, %v990
        %v997 = vrot.slane %v400, 2
        %v998 = vrot.slane %v401, 2
        %v999 = vsel %vm594, %v997, %v998
        %v1001 = vpack.c.bf16 %v999, %v808
        %v1002 = vpack.c.bf16 %v435, %v434
        %v1003 = vpack.c.bf16 %v437, %v436
        %v1005 = vsel %vm446, %v1001, 0
        %1007 = vmatprep.subr.bf16.mxu0 0
        %1008 = vmatpush1.bf16.msra.mxu0 %v1002
        %1009 = vmatprep.subr.bf16.mxu0 0
        %1010 = vmatpush1.bf16.msra.mxu0 %v1003
        %1011 = vmatprep.subr.bf16.mxu0 0
        %1012 = vmatpush1.bf16.msra.mxu0 0
        %1013 = vmatprep.subr.bf16.mxu0 0
        %1014 = vmatpush1.bf16.msra.mxu0 0
        %1015 = vmatprep.subr.bf16.mxu0 0
        %1016 = vmatpush1.bf16.msra.mxu0 0
        %1017 = vmatprep.subr.bf16.mxu0 0
        %1018 = vmatpush1.bf16.msra.mxu0 0
        %1019 = vmatprep.subr.bf16.mxu0 0
        %1020 = vmatpush1.bf16.msra.mxu0 0
        %1021 = vmatprep.subr.bf16.mxu0 0
        %1022 = vmatpush1.bf16.msra.mxu0 0
        %1023 = vmatprep.subr.bf16.mxu0 0
        %1024 = vmatpush1.bf16.msra.mxu0 0
        %1025 = vmatprep.subr.bf16.mxu0 0
        %1026 = vmatpush1.bf16.msra.mxu0 0
        %1027 = vmatprep.subr.bf16.mxu0 0
        %1028 = vmatpush1.bf16.msra.mxu0 0
        %1029 = vmatprep.subr.bf16.mxu0 0
        %1030 = vmatpush1.bf16.msra.mxu0 0
        %1031 = vmatprep.subr.bf16.mxu0 0
        %1032 = vmatpush1.bf16.msra.mxu0 0
        %1033 = vmatprep.subr.bf16.mxu0 0
        %1034 = vmatpush1.bf16.msra.mxu0 0
        %1035 = vmatprep.subr.bf16.mxu0 0
        %1036 = vmatpush1.bf16.msra.mxu0 0
        %1037 = vmatprep.subr.bf16.mxu0 0
        %1038 = vmatpush1.bf16.msra.mxu0 0
        %1039 = vmatprep.mubr.bf16.mxu0 0
        %1040 = vmatmul.mubr.bf16.gmra.mrb[0].mxu0 %v619
        %v1041 = vpop.f32.mrb[0].mxu0
        %v1042 = vadd.f32 0.0, %v1041
        %v1043 = vpop.f32.mrb[0].mxu0
        %v1044 = vpop.f32.mrb[0].mxu0
        %v1045 = vadd.f32 0.0, %v1044
        %v1046 = vpop.f32.mrb[0].mxu0
        %1047 = vmatprep.mubr.bf16.mxu0 0
        %1048 = vmatmul.mubr.bf16.gmra.mrb[0].mxu0 %v1005
        %v1049 = vpop.f32.mrb[0].mxu0
        %v1050 = vadd.f32 0.0, %v1049
        %v1051 = vpop.f32.mrb[0].mxu0
        %v1052 = vpop.f32.mrb[0].mxu0
        %v1053 = vadd.f32 0.0, %v1052
        %v1054 = vpop.f32.mrb[0].mxu0
        %1055 = vdwg.mxu0
        %v1056 = vadd.f32 %v993, %v1042
        %v1057 = vadd.f32 %v994, %v1045
        %v1058 = vadd.f32 %v995, %v1050
        %v1059 = vadd.f32 %v996, %v1053
        %1060 = vst.msk [vmem:[#allocation2] sm:$0xff] %vm446, %v1056
        %1061 = vst.msk [vmem:[#allocation2 + $0x8] sm:$0xff] %vm446, %v1057
        %1062 = vst.msk [vmem:[#allocation2 + $0x10] sm:$0xff] %vm446, %v1058
        %1063 = vst.msk [vmem:[#allocation2 + $0x18] sm:$0xff] %vm446, %v1059
        // Predicated region
        $region49: #{forward.9} parent=43 // pred_check
          %p1064 = pneg %p381
        $region50: #{forward.9} parent=43 // pred_check_branch
          %1066 = sbr.rel (%p1064) target = $region52
        $region51: #{forward.9} parent=43 // pred_region
          %v1067 = vld [vmem:[#allocation2] sm:$0xff]
          %v1068 = vld [vmem:[#allocation2 + $0x8] sm:$0xff]
          %v1069 = vld [vmem:[#allocation2 + $0x10] sm:$0xff]
          %v1070 = vld [vmem:[#allocation2 + $0x18] sm:$0xff]
          %v1071 = vld [vmem:[%s367] sm:$0x1]
          %v1073 = vlaneseq
          %v1074 = vshrl.u32 %v1073, 7
          %v1075 = vsub.s32 0, %v1074
          %v1076 = vrot.slane %v1071, %v1075
          %v1078 = vadd.f32 %v1067, %v1076
          %v1079 = vadd.f32 %v1068, %v1076
          %v1080 = vadd.f32 %v1069, %v1076
          %v1081 = vadd.f32 %v1070, %v1076
          %vm1082 = vcmp.gt.f32.partialorder %v1078, 0.0
          %vm1083 = vcmp.gt.f32.partialorder %v1079, 0.0
          %vm1084 = vcmp.gt.f32.partialorder %v1080, 0.0
          %vm1085 = vcmp.gt.f32.partialorder %v1081, 0.0
          %v1086 = vmul.f32 %v1078, 0.2
          %v1087 = vmul.f32 %v1079, 0.2
          %v1088 = vmul.f32 %v1080, 0.2
          %v1089 = vmul.f32 %v1081, 0.2
          %v1090 = vsel %vm1082, %v1078, %v1086
          %v1091 = vsel %vm1083, %v1079, %v1087
          %v1092 = vsel %vm1084, %v1080, %v1088
          %v1093 = vsel %vm1085, %v1081, %v1089
          %v1094 = vld [vmem:[%s372] sm:$0xff]
          %v1095 = vld [vmem:[%s372 + $0x8] sm:$0xff]
          %v1096 = vld [vmem:[%s372 + $0x10] sm:$0xff]
          %v1097 = vld [vmem:[%s372 + $0x18] sm:$0xff]
          %v1098 = vld [vmem:[%s376] sm:$0xff]
          %v1099 = vld [vmem:[%s376 + $0x8] sm:$0xff]
          %v1100 = vld [vmem:[%s376 + $0x10] sm:$0xff]
          %v1101 = vld [vmem:[%s376 + $0x18] sm:$0xff]
          %v1102 = vpack.c.bf16 %v1095, %v1094
          %v1103 = vpack.c.bf16 %v1097, %v1096
          %v1104 = vpack.c.bf16 %v1099, %v1098
          %v1105 = vpack.c.bf16 %v1101, %v1100
          %v1106 = vld [vmem:[%s379] sm:$0x1]
          %v1108 = vlaneseq
          %v1109 = vshrl.u32 %v1108, 7
          %v1110 = vsub.s32 0, %v1109
          %v1111 = vrot.slane %v1106, %v1110
          %v1114 = vsel %vm446, %v1102, 0
          %v1117 = vsel %vm446, %v1103, 0
          %1119 = vmatprep.subr.bf16.mxu0 0
          %1120 = vmatpush1.bf16.msra.mxu0 %v1104
          %1121 = vmatprep.subr.bf16.mxu0 0
          %1122 = vmatpush1.bf16.msra.mxu0 %v1105
          %1123 = vmatprep.subr.bf16.mxu0 0
          %1124 = vmatpush1.bf16.msra.mxu0 0
          %1125 = vmatprep.subr.bf16.mxu0 0
          %1126 = vmatpush1.bf16.msra.mxu0 0
          %1127 = vmatprep.subr.bf16.mxu0 0
          %1128 = vmatpush1.bf16.msra.mxu0 0
          %1129 = vmatprep.subr.bf16.mxu0 0
          %1130 = vmatpush1.bf16.msra.mxu0 0
          %1131 = vmatprep.subr.bf16.mxu0 0
          %1132 = vmatpush1.bf16.msra.mxu0 0
          %1133 = vmatprep.subr.bf16.mxu0 0
          %1134 = vmatpush1.bf16.msra.mxu0 0
          %1135 = vmatprep.subr.bf16.mxu0 0
          %1136 = vmatpush1.bf16.msra.mxu0 0
          %1137 = vmatprep.subr.bf16.mxu0 0
          %1138 = vmatpush1.bf16.msra.mxu0 0
          %1139 = vmatprep.subr.bf16.mxu0 0
          %1140 = vmatpush1.bf16.msra.mxu0 0
          %1141 = vmatprep.subr.bf16.mxu0 0
          %1142 = vmatpush1.bf16.msra.mxu0 0
          %1143 = vmatprep.subr.bf16.mxu0 0
          %1144 = vmatpush1.bf16.msra.mxu0 0
          %1145 = vmatprep.subr.bf16.mxu0 0
          %1146 = vmatpush1.bf16.msra.mxu0 0
          %1147 = vmatprep.subr.bf16.mxu0 0
          %1148 = vmatpush1.bf16.msra.mxu0 0
          %1149 = vmatprep.subr.bf16.mxu0 0
          %1150 = vmatpush1.bf16.msra.mxu0 0
          %1151 = vmatprep.mubr.bf16.mxu0 0
          %1152 = vmatmul.mubr.bf16.gmra.mrb[0].mxu0 %v1114
          %v1153 = vpop.f32.mrb[0].mxu0
          %v1154 = vadd.f32 %v1111, %v1153
          %v1155 = vpop.f32.mrb[0].mxu0
          %v1156 = vpop.f32.mrb[0].mxu0
          %v1157 = vadd.f32 %v1111, %v1156
          %v1158 = vpop.f32.mrb[0].mxu0
          %1159 = vmatprep.mubr.bf16.mxu0 0
          %1160 = vmatmul.mubr.bf16.gmra.mrb[0].mxu0 %v1117
          %v1161 = vpop.f32.mrb[0].mxu0
          %v1162 = vadd.f32 %v1111, %v1161
          %v1163 = vpop.f32.mrb[0].mxu0
          %v1164 = vpop.f32.mrb[0].mxu0
          %v1165 = vadd.f32 %v1111, %v1164
          %v1166 = vpop.f32.mrb[0].mxu0
          %1167 = vdwg.mxu0
          %v1168 = vadd.f32 %v1090, %v1154
          %v1169 = vadd.f32 %v1091, %v1157
          %v1170 = vadd.f32 %v1092, %v1162
          %v1171 = vadd.f32 %v1093, %v1165
          %v1172 = vmul.f32 %v1168, 0.70710677
          %v1173 = vmul.f32 %v1169, 0.70710677
          %v1174 = vmul.f32 %v1170, 0.70710677
          %v1175 = vmul.f32 %v1171, 0.70710677
          %1176 = vst.msk [vmem:[%s347] sm:$0xff] %vm446, %v1172
          %1177 = vst.msk [vmem:[%s347 + $0x8] sm:$0xff] %vm446, %v1173
          %1178 = vst.msk [vmem:[%s347 + $0x10] sm:$0xff] %vm446, %v1174
          %1179 = vst.msk [vmem:[%s347 + $0x18] sm:$0xff] %vm446, %v1175
        $region52: #{forward.9} parent=43 // pred_fallthru
          _
        %s1180 = sand.u32 %s209, 1
        %s1181 = scalar_lea.sflag [#allocation4], %s1180
        %s1182 = sand.u32 %s209, 1
        %s1183 = smul.addr %s1182, 32
        %s1184 = scalar_lea.vmem [#allocation3], %s1183
        // Predicated region
        $region53: #{forward.9} parent=43 // pred_check
          %p1185 = pneg %p219
        $region54: #{forward.9} parent=43 // pred_check_branch
          %1187 = sbr.rel (%p1185) target = $region56
        $region55: #{forward.9} parent=43 // pred_region
          %s1189 = ssub.s32 512, 512
          %1190 = vsyncadd %s1181, %s1189
          %s1191 = smul.addr %s25, 4
          %s1192 = sadd.s32 %s26, %s1191
          %s1193 = smul.addr %s1192, 128
          %s1194 = scalar_lea.hbm %s6, %s1193
          %s1195 = sshll.u32 %s1184, 4
          %s1196 = int_to_ptr.vmem [resolvable:$true] %s1195
          %1201 = dma.vmem_to_hbm [thread:$0]  %s1196, 512, %s1194, %s1181, 128, 128, 8
        $region56: #{forward.9} parent=43 // pred_fallthru
          _
      $region44: #{forward.9} parent=5 // pred_fallthru
        _
      %p1202 = scmp.le.s32.totalorder 2, %s15
      // Predicated region
      $region57: #{forward.9} parent=5 // pred_check
        %p1203 = pneg %p1202
      $region58: #{forward.9} parent=5 // pred_check_branch
        %1205 = sbr.rel (%p1203) target = $region60
      $region59: #{forward.9} parent=5 // pred_region
        %s1206 = ssub.s32 %s15, 2
        // Predicated region
        $region61: #{forward.9} parent=59 // pred_check
          %p1207 = pneg %p225
        $region62: #{forward.9} parent=59 // pred_check_branch
          %1209 = sbr.rel (%p1207) target = $region64
        $region63: #{forward.9} parent=59 // pred_region
          %s1210 = sand.u32 %s210, 1
          %s1211 = scalar_lea.sflag [#allocation4], %s1210
          %s1212 = sand.u32 %s210, 1
          %s1213 = smul.addr %s1212, 32
          %s1214 = scalar_lea.vmem [#allocation3], %s1213
          %1215 = dma.done %s1211, 512
        $region64: #{forward.9} parent=59 // pred_fallthru
          _
      $region60: #{forward.9} parent=5 // pred_fallthru
        _
    $region6: #{forward.9} parent=1 // loop_footer
      %s19 = sadd.s32 1, %s15
    $region7: #{forward.9} parent=1 // loop_footer_branch
      %14 = sbr.rel target = $region3
    $region8: #{forward.9} parent=1 // loop_exit
      _
    %1216 = vsyncpa [#allocation4], 1
    %s1217 = scalar_lea.sflag [#allocation4], 1
    %1218 = vsyncpa %s1217, 1

</llo_original>
